<compile_context>
chip_gen: v7x
topology: tpu7x:2x2x1
jax: 0.10.0
libtpu: 0.0.40
codegen_flags: <defaults>
</compile_context>

<pallas_src>
import functools
import math

import jax
import jax.numpy as jnp
from jax.experimental import pallas as pl
from jax.experimental.pallas import tpu as pltpu


def _round_up(x, m):
    return ((x + m - 1) // m) * m


# ----------------------------- Pallas kernel --------------------------------

def _conv_block_kernel(x_ref, w1_ref, s1_ref, b1_ref, w2_ref, s2_ref, b2_ref,
                       o_ref, p1_ref, h_ref, p2_ref, *, H, W, pad_lo):
    """Fused ConvBlock for one image (flattened channels-last layout).

      x_ref  : (FLAT_IN, Cin)    bf16  zero-padded image, flattened (Hp*Wp)+slack
      w1_ref : (9*Cin, CMIDP)    bf16  im2col conv1 weights (Cmid padded to 128)
      s1/b1  : (1, CMIDP)        f32   folded BN1 scale / shift (bias folded)
      w2_ref : (9*CMIDP, COUTP)  bf16  im2col conv2 weights (Cout padded to 128)
      s2/b2  : (1, COUTP)        f32   folded BN2 scale / shift
      o_ref  : (M, COUTP)        f32   M = H*(W+2); wrapper strips pad columns
      p1_ref : (M, 9*Cin)        bf16  VMEM scratch: conv1 im2col patches
      h_ref  : (FLAT2, CMIDP)    bf16  VMEM scratch: padded intermediate
      p2_ref : (M, 9*CMIDP)      bf16  VMEM scratch: conv2 im2col patches
    """
    Wp = W + 2
    M = H * Wp
    cin = x_ref.shape[-1]
    cmid = h_ref.shape[-1]
    flat2 = h_ref.shape[0]
    offs = [ky * Wp + kx for ky in range(3) for kx in range(3)]

    # ---- conv1: build (M, 9*Cin) patches, ONE matmul, fused BN+ReLU --------
    for t, off in enumerate(offs):
        p1_ref[:, t * cin:(t + 1) * cin] = x_ref[off:off + M, :]
    acc1 = jnp.dot(p1_ref[...], w1_ref[...], preferred_element_type=jnp.float32)
    h1 = jnp.maximum(acc1 * s1_ref[...] + b1_ref[...], 0.0)          # f32 epilogue

    # Zero the horizontal-pad columns (flat index mod Wp >= W) so they act as
    # conv2's left/right zero padding.
    col = jax.lax.broadcasted_iota(jnp.int32, (M, 1), 0) % Wp
    h1 = jnp.where(col < W, h1, 0.0)

    # Padded intermediate stays in VMEM.  Interior write is 8-sublane aligned
    # and 128-lane dense; only the small static borders are zeroed each step.
    h_ref[0:pad_lo, :] = jnp.zeros((pad_lo, cmid), h_ref.dtype)
    h_ref[pad_lo + M:flat2, :] = jnp.zeros((flat2 - pad_lo - M, cmid), h_ref.dtype)
    h_ref[pad_lo:pad_lo + M, :] = h1.astype(h_ref.dtype)

    # ---- conv2: same structure, reading the padded VMEM intermediate -------
    shift = pad_lo - (Wp + 1)
    for t, off in enumerate(offs):
        p2_ref[:, t * cmid:(t + 1) * cmid] = h_ref[off + shift:off + shift + M, :]
    acc2 = jnp.dot(p2_ref[...], w2_ref[...], preferred_element_type=jnp.float32)
    o_ref[...] = jnp.maximum(acc2 * s2_ref[...] + b2_ref[...], 0.0).astype(o_ref.dtype)


# ------------------------------ wrapper --------------------------------------

def bottleneck_forward(x_nchw, kparams):
    """Bottleneck.forward: NCHW float32 in -> NCHW float32 out."""
    B, Cin, H, W = x_nchw.shape
    Hp, Wp = H + 2, W + 2
    M = H * Wp                                   # flat output rows (incl. pad cols)
    flat_in = _round_up(M + 2 * Wp + 2, 8)       # slack so tap slices stay in-bounds
    pad_lo = _round_up(Wp + 1, 8)                # 8-aligned top border of h scratch
    flat2 = _round_up(M + Wp + pad_lo + 1, 8)

    w1, s1, b1 = kparams["w1"], kparams["s1"], kparams["b1"]
    w2, s2, b2 = kparams["w2"], kparams["s2"], kparams["b2"]
    cmidp, coutp = w1.shape[-1], w2.shape[-1]
    cout = kparams["out_ch"]

    # NCHW -> flattened padded channels-last; cast ONCE to bf16 (halves DMA).
    x = jnp.transpose(x_nchw, (0, 2, 3, 1)).astype(jnp.bfloat16)
    x = jnp.pad(x, ((0, 0), (1, 1), (1, 1), (0, 0)))            # spatial pad=1
    x = x.reshape(B, Hp * Wp, Cin)
    x = jnp.pad(x, ((0, 0), (0, flat_in - Hp * Wp), (0, 0)))    # tail slack (zeros)

    out = pl.pallas_call(
        functools.partial(_conv_block_kernel, H=H, W=W, pad_lo=pad_lo),
        out_shape=jax.ShapeDtypeStruct((B, M, coutp), x_nchw.dtype),
        grid_spec=pltpu.PrefetchScalarGridSpec(
            num_scalar_prefetch=0,
            grid=(B,),
            in_specs=[
                pl.BlockSpec((None, flat_in, Cin), lambda b: (b, 0, 0)),
                pl.BlockSpec(w1.shape, lambda b: (0, 0)),
                pl.BlockSpec(s1.shape, lambda b: (0, 0)),
                pl.BlockSpec(b1.shape, lambda b: (0, 0)),
                pl.BlockSpec(w2.shape, lambda b: (0, 0)),
                pl.BlockSpec(s2.shape, lambda b: (0, 0)),
                pl.BlockSpec(b2.shape, lambda b: (0, 0)),
            ],
            out_specs=pl.BlockSpec((None, M, coutp), lambda b: (b, 0, 0)),
            scratch_shapes=[
                pltpu.VMEM((M, 9 * Cin), jnp.bfloat16),     # conv1 im2col patches
                pltpu.VMEM((flat2, cmidp), jnp.bfloat16),   # padded intermediate
                pltpu.VMEM((M, 9 * cmidp), jnp.bfloat16),   # conv2 im2col patches
            ],
        ),
        compiler_params=pltpu.CompilerParams(
            dimension_semantics=("parallel",),
            vmem_limit_bytes=32 * 1024 * 1024),
    )(x, w1, s1, b1, w2, s2, b2)

    # Strip the horizontal pad columns and the channel padding, back to NCHW.
    out = out.reshape(B, H, Wp, coutp)[:, :, :W, :cout]
    return jnp.transpose(out, (0, 3, 1, 2))


# --------------------------- parameters --------------------------------------

def init_raw_params(key, in_ch, out_ch):
    """Torch-style params: Conv2d(.,.,3,pad=1) + BatchNorm2d, twice."""
    ks = jax.random.split(key, 2)

    def conv_init(k, o, i):
        bound = 1.0 / math.sqrt(i * 9)
        kw, kb = jax.random.split(k)
        w = jax.random.uniform(kw, (o, i, 3, 3), jnp.float32, -bound, bound)
        b = jax.random.uniform(kb, (o,), jnp.float32, -bound, bound)
        return w, b

    w1, b1 = conv_init(ks[0], out_ch, in_ch)
    w2, b2 = conv_init(ks[1], out_ch, out_ch)

    def bn(c):
        return dict(gamma=jnp.ones((c,), jnp.float32),
                    beta=jnp.zeros((c,), jnp.float32),
                    mean=jnp.zeros((c,), jnp.float32),
                    var=jnp.ones((c,), jnp.float32))

    return dict(w1=w1, b1=b1, bn1=bn(out_ch), w2=w2, b2=b2, bn2=bn(out_ch))


def fold_for_kernel(raw, eps=1e-5, lane=128):
    """Fold conv bias + eval-mode BN into per-channel scale/shift; build
    lane-padded im2col weights (9*Cin_pad, Cout_pad) in bf16 for the MXU."""
    def fold(w, b, bn, ci_pad, co_pad):
        o, i = w.shape[0], w.shape[1]
        scale = bn["gamma"] * jax.lax.rsqrt(bn["var"] + eps)
        shift = bn["beta"] + (b - bn["mean"]) * scale
        taps = jnp.transpose(w, (2, 3, 1, 0))                         # (3,3,I,O)
        taps = jnp.pad(taps, ((0, 0), (0, 0), (0, ci_pad - i), (0, co_pad - o)))
        taps = taps.reshape(9 * ci_pad, co_pad).astype(jnp.bfloat16)
        s = jnp.pad(scale, (0, co_pad - o)).reshape(1, -1)
        sh = jnp.pad(shift, (0, co_pad - o)).reshape(1, -1)
        return taps, s, sh

    in_ch = raw["w1"].shape[1]
    mid_ch = raw["w1"].shape[0]
    out_ch = raw["w2"].shape[0]
    cmidp = _round_up(mid_ch, lane)
    coutp = _round_up(out_ch, lane)
    w1, s1, b1 = fold(raw["w1"], raw["b1"], raw["bn1"], in_ch, cmidp)
    w2, s2, b2 = fold(raw["w2"], raw["b2"], raw["bn2"], cmidp, coutp)
    return dict(w1=w1, s1=s1, b1=b1, w2=w2, s2=s2, b2=b2, out_ch=int(out_ch))


# --------------------------- pure-JAX reference -------------------------------

def reference_forward(x, raw, eps=1e-5):
    """Pure-JAX reference with the same bf16-operand / f32-accum contract."""
    def conv_bn_relu(x, w, b, bn):
        y = jax.lax.conv_general_dilated(
            x.astype(jnp.bfloat16), w.astype(jnp.bfloat16),
            window_strides=(1, 1), padding=((1, 1), (1, 1)),
            dimension_numbers=("NCHW", "OIHW", "NCHW"),
            preferred_element_type=jnp.float32)
        scale = bn["gamma"] * jax.lax.rsqrt(bn["var"] + eps)
        shift = bn["beta"] + (b - bn["mean"]) * scale
        y = y * scale[None, :, None, None] + shift[None, :, None, None]
        return jnp.maximum(y, 0.0)

    y = conv_bn_relu(x, raw["w1"], raw["b1"], raw["bn1"])
    y = conv_bn_relu(y, raw["w2"], raw["b2"], raw["bn2"])
    return y


if __name__ == "__main__":
    key = jax.random.PRNGKey(0)
    B, in_ch, out_ch, H, W = 2, 4, 8, 16, 16

    k_x, k_p = jax.random.split(key)
    x = jax.random.normal(k_x, (B, in_ch, H, W), jnp.float32)
    raw = init_raw_params(k_p, in_ch, out_ch)
    kparams = fold_for_kernel(raw)

    y = jax.block_until_ready(bottleneck_forward(x, kparams))
    assert y.shape == (B, out_ch, H, W) and y.dtype == x.dtype, (y.shape, y.dtype)
    assert bool(jnp.isfinite(y).all())

    y_ref = jax.block_until_ready(reference_forward(x, raw))
    max_err = float(jnp.max(jnp.abs(y - y_ref)))
    assert bool(jnp.allclose(y, y_ref, atol=5e-2, rtol=5e-2)), max_err

    print("KERNEL_OK")
</pallas_src>

<mosaic_0001>
module attributes {stable_mosaic.version = 11 : i64} {
  func.func @_conv_block_kernel(%arg0: i32, %arg1: memref<1x328x4xbf16, #tpu.memory_space<vmem>>, %arg2: memref<36x128xbf16, #tpu.memory_space<vmem>>, %arg3: memref<1x128xf32, #tpu.memory_space<vmem>>, %arg4: memref<1x128xf32, #tpu.memory_space<vmem>>, %arg5: memref<1152x128xbf16, #tpu.memory_space<vmem>>, %arg6: memref<1x128xf32, #tpu.memory_space<vmem>>, %arg7: memref<1x128xf32, #tpu.memory_space<vmem>>, %arg8: memref<1x288x128xf32, #tpu.memory_space<vmem>>, %arg9: memref<288x36xbf16, #tpu.memory_space<vmem>>, %arg10: memref<336x128xbf16, #tpu.memory_space<vmem>>, %arg11: memref<288x1152xbf16, #tpu.memory_space<vmem>>) attributes {dimension_semantics = [#tpu.dimension_semantics<parallel>], iteration_bounds = array<i64: 2>, scalar_prefetch = 0 : i64, scratch_operands = 3 : i64, tpu.core_type = #tpu.core_type<tc>, window_params = [{transform_indices = @transform_0, window_bounds = array<i64: 1, 328, 4>}, {pipeline_mode = #tpu.pipeline_mode<synchronous>, transform_indices = @transform_1, window_bounds = array<i64: 36, 128>}, {pipeline_mode = #tpu.pipeline_mode<synchronous>, transform_indices = @transform_2, window_bounds = array<i64: 1, 128>}, {pipeline_mode = #tpu.pipeline_mode<synchronous>, transform_indices = @transform_3, window_bounds = array<i64: 1, 128>}, {pipeline_mode = #tpu.pipeline_mode<synchronous>, transform_indices = @transform_4, window_bounds = array<i64: 1152, 128>}, {pipeline_mode = #tpu.pipeline_mode<synchronous>, transform_indices = @transform_5, window_bounds = array<i64: 1, 128>}, {pipeline_mode = #tpu.pipeline_mode<synchronous>, transform_indices = @transform_6, window_bounds = array<i64: 1, 128>}, {transform_indices = @transform_7, window_bounds = array<i64: 1, 288, 128>}]} {
    %c0 = arith.constant 0 : index
    %c0_0 = arith.constant 0 : index
    %c0_1 = arith.constant 0 : index
    %0 = vector.load %arg1[%c0, %c0_0, %c0_1] : memref<1x328x4xbf16, #tpu.memory_space<vmem>>, vector<1x288x4xbf16>
    %1 = vector.shape_cast %0 : vector<1x288x4xbf16> to vector<288x4xbf16>
    %c0_2 = arith.constant 0 : index
    %c0_3 = arith.constant 0 : index
    %2 = vector.load %arg9[%c0_2, %c0_3] : memref<288x36xbf16, #tpu.memory_space<vmem>>, vector<288x4xbf16>
    tpu.vector_store %arg9[%c0_2, %c0_3], %1 {strides = array<i32>} : memref<288x36xbf16, #tpu.memory_space<vmem>>, vector<288x4xbf16>,
    %c0_4 = arith.constant 0 : index
    %c1 = arith.constant 1 : index
    %c0_5 = arith.constant 0 : index
    %3 = vector.load %arg1[%c0_4, %c1, %c0_5] : memref<1x328x4xbf16, #tpu.memory_space<vmem>>, vector<1x288x4xbf16>
    %4 = vector.shape_cast %3 : vector<1x288x4xbf16> to vector<288x4xbf16>
    %c0_6 = arith.constant 0 : index
    %c4 = arith.constant 4 : index
    %5 = vector.load %arg9[%c0_6, %c4] : memref<288x36xbf16, #tpu.memory_space<vmem>>, vector<288x4xbf16>
    tpu.vector_store %arg9[%c0_6, %c4], %4 {strides = array<i32>} : memref<288x36xbf16, #tpu.memory_space<vmem>>, vector<288x4xbf16>,
    %c0_7 = arith.constant 0 : index
    %c2 = arith.constant 2 : index
    %c0_8 = arith.constant 0 : index
    %6 = vector.load %arg1[%c0_7, %c2, %c0_8] : memref<1x328x4xbf16, #tpu.memory_space<vmem>>, vector<1x288x4xbf16>
    %7 = vector.shape_cast %6 : vector<1x288x4xbf16> to vector<288x4xbf16>
    %c0_9 = arith.constant 0 : index
    %c8 = arith.constant 8 : index
    %8 = vector.load %arg9[%c0_9, %c8] : memref<288x36xbf16, #tpu.memory_space<vmem>>, vector<288x4xbf16>
    tpu.vector_store %arg9[%c0_9, %c8], %7 {strides = array<i32>} : memref<288x36xbf16, #tpu.memory_space<vmem>>, vector<288x4xbf16>,
    %c0_10 = arith.constant 0 : index
    %c18 = arith.constant 18 : index
    %c0_11 = arith.constant 0 : index
    %9 = vector.load %arg1[%c0_10, %c18, %c0_11] : memref<1x328x4xbf16, #tpu.memory_space<vmem>>, vector<1x288x4xbf16>
    %10 = vector.shape_cast %9 : vector<1x288x4xbf16> to vector<288x4xbf16>
    %c0_12 = arith.constant 0 : index
    %c12 = arith.constant 12 : index
    %11 = vector.load %arg9[%c0_12, %c12] : memref<288x36xbf16, #tpu.memory_space<vmem>>, vector<288x4xbf16>
    tpu.vector_store %arg9[%c0_12, %c12], %10 {strides = array<i32>} : memref<288x36xbf16, #tpu.memory_space<vmem>>, vector<288x4xbf16>,
    %c0_13 = arith.constant 0 : index
    %c19 = arith.constant 19 : index
    %c0_14 = arith.constant 0 : index
    %12 = vector.load %arg1[%c0_13, %c19, %c0_14] : memref<1x328x4xbf16, #tpu.memory_space<vmem>>, vector<1x288x4xbf16>
    %13 = vector.shape_cast %12 : vector<1x288x4xbf16> to vector<288x4xbf16>
    %c0_15 = arith.constant 0 : index
    %c16 = arith.constant 16 : index
    %14 = vector.load %arg9[%c0_15, %c16] : memref<288x36xbf16, #tpu.memory_space<vmem>>, vector<288x4xbf16>
    tpu.vector_store %arg9[%c0_15, %c16], %13 {strides = array<i32>} : memref<288x36xbf16, #tpu.memory_space<vmem>>, vector<288x4xbf16>,
    %c0_16 = arith.constant 0 : index
    %c20 = arith.constant 20 : index
    %c0_17 = arith.constant 0 : index
    %15 = vector.load %arg1[%c0_16, %c20, %c0_17] : memref<1x328x4xbf16, #tpu.memory_space<vmem>>, vector<1x288x4xbf16>
    %16 = vector.shape_cast %15 : vector<1x288x4xbf16> to vector<288x4xbf16>
    %c0_18 = arith.constant 0 : index
    %c20_19 = arith.constant 20 : index
    %17 = vector.load %arg9[%c0_18, %c20_19] : memref<288x36xbf16, #tpu.memory_space<vmem>>, vector<288x4xbf16>
    tpu.vector_store %arg9[%c0_18, %c20_19], %16 {strides = array<i32>} : memref<288x36xbf16, #tpu.memory_space<vmem>>, vector<288x4xbf16>,
    %c0_20 = arith.constant 0 : index
    %c36 = arith.constant 36 : index
    %c0_21 = arith.constant 0 : index
    %18 = vector.load %arg1[%c0_20, %c36, %c0_21] : memref<1x328x4xbf16, #tpu.memory_space<vmem>>, vector<1x288x4xbf16>
    %19 = vector.shape_cast %18 : vector<1x288x4xbf16> to vector<288x4xbf16>
    %c0_22 = arith.constant 0 : index
    %c24 = arith.constant 24 : index
    %20 = vector.load %arg9[%c0_22, %c24] : memref<288x36xbf16, #tpu.memory_space<vmem>>, vector<288x4xbf16>
    tpu.vector_store %arg9[%c0_22, %c24], %19 {strides = array<i32>} : memref<288x36xbf16, #tpu.memory_space<vmem>>, vector<288x4xbf16>,
    %c0_23 = arith.constant 0 : index
    %c37 = arith.constant 37 : index
    %c0_24 = arith.constant 0 : index
    %21 = vector.load %arg1[%c0_23, %c37, %c0_24] : memref<1x328x4xbf16, #tpu.memory_space<vmem>>, vector<1x288x4xbf16>
    %22 = vector.shape_cast %21 : vector<1x288x4xbf16> to vector<288x4xbf16>
    %c0_25 = arith.constant 0 : index
    %c28 = arith.constant 28 : index
    %23 = vector.load %arg9[%c0_25, %c28] : memref<288x36xbf16, #tpu.memory_space<vmem>>, vector<288x4xbf16>
    tpu.vector_store %arg9[%c0_25, %c28], %22 {strides = array<i32>} : memref<288x36xbf16, #tpu.memory_space<vmem>>, vector<288x4xbf16>,
    %c0_26 = arith.constant 0 : index
    %c38 = arith.constant 38 : index
    %c0_27 = arith.constant 0 : index
    %24 = vector.load %arg1[%c0_26, %c38, %c0_27] : memref<1x328x4xbf16, #tpu.memory_space<vmem>>, vector<1x288x4xbf16>
    %25 = vector.shape_cast %24 : vector<1x288x4xbf16> to vector<288x4xbf16>
    %c0_28 = arith.constant 0 : index
    %c32 = arith.constant 32 : index
    %26 = vector.load %arg9[%c0_28, %c32] : memref<288x36xbf16, #tpu.memory_space<vmem>>, vector<288x4xbf16>
    tpu.vector_store %arg9[%c0_28, %c32], %25 {strides = array<i32>} : memref<288x36xbf16, #tpu.memory_space<vmem>>, vector<288x4xbf16>,
    %c0_29 = arith.constant 0 : index
    %c0_30 = arith.constant 0 : index
    %27 = vector.load %arg9[%c0_29, %c0_30] : memref<288x36xbf16, #tpu.memory_space<vmem>>, vector<288x36xbf16>
    %c0_31 = arith.constant 0 : index
    %c0_32 = arith.constant 0 : index
    %28 = vector.load %arg2[%c0_31, %c0_32] : memref<36x128xbf16, #tpu.memory_space<vmem>>, vector<36x128xbf16>
    %cst = arith.constant dense<0.000000e+00> : vector<288x128xf32>
    %29 = tpu.matmul %27, %28, %cst {dimension_numbers = #tpu.dot_dimension_numbers<[1], [0], [0], [1], [0, 0, 1, 1], [], []>} : vector<288x36xbf16>, vector<36x128xbf16>, vector<288x128xf32> -> vector<288x128xf32>
    %c0_33 = arith.constant 0 : index
    %c0_34 = arith.constant 0 : index
    %30 = vector.load %arg3[%c0_33, %c0_34] : memref<1x128xf32, #tpu.memory_space<vmem>>, vector<1x128xf32>
    %31 = vector.broadcast %30 : vector<1x128xf32> to vector<288x128xf32>
    %32 = arith.mulf %29, %31 : vector<288x128xf32>
    %c0_35 = arith.constant 0 : index
    %c0_36 = arith.constant 0 : index
    %33 = vector.load %arg4[%c0_35, %c0_36] : memref<1x128xf32, #tpu.memory_space<vmem>>, vector<1x128xf32>
    %34 = vector.broadcast %33 : vector<1x128xf32> to vector<288x128xf32>
    %35 = arith.addf %32, %34 : vector<288x128xf32>
    %cst_37 = arith.constant 0.000000e+00 : f32
    %36 = vector.broadcast %cst_37 : f32 to vector<288x128xf32>
    %37 = arith.maximumf %35, %36 : vector<288x128xf32>
    %38 = tpu.iota {dimensions = array<i32: 0>} : vector<288x1xi32>
    %c18_i32 = arith.constant 18 : i32
    %c0_i32 = arith.constant 0 : i32
    %39 = arith.cmpi eq, %c18_i32, %c0_i32 : i32
    %c1_i32 = arith.constant 1 : i32
    %40 = arith.select %39, %c1_i32, %c18_i32 : i32
    %41 = vector.broadcast %40 : i32 to vector<288x1xi32>
    %42 = arith.remsi %38, %41 : vector<288x1xi32>
    %c0_i32_38 = arith.constant 0 : i32
    %43 = vector.broadcast %c0_i32_38 : i32 to vector<288x1xi32>
    %44 = arith.cmpi ne, %42, %43 : vector<288x1xi32>
    %c0_i32_39 = arith.constant 0 : i32
    %45 = vector.broadcast %c0_i32_39 : i32 to vector<288x1xi32>
    %46 = arith.cmpi slt, %42, %45 : vector<288x1xi32>
    %c0_i32_40 = arith.constant 0 : i32
    %47 = arith.cmpi slt, %40, %c0_i32_40 : i32
    %48 = vector.broadcast %47 : i1 to vector<288x1xi1>
    %49 = vector.broadcast %48 : vector<288x1xi1> to vector<288x1xi1>
    %50 = arith.xori %46, %49 : vector<288x1xi1>
    %51 = arith.andi %50, %44 : vector<288x1xi1>
    %52 = vector.broadcast %40 : i32 to vector<288x1xi32>
    %53 = arith.addi %42, %52 : vector<288x1xi32>
    %54 = arith.select %51, %53, %42 : vector<288x1xi1>, vector<288x1xi32>
    %c16_i32 = arith.constant 16 : i32
    %55 = vector.broadcast %c16_i32 : i32 to vector<288x1xi32>
    %56 = arith.cmpi slt, %54, %55 : vector<288x1xi32>
    %cst_41 = arith.constant 0.000000e+00 : f32
    %57 = vector.shape_cast %56 : vector<288x1xi1> to vector<288x1xi1>
    %58 = vector.broadcast %57 : vector<288x1xi1> to vector<288x128xi1>
    %59 = vector.broadcast %cst_41 : f32 to vector<288x128xf32>
    %60 = arith.select %58, %37, %59 : vector<288x128xi1>, vector<288x128xf32>
    %cst_42 = arith.constant 0.000000e+00 : bf16
    %61 = vector.broadcast %cst_42 : bf16 to vector<24x128xbf16>
    %c0_43 = arith.constant 0 : index
    %c0_44 = arith.constant 0 : index
    %62 = vector.load %arg10[%c0_43, %c0_44] : memref<336x128xbf16, #tpu.memory_space<vmem>>, vector<24x128xbf16>
    tpu.vector_store %arg10[%c0_43, %c0_44], %61 {strides = array<i32>} : memref<336x128xbf16, #tpu.memory_space<vmem>>, vector<24x128xbf16>,
    %cst_45 = arith.constant 0.000000e+00 : bf16
    %63 = vector.broadcast %cst_45 : bf16 to vector<24x128xbf16>
    %c312 = arith.constant 312 : index
    %c0_46 = arith.constant 0 : index
    %64 = vector.load %arg10[%c312, %c0_46] : memref<336x128xbf16, #tpu.memory_space<vmem>>, vector<24x128xbf16>
    tpu.vector_store %arg10[%c312, %c0_46], %63 {strides = array<i32>} : memref<336x128xbf16, #tpu.memory_space<vmem>>, vector<24x128xbf16>,
    %65 = arith.truncf %60 : vector<288x128xf32> to vector<288x128xbf16>
    %c24_47 = arith.constant 24 : index
    %c0_48 = arith.constant 0 : index
    %66 = vector.load %arg10[%c24_47, %c0_48] : memref<336x128xbf16, #tpu.memory_space<vmem>>, vector<288x128xbf16>
    tpu.vector_store %arg10[%c24_47, %c0_48], %65 {strides = array<i32>} : memref<336x128xbf16, #tpu.memory_space<vmem>>, vector<288x128xbf16>,
    %c5 = arith.constant 5 : index
    %c0_49 = arith.constant 0 : index
    %67 = vector.load %arg10[%c5, %c0_49] : memref<336x128xbf16, #tpu.memory_space<vmem>>, vector<288x128xbf16>
    %c0_50 = arith.constant 0 : index
    %c0_51 = arith.constant 0 : index
    %68 = vector.load %arg11[%c0_50, %c0_51] : memref<288x1152xbf16, #tpu.memory_space<vmem>>, vector<288x128xbf16>
    tpu.vector_store %arg11[%c0_50, %c0_51], %67 {strides = array<i32>} : memref<288x1152xbf16, #tpu.memory_space<vmem>>, vector<288x128xbf16>,
    %c6 = arith.constant 6 : index
    %c0_52 = arith.constant 0 : index
    %69 = vector.load %arg10[%c6, %c0_52] : memref<336x128xbf16, #tpu.memory_space<vmem>>, vector<288x128xbf16>
    %c0_53 = arith.constant 0 : index
    %c128 = arith.constant 128 : index
    %70 = vector.load %arg11[%c0_53, %c128] : memref<288x1152xbf16, #tpu.memory_space<vmem>>, vector<288x128xbf16>
    tpu.vector_store %arg11[%c0_53, %c128], %69 {strides = array<i32>} : memref<288x1152xbf16, #tpu.memory_space<vmem>>, vector<288x128xbf16>,
    %c7 = arith.constant 7 : index
    %c0_54 = arith.constant 0 : index
    %71 = vector.load %arg10[%c7, %c0_54] : memref<336x128xbf16, #tpu.memory_space<vmem>>, vector<288x128xbf16>
    %c0_55 = arith.constant 0 : index
    %c256 = arith.constant 256 : index
    %72 = vector.load %arg11[%c0_55, %c256] : memref<288x1152xbf16, #tpu.memory_space<vmem>>, vector<288x128xbf16>
    tpu.vector_store %arg11[%c0_55, %c256], %71 {strides = array<i32>} : memref<288x1152xbf16, #tpu.memory_space<vmem>>, vector<288x128xbf16>,
    %c23 = arith.constant 23 : index
    %c0_56 = arith.constant 0 : index
    %73 = vector.load %arg10[%c23, %c0_56] : memref<336x128xbf16, #tpu.memory_space<vmem>>, vector<288x128xbf16>
    %c0_57 = arith.constant 0 : index
    %c384 = arith.constant 384 : index
    %74 = vector.load %arg11[%c0_57, %c384] : memref<288x1152xbf16, #tpu.memory_space<vmem>>, vector<288x128xbf16>
    tpu.vector_store %arg11[%c0_57, %c384], %73 {strides = array<i32>} : memref<288x1152xbf16, #tpu.memory_space<vmem>>, vector<288x128xbf16>,
    %c24_58 = arith.constant 24 : index
    %c0_59 = arith.constant 0 : index
    %75 = vector.load %arg10[%c24_58, %c0_59] : memref<336x128xbf16, #tpu.memory_space<vmem>>, vector<288x128xbf16>
    %c0_60 = arith.constant 0 : index
    %c512 = arith.constant 512 : index
    %76 = vector.load %arg11[%c0_60, %c512] : memref<288x1152xbf16, #tpu.memory_space<vmem>>, vector<288x128xbf16>
    tpu.vector_store %arg11[%c0_60, %c512], %75 {strides = array<i32>} : memref<288x1152xbf16, #tpu.memory_space<vmem>>, vector<288x128xbf16>,
    %c25 = arith.constant 25 : index
    %c0_61 = arith.constant 0 : index
    %77 = vector.load %arg10[%c25, %c0_61] : memref<336x128xbf16, #tpu.memory_space<vmem>>, vector<288x128xbf16>
    %c0_62 = arith.constant 0 : index
    %c640 = arith.constant 640 : index
    %78 = vector.load %arg11[%c0_62, %c640] : memref<288x1152xbf16, #tpu.memory_space<vmem>>, vector<288x128xbf16>
    tpu.vector_store %arg11[%c0_62, %c640], %77 {strides = array<i32>} : memref<288x1152xbf16, #tpu.memory_space<vmem>>, vector<288x128xbf16>,
    %c41 = arith.constant 41 : index
    %c0_63 = arith.constant 0 : index
    %79 = vector.load %arg10[%c41, %c0_63] : memref<336x128xbf16, #tpu.memory_space<vmem>>, vector<288x128xbf16>
    %c0_64 = arith.constant 0 : index
    %c768 = arith.constant 768 : index
    %80 = vector.load %arg11[%c0_64, %c768] : memref<288x1152xbf16, #tpu.memory_space<vmem>>, vector<288x128xbf16>
    tpu.vector_store %arg11[%c0_64, %c768], %79 {strides = array<i32>} : memref<288x1152xbf16, #tpu.memory_space<vmem>>, vector<288x128xbf16>,
    %c42 = arith.constant 42 : index
    %c0_65 = arith.constant 0 : index
    %81 = vector.load %arg10[%c42, %c0_65] : memref<336x128xbf16, #tpu.memory_space<vmem>>, vector<288x128xbf16>
    %c0_66 = arith.constant 0 : index
    %c896 = arith.constant 896 : index
    %82 = vector.load %arg11[%c0_66, %c896] : memref<288x1152xbf16, #tpu.memory_space<vmem>>, vector<288x128xbf16>
    tpu.vector_store %arg11[%c0_66, %c896], %81 {strides = array<i32>} : memref<288x1152xbf16, #tpu.memory_space<vmem>>, vector<288x128xbf16>,
    %c43 = arith.constant 43 : index
    %c0_67 = arith.constant 0 : index
    %83 = vector.load %arg10[%c43, %c0_67] : memref<336x128xbf16, #tpu.memory_space<vmem>>, vector<288x128xbf16>
    %c0_68 = arith.constant 0 : index
    %c1024 = arith.constant 1024 : index
    %84 = vector.load %arg11[%c0_68, %c1024] : memref<288x1152xbf16, #tpu.memory_space<vmem>>, vector<288x128xbf16>
    tpu.vector_store %arg11[%c0_68, %c1024], %83 {strides = array<i32>} : memref<288x1152xbf16, #tpu.memory_space<vmem>>, vector<288x128xbf16>,
    %c0_69 = arith.constant 0 : index
    %c0_70 = arith.constant 0 : index
    %85 = vector.load %arg11[%c0_69, %c0_70] : memref<288x1152xbf16, #tpu.memory_space<vmem>>, vector<288x1152xbf16>
    %c0_71 = arith.constant 0 : index
    %c0_72 = arith.constant 0 : index
    %86 = vector.load %arg5[%c0_71, %c0_72] : memref<1152x128xbf16, #tpu.memory_space<vmem>>, vector<1152x128xbf16>
    %cst_73 = arith.constant dense<0.000000e+00> : vector<288x128xf32>
    %87 = tpu.matmul %85, %86, %cst_73 {dimension_numbers = #tpu.dot_dimension_numbers<[1], [0], [0], [1], [0, 0, 1, 1], [], []>} : vector<288x1152xbf16>, vector<1152x128xbf16>, vector<288x128xf32> -> vector<288x128xf32>
    %c0_74 = arith.constant 0 : index
    %c0_75 = arith.constant 0 : index
    %88 = vector.load %arg6[%c0_74, %c0_75] : memref<1x128xf32, #tpu.memory_space<vmem>>, vector<1x128xf32>
    %89 = vector.broadcast %88 : vector<1x128xf32> to vector<288x128xf32>
    %90 = arith.mulf %87, %89 : vector<288x128xf32>
    %c0_76 = arith.constant 0 : index
    %c0_77 = arith.constant 0 : index
    %91 = vector.load %arg7[%c0_76, %c0_77] : memref<1x128xf32, #tpu.memory_space<vmem>>, vector<1x128xf32>
    %92 = vector.broadcast %91 : vector<1x128xf32> to vector<288x128xf32>
    %93 = arith.addf %90, %92 : vector<288x128xf32>
    %cst_78 = arith.constant 0.000000e+00 : f32
    %94 = vector.broadcast %cst_78 : f32 to vector<288x128xf32>
    %95 = arith.maximumf %93, %94 : vector<288x128xf32>
    %c0_79 = arith.constant 0 : index
    %c0_80 = arith.constant 0 : index
    %c0_81 = arith.constant 0 : index
    %96 = vector.load %arg8[%c0_79, %c0_80, %c0_81] : memref<1x288x128xf32, #tpu.memory_space<vmem>>, vector<1x288x128xf32>
    %97 = vector.shape_cast %96 : vector<1x288x128xf32> to vector<288x128xf32>
    %98 = vector.shape_cast %95 : vector<288x128xf32> to vector<1x288x128xf32>
    tpu.vector_store %arg8[%c0_79, %c0_80, %c0_81], %98 {strides = array<i32>} : memref<1x288x128xf32, #tpu.memory_space<vmem>>, vector<1x288x128xf32>,
    return
  }
  func.func @transform_0(%arg0: i32) -> (i32, i32, i32) {
    %c0_i32 = arith.constant 0 : i32
    %c0_i32_0 = arith.constant 0 : i32
    %c0_i32_1 = arith.constant 0 : i32
    return %arg0, %c0_i32, %c0_i32_0 : i32, i32, i32
  }
  func.func @transform_1(%arg0: i32) -> (i32, i32) {
    %c0_i32 = arith.constant 0 : i32
    %c0_i32_0 = arith.constant 0 : i32
    %c0_i32_1 = arith.constant 0 : i32
    return %c0_i32, %c0_i32_0 : i32, i32
  }
  func.func @transform_2(%arg0: i32) -> (i32, i32) {
    %c0_i32 = arith.constant 0 : i32
    %c0_i32_0 = arith.constant 0 : i32
    %c0_i32_1 = arith.constant 0 : i32
    return %c0_i32, %c0_i32_0 : i32, i32
  }
  func.func @transform_3(%arg0: i32) -> (i32, i32) {
    %c0_i32 = arith.constant 0 : i32
    %c0_i32_0 = arith.constant 0 : i32
    %c0_i32_1 = arith.constant 0 : i32
    return %c0_i32, %c0_i32_0 : i32, i32
  }
  func.func @transform_4(%arg0: i32) -> (i32, i32) {
    %c0_i32 = arith.constant 0 : i32
    %c0_i32_0 = arith.constant 0 : i32
    %c0_i32_1 = arith.constant 0 : i32
    return %c0_i32, %c0_i32_0 : i32, i32
  }
  func.func @transform_5(%arg0: i32) -> (i32, i32) {
    %c0_i32 = arith.constant 0 : i32
    %c0_i32_0 = arith.constant 0 : i32
    %c0_i32_1 = arith.constant 0 : i32
    return %c0_i32, %c0_i32_0 : i32, i32
  }
  func.func @transform_6(%arg0: i32) -> (i32, i32) {
    %c0_i32 = arith.constant 0 : i32
    %c0_i32_0 = arith.constant 0 : i32
    %c0_i32_1 = arith.constant 0 : i32
    return %c0_i32, %c0_i32_0 : i32, i32
  }
  func.func @transform_7(%arg0: i32) -> (i32, i32, i32) {
    %c0_i32 = arith.constant 0 : i32
    %c0_i32_0 = arith.constant 0 : i32
    %c0_i32_1 = arith.constant 0 : i32
    return %arg0, %c0_i32, %c0_i32_0 : i32, i32, i32
  }
}

</mosaic_0001>

<llo_original>
// kernel: tpu_custom_call.1
$region0: #{tpu_custom_call.1}
  #allocation0 [shape = 'u32[]', space=smem, size = 0x4, offset = 0x4, fixed_abs, tag = 'smem constant byte address 0x4 - core index']
  #allocation1 [shape = 'u32[144,128]{1,0:T(1,128)}', space=vmem, size = 0x12000, scoped, tag = 'internal scratch']
  #allocation2 [shape = 'bf16[288,36]{1,0:T(16,128)(2,1)}', space=vmem, size = 0x12000, scoped, tag = 'scratch operand']
  #allocation3 [shape = 'bf16[336,128]{1,0:T(16,128)(2,1)}', space=vmem, size = 0x15000, scoped, tag = 'scratch operand']
  #allocation4 [shape = 'bf16[288,1152]{1,0:T(16,128)(2,1)}', space=vmem, size = 0xa2000, scoped, tag = 'scratch operand']
  %s0 = inlined_call_operand.vmem [shape: bf16[2,328,4], index: 0, kind: input, shape index: {}]
  %s1 = inlined_call_operand.vmem [shape: bf16[36,128], index: 1, kind: input, shape index: {}]
  %s2 = inlined_call_operand.vmem [shape: f32[1,128], index: 2, kind: input, shape index: {}]
  %s3 = inlined_call_operand.vmem [shape: f32[1,128], index: 3, kind: input, shape index: {}]
  %s4 = inlined_call_operand.hbm [shape: bf16[1152,128], index: 4, kind: input, shape index: {}]
  %s5 = inlined_call_operand.vmem [shape: f32[1,128], index: 5, kind: input, shape index: {}]
  %s6 = inlined_call_operand.vmem [shape: f32[1,128], index: 6, kind: input, shape index: {}]
  %s7 = inlined_call_operand.hbm [shape: f32[2,288,128], index: 7, kind: output, shape index: {}]
  %s8 = sld [smem:[#allocation0]]
  $region65: #{tpu_custom_call.1} parent=0
    _
  %s10 = ssub.s32 1, %s8
  %s11 = scalar_select 0, %s10, %s8
  $region1: #{tpu_custom_call.1} parent=0
    #allocation5 [shape = 'u8[294912]{0}', space=vmem, size = 0x48000, scoped, tag = 'input window, operand 4, single buffered']
    #allocation6 [shape = 's32[2]{0}', space=sflag, size = 0x8, scoped, tag = 'scoped memory for tpu_custom_call.1']
    #allocation7 [shape = 's32[2]{0}', space=sflag, size = 0x8, scoped, tag = 'scoped memory for tpu_custom_call.1']
    #allocation8 [shape = 'u8[294912]{0}', space=vmem, size = 0x48000, scoped, tag = 'output window, operand 0']
    %12 = vsyncpa [#allocation6], 0
    %13 = vsyncpa [#allocation7], 0
    %s14 = scalar_lea.sflag [#allocation7], 1
    %15 = vsyncpa %s14, 0
    loop: start=0, step=1, limit=4
    $region2: #{tpu_custom_call.1} parent=1 // loop_pre_header
      _
    $region3: #{tpu_custom_call.1} parent=1 // loop_header
      %s17 = sphi 0, %s21
      %p18 = scmp.ge.s32.totalorder %s17, 4
      %s27 = sphi 0, %s29
      %s30 = sphi 0, %s27
      %s31 = sphi 0, %s30
      %s47 = sphi 0, %s31
      %s51 = sphi 0, %s51
      %s53 = sphi 0, %s51
      %s54 = sphi 0, %s53
      %s68 = sphi 0, %s54
      %s72 = sphi 0, %s72
      %s74 = sphi 0, %s72
      %s75 = sphi 0, %s74
      %s89 = sphi 0, %s75
      %s93 = sphi 0, %s93
      %s95 = sphi 0, %s93
      %s96 = sphi 0, %s95
      %s110 = sphi 0, %s96
      %s114 = sphi 0, %s114
      %s116 = sphi 0, %s114
      %s117 = sphi 0, %s116
      %s131 = sphi 0, %s117
      %s135 = sphi 0, %s135
      %s137 = sphi 0, %s135
      %s138 = sphi 0, %s137
      %s152 = sphi 0, %s138
      %s156 = sphi 0, %s156
      %s158 = sphi 0, %s156
      %s159 = sphi 0, %s158
      %s173 = sphi 0, %s159
      %s179 = sphi 0, %s181
      %s182 = sphi 0, %s179
      %s183 = sphi 0, %s182
      %s199 = sphi 0, %s183
    $region4: #{tpu_custom_call.1} parent=1 // loop_header_branch
      %20 = sbr.rel (%p18) target = $region8
    $region5: #{tpu_custom_call.1} parent=1 // loop_body
      %s22 = ssub.s32 %s17, 1
      %s23 = ssub.s32 %s17, 2
      %s24 = sadd.s32 %s17, 1
      %s25 = ssub.s32 %s17, %s24
      %p26 = scmp.eq.s32.totalorder %s25, 0
      %s28 = sadd.s32 %s27, 1
      %s29 = scalar_select %p26, %s27, %s28
      %p32 = pneg %p26
      %p33 = scmp.eq.s32.totalorder %s17, 1
      %p34 = por %p32, %p33
      %p35 = scmp.ne.s32.totalorder %s27, %s30
      %p36 = scmp.eq.s32.totalorder %s17, 0
      %p37 = por %p35, %p36
      %p38 = scmp.ne.s32.totalorder %s27, %s30
      %p39 = scmp.eq.s32.totalorder %s22, 1
      %p40 = por %p38, %p39
      %p41 = scmp.ne.s32.totalorder %s30, %s31
      %p42 = scmp.eq.s32.totalorder %s22, 0
      %p43 = por %p41, %p42
      %p44 = scmp.ne.s32.totalorder %s30, %s31
      %p45 = scmp.eq.s32.totalorder %s23, 1
      %p46 = por %p44, %p45
      %p48 = scmp.ne.s32.totalorder %s31, %s47
      %p49 = scmp.eq.s32.totalorder %s23, 0
      %p50 = por %p48, %p49
      %s52 = sadd.s32 %s51, 1
      %p55 = scmp.eq.s32.totalorder %s17, 1
      %p56 = scmp.ne.s32.totalorder %s51, %s53
      %p57 = scmp.eq.s32.totalorder %s17, 0
      %p58 = por %p56, %p57
      %p59 = scmp.ne.s32.totalorder %s51, %s53
      %p60 = scmp.eq.s32.totalorder %s22, 1
      %p61 = por %p59, %p60
      %p62 = scmp.ne.s32.totalorder %s53, %s54
      %p63 = scmp.eq.s32.totalorder %s22, 0
      %p64 = por %p62, %p63
      %p65 = scmp.ne.s32.totalorder %s53, %s54
      %p66 = scmp.eq.s32.totalorder %s23, 1
      %p67 = por %p65, %p66
      %p69 = scmp.ne.s32.totalorder %s54, %s68
      %p70 = scmp.eq.s32.totalorder %s23, 0
      %p71 = por %p69, %p70
      %s73 = sadd.s32 %s72, 1
      %p76 = scmp.eq.s32.totalorder %s17, 1
      %p77 = scmp.ne.s32.totalorder %s72, %s74
      %p78 = scmp.eq.s32.totalorder %s17, 0
      %p79 = por %p77, %p78
      %p80 = scmp.ne.s32.totalorder %s72, %s74
      %p81 = scmp.eq.s32.totalorder %s22, 1
      %p82 = por %p80, %p81
      %p83 = scmp.ne.s32.totalorder %s74, %s75
      %p84 = scmp.eq.s32.totalorder %s22, 0
      %p85 = por %p83, %p84
      %p86 = scmp.ne.s32.totalorder %s74, %s75
      %p87 = scmp.eq.s32.totalorder %s23, 1
      %p88 = por %p86, %p87
      %p90 = scmp.ne.s32.totalorder %s75, %s89
      %p91 = scmp.eq.s32.totalorder %s23, 0
      %p92 = por %p90, %p91
      %s94 = sadd.s32 %s93, 1
      %p97 = scmp.eq.s32.totalorder %s17, 1
      %p98 = scmp.ne.s32.totalorder %s93, %s95
      %p99 = scmp.eq.s32.totalorder %s17, 0
      %p100 = por %p98, %p99
      %p101 = scmp.ne.s32.totalorder %s93, %s95
      %p102 = scmp.eq.s32.totalorder %s22, 1
      %p103 = por %p101, %p102
      %p104 = scmp.ne.s32.totalorder %s95, %s96
      %p105 = scmp.eq.s32.totalorder %s22, 0
      %p106 = por %p104, %p105
      %p107 = scmp.ne.s32.totalorder %s95, %s96
      %p108 = scmp.eq.s32.totalorder %s23, 1
      %p109 = por %p107, %p108
      %p111 = scmp.ne.s32.totalorder %s96, %s110
      %p112 = scmp.eq.s32.totalorder %s23, 0
      %p113 = por %p111, %p112
      %s115 = sadd.s32 %s114, 1
      %p118 = scmp.eq.s32.totalorder %s17, 1
      %p119 = scmp.ne.s32.totalorder %s114, %s116
      %p120 = scmp.eq.s32.totalorder %s17, 0
      %p121 = por %p119, %p120
      %p122 = scmp.ne.s32.totalorder %s114, %s116
      %p123 = scmp.eq.s32.totalorder %s22, 1
      %p124 = por %p122, %p123
      %p125 = scmp.ne.s32.totalorder %s116, %s117
      %p126 = scmp.eq.s32.totalorder %s22, 0
      %p127 = por %p125, %p126
      %p128 = scmp.ne.s32.totalorder %s116, %s117
      %p129 = scmp.eq.s32.totalorder %s23, 1
      %p130 = por %p128, %p129
      %p132 = scmp.ne.s32.totalorder %s117, %s131
      %p133 = scmp.eq.s32.totalorder %s23, 0
      %p134 = por %p132, %p133
      %s136 = sadd.s32 %s135, 1
      %p139 = scmp.eq.s32.totalorder %s17, 1
      %p140 = scmp.ne.s32.totalorder %s135, %s137
      %p141 = scmp.eq.s32.totalorder %s17, 0
      %p142 = por %p140, %p141
      %p143 = scmp.ne.s32.totalorder %s135, %s137
      %p144 = scmp.eq.s32.totalorder %s22, 1
      %p145 = por %p143, %p144
      %p146 = scmp.ne.s32.totalorder %s137, %s138
      %p147 = scmp.eq.s32.totalorder %s22, 0
      %p148 = por %p146, %p147
      %p149 = scmp.ne.s32.totalorder %s137, %s138
      %p150 = scmp.eq.s32.totalorder %s23, 1
      %p151 = por %p149, %p150
      %p153 = scmp.ne.s32.totalorder %s138, %s152
      %p154 = scmp.eq.s32.totalorder %s23, 0
      %p155 = por %p153, %p154
      %s157 = sadd.s32 %s156, 1
      %p160 = scmp.eq.s32.totalorder %s17, 1
      %p161 = scmp.ne.s32.totalorder %s156, %s158
      %p162 = scmp.eq.s32.totalorder %s17, 0
      %p163 = por %p161, %p162
      %p164 = scmp.ne.s32.totalorder %s156, %s158
      %p165 = scmp.eq.s32.totalorder %s22, 1
      %p166 = por %p164, %p165
      %p167 = scmp.ne.s32.totalorder %s158, %s159
      %p168 = scmp.eq.s32.totalorder %s22, 0
      %p169 = por %p167, %p168
      %p170 = scmp.ne.s32.totalorder %s158, %s159
      %p171 = scmp.eq.s32.totalorder %s23, 1
      %p172 = por %p170, %p171
      %p174 = scmp.ne.s32.totalorder %s159, %s173
      %p175 = scmp.eq.s32.totalorder %s23, 0
      %p176 = por %p174, %p175
      %s177 = ssub.s32 %s17, %s24
      %p178 = scmp.eq.s32.totalorder %s177, 0
      %s180 = sadd.s32 %s179, 1
      %s181 = scalar_select %p178, %s179, %s180
      %p184 = pneg %p178
      %p185 = scmp.eq.s32.totalorder %s17, 1
      %p186 = por %p184, %p185
      %p187 = scmp.ne.s32.totalorder %s179, %s182
      %p188 = scmp.eq.s32.totalorder %s17, 0
      %p189 = por %p187, %p188
      %p190 = scmp.ne.s32.totalorder %s179, %s182
      %p191 = scmp.eq.s32.totalorder %s22, 1
      %p192 = por %p190, %p191
      %p193 = scmp.ne.s32.totalorder %s182, %s183
      %p194 = scmp.eq.s32.totalorder %s22, 0
      %p195 = por %p193, %p194
      %p196 = scmp.ne.s32.totalorder %s182, %s183
      %p197 = scmp.eq.s32.totalorder %s23, 1
      %p198 = por %p196, %p197
      %p200 = scmp.ne.s32.totalorder %s183, %s199
      %p201 = scmp.eq.s32.totalorder %s23, 0
      %p202 = por %p200, %p201
      %p203 = scmp.le.s32.totalorder 1, %s17
      %p204 = scmp.lt.s32.totalorder %s17, 3
      %p205 = pnand %p203, %p204
      %p206 = pneg %p205
      // Predicated region
      $region9: #{tpu_custom_call.1} parent=5 // pred_check
        _
      $region10: #{tpu_custom_call.1} parent=5 // pred_check_branch
        %208 = sbr.rel (%p205) target = $region12
      $region11: #{tpu_custom_call.1} parent=5 // pred_region
        %s209 = ssub.s32 %s17, 1
        // Predicated region
        $region13: #{tpu_custom_call.1} parent=11 // pred_check
          %p210 = pneg %p64
        $region14: #{tpu_custom_call.1} parent=11 // pred_check_branch
          %212 = sbr.rel (%p210) target = $region16
        $region15: #{tpu_custom_call.1} parent=11 // pred_region
          _
        $region16: #{tpu_custom_call.1} parent=11 // pred_fallthru
          _
        // Predicated region
        $region17: #{tpu_custom_call.1} parent=11 // pred_check
          %p213 = pneg %p85
        $region18: #{tpu_custom_call.1} parent=11 // pred_check_branch
          %215 = sbr.rel (%p213) target = $region20
        $region19: #{tpu_custom_call.1} parent=11 // pred_region
          _
        $region20: #{tpu_custom_call.1} parent=11 // pred_fallthru
          _
        // Predicated region
        $region21: #{tpu_custom_call.1} parent=11 // pred_check
          %p216 = pneg %p106
        $region22: #{tpu_custom_call.1} parent=11 // pred_check_branch
          %218 = sbr.rel (%p216) target = $region24
        $region23: #{tpu_custom_call.1} parent=11 // pred_region
          _
        $region24: #{tpu_custom_call.1} parent=11 // pred_fallthru
          _
        // Predicated region
        $region25: #{tpu_custom_call.1} parent=11 // pred_check
          %p219 = pneg %p127
        $region26: #{tpu_custom_call.1} parent=11 // pred_check_branch
          %221 = sbr.rel (%p219) target = $region28
        $region27: #{tpu_custom_call.1} parent=11 // pred_region
          %s223 = ssub.s32 9216, 9216
          %224 = vsyncadd [#allocation6], %s223
          %s225 = sshll.u32 [#allocation5], 4
          %s226 = int_to_ptr.vmem [resolvable:$true] %s225
          %231 = dma.hbm_to_vmem [thread:$0]  %s4, 9216, %s226, [#allocation6], 64, 64, 4
        $region28: #{tpu_custom_call.1} parent=11 // pred_fallthru
          _
        // Predicated region
        $region29: #{tpu_custom_call.1} parent=11 // pred_check
          %p232 = pneg %p148
        $region30: #{tpu_custom_call.1} parent=11 // pred_check_branch
          %234 = sbr.rel (%p232) target = $region32
        $region31: #{tpu_custom_call.1} parent=11 // pred_region
          _
        $region32: #{tpu_custom_call.1} parent=11 // pred_fallthru
          _
        // Predicated region
        $region33: #{tpu_custom_call.1} parent=11 // pred_check
          %p235 = pneg %p169
        $region34: #{tpu_custom_call.1} parent=11 // pred_check_branch
          %237 = sbr.rel (%p235) target = $region36
        $region35: #{tpu_custom_call.1} parent=11 // pred_region
          _
        $region36: #{tpu_custom_call.1} parent=11 // pred_fallthru
          _
      $region12: #{tpu_custom_call.1} parent=5 // pred_fallthru
        _
      %p238 = scmp.lt.s32.totalorder %s17, 2
      // Predicated region
      $region37: #{tpu_custom_call.1} parent=5 // pred_check
        %p239 = pneg %p238
      $region38: #{tpu_custom_call.1} parent=5 // pred_check_branch
        %241 = sbr.rel (%p239) target = $region40
      $region39: #{tpu_custom_call.1} parent=5 // pred_region
        // Predicated region
        $region41: #{tpu_custom_call.1} parent=39 // pred_check
          %p242 = pneg %p37
        $region42: #{tpu_custom_call.1} parent=39 // pred_check_branch
          %244 = sbr.rel (%p242) target = $region44
        $region43: #{tpu_custom_call.1} parent=39 // pred_region
          %p245 = scmp.lt.s32.totalorder %s17, 1
          %s246 = scalar_select %p245, %s17, 1
          %s247 = smul.addr %s246, 41
          %s248 = smul.addr %s247, 4
          %s249 = scalar_lea.vmem %s0, %s248
        $region44: #{tpu_custom_call.1} parent=39 // pred_fallthru
          _
      $region40: #{tpu_custom_call.1} parent=5 // pred_fallthru
        _
      %p250 = scmp.le.s32.totalorder 1, %s17
      %p251 = scmp.lt.s32.totalorder %s17, 3
      %p252 = pnand %p250, %p251
      %p253 = pneg %p252
      // Predicated region
      $region45: #{tpu_custom_call.1} parent=5 // pred_check
        _
      $region46: #{tpu_custom_call.1} parent=5 // pred_check_branch
        %255 = sbr.rel (%p252) target = $region48
      $region47: #{tpu_custom_call.1} parent=5 // pred_region
        %s256 = ssub.s32 %s17, 1
        // Predicated region
        $region49: #{tpu_custom_call.1} parent=47 // pred_check
          %p257 = pneg %p127
        $region50: #{tpu_custom_call.1} parent=47 // pred_check_branch
          %259 = sbr.rel (%p257) target = $region52
        $region51: #{tpu_custom_call.1} parent=47 // pred_region
          %260 = dma.done [#allocation6], 9216
        $region52: #{tpu_custom_call.1} parent=47 // pred_fallthru
          _
        %p261 = scmp.lt.s32.totalorder %s22, 1
        %s262 = scalar_select %p261, %s22, 1
        %s263 = smul.addr %s262, 41
        %s264 = smul.addr %s263, 4
        %s265 = scalar_lea.vmem %s0, %s264
        %p266 = pneg %p43
        %p267 = pneg %p40
        %p268 = pneg %p64
        %p269 = pneg %p61
        %p270 = pneg %p85
        %p271 = pneg %p82
        %p272 = pneg %p106
        %p273 = pneg %p103
        %p274 = pneg %p127
        %p275 = pneg %p124
        %p276 = pneg %p148
        %p277 = pneg %p145
        %p278 = pneg %p169
        %p279 = pneg %p166
        %p280 = pneg %p195
        %p281 = pneg %p192
        %s282 = sand.u32 %s182, 1
        %s283 = scalar_lea.sflag [#allocation7], %s282
        %s284 = sand.u32 %s182, 1
        %s285 = smul.addr %s284, 288
        %s286 = scalar_lea.vmem [#allocation8], %s285
        %p287 = scmp.lt.s32.totalorder %s22, 1
        %s288 = scalar_select %p287, %s22, 1
        %s289 = smul.addr %s288, 41
        %s290 = smul.addr %s289, 4
        %s291 = scalar_lea.vmem %s0, %s290
        %v293 = vld [vmem:[%s291] sm:$0xf]
        %v294 = vld [vmem:[%s291 + $0x4] sm:$0xf]
        %v295 = vld [vmem:[%s291 + $0x8] sm:$0xf]
        %v296 = vld [vmem:[%s291 + $0xc] sm:$0xf]
        %v297 = vld [vmem:[%s291 + $0x10] sm:$0xf]
        %v298 = vld [vmem:[%s291 + $0x14] sm:$0xf]
        %v299 = vld [vmem:[%s291 + $0x18] sm:$0xf]
        %v300 = vld [vmem:[%s291 + $0x1c] sm:$0xf]
        %v301 = vld [vmem:[%s291 + $0x20] sm:$0xf]
        %v302 = vld [vmem:[%s291 + $0x24] sm:$0xf]
        %v303 = vld [vmem:[%s291 + $0x28] sm:$0xf]
        %v304 = vld [vmem:[%s291 + $0x2c] sm:$0xf]
        %v305 = vld [vmem:[%s291 + $0x30] sm:$0xf]
        %v306 = vld [vmem:[%s291 + $0x34] sm:$0xf]
        %v307 = vld [vmem:[%s291 + $0x38] sm:$0xf]
        %v308 = vld [vmem:[%s291 + $0x3c] sm:$0xf]
        %v309 = vld [vmem:[%s291 + $0x40] sm:$0xf]
        %v310 = vld [vmem:[%s291 + $0x44] sm:$0xf]
        %v311 = vld [vmem:[%s291 + $0x48] sm:$0xf]
        %v312 = vld [vmem:[%s291 + $0x4c] sm:$0xf]
        %v313 = vld [vmem:[%s291 + $0x50] sm:$0xf]
        %v314 = vld [vmem:[%s291 + $0x54] sm:$0xf]
        %v315 = vld [vmem:[%s291 + $0x58] sm:$0xf]
        %v316 = vld [vmem:[%s291 + $0x5c] sm:$0xf]
        %v317 = vld [vmem:[%s291 + $0x60] sm:$0xf]
        %v318 = vld [vmem:[%s291 + $0x64] sm:$0xf]
        %v319 = vld [vmem:[%s291 + $0x68] sm:$0xf]
        %v320 = vld [vmem:[%s291 + $0x6c] sm:$0xf]
        %v321 = vld [vmem:[%s291 + $0x70] sm:$0xf]
        %v322 = vld [vmem:[%s291 + $0x74] sm:$0xf]
        %v323 = vld [vmem:[%s291 + $0x78] sm:$0xf]
        %v324 = vld [vmem:[%s291 + $0x7c] sm:$0xf]
        %v325 = vld [vmem:[%s291 + $0x80] sm:$0xf]
        %v326 = vld [vmem:[%s291 + $0x84] sm:$0xf]
        %v327 = vld [vmem:[%s291 + $0x88] sm:$0xf]
        %v328 = vld [vmem:[%s291 + $0x8c] sm:$0xf]
        %v365 = vunpack.c.l.b16 %v293
        %v366 = vunpack.c.l.b16 %v294
        %v367 = vunpack.c.l.b16 %v295
        %v368 = vunpack.c.l.b16 %v296
        %v369 = vunpack.c.l.b16 %v297
        %v370 = vunpack.c.l.b16 %v298
        %v371 = vunpack.c.l.b16 %v299
        %v372 = vunpack.c.l.b16 %v300
        %v373 = vunpack.c.l.b16 %v301
        %v374 = vunpack.c.l.b16 %v302
        %v375 = vunpack.c.l.b16 %v303
        %v376 = vunpack.c.l.b16 %v304
        %v377 = vunpack.c.l.b16 %v305
        %v378 = vunpack.c.l.b16 %v306
        %v379 = vunpack.c.l.b16 %v307
        %v380 = vunpack.c.l.b16 %v308
        %v381 = vunpack.c.l.b16 %v309
        %v382 = vunpack.c.l.b16 %v310
        %v383 = vunpack.c.l.b16 %v311
        %v384 = vunpack.c.l.b16 %v312
        %v385 = vunpack.c.l.b16 %v313
        %v386 = vunpack.c.l.b16 %v314
        %v387 = vunpack.c.l.b16 %v315
        %v388 = vunpack.c.l.b16 %v316
        %v389 = vunpack.c.l.b16 %v317
        %v390 = vunpack.c.l.b16 %v318
        %v391 = vunpack.c.l.b16 %v319
        %v392 = vunpack.c.l.b16 %v320
        %v393 = vunpack.c.l.b16 %v321
        %v394 = vunpack.c.l.b16 %v322
        %v395 = vunpack.c.l.b16 %v323
        %v396 = vunpack.c.l.b16 %v324
        %v397 = vunpack.c.l.b16 %v325
        %v398 = vunpack.c.l.b16 %v326
        %v399 = vunpack.c.l.b16 %v327
        %v400 = vunpack.c.l.b16 %v328
        %v401 = vpack.c.b16 %v366, %v365
        %v402 = vpack.c.b16 %v368, %v367
        %v403 = vpack.c.b16 %v370, %v369
        %v404 = vpack.c.b16 %v372, %v371
        %v405 = vpack.c.b16 %v374, %v373
        %v406 = vpack.c.b16 %v376, %v375
        %v407 = vpack.c.b16 %v378, %v377
        %v408 = vpack.c.b16 %v380, %v379
        %v409 = vpack.c.b16 %v382, %v381
        %v410 = vpack.c.b16 %v384, %v383
        %v411 = vpack.c.b16 %v386, %v385
        %v412 = vpack.c.b16 %v388, %v387
        %v413 = vpack.c.b16 %v390, %v389
        %v414 = vpack.c.b16 %v392, %v391
        %v415 = vpack.c.b16 %v394, %v393
        %v416 = vpack.c.b16 %v396, %v395
        %v417 = vpack.c.b16 %v398, %v397
        %v418 = vpack.c.b16 %v400, %v399
        %vm437 = vcmask 31744
        %438 = vst.msk [vmem:[#allocation2] sm:$0xff] %vm437, %v401
        %439 = vst.msk [vmem:[#allocation2 + $0x8] sm:$0xff] %vm437, %v402
        %440 = vst.msk [vmem:[#allocation2 + $0x10] sm:$0xff] %vm437, %v403
        %441 = vst.msk [vmem:[#allocation2 + $0x18] sm:$0xff] %vm437, %v404
        %442 = vst.msk [vmem:[#allocation2 + $0x20] sm:$0xff] %vm437, %v405
        %443 = vst.msk [vmem:[#allocation2 + $0x28] sm:$0xff] %vm437, %v406
        %444 = vst.msk [vmem:[#allocation2 + $0x30] sm:$0xff] %vm437, %v407
        %445 = vst.msk [vmem:[#allocation2 + $0x38] sm:$0xff] %vm437, %v408
        %446 = vst.msk [vmem:[#allocation2 + $0x40] sm:$0xff] %vm437, %v409
        %447 = vst.msk [vmem:[#allocation2 + $0x48] sm:$0xff] %vm437, %v410
        %448 = vst.msk [vmem:[#allocation2 + $0x50] sm:$0xff] %vm437, %v411
        %449 = vst.msk [vmem:[#allocation2 + $0x58] sm:$0xff] %vm437, %v412
        %450 = vst.msk [vmem:[#allocation2 + $0x60] sm:$0xff] %vm437, %v413
        %451 = vst.msk [vmem:[#allocation2 + $0x68] sm:$0xff] %vm437, %v414
        %452 = vst.msk [vmem:[#allocation2 + $0x70] sm:$0xff] %vm437, %v415
        %453 = vst.msk [vmem:[#allocation2 + $0x78] sm:$0xff] %vm437, %v416
        %454 = vst.msk [vmem:[#allocation2 + $0x80] sm:$0xff] %vm437, %v417
        %455 = vst.msk [vmem:[#allocation2 + $0x88] sm:$0xff] %vm437, %v418
        %v456 = vld [vmem:[%s291] sm:$0xf]
        %v457 = vld [vmem:[%s291 + $0x4] sm:$0xf]
        %v458 = vld [vmem:[%s291 + $0x8] sm:$0xf]
        %v459 = vld [vmem:[%s291 + $0xc] sm:$0xf]
        %v460 = vld [vmem:[%s291 + $0x10] sm:$0xf]
        %v461 = vld [vmem:[%s291 + $0x14] sm:$0xf]
        %v462 = vld [vmem:[%s291 + $0x18] sm:$0xf]
        %v463 = vld [vmem:[%s291 + $0x1c] sm:$0xf]
        %v464 = vld [vmem:[%s291 + $0x20] sm:$0xf]
        %v465 = vld [vmem:[%s291 + $0x24] sm:$0xf]
        %v466 = vld [vmem:[%s291 + $0x28] sm:$0xf]
        %v467 = vld [vmem:[%s291 + $0x2c] sm:$0xf]
        %v468 = vld [vmem:[%s291 + $0x30] sm:$0xf]
        %v469 = vld [vmem:[%s291 + $0x34] sm:$0xf]
        %v470 = vld [vmem:[%s291 + $0x38] sm:$0xf]
        %v471 = vld [vmem:[%s291 + $0x3c] sm:$0xf]
        %v472 = vld [vmem:[%s291 + $0x40] sm:$0xf]
        %v473 = vld [vmem:[%s291 + $0x44] sm:$0xf]
        %v474 = vld [vmem:[%s291 + $0x48] sm:$0xf]
        %v475 = vld [vmem:[%s291 + $0x4c] sm:$0xf]
        %v476 = vld [vmem:[%s291 + $0x50] sm:$0xf]
        %v477 = vld [vmem:[%s291 + $0x54] sm:$0xf]
        %v478 = vld [vmem:[%s291 + $0x58] sm:$0xf]
        %v479 = vld [vmem:[%s291 + $0x5c] sm:$0xf]
        %v480 = vld [vmem:[%s291 + $0x60] sm:$0xf]
        %v481 = vld [vmem:[%s291 + $0x64] sm:$0xf]
        %v482 = vld [vmem:[%s291 + $0x68] sm:$0xf]
        %v483 = vld [vmem:[%s291 + $0x6c] sm:$0xf]
        %v484 = vld [vmem:[%s291 + $0x70] sm:$0xf]
        %v485 = vld [vmem:[%s291 + $0x74] sm:$0xf]
        %v486 = vld [vmem:[%s291 + $0x78] sm:$0xf]
        %v487 = vld [vmem:[%s291 + $0x7c] sm:$0xf]
        %v488 = vld [vmem:[%s291 + $0x80] sm:$0xf]
        %v489 = vld [vmem:[%s291 + $0x84] sm:$0xf]
        %v490 = vld [vmem:[%s291 + $0x88] sm:$0xf]
        %v491 = vld [vmem:[%s291 + $0x8c] sm:$0xf]
        %v492 = vld [vmem:[%s291 + $0x90] sm:$0x1]
        %v530 = vunpack.c.l.b16 %v456
        %v531 = vunpack.c.l.b16 %v457
        %v532 = vunpack.c.l.b16 %v458
        %v533 = vunpack.c.l.b16 %v459
        %v534 = vunpack.c.l.b16 %v460
        %v535 = vunpack.c.l.b16 %v461
        %v536 = vunpack.c.l.b16 %v462
        %v537 = vunpack.c.l.b16 %v463
        %v538 = vunpack.c.l.b16 %v464
        %v539 = vunpack.c.l.b16 %v465
        %v540 = vunpack.c.l.b16 %v466
        %v541 = vunpack.c.l.b16 %v467
        %v542 = vunpack.c.l.b16 %v468
        %v543 = vunpack.c.l.b16 %v469
        %v544 = vunpack.c.l.b16 %v470
        %v545 = vunpack.c.l.b16 %v471
        %v546 = vunpack.c.l.b16 %v472
        %v547 = vunpack.c.l.b16 %v473
        %v548 = vunpack.c.l.b16 %v474
        %v549 = vunpack.c.l.b16 %v475
        %v550 = vunpack.c.l.b16 %v476
        %v551 = vunpack.c.l.b16 %v477
        %v552 = vunpack.c.l.b16 %v478
        %v553 = vunpack.c.l.b16 %v479
        %v554 = vunpack.c.l.b16 %v480
        %v555 = vunpack.c.l.b16 %v481
        %v556 = vunpack.c.l.b16 %v482
        %v557 = vunpack.c.l.b16 %v483
        %v558 = vunpack.c.l.b16 %v484
        %v559 = vunpack.c.l.b16 %v485
        %v560 = vunpack.c.l.b16 %v486
        %v561 = vunpack.c.l.b16 %v487
        %v562 = vunpack.c.l.b16 %v488
        %v563 = vunpack.c.l.b16 %v489
        %v564 = vunpack.c.l.b16 %v490
        %v565 = vunpack.c.l.b16 %v491
        %v566 = vunpack.c.l.b16 %v492
        %v567 = vpack.c.b16 %v531, %v530
        %v568 = vpack.c.b16 %v533, %v532
        %v569 = vpack.c.b16 %v535, %v534
        %v570 = vpack.c.b16 %v537, %v536
        %v571 = vpack.c.b16 %v539, %v538
        %v572 = vpack.c.b16 %v541, %v540
        %v573 = vpack.c.b16 %v543, %v542
        %v574 = vpack.c.b16 %v545, %v544
        %v575 = vpack.c.b16 %v547, %v546
        %v576 = vpack.c.b16 %v549, %v548
        %v577 = vpack.c.b16 %v551, %v550
        %v578 = vpack.c.b16 %v553, %v552
        %v579 = vpack.c.b16 %v555, %v554
        %v580 = vpack.c.b16 %v557, %v556
        %v581 = vpack.c.b16 %v559, %v558
        %v582 = vpack.c.b16 %v561, %v560
        %v583 = vpack.c.b16 %v563, %v562
        %v584 = vpack.c.b16 %v565, %v564
        %v585 = vpack.c.b16 %v566, %v566
        %vm586 = vsmask.f32 7424
        %v588 = vshrl.u32 %v567, 16
        %v590 = vshll.u32 %v567, 16
        %v592 = vrot.slane %v590, 1
        %v593 = vor.u32 %v588, %v592
        %v595 = vshll.u32 %v568, 16
        %v597 = vrot.slane %v595, 1
        %v598 = vsel %vm586, %v593, %v597
        %v599 = vshrl.u32 %v568, 16
        %v601 = vor.u32 %v599, %v597
        %v603 = vshll.u32 %v569, 16
        %v605 = vrot.slane %v603, 1
        %v606 = vsel %vm586, %v601, %v605
        %v607 = vshrl.u32 %v569, 16
        %v609 = vor.u32 %v607, %v605
        %v611 = vshll.u32 %v570, 16
        %v613 = vrot.slane %v611, 1
        %v614 = vsel %vm586, %v609, %v613
        %v615 = vshrl.u32 %v570, 16
        %v617 = vor.u32 %v615, %v613
        %v619 = vshll.u32 %v571, 16
        %v621 = vrot.slane %v619, 1
        %v622 = vsel %vm586, %v617, %v621
        %v623 = vshrl.u32 %v571, 16
        %v625 = vor.u32 %v623, %v621
        %v627 = vshll.u32 %v572, 16
        %v629 = vrot.slane %v627, 1
        %v630 = vsel %vm586, %v625, %v629
        %v631 = vshrl.u32 %v572, 16
        %v633 = vor.u32 %v631, %v629
        %v635 = vshll.u32 %v573, 16
        %v637 = vrot.slane %v635, 1
        %v638 = vsel %vm586, %v633, %v637
        %v639 = vshrl.u32 %v573, 16
        %v641 = vor.u32 %v639, %v637
        %v643 = vshll.u32 %v574, 16
        %v645 = vrot.slane %v643, 1
        %v646 = vsel %vm586, %v641, %v645
        %v647 = vshrl.u32 %v574, 16
        %v649 = vor.u32 %v647, %v645
        %v651 = vshll.u32 %v575, 16
        %v653 = vrot.slane %v651, 1
        %v654 = vsel %vm586, %v649, %v653
        %v655 = vshrl.u32 %v575, 16
        %v657 = vor.u32 %v655, %v653
        %v659 = vshll.u32 %v576, 16
        %v661 = vrot.slane %v659, 1
        %v662 = vsel %vm586, %v657, %v661
        %v663 = vshrl.u32 %v576, 16
        %v665 = vor.u32 %v663, %v661
        %v667 = vshll.u32 %v577, 16
        %v669 = vrot.slane %v667, 1
        %v670 = vsel %vm586, %v665, %v669
        %v671 = vshrl.u32 %v577, 16
        %v673 = vor.u32 %v671, %v669
        %v675 = vshll.u32 %v578, 16
        %v677 = vrot.slane %v675, 1
        %v678 = vsel %vm586, %v673, %v677
        %v679 = vshrl.u32 %v578, 16
        %v681 = vor.u32 %v679, %v677
        %v683 = vshll.u32 %v579, 16
        %v685 = vrot.slane %v683, 1
        %v686 = vsel %vm586, %v681, %v685
        %v687 = vshrl.u32 %v579, 16
        %v689 = vor.u32 %v687, %v685
        %v691 = vshll.u32 %v580, 16
        %v693 = vrot.slane %v691, 1
        %v694 = vsel %vm586, %v689, %v693
        %v695 = vshrl.u32 %v580, 16
        %v697 = vor.u32 %v695, %v693
        %v699 = vshll.u32 %v581, 16
        %v701 = vrot.slane %v699, 1
        %v702 = vsel %vm586, %v697, %v701
        %v703 = vshrl.u32 %v581, 16
        %v705 = vor.u32 %v703, %v701
        %v707 = vshll.u32 %v582, 16
        %v709 = vrot.slane %v707, 1
        %v710 = vsel %vm586, %v705, %v709
        %v711 = vshrl.u32 %v582, 16
        %v713 = vor.u32 %v711, %v709
        %v715 = vshll.u32 %v583, 16
        %v717 = vrot.slane %v715, 1
        %v718 = vsel %vm586, %v713, %v717
        %v719 = vshrl.u32 %v583, 16
        %v721 = vor.u32 %v719, %v717
        %v723 = vshll.u32 %v584, 16
        %v725 = vrot.slane %v723, 1
        %v726 = vsel %vm586, %v721, %v725
        %v727 = vshrl.u32 %v584, 16
        %v729 = vor.u32 %v727, %v725
        %v731 = vshll.u32 %v585, 16
        %v733 = vrot.slane %v731, 1
        %v734 = vsel %vm586, %v729, %v733
        %735 = vrot.lane.b32.xlu0 %v598, 4
        %v736 = vpop.permute.xlu0 %735
        %737 = vrot.lane.b32.xlu0 %v606, 4
        %v738 = vpop.permute.xlu0 %737
        %739 = vrot.lane.b32.xlu0 %v614, 4
        %v740 = vpop.permute.xlu0 %739
        %741 = vrot.lane.b32.xlu0 %v622, 4
        %v742 = vpop.permute.xlu0 %741
        %743 = vrot.lane.b32.xlu0 %v630, 4
        %v744 = vpop.permute.xlu0 %743
        %745 = vrot.lane.b32.xlu0 %v638, 4
        %v746 = vpop.permute.xlu0 %745
        %747 = vrot.lane.b32.xlu0 %v646, 4
        %v748 = vpop.permute.xlu0 %747
        %749 = vrot.lane.b32.xlu0 %v654, 4
        %v750 = vpop.permute.xlu0 %749
        %751 = vrot.lane.b32.xlu0 %v662, 4
        %v752 = vpop.permute.xlu0 %751
        %753 = vrot.lane.b32.xlu0 %v670, 4
        %v754 = vpop.permute.xlu0 %753
        %755 = vrot.lane.b32.xlu0 %v678, 4
        %v756 = vpop.permute.xlu0 %755
        %757 = vrot.lane.b32.xlu0 %v686, 4
        %v758 = vpop.permute.xlu0 %757
        %759 = vrot.lane.b32.xlu0 %v694, 4
        %v760 = vpop.permute.xlu0 %759
        %761 = vrot.lane.b32.xlu0 %v702, 4
        %v762 = vpop.permute.xlu0 %761
        %763 = vrot.lane.b32.xlu0 %v710, 4
        %v764 = vpop.permute.xlu0 %763
        %765 = vrot.lane.b32.xlu0 %v718, 4
        %v766 = vpop.permute.xlu0 %765
        %767 = vrot.lane.b32.xlu0 %v726, 4
        %v768 = vpop.permute.xlu0 %767
        %769 = vrot.lane.b32.xlu0 %v734, 4
        %v770 = vpop.permute.xlu0 %769
        %vm789 = vcmask 64544
        %790 = vst.msk [vmem:[#allocation2] sm:$0xff] %vm789, %v736
        %791 = vst.msk [vmem:[#allocation2 + $0x8] sm:$0xff] %vm789, %v738
        %792 = vst.msk [vmem:[#allocation2 + $0x10] sm:$0xff] %vm789, %v740
        %793 = vst.msk [vmem:[#allocation2 + $0x18] sm:$0xff] %vm789, %v742
        %794 = vst.msk [vmem:[#allocation2 + $0x20] sm:$0xff] %vm789, %v744
        %795 = vst.msk [vmem:[#allocation2 + $0x28] sm:$0xff] %vm789, %v746
        %796 = vst.msk [vmem:[#allocation2 + $0x30] sm:$0xff] %vm789, %v748
        %797 = vst.msk [vmem:[#allocation2 + $0x38] sm:$0xff] %vm789, %v750
        %798 = vst.msk [vmem:[#allocation2 + $0x40] sm:$0xff] %vm789, %v752
        %799 = vst.msk [vmem:[#allocation2 + $0x48] sm:$0xff] %vm789, %v754
        %800 = vst.msk [vmem:[#allocation2 + $0x50] sm:$0xff] %vm789, %v756
        %801 = vst.msk [vmem:[#allocation2 + $0x58] sm:$0xff] %vm789, %v758
        %802 = vst.msk [vmem:[#allocation2 + $0x60] sm:$0xff] %vm789, %v760
        %803 = vst.msk [vmem:[#allocation2 + $0x68] sm:$0xff] %vm789, %v762
        %804 = vst.msk [vmem:[#allocation2 + $0x70] sm:$0xff] %vm789, %v764
        %805 = vst.msk [vmem:[#allocation2 + $0x78] sm:$0xff] %vm789, %v766
        %806 = vst.msk [vmem:[#allocation2 + $0x80] sm:$0xff] %vm789, %v768
        %807 = vst.msk [vmem:[#allocation2 + $0x88] sm:$0xff] %vm789, %v770
        %v808 = vld [vmem:[%s291] sm:$0xe]
        %v809 = vld [vmem:[%s291 + $0x4] sm:$0xf]
        %v810 = vld [vmem:[%s291 + $0x8] sm:$0xf]
        %v811 = vld [vmem:[%s291 + $0xc] sm:$0xf]
        %v812 = vld [vmem:[%s291 + $0x10] sm:$0xf]
        %v813 = vld [vmem:[%s291 + $0x14] sm:$0xf]
        %v814 = vld [vmem:[%s291 + $0x18] sm:$0xf]
        %v815 = vld [vmem:[%s291 + $0x1c] sm:$0xf]
        %v816 = vld [vmem:[%s291 + $0x20] sm:$0xf]
        %v817 = vld [vmem:[%s291 + $0x24] sm:$0xf]
        %v818 = vld [vmem:[%s291 + $0x28] sm:$0xf]
        %v819 = vld [vmem:[%s291 + $0x2c] sm:$0xf]
        %v820 = vld [vmem:[%s291 + $0x30] sm:$0xf]
        %v821 = vld [vmem:[%s291 + $0x34] sm:$0xf]
        %v822 = vld [vmem:[%s291 + $0x38] sm:$0xf]
        %v823 = vld [vmem:[%s291 + $0x3c] sm:$0xf]
        %v824 = vld [vmem:[%s291 + $0x40] sm:$0xf]
        %v825 = vld [vmem:[%s291 + $0x44] sm:$0xf]
        %v826 = vld [vmem:[%s291 + $0x48] sm:$0xf]
        %v827 = vld [vmem:[%s291 + $0x4c] sm:$0xf]
        %v828 = vld [vmem:[%s291 + $0x50] sm:$0xf]
        %v829 = vld [vmem:[%s291 + $0x54] sm:$0xf]
        %v830 = vld [vmem:[%s291 + $0x58] sm:$0xf]
        %v831 = vld [vmem:[%s291 + $0x5c] sm:$0xf]
        %v832 = vld [vmem:[%s291 + $0x60] sm:$0xf]
        %v833 = vld [vmem:[%s291 + $0x64] sm:$0xf]
        %v834 = vld [vmem:[%s291 + $0x68] sm:$0xf]
        %v835 = vld [vmem:[%s291 + $0x6c] sm:$0xf]
        %v836 = vld [vmem:[%s291 + $0x70] sm:$0xf]
        %v837 = vld [vmem:[%s291 + $0x74] sm:$0xf]
        %v838 = vld [vmem:[%s291 + $0x78] sm:$0xf]
        %v839 = vld [vmem:[%s291 + $0x7c] sm:$0xf]
        %v840 = vld [vmem:[%s291 + $0x80] sm:$0xf]
        %v841 = vld [vmem:[%s291 + $0x84] sm:$0xf]
        %v842 = vld [vmem:[%s291 + $0x88] sm:$0xf]
        %v843 = vld [vmem:[%s291 + $0x8c] sm:$0xf]
        %v844 = vld [vmem:[%s291 + $0x90] sm:$0x1]
        %v882 = vunpack.c.l.b16 %v808
        %v883 = vunpack.c.l.b16 %v809
        %v884 = vunpack.c.l.b16 %v810
        %v885 = vunpack.c.l.b16 %v811
        %v886 = vunpack.c.l.b16 %v812
        %v887 = vunpack.c.l.b16 %v813
        %v888 = vunpack.c.l.b16 %v814
        %v889 = vunpack.c.l.b16 %v815
        %v890 = vunpack.c.l.b16 %v816
        %v891 = vunpack.c.l.b16 %v817
        %v892 = vunpack.c.l.b16 %v818
        %v893 = vunpack.c.l.b16 %v819
        %v894 = vunpack.c.l.b16 %v820
        %v895 = vunpack.c.l.b16 %v821
        %v896 = vunpack.c.l.b16 %v822
        %v897 = vunpack.c.l.b16 %v823
        %v898 = vunpack.c.l.b16 %v824
        %v899 = vunpack.c.l.b16 %v825
        %v900 = vunpack.c.l.b16 %v826
        %v901 = vunpack.c.l.b16 %v827
        %v902 = vunpack.c.l.b16 %v828
        %v903 = vunpack.c.l.b16 %v829
        %v904 = vunpack.c.l.b16 %v830
        %v905 = vunpack.c.l.b16 %v831
        %v906 = vunpack.c.l.b16 %v832
        %v907 = vunpack.c.l.b16 %v833
        %v908 = vunpack.c.l.b16 %v834
        %v909 = vunpack.c.l.b16 %v835
        %v910 = vunpack.c.l.b16 %v836
        %v911 = vunpack.c.l.b16 %v837
        %v912 = vunpack.c.l.b16 %v838
        %v913 = vunpack.c.l.b16 %v839
        %v914 = vunpack.c.l.b16 %v840
        %v915 = vunpack.c.l.b16 %v841
        %v916 = vunpack.c.l.b16 %v842
        %v917 = vunpack.c.l.b16 %v843
        %v918 = vunpack.c.l.b16 %v844
        %v919 = vpack.c.b16 %v883, %v882
        %v920 = vpack.c.b16 %v885, %v884
        %v921 = vpack.c.b16 %v887, %v886
        %v922 = vpack.c.b16 %v889, %v888
        %v923 = vpack.c.b16 %v891, %v890
        %v924 = vpack.c.b16 %v893, %v892
        %v925 = vpack.c.b16 %v895, %v894
        %v926 = vpack.c.b16 %v897, %v896
        %v927 = vpack.c.b16 %v899, %v898
        %v928 = vpack.c.b16 %v901, %v900
        %v929 = vpack.c.b16 %v903, %v902
        %v930 = vpack.c.b16 %v905, %v904
        %v931 = vpack.c.b16 %v907, %v906
        %v932 = vpack.c.b16 %v909, %v908
        %v933 = vpack.c.b16 %v911, %v910
        %v934 = vpack.c.b16 %v913, %v912
        %v935 = vpack.c.b16 %v915, %v914
        %v936 = vpack.c.b16 %v917, %v916
        %v937 = vpack.c.b16 %v918, %v918
        %vm938 = vcmask 1046528
        %v939 = vrot.slane %v919, 1
        %v940 = vrot.slane %v920, 1
        %v941 = vsel %vm938, %v939, %v940
        %v942 = vrot.slane %v921, 1
        %v943 = vsel %vm938, %v940, %v942
        %v944 = vrot.slane %v922, 1
        %v945 = vsel %vm938, %v942, %v944
        %v946 = vrot.slane %v923, 1
        %v947 = vsel %vm938, %v944, %v946
        %v948 = vrot.slane %v924, 1
        %v949 = vsel %vm938, %v946, %v948
        %v950 = vrot.slane %v925, 1
        %v951 = vsel %vm938, %v948, %v950
        %v952 = vrot.slane %v926, 1
        %v953 = vsel %vm938, %v950, %v952
        %v954 = vrot.slane %v927, 1
        %v955 = vsel %vm938, %v952, %v954
        %v956 = vrot.slane %v928, 1
        %v957 = vsel %vm938, %v954, %v956
        %v958 = vrot.slane %v929, 1
        %v959 = vsel %vm938, %v956, %v958
        %v960 = vrot.slane %v930, 1
        %v961 = vsel %vm938, %v958, %v960
        %v962 = vrot.slane %v931, 1
        %v963 = vsel %vm938, %v960, %v962
        %v964 = vrot.slane %v932, 1
        %v965 = vsel %vm938, %v962, %v964
        %v966 = vrot.slane %v933, 1
        %v967 = vsel %vm938, %v964, %v966
        %v968 = vrot.slane %v934, 1
        %v969 = vsel %vm938, %v966, %v968
        %v970 = vrot.slane %v935, 1
        %v971 = vsel %vm938, %v968, %v970
        %v972 = vrot.slane %v936, 1
        %v973 = vsel %vm938, %v970, %v972
        %v974 = vrot.slane %v937, 1
        %v975 = vsel %vm938, %v972, %v974
        %976 = vrot.lane.b32.xlu0 %v941, 8
        %v977 = vpop.permute.xlu0 %976
        %978 = vrot.lane.b32.xlu0 %v943, 8
        %v979 = vpop.permute.xlu0 %978
        %980 = vrot.lane.b32.xlu0 %v945, 8
        %v981 = vpop.permute.xlu0 %980
        %982 = vrot.lane.b32.xlu0 %v947, 8
        %v983 = vpop.permute.xlu0 %982
        %984 = vrot.lane.b32.xlu0 %v949, 8
        %v985 = vpop.permute.xlu0 %984
        %986 = vrot.lane.b32.xlu0 %v951, 8
        %v987 = vpop.permute.xlu0 %986
        %988 = vrot.lane.b32.xlu0 %v953, 8
        %v989 = vpop.permute.xlu0 %988
        %990 = vrot.lane.b32.xlu0 %v955, 8
        %v991 = vpop.permute.xlu0 %990
        %992 = vrot.lane.b32.xlu0 %v957, 8
        %v993 = vpop.permute.xlu0 %992
        %994 = vrot.lane.b32.xlu0 %v959, 8
        %v995 = vpop.permute.xlu0 %994
        %996 = vrot.lane.b32.xlu0 %v961, 8
        %v997 = vpop.permute.xlu0 %996
        %998 = vrot.lane.b32.xlu0 %v963, 8
        %v999 = vpop.permute.xlu0 %998
        %1000 = vrot.lane.b32.xlu0 %v965, 8
        %v1001 = vpop.permute.xlu0 %1000
        %1002 = vrot.lane.b32.xlu0 %v967, 8
        %v1003 = vpop.permute.xlu0 %1002
        %1004 = vrot.lane.b32.xlu0 %v969, 8
        %v1005 = vpop.permute.xlu0 %1004
        %1006 = vrot.lane.b32.xlu0 %v971, 8
        %v1007 = vpop.permute.xlu0 %1006
        %1008 = vrot.lane.b32.xlu0 %v973, 8
        %v1009 = vpop.permute.xlu0 %1008
        %1010 = vrot.lane.b32.xlu0 %v975, 8
        %v1011 = vpop.permute.xlu0 %1010
        %vm1030 = vcmask 97344
        %1031 = vst.msk [vmem:[#allocation2] sm:$0xff] %vm1030, %v977
        %1032 = vst.msk [vmem:[#allocation2 + $0x8] sm:$0xff] %vm1030, %v979
        %1033 = vst.msk [vmem:[#allocation2 + $0x10] sm:$0xff] %vm1030, %v981
        %1034 = vst.msk [vmem:[#allocation2 + $0x18] sm:$0xff] %vm1030, %v983
        %1035 = vst.msk [vmem:[#allocation2 + $0x20] sm:$0xff] %vm1030, %v985
        %1036 = vst.msk [vmem:[#allocation2 + $0x28] sm:$0xff] %vm1030, %v987
        %1037 = vst.msk [vmem:[#allocation2 + $0x30] sm:$0xff] %vm1030, %v989
        %1038 = vst.msk [vmem:[#allocation2 + $0x38] sm:$0xff] %vm1030, %v991
        %1039 = vst.msk [vmem:[#allocation2 + $0x40] sm:$0xff] %vm1030, %v993
        %1040 = vst.msk [vmem:[#allocation2 + $0x48] sm:$0xff] %vm1030, %v995
        %1041 = vst.msk [vmem:[#allocation2 + $0x50] sm:$0xff] %vm1030, %v997
        %1042 = vst.msk [vmem:[#allocation2 + $0x58] sm:$0xff] %vm1030, %v999
        %1043 = vst.msk [vmem:[#allocation2 + $0x60] sm:$0xff] %vm1030, %v1001
        %1044 = vst.msk [vmem:[#allocation2 + $0x68] sm:$0xff] %vm1030, %v1003
        %1045 = vst.msk [vmem:[#allocation2 + $0x70] sm:$0xff] %vm1030, %v1005
        %1046 = vst.msk [vmem:[#allocation2 + $0x78] sm:$0xff] %vm1030, %v1007
        %1047 = vst.msk [vmem:[#allocation2 + $0x80] sm:$0xff] %vm1030, %v1009
        %1048 = vst.msk [vmem:[#allocation2 + $0x88] sm:$0xff] %vm1030, %v1011
        %v1049 = vld [vmem:[%s291 + $0x8] sm:$0xe]
        %v1050 = vld [vmem:[%s291 + $0xc] sm:$0xf]
        %v1051 = vld [vmem:[%s291 + $0x10] sm:$0xf]
        %v1052 = vld [vmem:[%s291 + $0x14] sm:$0xf]
        %v1053 = vld [vmem:[%s291 + $0x18] sm:$0xf]
        %v1054 = vld [vmem:[%s291 + $0x1c] sm:$0xf]
        %v1055 = vld [vmem:[%s291 + $0x20] sm:$0xf]
        %v1056 = vld [vmem:[%s291 + $0x24] sm:$0xf]
        %v1057 = vld [vmem:[%s291 + $0x28] sm:$0xf]
        %v1058 = vld [vmem:[%s291 + $0x2c] sm:$0xf]
        %v1059 = vld [vmem:[%s291 + $0x30] sm:$0xf]
        %v1060 = vld [vmem:[%s291 + $0x34] sm:$0xf]
        %v1061 = vld [vmem:[%s291 + $0x38] sm:$0xf]
        %v1062 = vld [vmem:[%s291 + $0x3c] sm:$0xf]
        %v1063 = vld [vmem:[%s291 + $0x40] sm:$0xf]
        %v1064 = vld [vmem:[%s291 + $0x44] sm:$0xf]
        %v1065 = vld [vmem:[%s291 + $0x48] sm:$0xf]
        %v1066 = vld [vmem:[%s291 + $0x4c] sm:$0xf]
        %v1067 = vld [vmem:[%s291 + $0x50] sm:$0xf]
        %v1068 = vld [vmem:[%s291 + $0x54] sm:$0xf]
        %v1069 = vld [vmem:[%s291 + $0x58] sm:$0xf]
        %v1070 = vld [vmem:[%s291 + $0x5c] sm:$0xf]
        %v1071 = vld [vmem:[%s291 + $0x60] sm:$0xf]
        %v1072 = vld [vmem:[%s291 + $0x64] sm:$0xf]
        %v1073 = vld [vmem:[%s291 + $0x68] sm:$0xf]
        %v1074 = vld [vmem:[%s291 + $0x6c] sm:$0xf]
        %v1075 = vld [vmem:[%s291 + $0x70] sm:$0xf]
        %v1076 = vld [vmem:[%s291 + $0x74] sm:$0xf]
        %v1077 = vld [vmem:[%s291 + $0x78] sm:$0xf]
        %v1078 = vld [vmem:[%s291 + $0x7c] sm:$0xf]
        %v1079 = vld [vmem:[%s291 + $0x80] sm:$0xf]
        %v1080 = vld [vmem:[%s291 + $0x84] sm:$0xf]
        %v1081 = vld [vmem:[%s291 + $0x88] sm:$0xf]
        %v1082 = vld [vmem:[%s291 + $0x8c] sm:$0xf]
        %v1083 = vld [vmem:[%s291 + $0x90] sm:$0xf]
        %v1084 = vld [vmem:[%s291 + $0x94] sm:$0xf]
        %v1085 = vld [vmem:[%s291 + $0x98] sm:$0x1]
        %v1123 = vunpack.c.l.b16 %v1049
        %v1124 = vunpack.c.l.b16 %v1050
        %v1125 = vunpack.c.l.b16 %v1051
        %v1126 = vunpack.c.l.b16 %v1052
        %v1127 = vunpack.c.l.b16 %v1053
        %v1128 = vunpack.c.l.b16 %v1054
        %v1129 = vunpack.c.l.b16 %v1055
        %v1130 = vunpack.c.l.b16 %v1056
        %v1131 = vunpack.c.l.b16 %v1057
        %v1132 = vunpack.c.l.b16 %v1058
        %v1133 = vunpack.c.l.b16 %v1059
        %v1134 = vunpack.c.l.b16 %v1060
        %v1135 = vunpack.c.l.b16 %v1061
        %v1136 = vunpack.c.l.b16 %v1062
        %v1137 = vunpack.c.l.b16 %v1063
        %v1138 = vunpack.c.l.b16 %v1064
        %v1139 = vunpack.c.l.b16 %v1065
        %v1140 = vunpack.c.l.b16 %v1066
        %v1141 = vunpack.c.l.b16 %v1067
        %v1142 = vunpack.c.l.b16 %v1068
        %v1143 = vunpack.c.l.b16 %v1069
        %v1144 = vunpack.c.l.b16 %v1070
        %v1145 = vunpack.c.l.b16 %v1071
        %v1146 = vunpack.c.l.b16 %v1072
        %v1147 = vunpack.c.l.b16 %v1073
        %v1148 = vunpack.c.l.b16 %v1074
        %v1149 = vunpack.c.l.b16 %v1075
        %v1150 = vunpack.c.l.b16 %v1076
        %v1151 = vunpack.c.l.b16 %v1077
        %v1152 = vunpack.c.l.b16 %v1078
        %v1153 = vunpack.c.l.b16 %v1079
        %v1154 = vunpack.c.l.b16 %v1080
        %v1155 = vunpack.c.l.b16 %v1081
        %v1156 = vunpack.c.l.b16 %v1082
        %v1157 = vunpack.c.l.b16 %v1083
        %v1158 = vunpack.c.l.b16 %v1084
        %v1159 = vunpack.c.l.b16 %v1085
        %v1160 = vpack.c.b16 %v1124, %v1123
        %v1161 = vpack.c.b16 %v1126, %v1125
        %v1162 = vpack.c.b16 %v1128, %v1127
        %v1163 = vpack.c.b16 %v1130, %v1129
        %v1164 = vpack.c.b16 %v1132, %v1131
        %v1165 = vpack.c.b16 %v1134, %v1133
        %v1166 = vpack.c.b16 %v1136, %v1135
        %v1167 = vpack.c.b16 %v1138, %v1137
        %v1168 = vpack.c.b16 %v1140, %v1139
        %v1169 = vpack.c.b16 %v1142, %v1141
        %v1170 = vpack.c.b16 %v1144, %v1143
        %v1171 = vpack.c.b16 %v1146, %v1145
        %v1172 = vpack.c.b16 %v1148, %v1147
        %v1173 = vpack.c.b16 %v1150, %v1149
        %v1174 = vpack.c.b16 %v1152, %v1151
        %v1175 = vpack.c.b16 %v1154, %v1153
        %v1176 = vpack.c.b16 %v1156, %v1155
        %v1177 = vpack.c.b16 %v1158, %v1157
        %v1178 = vpack.c.b16 %v1159, %v1159
        %v1179 = vrot.slane %v1160, 1
        %v1180 = vrot.slane %v1161, 1
        %v1181 = vsel %vm938, %v1179, %v1180
        %v1182 = vrot.slane %v1162, 1
        %v1183 = vsel %vm938, %v1180, %v1182
        %v1184 = vrot.slane %v1163, 1
        %v1185 = vsel %vm938, %v1182, %v1184
        %v1186 = vrot.slane %v1164, 1
        %v1187 = vsel %vm938, %v1184, %v1186
        %v1188 = vrot.slane %v1165, 1
        %v1189 = vsel %vm938, %v1186, %v1188
        %v1190 = vrot.slane %v1166, 1
        %v1191 = vsel %vm938, %v1188, %v1190
        %v1192 = vrot.slane %v1167, 1
        %v1193 = vsel %vm938, %v1190, %v1192
        %v1194 = vrot.slane %v1168, 1
        %v1195 = vsel %vm938, %v1192, %v1194
        %v1196 = vrot.slane %v1169, 1
        %v1197 = vsel %vm938, %v1194, %v1196
        %v1198 = vrot.slane %v1170, 1
        %v1199 = vsel %vm938, %v1196, %v1198
        %v1200 = vrot.slane %v1171, 1
        %v1201 = vsel %vm938, %v1198, %v1200
        %v1202 = vrot.slane %v1172, 1
        %v1203 = vsel %vm938, %v1200, %v1202
        %v1204 = vrot.slane %v1173, 1
        %v1205 = vsel %vm938, %v1202, %v1204
        %v1206 = vrot.slane %v1174, 1
        %v1207 = vsel %vm938, %v1204, %v1206
        %v1208 = vrot.slane %v1175, 1
        %v1209 = vsel %vm938, %v1206, %v1208
        %v1210 = vrot.slane %v1176, 1
        %v1211 = vsel %vm938, %v1208, %v1210
        %v1212 = vrot.slane %v1177, 1
        %v1213 = vsel %vm938, %v1210, %v1212
        %v1214 = vrot.slane %v1178, 1
        %v1215 = vsel %vm938, %v1212, %v1214
        %1216 = vrot.lane.b32.xlu0 %v1181, 12
        %v1217 = vpop.permute.xlu0 %1216
        %1218 = vrot.lane.b32.xlu0 %v1183, 12
        %v1219 = vpop.permute.xlu0 %1218
        %1220 = vrot.lane.b32.xlu0 %v1185, 12
        %v1221 = vpop.permute.xlu0 %1220
        %1222 = vrot.lane.b32.xlu0 %v1187, 12
        %v1223 = vpop.permute.xlu0 %1222
        %1224 = vrot.lane.b32.xlu0 %v1189, 12
        %v1225 = vpop.permute.xlu0 %1224
        %1226 = vrot.lane.b32.xlu0 %v1191, 12
        %v1227 = vpop.permute.xlu0 %1226
        %1228 = vrot.lane.b32.xlu0 %v1193, 12
        %v1229 = vpop.permute.xlu0 %1228
        %1230 = vrot.lane.b32.xlu0 %v1195, 12
        %v1231 = vpop.permute.xlu0 %1230
        %1232 = vrot.lane.b32.xlu0 %v1197, 12
        %v1233 = vpop.permute.xlu0 %1232
        %1234 = vrot.lane.b32.xlu0 %v1199, 12
        %v1235 = vpop.permute.xlu0 %1234
        %1236 = vrot.lane.b32.xlu0 %v1201, 12
        %v1237 = vpop.permute.xlu0 %1236
        %1238 = vrot.lane.b32.xlu0 %v1203, 12
        %v1239 = vpop.permute.xlu0 %1238
        %1240 = vrot.lane.b32.xlu0 %v1205, 12
        %v1241 = vpop.permute.xlu0 %1240
        %1242 = vrot.lane.b32.xlu0 %v1207, 12
        %v1243 = vpop.permute.xlu0 %1242
        %1244 = vrot.lane.b32.xlu0 %v1209, 12
        %v1245 = vpop.permute.xlu0 %1244
        %1246 = vrot.lane.b32.xlu0 %v1211, 12
        %v1247 = vpop.permute.xlu0 %1246
        %1248 = vrot.lane.b32.xlu0 %v1213, 12
        %v1249 = vpop.permute.xlu0 %1248
        %1250 = vrot.lane.b32.xlu0 %v1215, 12
        %v1251 = vpop.permute.xlu0 %1250
        %vm1270 = vcmask 130144
        %1271 = vst.msk [vmem:[#allocation2] sm:$0xff] %vm1270, %v1217
        %1272 = vst.msk [vmem:[#allocation2 + $0x8] sm:$0xff] %vm1270, %v1219
        %1273 = vst.msk [vmem:[#allocation2 + $0x10] sm:$0xff] %vm1270, %v1221
        %1274 = vst.msk [vmem:[#allocation2 + $0x18] sm:$0xff] %vm1270, %v1223
        %1275 = vst.msk [vmem:[#allocation2 + $0x20] sm:$0xff] %vm1270, %v1225
        %1276 = vst.msk [vmem:[#allocation2 + $0x28] sm:$0xff] %vm1270, %v1227
        %1277 = vst.msk [vmem:[#allocation2 + $0x30] sm:$0xff] %vm1270, %v1229
        %1278 = vst.msk [vmem:[#allocation2 + $0x38] sm:$0xff] %vm1270, %v1231
        %1279 = vst.msk [vmem:[#allocation2 + $0x40] sm:$0xff] %vm1270, %v1233
        %1280 = vst.msk [vmem:[#allocation2 + $0x48] sm:$0xff] %vm1270, %v1235
        %1281 = vst.msk [vmem:[#allocation2 + $0x50] sm:$0xff] %vm1270, %v1237
        %1282 = vst.msk [vmem:[#allocation2 + $0x58] sm:$0xff] %vm1270, %v1239
        %1283 = vst.msk [vmem:[#allocation2 + $0x60] sm:$0xff] %vm1270, %v1241
        %1284 = vst.msk [vmem:[#allocation2 + $0x68] sm:$0xff] %vm1270, %v1243
        %1285 = vst.msk [vmem:[#allocation2 + $0x70] sm:$0xff] %vm1270, %v1245
        %1286 = vst.msk [vmem:[#allocation2 + $0x78] sm:$0xff] %vm1270, %v1247
        %1287 = vst.msk [vmem:[#allocation2 + $0x80] sm:$0xff] %vm1270, %v1249
        %1288 = vst.msk [vmem:[#allocation2 + $0x88] sm:$0xff] %vm1270, %v1251
        %v1289 = vld [vmem:[%s291 + $0x8] sm:$0xe]
        %v1290 = vld [vmem:[%s291 + $0xc] sm:$0xf]
        %v1291 = vld [vmem:[%s291 + $0x10] sm:$0xf]
        %v1292 = vld [vmem:[%s291 + $0x14] sm:$0xf]
        %v1293 = vld [vmem:[%s291 + $0x18] sm:$0xf]
        %v1294 = vld [vmem:[%s291 + $0x1c] sm:$0xf]
        %v1295 = vld [vmem:[%s291 + $0x20] sm:$0xf]
        %v1296 = vld [vmem:[%s291 + $0x24] sm:$0xf]
        %v1297 = vld [vmem:[%s291 + $0x28] sm:$0xf]
        %v1298 = vld [vmem:[%s291 + $0x2c] sm:$0xf]
        %v1299 = vld [vmem:[%s291 + $0x30] sm:$0xf]
        %v1300 = vld [vmem:[%s291 + $0x34] sm:$0xf]
        %v1301 = vld [vmem:[%s291 + $0x38] sm:$0xf]
        %v1302 = vld [vmem:[%s291 + $0x3c] sm:$0xf]
        %v1303 = vld [vmem:[%s291 + $0x40] sm:$0xf]
        %v1304 = vld [vmem:[%s291 + $0x44] sm:$0xf]
        %v1305 = vld [vmem:[%s291 + $0x48] sm:$0xf]
        %v1306 = vld [vmem:[%s291 + $0x4c] sm:$0xf]
        %v1307 = vld [vmem:[%s291 + $0x50] sm:$0xf]
        %v1308 = vld [vmem:[%s291 + $0x54] sm:$0xf]
        %v1309 = vld [vmem:[%s291 + $0x58] sm:$0xf]
        %v1310 = vld [vmem:[%s291 + $0x5c] sm:$0xf]
        %v1311 = vld [vmem:[%s291 + $0x60] sm:$0xf]
        %v1312 = vld [vmem:[%s291 + $0x64] sm:$0xf]
        %v1313 = vld [vmem:[%s291 + $0x68] sm:$0xf]
        %v1314 = vld [vmem:[%s291 + $0x6c] sm:$0xf]
        %v1315 = vld [vmem:[%s291 + $0x70] sm:$0xf]
        %v1316 = vld [vmem:[%s291 + $0x74] sm:$0xf]
        %v1317 = vld [vmem:[%s291 + $0x78] sm:$0xf]
        %v1318 = vld [vmem:[%s291 + $0x7c] sm:$0xf]
        %v1319 = vld [vmem:[%s291 + $0x80] sm:$0xf]
        %v1320 = vld [vmem:[%s291 + $0x84] sm:$0xf]
        %v1321 = vld [vmem:[%s291 + $0x88] sm:$0xf]
        %v1322 = vld [vmem:[%s291 + $0x8c] sm:$0xf]
        %v1323 = vld [vmem:[%s291 + $0x90] sm:$0xf]
        %v1324 = vld [vmem:[%s291 + $0x94] sm:$0xf]
        %v1325 = vld [vmem:[%s291 + $0x98] sm:$0x3]
        %v1363 = vunpack.c.l.b16 %v1289
        %v1364 = vunpack.c.l.b16 %v1290
        %v1365 = vunpack.c.l.b16 %v1291
        %v1366 = vunpack.c.l.b16 %v1292
        %v1367 = vunpack.c.l.b16 %v1293
        %v1368 = vunpack.c.l.b16 %v1294
        %v1369 = vunpack.c.l.b16 %v1295
        %v1370 = vunpack.c.l.b16 %v1296
        %v1371 = vunpack.c.l.b16 %v1297
        %v1372 = vunpack.c.l.b16 %v1298
        %v1373 = vunpack.c.l.b16 %v1299
        %v1374 = vunpack.c.l.b16 %v1300
        %v1375 = vunpack.c.l.b16 %v1301
        %v1376 = vunpack.c.l.b16 %v1302
        %v1377 = vunpack.c.l.b16 %v1303
        %v1378 = vunpack.c.l.b16 %v1304
        %v1379 = vunpack.c.l.b16 %v1305
        %v1380 = vunpack.c.l.b16 %v1306
        %v1381 = vunpack.c.l.b16 %v1307
        %v1382 = vunpack.c.l.b16 %v1308
        %v1383 = vunpack.c.l.b16 %v1309
        %v1384 = vunpack.c.l.b16 %v1310
        %v1385 = vunpack.c.l.b16 %v1311
        %v1386 = vunpack.c.l.b16 %v1312
        %v1387 = vunpack.c.l.b16 %v1313
        %v1388 = vunpack.c.l.b16 %v1314
        %v1389 = vunpack.c.l.b16 %v1315
        %v1390 = vunpack.c.l.b16 %v1316
        %v1391 = vunpack.c.l.b16 %v1317
        %v1392 = vunpack.c.l.b16 %v1318
        %v1393 = vunpack.c.l.b16 %v1319
        %v1394 = vunpack.c.l.b16 %v1320
        %v1395 = vunpack.c.l.b16 %v1321
        %v1396 = vunpack.c.l.b16 %v1322
        %v1397 = vunpack.c.l.b16 %v1323
        %v1398 = vunpack.c.l.b16 %v1324
        %v1399 = vunpack.c.l.b16 %v1325
        %v1400 = vpack.c.b16 %v1364, %v1363
        %v1401 = vpack.c.b16 %v1366, %v1365
        %v1402 = vpack.c.b16 %v1368, %v1367
        %v1403 = vpack.c.b16 %v1370, %v1369
        %v1404 = vpack.c.b16 %v1372, %v1371
        %v1405 = vpack.c.b16 %v1374, %v1373
        %v1406 = vpack.c.b16 %v1376, %v1375
        %v1407 = vpack.c.b16 %v1378, %v1377
        %v1408 = vpack.c.b16 %v1380, %v1379
        %v1409 = vpack.c.b16 %v1382, %v1381
        %v1410 = vpack.c.b16 %v1384, %v1383
        %v1411 = vpack.c.b16 %v1386, %v1385
        %v1412 = vpack.c.b16 %v1388, %v1387
        %v1413 = vpack.c.b16 %v1390, %v1389
        %v1414 = vpack.c.b16 %v1392, %v1391
        %v1415 = vpack.c.b16 %v1394, %v1393
        %v1416 = vpack.c.b16 %v1396, %v1395
        %v1417 = vpack.c.b16 %v1398, %v1397
        %v1418 = vpack.c.b16 %v1399, %v1399
        %vm1419 = vsmask.f32 6400
        %v1421 = vshrl.u32 %v1400, 16
        %v1423 = vrot.slane %v1421, 1
        %v1424 = vshll.u32 %v1400, 16
        %v1426 = vrot.slane %v1424, 2
        %v1427 = vor.u32 %v1423, %v1426
        %v1429 = vshrl.u32 %v1401, 16
        %v1431 = vrot.slane %v1429, 1
        %v1432 = vshll.u32 %v1401, 16
        %v1434 = vrot.slane %v1432, 2
        %v1435 = vor.u32 %v1431, %v1434
        %v1436 = vsel %vm1419, %v1427, %v1435
        %v1438 = vshrl.u32 %v1402, 16
        %v1440 = vrot.slane %v1438, 1
        %v1441 = vshll.u32 %v1402, 16
        %v1443 = vrot.slane %v1441, 2
        %v1444 = vor.u32 %v1440, %v1443
        %v1445 = vsel %vm1419, %v1435, %v1444
        %v1447 = vshrl.u32 %v1403, 16
        %v1449 = vrot.slane %v1447, 1
        %v1450 = vshll.u32 %v1403, 16
        %v1452 = vrot.slane %v1450, 2
        %v1453 = vor.u32 %v1449, %v1452
        %v1454 = vsel %vm1419, %v1444, %v1453
        %v1456 = vshrl.u32 %v1404, 16
        %v1458 = vrot.slane %v1456, 1
        %v1459 = vshll.u32 %v1404, 16
        %v1461 = vrot.slane %v1459, 2
        %v1462 = vor.u32 %v1458, %v1461
        %v1463 = vsel %vm1419, %v1453, %v1462
        %v1465 = vshrl.u32 %v1405, 16
        %v1467 = vrot.slane %v1465, 1
        %v1468 = vshll.u32 %v1405, 16
        %v1470 = vrot.slane %v1468, 2
        %v1471 = vor.u32 %v1467, %v1470
        %v1472 = vsel %vm1419, %v1462, %v1471
        %v1474 = vshrl.u32 %v1406, 16
        %v1476 = vrot.slane %v1474, 1
        %v1477 = vshll.u32 %v1406, 16
        %v1479 = vrot.slane %v1477, 2
        %v1480 = vor.u32 %v1476, %v1479
        %v1481 = vsel %vm1419, %v1471, %v1480
        %v1483 = vshrl.u32 %v1407, 16
        %v1485 = vrot.slane %v1483, 1
        %v1486 = vshll.u32 %v1407, 16
        %v1488 = vrot.slane %v1486, 2
        %v1489 = vor.u32 %v1485, %v1488
        %v1490 = vsel %vm1419, %v1480, %v1489
        %v1492 = vshrl.u32 %v1408, 16
        %v1494 = vrot.slane %v1492, 1
        %v1495 = vshll.u32 %v1408, 16
        %v1497 = vrot.slane %v1495, 2
        %v1498 = vor.u32 %v1494, %v1497
        %v1499 = vsel %vm1419, %v1489, %v1498
        %v1501 = vshrl.u32 %v1409, 16
        %v1503 = vrot.slane %v1501, 1
        %v1504 = vshll.u32 %v1409, 16
        %v1506 = vrot.slane %v1504, 2
        %v1507 = vor.u32 %v1503, %v1506
        %v1508 = vsel %vm1419, %v1498, %v1507
        %v1510 = vshrl.u32 %v1410, 16
        %v1512 = vrot.slane %v1510, 1
        %v1513 = vshll.u32 %v1410, 16
        %v1515 = vrot.slane %v1513, 2
        %v1516 = vor.u32 %v1512, %v1515
        %v1517 = vsel %vm1419, %v1507, %v1516
        %v1519 = vshrl.u32 %v1411, 16
        %v1521 = vrot.slane %v1519, 1
        %v1522 = vshll.u32 %v1411, 16
        %v1524 = vrot.slane %v1522, 2
        %v1525 = vor.u32 %v1521, %v1524
        %v1526 = vsel %vm1419, %v1516, %v1525
        %v1528 = vshrl.u32 %v1412, 16
        %v1530 = vrot.slane %v1528, 1
        %v1531 = vshll.u32 %v1412, 16
        %v1533 = vrot.slane %v1531, 2
        %v1534 = vor.u32 %v1530, %v1533
        %v1535 = vsel %vm1419, %v1525, %v1534
        %v1537 = vshrl.u32 %v1413, 16
        %v1539 = vrot.slane %v1537, 1
        %v1540 = vshll.u32 %v1413, 16
        %v1542 = vrot.slane %v1540, 2
        %v1543 = vor.u32 %v1539, %v1542
        %v1544 = vsel %vm1419, %v1534, %v1543
        %v1546 = vshrl.u32 %v1414, 16
        %v1548 = vrot.slane %v1546, 1
        %v1549 = vshll.u32 %v1414, 16
        %v1551 = vrot.slane %v1549, 2
        %v1552 = vor.u32 %v1548, %v1551
        %v1553 = vsel %vm1419, %v1543, %v1552
        %v1555 = vshrl.u32 %v1415, 16
        %v1557 = vrot.slane %v1555, 1
        %v1558 = vshll.u32 %v1415, 16
        %v1560 = vrot.slane %v1558, 2
        %v1561 = vor.u32 %v1557, %v1560
        %v1562 = vsel %vm1419, %v1552, %v1561
        %v1564 = vshrl.u32 %v1416, 16
        %v1566 = vrot.slane %v1564, 1
        %v1567 = vshll.u32 %v1416, 16
        %v1569 = vrot.slane %v1567, 2
        %v1570 = vor.u32 %v1566, %v1569
        %v1571 = vsel %vm1419, %v1561, %v1570
        %v1573 = vshrl.u32 %v1417, 16
        %v1575 = vrot.slane %v1573, 1
        %v1576 = vshll.u32 %v1417, 16
        %v1578 = vrot.slane %v1576, 2
        %v1579 = vor.u32 %v1575, %v1578
        %v1580 = vsel %vm1419, %v1570, %v1579
        %v1582 = vshrl.u32 %v1418, 16
        %v1584 = vrot.slane %v1582, 1
        %v1585 = vshll.u32 %v1418, 16
        %v1587 = vrot.slane %v1585, 2
        %v1588 = vor.u32 %v1584, %v1587
        %v1589 = vsel %vm1419, %v1579, %v1588
        %1590 = vrot.lane.b32.xlu0 %v1436, 16
        %v1591 = vpop.permute.xlu0 %1590
        %1592 = vrot.lane.b32.xlu0 %v1445, 16
        %v1593 = vpop.permute.xlu0 %1592
        %1594 = vrot.lane.b32.xlu0 %v1454, 16
        %v1595 = vpop.permute.xlu0 %1594
        %1596 = vrot.lane.b32.xlu0 %v1463, 16
        %v1597 = vpop.permute.xlu0 %1596
        %1598 = vrot.lane.b32.xlu0 %v1472, 16
        %v1599 = vpop.permute.xlu0 %1598
        %1600 = vrot.lane.b32.xlu0 %v1481, 16
        %v1601 = vpop.permute.xlu0 %1600
        %1602 = vrot.lane.b32.xlu0 %v1490, 16
        %v1603 = vpop.permute.xlu0 %1602
        %1604 = vrot.lane.b32.xlu0 %v1499, 16
        %v1605 = vpop.permute.xlu0 %1604
        %1606 = vrot.lane.b32.xlu0 %v1508, 16
        %v1607 = vpop.permute.xlu0 %1606
        %1608 = vrot.lane.b32.xlu0 %v1517, 16
        %v1609 = vpop.permute.xlu0 %1608
        %1610 = vrot.lane.b32.xlu0 %v1526, 16
        %v1611 = vpop.permute.xlu0 %1610
        %1612 = vrot.lane.b32.xlu0 %v1535, 16
        %v1613 = vpop.permute.xlu0 %1612
        %1614 = vrot.lane.b32.xlu0 %v1544, 16
        %v1615 = vpop.permute.xlu0 %1614
        %1616 = vrot.lane.b32.xlu0 %v1553, 16
        %v1617 = vpop.permute.xlu0 %1616
        %1618 = vrot.lane.b32.xlu0 %v1562, 16
        %v1619 = vpop.permute.xlu0 %1618
        %1620 = vrot.lane.b32.xlu0 %v1571, 16
        %v1621 = vpop.permute.xlu0 %1620
        %1622 = vrot.lane.b32.xlu0 %v1580, 16
        %v1623 = vpop.permute.xlu0 %1622
        %1624 = vrot.lane.b32.xlu0 %v1589, 16
        %v1625 = vpop.permute.xlu0 %1624
        %vm1644 = vcmask 162944
        %1645 = vst.msk [vmem:[#allocation2] sm:$0xff] %vm1644, %v1591
        %1646 = vst.msk [vmem:[#allocation2 + $0x8] sm:$0xff] %vm1644, %v1593
        %1647 = vst.msk [vmem:[#allocation2 + $0x10] sm:$0xff] %vm1644, %v1595
        %1648 = vst.msk [vmem:[#allocation2 + $0x18] sm:$0xff] %vm1644, %v1597
        %1649 = vst.msk [vmem:[#allocation2 + $0x20] sm:$0xff] %vm1644, %v1599
        %1650 = vst.msk [vmem:[#allocation2 + $0x28] sm:$0xff] %vm1644, %v1601
        %1651 = vst.msk [vmem:[#allocation2 + $0x30] sm:$0xff] %vm1644, %v1603
        %1652 = vst.msk [vmem:[#allocation2 + $0x38] sm:$0xff] %vm1644, %v1605
        %1653 = vst.msk [vmem:[#allocation2 + $0x40] sm:$0xff] %vm1644, %v1607
        %1654 = vst.msk [vmem:[#allocation2 + $0x48] sm:$0xff] %vm1644, %v1609
        %1655 = vst.msk [vmem:[#allocation2 + $0x50] sm:$0xff] %vm1644, %v1611
        %1656 = vst.msk [vmem:[#allocation2 + $0x58] sm:$0xff] %vm1644, %v1613
        %1657 = vst.msk [vmem:[#allocation2 + $0x60] sm:$0xff] %vm1644, %v1615
        %1658 = vst.msk [vmem:[#allocation2 + $0x68] sm:$0xff] %vm1644, %v1617
        %1659 = vst.msk [vmem:[#allocation2 + $0x70] sm:$0xff] %vm1644, %v1619
        %1660 = vst.msk [vmem:[#allocation2 + $0x78] sm:$0xff] %vm1644, %v1621
        %1661 = vst.msk [vmem:[#allocation2 + $0x80] sm:$0xff] %vm1644, %v1623
        %1662 = vst.msk [vmem:[#allocation2 + $0x88] sm:$0xff] %vm1644, %v1625
        %v1663 = vld [vmem:[%s291 + $0x8] sm:$0xc]
        %v1664 = vld [vmem:[%s291 + $0xc] sm:$0xf]
        %v1665 = vld [vmem:[%s291 + $0x10] sm:$0xf]
        %v1666 = vld [vmem:[%s291 + $0x14] sm:$0xf]
        %v1667 = vld [vmem:[%s291 + $0x18] sm:$0xf]
        %v1668 = vld [vmem:[%s291 + $0x1c] sm:$0xf]
        %v1669 = vld [vmem:[%s291 + $0x20] sm:$0xf]
        %v1670 = vld [vmem:[%s291 + $0x24] sm:$0xf]
        %v1671 = vld [vmem:[%s291 + $0x28] sm:$0xf]
        %v1672 = vld [vmem:[%s291 + $0x2c] sm:$0xf]
        %v1673 = vld [vmem:[%s291 + $0x30] sm:$0xf]
        %v1674 = vld [vmem:[%s291 + $0x34] sm:$0xf]
        %v1675 = vld [vmem:[%s291 + $0x38] sm:$0xf]
        %v1676 = vld [vmem:[%s291 + $0x3c] sm:$0xf]
        %v1677 = vld [vmem:[%s291 + $0x40] sm:$0xf]
        %v1678 = vld [vmem:[%s291 + $0x44] sm:$0xf]
        %v1679 = vld [vmem:[%s291 + $0x48] sm:$0xf]
        %v1680 = vld [vmem:[%s291 + $0x4c] sm:$0xf]
        %v1681 = vld [vmem:[%s291 + $0x50] sm:$0xf]
        %v1682 = vld [vmem:[%s291 + $0x54] sm:$0xf]
        %v1683 = vld [vmem:[%s291 + $0x58] sm:$0xf]
        %v1684 = vld [vmem:[%s291 + $0x5c] sm:$0xf]
        %v1685 = vld [vmem:[%s291 + $0x60] sm:$0xf]
        %v1686 = vld [vmem:[%s291 + $0x64] sm:$0xf]
        %v1687 = vld [vmem:[%s291 + $0x68] sm:$0xf]
        %v1688 = vld [vmem:[%s291 + $0x6c] sm:$0xf]
        %v1689 = vld [vmem:[%s291 + $0x70] sm:$0xf]
        %v1690 = vld [vmem:[%s291 + $0x74] sm:$0xf]
        %v1691 = vld [vmem:[%s291 + $0x78] sm:$0xf]
        %v1692 = vld [vmem:[%s291 + $0x7c] sm:$0xf]
        %v1693 = vld [vmem:[%s291 + $0x80] sm:$0xf]
        %v1694 = vld [vmem:[%s291 + $0x84] sm:$0xf]
        %v1695 = vld [vmem:[%s291 + $0x88] sm:$0xf]
        %v1696 = vld [vmem:[%s291 + $0x8c] sm:$0xf]
        %v1697 = vld [vmem:[%s291 + $0x90] sm:$0xf]
        %v1698 = vld [vmem:[%s291 + $0x94] sm:$0xf]
        %v1699 = vld [vmem:[%s291 + $0x98] sm:$0x3]
        %v1737 = vunpack.c.l.b16 %v1663
        %v1738 = vunpack.c.l.b16 %v1664
        %v1739 = vunpack.c.l.b16 %v1665
        %v1740 = vunpack.c.l.b16 %v1666
        %v1741 = vunpack.c.l.b16 %v1667
        %v1742 = vunpack.c.l.b16 %v1668
        %v1743 = vunpack.c.l.b16 %v1669
        %v1744 = vunpack.c.l.b16 %v1670
        %v1745 = vunpack.c.l.b16 %v1671
        %v1746 = vunpack.c.l.b16 %v1672
        %v1747 = vunpack.c.l.b16 %v1673
        %v1748 = vunpack.c.l.b16 %v1674
        %v1749 = vunpack.c.l.b16 %v1675
        %v1750 = vunpack.c.l.b16 %v1676
        %v1751 = vunpack.c.l.b16 %v1677
        %v1752 = vunpack.c.l.b16 %v1678
        %v1753 = vunpack.c.l.b16 %v1679
        %v1754 = vunpack.c.l.b16 %v1680
        %v1755 = vunpack.c.l.b16 %v1681
        %v1756 = vunpack.c.l.b16 %v1682
        %v1757 = vunpack.c.l.b16 %v1683
        %v1758 = vunpack.c.l.b16 %v1684
        %v1759 = vunpack.c.l.b16 %v1685
        %v1760 = vunpack.c.l.b16 %v1686
        %v1761 = vunpack.c.l.b16 %v1687
        %v1762 = vunpack.c.l.b16 %v1688
        %v1763 = vunpack.c.l.b16 %v1689
        %v1764 = vunpack.c.l.b16 %v1690
        %v1765 = vunpack.c.l.b16 %v1691
        %v1766 = vunpack.c.l.b16 %v1692
        %v1767 = vunpack.c.l.b16 %v1693
        %v1768 = vunpack.c.l.b16 %v1694
        %v1769 = vunpack.c.l.b16 %v1695
        %v1770 = vunpack.c.l.b16 %v1696
        %v1771 = vunpack.c.l.b16 %v1697
        %v1772 = vunpack.c.l.b16 %v1698
        %v1773 = vunpack.c.l.b16 %v1699
        %v1774 = vpack.c.b16 %v1738, %v1737
        %v1775 = vpack.c.b16 %v1740, %v1739
        %v1776 = vpack.c.b16 %v1742, %v1741
        %v1777 = vpack.c.b16 %v1744, %v1743
        %v1778 = vpack.c.b16 %v1746, %v1745
        %v1779 = vpack.c.b16 %v1748, %v1747
        %v1780 = vpack.c.b16 %v1750, %v1749
        %v1781 = vpack.c.b16 %v1752, %v1751
        %v1782 = vpack.c.b16 %v1754, %v1753
        %v1783 = vpack.c.b16 %v1756, %v1755
        %v1784 = vpack.c.b16 %v1758, %v1757
        %v1785 = vpack.c.b16 %v1760, %v1759
        %v1786 = vpack.c.b16 %v1762, %v1761
        %v1787 = vpack.c.b16 %v1764, %v1763
        %v1788 = vpack.c.b16 %v1766, %v1765
        %v1789 = vpack.c.b16 %v1768, %v1767
        %v1790 = vpack.c.b16 %v1770, %v1769
        %v1791 = vpack.c.b16 %v1772, %v1771
        %v1792 = vpack.c.b16 %v1773, %v1773
        %vm1793 = vcmask 1045504
        %v1794 = vrot.slane %v1774, 2
        %v1795 = vrot.slane %v1775, 2
        %v1796 = vsel %vm1793, %v1794, %v1795
        %v1797 = vrot.slane %v1776, 2
        %v1798 = vsel %vm1793, %v1795, %v1797
        %v1799 = vrot.slane %v1777, 2
        %v1800 = vsel %vm1793, %v1797, %v1799
        %v1801 = vrot.slane %v1778, 2
        %v1802 = vsel %vm1793, %v1799, %v1801
        %v1803 = vrot.slane %v1779, 2
        %v1804 = vsel %vm1793, %v1801, %v1803
        %v1805 = vrot.slane %v1780, 2
        %v1806 = vsel %vm1793, %v1803, %v1805
        %v1807 = vrot.slane %v1781, 2
        %v1808 = vsel %vm1793, %v1805, %v1807
        %v1809 = vrot.slane %v1782, 2
        %v1810 = vsel %vm1793, %v1807, %v1809
        %v1811 = vrot.slane %v1783, 2
        %v1812 = vsel %vm1793, %v1809, %v1811
        %v1813 = vrot.slane %v1784, 2
        %v1814 = vsel %vm1793, %v1811, %v1813
        %v1815 = vrot.slane %v1785, 2
        %v1816 = vsel %vm1793, %v1813, %v1815
        %v1817 = vrot.slane %v1786, 2
        %v1818 = vsel %vm1793, %v1815, %v1817
        %v1819 = vrot.slane %v1787, 2
        %v1820 = vsel %vm1793, %v1817, %v1819
        %v1821 = vrot.slane %v1788, 2
        %v1822 = vsel %vm1793, %v1819, %v1821
        %v1823 = vrot.slane %v1789, 2
        %v1824 = vsel %vm1793, %v1821, %v1823
        %v1825 = vrot.slane %v1790, 2
        %v1826 = vsel %vm1793, %v1823, %v1825
        %v1827 = vrot.slane %v1791, 2
        %v1828 = vsel %vm1793, %v1825, %v1827
        %v1829 = vrot.slane %v1792, 2
        %v1830 = vsel %vm1793, %v1827, %v1829
        %1831 = vrot.lane.b32.xlu0 %v1796, 20
        %v1832 = vpop.permute.xlu0 %1831
        %1833 = vrot.lane.b32.xlu0 %v1798, 20
        %v1834 = vpop.permute.xlu0 %1833
        %1835 = vrot.lane.b32.xlu0 %v1800, 20
        %v1836 = vpop.permute.xlu0 %1835
        %1837 = vrot.lane.b32.xlu0 %v1802, 20
        %v1838 = vpop.permute.xlu0 %1837
        %1839 = vrot.lane.b32.xlu0 %v1804, 20
        %v1840 = vpop.permute.xlu0 %1839
        %1841 = vrot.lane.b32.xlu0 %v1806, 20
        %v1842 = vpop.permute.xlu0 %1841
        %1843 = vrot.lane.b32.xlu0 %v1808, 20
        %v1844 = vpop.permute.xlu0 %1843
        %1845 = vrot.lane.b32.xlu0 %v1810, 20
        %v1846 = vpop.permute.xlu0 %1845
        %1847 = vrot.lane.b32.xlu0 %v1812, 20
        %v1848 = vpop.permute.xlu0 %1847
        %1849 = vrot.lane.b32.xlu0 %v1814, 20
        %v1850 = vpop.permute.xlu0 %1849
        %1851 = vrot.lane.b32.xlu0 %v1816, 20
        %v1852 = vpop.permute.xlu0 %1851
        %1853 = vrot.lane.b32.xlu0 %v1818, 20
        %v1854 = vpop.permute.xlu0 %1853
        %1855 = vrot.lane.b32.xlu0 %v1820, 20
        %v1856 = vpop.permute.xlu0 %1855
        %1857 = vrot.lane.b32.xlu0 %v1822, 20
        %v1858 = vpop.permute.xlu0 %1857
        %1859 = vrot.lane.b32.xlu0 %v1824, 20
        %v1860 = vpop.permute.xlu0 %1859
        %1861 = vrot.lane.b32.xlu0 %v1826, 20
        %v1862 = vpop.permute.xlu0 %1861
        %1863 = vrot.lane.b32.xlu0 %v1828, 20
        %v1864 = vpop.permute.xlu0 %1863
        %1865 = vrot.lane.b32.xlu0 %v1830, 20
        %v1866 = vpop.permute.xlu0 %1865
        %vm1885 = vcmask 195744
        %1886 = vst.msk [vmem:[#allocation2] sm:$0xff] %vm1885, %v1832
        %1887 = vst.msk [vmem:[#allocation2 + $0x8] sm:$0xff] %vm1885, %v1834
        %1888 = vst.msk [vmem:[#allocation2 + $0x10] sm:$0xff] %vm1885, %v1836
        %1889 = vst.msk [vmem:[#allocation2 + $0x18] sm:$0xff] %vm1885, %v1838
        %1890 = vst.msk [vmem:[#allocation2 + $0x20] sm:$0xff] %vm1885, %v1840
        %1891 = vst.msk [vmem:[#allocation2 + $0x28] sm:$0xff] %vm1885, %v1842
        %1892 = vst.msk [vmem:[#allocation2 + $0x30] sm:$0xff] %vm1885, %v1844
        %1893 = vst.msk [vmem:[#allocation2 + $0x38] sm:$0xff] %vm1885, %v1846
        %1894 = vst.msk [vmem:[#allocation2 + $0x40] sm:$0xff] %vm1885, %v1848
        %1895 = vst.msk [vmem:[#allocation2 + $0x48] sm:$0xff] %vm1885, %v1850
        %1896 = vst.msk [vmem:[#allocation2 + $0x50] sm:$0xff] %vm1885, %v1852
        %1897 = vst.msk [vmem:[#allocation2 + $0x58] sm:$0xff] %vm1885, %v1854
        %1898 = vst.msk [vmem:[#allocation2 + $0x60] sm:$0xff] %vm1885, %v1856
        %1899 = vst.msk [vmem:[#allocation2 + $0x68] sm:$0xff] %vm1885, %v1858
        %1900 = vst.msk [vmem:[#allocation2 + $0x70] sm:$0xff] %vm1885, %v1860
        %1901 = vst.msk [vmem:[#allocation2 + $0x78] sm:$0xff] %vm1885, %v1862
        %1902 = vst.msk [vmem:[#allocation2 + $0x80] sm:$0xff] %vm1885, %v1864
        %1903 = vst.msk [vmem:[#allocation2 + $0x88] sm:$0xff] %vm1885, %v1866
        %v1904 = vld [vmem:[%s291 + $0x10] sm:$0xc]
        %v1905 = vld [vmem:[%s291 + $0x14] sm:$0xf]
        %v1906 = vld [vmem:[%s291 + $0x18] sm:$0xf]
        %v1907 = vld [vmem:[%s291 + $0x1c] sm:$0xf]
        %v1908 = vld [vmem:[%s291 + $0x20] sm:$0xf]
        %v1909 = vld [vmem:[%s291 + $0x24] sm:$0xf]
        %v1910 = vld [vmem:[%s291 + $0x28] sm:$0xf]
        %v1911 = vld [vmem:[%s291 + $0x2c] sm:$0xf]
        %v1912 = vld [vmem:[%s291 + $0x30] sm:$0xf]
        %v1913 = vld [vmem:[%s291 + $0x34] sm:$0xf]
        %v1914 = vld [vmem:[%s291 + $0x38] sm:$0xf]
        %v1915 = vld [vmem:[%s291 + $0x3c] sm:$0xf]
        %v1916 = vld [vmem:[%s291 + $0x40] sm:$0xf]
        %v1917 = vld [vmem:[%s291 + $0x44] sm:$0xf]
        %v1918 = vld [vmem:[%s291 + $0x48] sm:$0xf]
        %v1919 = vld [vmem:[%s291 + $0x4c] sm:$0xf]
        %v1920 = vld [vmem:[%s291 + $0x50] sm:$0xf]
        %v1921 = vld [vmem:[%s291 + $0x54] sm:$0xf]
        %v1922 = vld [vmem:[%s291 + $0x58] sm:$0xf]
        %v1923 = vld [vmem:[%s291 + $0x5c] sm:$0xf]
        %v1924 = vld [vmem:[%s291 + $0x60] sm:$0xf]
        %v1925 = vld [vmem:[%s291 + $0x64] sm:$0xf]
        %v1926 = vld [vmem:[%s291 + $0x68] sm:$0xf]
        %v1927 = vld [vmem:[%s291 + $0x6c] sm:$0xf]
        %v1928 = vld [vmem:[%s291 + $0x70] sm:$0xf]
        %v1929 = vld [vmem:[%s291 + $0x74] sm:$0xf]
        %v1930 = vld [vmem:[%s291 + $0x78] sm:$0xf]
        %v1931 = vld [vmem:[%s291 + $0x7c] sm:$0xf]
        %v1932 = vld [vmem:[%s291 + $0x80] sm:$0xf]
        %v1933 = vld [vmem:[%s291 + $0x84] sm:$0xf]
        %v1934 = vld [vmem:[%s291 + $0x88] sm:$0xf]
        %v1935 = vld [vmem:[%s291 + $0x8c] sm:$0xf]
        %v1936 = vld [vmem:[%s291 + $0x90] sm:$0xf]
        %v1937 = vld [vmem:[%s291 + $0x94] sm:$0xf]
        %v1938 = vld [vmem:[%s291 + $0x98] sm:$0xf]
        %v1939 = vld [vmem:[%s291 + $0x9c] sm:$0xf]
        %v1940 = vld [vmem:[%s291 + $0xa0] sm:$0x3]
        %v1978 = vunpack.c.l.b16 %v1904
        %v1979 = vunpack.c.l.b16 %v1905
        %v1980 = vunpack.c.l.b16 %v1906
        %v1981 = vunpack.c.l.b16 %v1907
        %v1982 = vunpack.c.l.b16 %v1908
        %v1983 = vunpack.c.l.b16 %v1909
        %v1984 = vunpack.c.l.b16 %v1910
        %v1985 = vunpack.c.l.b16 %v1911
        %v1986 = vunpack.c.l.b16 %v1912
        %v1987 = vunpack.c.l.b16 %v1913
        %v1988 = vunpack.c.l.b16 %v1914
        %v1989 = vunpack.c.l.b16 %v1915
        %v1990 = vunpack.c.l.b16 %v1916
        %v1991 = vunpack.c.l.b16 %v1917
        %v1992 = vunpack.c.l.b16 %v1918
        %v1993 = vunpack.c.l.b16 %v1919
        %v1994 = vunpack.c.l.b16 %v1920
        %v1995 = vunpack.c.l.b16 %v1921
        %v1996 = vunpack.c.l.b16 %v1922
        %v1997 = vunpack.c.l.b16 %v1923
        %v1998 = vunpack.c.l.b16 %v1924
        %v1999 = vunpack.c.l.b16 %v1925
        %v2000 = vunpack.c.l.b16 %v1926
        %v2001 = vunpack.c.l.b16 %v1927
        %v2002 = vunpack.c.l.b16 %v1928
        %v2003 = vunpack.c.l.b16 %v1929
        %v2004 = vunpack.c.l.b16 %v1930
        %v2005 = vunpack.c.l.b16 %v1931
        %v2006 = vunpack.c.l.b16 %v1932
        %v2007 = vunpack.c.l.b16 %v1933
        %v2008 = vunpack.c.l.b16 %v1934
        %v2009 = vunpack.c.l.b16 %v1935
        %v2010 = vunpack.c.l.b16 %v1936
        %v2011 = vunpack.c.l.b16 %v1937
        %v2012 = vunpack.c.l.b16 %v1938
        %v2013 = vunpack.c.l.b16 %v1939
        %v2014 = vunpack.c.l.b16 %v1940
        %v2015 = vpack.c.b16 %v1979, %v1978
        %v2016 = vpack.c.b16 %v1981, %v1980
        %v2017 = vpack.c.b16 %v1983, %v1982
        %v2018 = vpack.c.b16 %v1985, %v1984
        %v2019 = vpack.c.b16 %v1987, %v1986
        %v2020 = vpack.c.b16 %v1989, %v1988
        %v2021 = vpack.c.b16 %v1991, %v1990
        %v2022 = vpack.c.b16 %v1993, %v1992
        %v2023 = vpack.c.b16 %v1995, %v1994
        %v2024 = vpack.c.b16 %v1997, %v1996
        %v2025 = vpack.c.b16 %v1999, %v1998
        %v2026 = vpack.c.b16 %v2001, %v2000
        %v2027 = vpack.c.b16 %v2003, %v2002
        %v2028 = vpack.c.b16 %v2005, %v2004
        %v2029 = vpack.c.b16 %v2007, %v2006
        %v2030 = vpack.c.b16 %v2009, %v2008
        %v2031 = vpack.c.b16 %v2011, %v2010
        %v2032 = vpack.c.b16 %v2013, %v2012
        %v2033 = vpack.c.b16 %v2014, %v2014
        %v2034 = vrot.slane %v2015, 2
        %v2035 = vrot.slane %v2016, 2
        %v2036 = vsel %vm1793, %v2034, %v2035
        %v2037 = vrot.slane %v2017, 2
        %v2038 = vsel %vm1793, %v2035, %v2037
        %v2039 = vrot.slane %v2018, 2
        %v2040 = vsel %vm1793, %v2037, %v2039
        %v2041 = vrot.slane %v2019, 2
        %v2042 = vsel %vm1793, %v2039, %v2041
        %v2043 = vrot.slane %v2020, 2
        %v2044 = vsel %vm1793, %v2041, %v2043
        %v2045 = vrot.slane %v2021, 2
        %v2046 = vsel %vm1793, %v2043, %v2045
        %v2047 = vrot.slane %v2022, 2
        %v2048 = vsel %vm1793, %v2045, %v2047
        %v2049 = vrot.slane %v2023, 2
        %v2050 = vsel %vm1793, %v2047, %v2049
        %v2051 = vrot.slane %v2024, 2
        %v2052 = vsel %vm1793, %v2049, %v2051
        %v2053 = vrot.slane %v2025, 2
        %v2054 = vsel %vm1793, %v2051, %v2053
        %v2055 = vrot.slane %v2026, 2
        %v2056 = vsel %vm1793, %v2053, %v2055
        %v2057 = vrot.slane %v2027, 2
        %v2058 = vsel %vm1793, %v2055, %v2057
        %v2059 = vrot.slane %v2028, 2
        %v2060 = vsel %vm1793, %v2057, %v2059
        %v2061 = vrot.slane %v2029, 2
        %v2062 = vsel %vm1793, %v2059, %v2061
        %v2063 = vrot.slane %v2030, 2
        %v2064 = vsel %vm1793, %v2061, %v2063
        %v2065 = vrot.slane %v2031, 2
        %v2066 = vsel %vm1793, %v2063, %v2065
        %v2067 = vrot.slane %v2032, 2
        %v2068 = vsel %vm1793, %v2065, %v2067
        %v2069 = vrot.slane %v2033, 2
        %v2070 = vsel %vm1793, %v2067, %v2069
        %2071 = vrot.lane.b32.xlu0 %v2036, 24
        %v2072 = vpop.permute.xlu0 %2071
        %2073 = vrot.lane.b32.xlu0 %v2038, 24
        %v2074 = vpop.permute.xlu0 %2073
        %2075 = vrot.lane.b32.xlu0 %v2040, 24
        %v2076 = vpop.permute.xlu0 %2075
        %2077 = vrot.lane.b32.xlu0 %v2042, 24
        %v2078 = vpop.permute.xlu0 %2077
        %2079 = vrot.lane.b32.xlu0 %v2044, 24
        %v2080 = vpop.permute.xlu0 %2079
        %2081 = vrot.lane.b32.xlu0 %v2046, 24
        %v2082 = vpop.permute.xlu0 %2081
        %2083 = vrot.lane.b32.xlu0 %v2048, 24
        %v2084 = vpop.permute.xlu0 %2083
        %2085 = vrot.lane.b32.xlu0 %v2050, 24
        %v2086 = vpop.permute.xlu0 %2085
        %2087 = vrot.lane.b32.xlu0 %v2052, 24
        %v2088 = vpop.permute.xlu0 %2087
        %2089 = vrot.lane.b32.xlu0 %v2054, 24
        %v2090 = vpop.permute.xlu0 %2089
        %2091 = vrot.lane.b32.xlu0 %v2056, 24
        %v2092 = vpop.permute.xlu0 %2091
        %2093 = vrot.lane.b32.xlu0 %v2058, 24
        %v2094 = vpop.permute.xlu0 %2093
        %2095 = vrot.lane.b32.xlu0 %v2060, 24
        %v2096 = vpop.permute.xlu0 %2095
        %2097 = vrot.lane.b32.xlu0 %v2062, 24
        %v2098 = vpop.permute.xlu0 %2097
        %2099 = vrot.lane.b32.xlu0 %v2064, 24
        %v2100 = vpop.permute.xlu0 %2099
        %2101 = vrot.lane.b32.xlu0 %v2066, 24
        %v2102 = vpop.permute.xlu0 %2101
        %2103 = vrot.lane.b32.xlu0 %v2068, 24
        %v2104 = vpop.permute.xlu0 %2103
        %2105 = vrot.lane.b32.xlu0 %v2070, 24
        %v2106 = vpop.permute.xlu0 %2105
        %vm2125 = vcmask 228544
        %2126 = vst.msk [vmem:[#allocation2] sm:$0xff] %vm2125, %v2072
        %2127 = vst.msk [vmem:[#allocation2 + $0x8] sm:$0xff] %vm2125, %v2074
        %2128 = vst.msk [vmem:[#allocation2 + $0x10] sm:$0xff] %vm2125, %v2076
        %2129 = vst.msk [vmem:[#allocation2 + $0x18] sm:$0xff] %vm2125, %v2078
        %2130 = vst.msk [vmem:[#allocation2 + $0x20] sm:$0xff] %vm2125, %v2080
        %2131 = vst.msk [vmem:[#allocation2 + $0x28] sm:$0xff] %vm2125, %v2082
        %2132 = vst.msk [vmem:[#allocation2 + $0x30] sm:$0xff] %vm2125, %v2084
        %2133 = vst.msk [vmem:[#allocation2 + $0x38] sm:$0xff] %vm2125, %v2086
        %2134 = vst.msk [vmem:[#allocation2 + $0x40] sm:$0xff] %vm2125, %v2088
        %2135 = vst.msk [vmem:[#allocation2 + $0x48] sm:$0xff] %vm2125, %v2090
        %2136 = vst.msk [vmem:[#allocation2 + $0x50] sm:$0xff] %vm2125, %v2092
        %2137 = vst.msk [vmem:[#allocation2 + $0x58] sm:$0xff] %vm2125, %v2094
        %2138 = vst.msk [vmem:[#allocation2 + $0x60] sm:$0xff] %vm2125, %v2096
        %2139 = vst.msk [vmem:[#allocation2 + $0x68] sm:$0xff] %vm2125, %v2098
        %2140 = vst.msk [vmem:[#allocation2 + $0x70] sm:$0xff] %vm2125, %v2100
        %2141 = vst.msk [vmem:[#allocation2 + $0x78] sm:$0xff] %vm2125, %v2102
        %2142 = vst.msk [vmem:[#allocation2 + $0x80] sm:$0xff] %vm2125, %v2104
        %2143 = vst.msk [vmem:[#allocation2 + $0x88] sm:$0xff] %vm2125, %v2106
        %v2144 = vld [vmem:[%s291 + $0x10] sm:$0xc]
        %v2145 = vld [vmem:[%s291 + $0x14] sm:$0xf]
        %v2146 = vld [vmem:[%s291 + $0x18] sm:$0xf]
        %v2147 = vld [vmem:[%s291 + $0x1c] sm:$0xf]
        %v2148 = vld [vmem:[%s291 + $0x20] sm:$0xf]
        %v2149 = vld [vmem:[%s291 + $0x24] sm:$0xf]
        %v2150 = vld [vmem:[%s291 + $0x28] sm:$0xf]
        %v2151 = vld [vmem:[%s291 + $0x2c] sm:$0xf]
        %v2152 = vld [vmem:[%s291 + $0x30] sm:$0xf]
        %v2153 = vld [vmem:[%s291 + $0x34] sm:$0xf]
        %v2154 = vld [vmem:[%s291 + $0x38] sm:$0xf]
        %v2155 = vld [vmem:[%s291 + $0x3c] sm:$0xf]
        %v2156 = vld [vmem:[%s291 + $0x40] sm:$0xf]
        %v2157 = vld [vmem:[%s291 + $0x44] sm:$0xf]
        %v2158 = vld [vmem:[%s291 + $0x48] sm:$0xf]
        %v2159 = vld [vmem:[%s291 + $0x4c] sm:$0xf]
        %v2160 = vld [vmem:[%s291 + $0x50] sm:$0xf]
        %v2161 = vld [vmem:[%s291 + $0x54] sm:$0xf]
        %v2162 = vld [vmem:[%s291 + $0x58] sm:$0xf]
        %v2163 = vld [vmem:[%s291 + $0x5c] sm:$0xf]
        %v2164 = vld [vmem:[%s291 + $0x60] sm:$0xf]
        %v2165 = vld [vmem:[%s291 + $0x64] sm:$0xf]
        %v2166 = vld [vmem:[%s291 + $0x68] sm:$0xf]
        %v2167 = vld [vmem:[%s291 + $0x6c] sm:$0xf]
        %v2168 = vld [vmem:[%s291 + $0x70] sm:$0xf]
        %v2169 = vld [vmem:[%s291 + $0x74] sm:$0xf]
        %v2170 = vld [vmem:[%s291 + $0x78] sm:$0xf]
        %v2171 = vld [vmem:[%s291 + $0x7c] sm:$0xf]
        %v2172 = vld [vmem:[%s291 + $0x80] sm:$0xf]
        %v2173 = vld [vmem:[%s291 + $0x84] sm:$0xf]
        %v2174 = vld [vmem:[%s291 + $0x88] sm:$0xf]
        %v2175 = vld [vmem:[%s291 + $0x8c] sm:$0xf]
        %v2176 = vld [vmem:[%s291 + $0x90] sm:$0xf]
        %v2177 = vld [vmem:[%s291 + $0x94] sm:$0xf]
        %v2178 = vld [vmem:[%s291 + $0x98] sm:$0xf]
        %v2179 = vld [vmem:[%s291 + $0x9c] sm:$0xf]
        %v2180 = vld [vmem:[%s291 + $0xa0] sm:$0x7]
        %v2218 = vunpack.c.l.b16 %v2144
        %v2219 = vunpack.c.l.b16 %v2145
        %v2220 = vunpack.c.l.b16 %v2146
        %v2221 = vunpack.c.l.b16 %v2147
        %v2222 = vunpack.c.l.b16 %v2148
        %v2223 = vunpack.c.l.b16 %v2149
        %v2224 = vunpack.c.l.b16 %v2150
        %v2225 = vunpack.c.l.b16 %v2151
        %v2226 = vunpack.c.l.b16 %v2152
        %v2227 = vunpack.c.l.b16 %v2153
        %v2228 = vunpack.c.l.b16 %v2154
        %v2229 = vunpack.c.l.b16 %v2155
        %v2230 = vunpack.c.l.b16 %v2156
        %v2231 = vunpack.c.l.b16 %v2157
        %v2232 = vunpack.c.l.b16 %v2158
        %v2233 = vunpack.c.l.b16 %v2159
        %v2234 = vunpack.c.l.b16 %v2160
        %v2235 = vunpack.c.l.b16 %v2161
        %v2236 = vunpack.c.l.b16 %v2162
        %v2237 = vunpack.c.l.b16 %v2163
        %v2238 = vunpack.c.l.b16 %v2164
        %v2239 = vunpack.c.l.b16 %v2165
        %v2240 = vunpack.c.l.b16 %v2166
        %v2241 = vunpack.c.l.b16 %v2167
        %v2242 = vunpack.c.l.b16 %v2168
        %v2243 = vunpack.c.l.b16 %v2169
        %v2244 = vunpack.c.l.b16 %v2170
        %v2245 = vunpack.c.l.b16 %v2171
        %v2246 = vunpack.c.l.b16 %v2172
        %v2247 = vunpack.c.l.b16 %v2173
        %v2248 = vunpack.c.l.b16 %v2174
        %v2249 = vunpack.c.l.b16 %v2175
        %v2250 = vunpack.c.l.b16 %v2176
        %v2251 = vunpack.c.l.b16 %v2177
        %v2252 = vunpack.c.l.b16 %v2178
        %v2253 = vunpack.c.l.b16 %v2179
        %v2254 = vunpack.c.l.b16 %v2180
        %v2255 = vpack.c.b16 %v2219, %v2218
        %v2256 = vpack.c.b16 %v2221, %v2220
        %v2257 = vpack.c.b16 %v2223, %v2222
        %v2258 = vpack.c.b16 %v2225, %v2224
        %v2259 = vpack.c.b16 %v2227, %v2226
        %v2260 = vpack.c.b16 %v2229, %v2228
        %v2261 = vpack.c.b16 %v2231, %v2230
        %v2262 = vpack.c.b16 %v2233, %v2232
        %v2263 = vpack.c.b16 %v2235, %v2234
        %v2264 = vpack.c.b16 %v2237, %v2236
        %v2265 = vpack.c.b16 %v2239, %v2238
        %v2266 = vpack.c.b16 %v2241, %v2240
        %v2267 = vpack.c.b16 %v2243, %v2242
        %v2268 = vpack.c.b16 %v2245, %v2244
        %v2269 = vpack.c.b16 %v2247, %v2246
        %v2270 = vpack.c.b16 %v2249, %v2248
        %v2271 = vpack.c.b16 %v2251, %v2250
        %v2272 = vpack.c.b16 %v2253, %v2252
        %v2273 = vpack.c.b16 %v2254, %v2254
        %vm2274 = vsmask.f32 5376
        %v2276 = vshrl.u32 %v2255, 16
        %v2278 = vrot.slane %v2276, 2
        %v2279 = vshll.u32 %v2255, 16
        %v2281 = vrot.slane %v2279, 3
        %v2282 = vor.u32 %v2278, %v2281
        %v2284 = vshrl.u32 %v2256, 16
        %v2286 = vrot.slane %v2284, 2
        %v2287 = vshll.u32 %v2256, 16
        %v2289 = vrot.slane %v2287, 3
        %v2290 = vor.u32 %v2286, %v2289
        %v2291 = vsel %vm2274, %v2282, %v2290
        %v2293 = vshrl.u32 %v2257, 16
        %v2295 = vrot.slane %v2293, 2
        %v2296 = vshll.u32 %v2257, 16
        %v2298 = vrot.slane %v2296, 3
        %v2299 = vor.u32 %v2295, %v2298
        %v2300 = vsel %vm2274, %v2290, %v2299
        %v2302 = vshrl.u32 %v2258, 16
        %v2304 = vrot.slane %v2302, 2
        %v2305 = vshll.u32 %v2258, 16
        %v2307 = vrot.slane %v2305, 3
        %v2308 = vor.u32 %v2304, %v2307
        %v2309 = vsel %vm2274, %v2299, %v2308
        %v2311 = vshrl.u32 %v2259, 16
        %v2313 = vrot.slane %v2311, 2
        %v2314 = vshll.u32 %v2259, 16
        %v2316 = vrot.slane %v2314, 3
        %v2317 = vor.u32 %v2313, %v2316
        %v2318 = vsel %vm2274, %v2308, %v2317
        %v2320 = vshrl.u32 %v2260, 16
        %v2322 = vrot.slane %v2320, 2
        %v2323 = vshll.u32 %v2260, 16
        %v2325 = vrot.slane %v2323, 3
        %v2326 = vor.u32 %v2322, %v2325
        %v2327 = vsel %vm2274, %v2317, %v2326
        %v2329 = vshrl.u32 %v2261, 16
        %v2331 = vrot.slane %v2329, 2
        %v2332 = vshll.u32 %v2261, 16
        %v2334 = vrot.slane %v2332, 3
        %v2335 = vor.u32 %v2331, %v2334
        %v2336 = vsel %vm2274, %v2326, %v2335
        %v2338 = vshrl.u32 %v2262, 16
        %v2340 = vrot.slane %v2338, 2
        %v2341 = vshll.u32 %v2262, 16
        %v2343 = vrot.slane %v2341, 3
        %v2344 = vor.u32 %v2340, %v2343
        %v2345 = vsel %vm2274, %v2335, %v2344
        %v2347 = vshrl.u32 %v2263, 16
        %v2349 = vrot.slane %v2347, 2
        %v2350 = vshll.u32 %v2263, 16
        %v2352 = vrot.slane %v2350, 3
        %v2353 = vor.u32 %v2349, %v2352
        %v2354 = vsel %vm2274, %v2344, %v2353
        %v2356 = vshrl.u32 %v2264, 16
        %v2358 = vrot.slane %v2356, 2
        %v2359 = vshll.u32 %v2264, 16
        %v2361 = vrot.slane %v2359, 3
        %v2362 = vor.u32 %v2358, %v2361
        %v2363 = vsel %vm2274, %v2353, %v2362
        %v2365 = vshrl.u32 %v2265, 16
        %v2367 = vrot.slane %v2365, 2
        %v2368 = vshll.u32 %v2265, 16
        %v2370 = vrot.slane %v2368, 3
        %v2371 = vor.u32 %v2367, %v2370
        %v2372 = vsel %vm2274, %v2362, %v2371
        %v2374 = vshrl.u32 %v2266, 16
        %v2376 = vrot.slane %v2374, 2
        %v2377 = vshll.u32 %v2266, 16
        %v2379 = vrot.slane %v2377, 3
        %v2380 = vor.u32 %v2376, %v2379
        %v2381 = vsel %vm2274, %v2371, %v2380
        %v2383 = vshrl.u32 %v2267, 16
        %v2385 = vrot.slane %v2383, 2
        %v2386 = vshll.u32 %v2267, 16
        %v2388 = vrot.slane %v2386, 3
        %v2389 = vor.u32 %v2385, %v2388
        %v2390 = vsel %vm2274, %v2380, %v2389
        %v2392 = vshrl.u32 %v2268, 16
        %v2394 = vrot.slane %v2392, 2
        %v2395 = vshll.u32 %v2268, 16
        %v2397 = vrot.slane %v2395, 3
        %v2398 = vor.u32 %v2394, %v2397
        %v2399 = vsel %vm2274, %v2389, %v2398
        %v2401 = vshrl.u32 %v2269, 16
        %v2403 = vrot.slane %v2401, 2
        %v2404 = vshll.u32 %v2269, 16
        %v2406 = vrot.slane %v2404, 3
        %v2407 = vor.u32 %v2403, %v2406
        %v2408 = vsel %vm2274, %v2398, %v2407
        %v2410 = vshrl.u32 %v2270, 16
        %v2412 = vrot.slane %v2410, 2
        %v2413 = vshll.u32 %v2270, 16
        %v2415 = vrot.slane %v2413, 3
        %v2416 = vor.u32 %v2412, %v2415
        %v2417 = vsel %vm2274, %v2407, %v2416
        %v2419 = vshrl.u32 %v2271, 16
        %v2421 = vrot.slane %v2419, 2
        %v2422 = vshll.u32 %v2271, 16
        %v2424 = vrot.slane %v2422, 3
        %v2425 = vor.u32 %v2421, %v2424
        %v2426 = vsel %vm2274, %v2416, %v2425
        %v2428 = vshrl.u32 %v2272, 16
        %v2430 = vrot.slane %v2428, 2
        %v2431 = vshll.u32 %v2272, 16
        %v2433 = vrot.slane %v2431, 3
        %v2434 = vor.u32 %v2430, %v2433
        %v2435 = vsel %vm2274, %v2425, %v2434
        %v2437 = vshrl.u32 %v2273, 16
        %v2439 = vrot.slane %v2437, 2
        %v2440 = vshll.u32 %v2273, 16
        %v2442 = vrot.slane %v2440, 3
        %v2443 = vor.u32 %v2439, %v2442
        %v2444 = vsel %vm2274, %v2434, %v2443
        %2445 = vrot.lane.b32.xlu0 %v2291, 28
        %v2446 = vpop.permute.xlu0 %2445
        %2447 = vrot.lane.b32.xlu0 %v2300, 28
        %v2448 = vpop.permute.xlu0 %2447
        %2449 = vrot.lane.b32.xlu0 %v2309, 28
        %v2450 = vpop.permute.xlu0 %2449
        %2451 = vrot.lane.b32.xlu0 %v2318, 28
        %v2452 = vpop.permute.xlu0 %2451
        %2453 = vrot.lane.b32.xlu0 %v2327, 28
        %v2454 = vpop.permute.xlu0 %2453
        %2455 = vrot.lane.b32.xlu0 %v2336, 28
        %v2456 = vpop.permute.xlu0 %2455
        %2457 = vrot.lane.b32.xlu0 %v2345, 28
        %v2458 = vpop.permute.xlu0 %2457
        %2459 = vrot.lane.b32.xlu0 %v2354, 28
        %v2460 = vpop.permute.xlu0 %2459
        %2461 = vrot.lane.b32.xlu0 %v2363, 28
        %v2462 = vpop.permute.xlu0 %2461
        %2463 = vrot.lane.b32.xlu0 %v2372, 28
        %v2464 = vpop.permute.xlu0 %2463
        %2465 = vrot.lane.b32.xlu0 %v2381, 28
        %v2466 = vpop.permute.xlu0 %2465
        %2467 = vrot.lane.b32.xlu0 %v2390, 28
        %v2468 = vpop.permute.xlu0 %2467
        %2469 = vrot.lane.b32.xlu0 %v2399, 28
        %v2470 = vpop.permute.xlu0 %2469
        %2471 = vrot.lane.b32.xlu0 %v2408, 28
        %v2472 = vpop.permute.xlu0 %2471
        %2473 = vrot.lane.b32.xlu0 %v2417, 28
        %v2474 = vpop.permute.xlu0 %2473
        %2475 = vrot.lane.b32.xlu0 %v2426, 28
        %v2476 = vpop.permute.xlu0 %2475
        %2477 = vrot.lane.b32.xlu0 %v2435, 28
        %v2478 = vpop.permute.xlu0 %2477
        %2479 = vrot.lane.b32.xlu0 %v2444, 28
        %v2480 = vpop.permute.xlu0 %2479
        %vm2499 = vcmask 261344
        %2500 = vst.msk [vmem:[#allocation2] sm:$0xff] %vm2499, %v2446
        %2501 = vst.msk [vmem:[#allocation2 + $0x8] sm:$0xff] %vm2499, %v2448
        %2502 = vst.msk [vmem:[#allocation2 + $0x10] sm:$0xff] %vm2499, %v2450
        %2503 = vst.msk [vmem:[#allocation2 + $0x18] sm:$0xff] %vm2499, %v2452
        %2504 = vst.msk [vmem:[#allocation2 + $0x20] sm:$0xff] %vm2499, %v2454
        %2505 = vst.msk [vmem:[#allocation2 + $0x28] sm:$0xff] %vm2499, %v2456
        %2506 = vst.msk [vmem:[#allocation2 + $0x30] sm:$0xff] %vm2499, %v2458
        %2507 = vst.msk [vmem:[#allocation2 + $0x38] sm:$0xff] %vm2499, %v2460
        %2508 = vst.msk [vmem:[#allocation2 + $0x40] sm:$0xff] %vm2499, %v2462
        %2509 = vst.msk [vmem:[#allocation2 + $0x48] sm:$0xff] %vm2499, %v2464
        %2510 = vst.msk [vmem:[#allocation2 + $0x50] sm:$0xff] %vm2499, %v2466
        %2511 = vst.msk [vmem:[#allocation2 + $0x58] sm:$0xff] %vm2499, %v2468
        %2512 = vst.msk [vmem:[#allocation2 + $0x60] sm:$0xff] %vm2499, %v2470
        %2513 = vst.msk [vmem:[#allocation2 + $0x68] sm:$0xff] %vm2499, %v2472
        %2514 = vst.msk [vmem:[#allocation2 + $0x70] sm:$0xff] %vm2499, %v2474
        %2515 = vst.msk [vmem:[#allocation2 + $0x78] sm:$0xff] %vm2499, %v2476
        %2516 = vst.msk [vmem:[#allocation2 + $0x80] sm:$0xff] %vm2499, %v2478
        %2517 = vst.msk [vmem:[#allocation2 + $0x88] sm:$0xff] %vm2499, %v2480
        %v2518 = vld [vmem:[%s291 + $0x10] sm:$0x8]
        %v2519 = vld [vmem:[%s291 + $0x14] sm:$0xf]
        %v2520 = vld [vmem:[%s291 + $0x18] sm:$0xf]
        %v2521 = vld [vmem:[%s291 + $0x1c] sm:$0xf]
        %v2522 = vld [vmem:[%s291 + $0x20] sm:$0xf]
        %v2523 = vld [vmem:[%s291 + $0x24] sm:$0xf]
        %v2524 = vld [vmem:[%s291 + $0x28] sm:$0xf]
        %v2525 = vld [vmem:[%s291 + $0x2c] sm:$0xf]
        %v2526 = vld [vmem:[%s291 + $0x30] sm:$0xf]
        %v2527 = vld [vmem:[%s291 + $0x34] sm:$0xf]
        %v2528 = vld [vmem:[%s291 + $0x38] sm:$0xf]
        %v2529 = vld [vmem:[%s291 + $0x3c] sm:$0xf]
        %v2530 = vld [vmem:[%s291 + $0x40] sm:$0xf]
        %v2531 = vld [vmem:[%s291 + $0x44] sm:$0xf]
        %v2532 = vld [vmem:[%s291 + $0x48] sm:$0xf]
        %v2533 = vld [vmem:[%s291 + $0x4c] sm:$0xf]
        %v2534 = vld [vmem:[%s291 + $0x50] sm:$0xf]
        %v2535 = vld [vmem:[%s291 + $0x54] sm:$0xf]
        %v2536 = vld [vmem:[%s291 + $0x58] sm:$0xf]
        %v2537 = vld [vmem:[%s291 + $0x5c] sm:$0xf]
        %v2538 = vld [vmem:[%s291 + $0x60] sm:$0xf]
        %v2539 = vld [vmem:[%s291 + $0x64] sm:$0xf]
        %v2540 = vld [vmem:[%s291 + $0x68] sm:$0xf]
        %v2541 = vld [vmem:[%s291 + $0x6c] sm:$0xf]
        %v2542 = vld [vmem:[%s291 + $0x70] sm:$0xf]
        %v2543 = vld [vmem:[%s291 + $0x74] sm:$0xf]
        %v2544 = vld [vmem:[%s291 + $0x78] sm:$0xf]
        %v2545 = vld [vmem:[%s291 + $0x7c] sm:$0xf]
        %v2546 = vld [vmem:[%s291 + $0x80] sm:$0xf]
        %v2547 = vld [vmem:[%s291 + $0x84] sm:$0xf]
        %v2548 = vld [vmem:[%s291 + $0x88] sm:$0xf]
        %v2549 = vld [vmem:[%s291 + $0x8c] sm:$0xf]
        %v2550 = vld [vmem:[%s291 + $0x90] sm:$0xf]
        %v2551 = vld [vmem:[%s291 + $0x94] sm:$0xf]
        %v2552 = vld [vmem:[%s291 + $0x98] sm:$0xf]
        %v2553 = vld [vmem:[%s291 + $0x9c] sm:$0xf]
        %v2554 = vld [vmem:[%s291 + $0xa0] sm:$0x7]
        %v2592 = vunpack.c.l.b16 %v2518
        %v2593 = vunpack.c.l.b16 %v2519
        %v2594 = vunpack.c.l.b16 %v2520
        %v2595 = vunpack.c.l.b16 %v2521
        %v2596 = vunpack.c.l.b16 %v2522
        %v2597 = vunpack.c.l.b16 %v2523
        %v2598 = vunpack.c.l.b16 %v2524
        %v2599 = vunpack.c.l.b16 %v2525
        %v2600 = vunpack.c.l.b16 %v2526
        %v2601 = vunpack.c.l.b16 %v2527
        %v2602 = vunpack.c.l.b16 %v2528
        %v2603 = vunpack.c.l.b16 %v2529
        %v2604 = vunpack.c.l.b16 %v2530
        %v2605 = vunpack.c.l.b16 %v2531
        %v2606 = vunpack.c.l.b16 %v2532
        %v2607 = vunpack.c.l.b16 %v2533
        %v2608 = vunpack.c.l.b16 %v2534
        %v2609 = vunpack.c.l.b16 %v2535
        %v2610 = vunpack.c.l.b16 %v2536
        %v2611 = vunpack.c.l.b16 %v2537
        %v2612 = vunpack.c.l.b16 %v2538
        %v2613 = vunpack.c.l.b16 %v2539
        %v2614 = vunpack.c.l.b16 %v2540
        %v2615 = vunpack.c.l.b16 %v2541
        %v2616 = vunpack.c.l.b16 %v2542
        %v2617 = vunpack.c.l.b16 %v2543
        %v2618 = vunpack.c.l.b16 %v2544
        %v2619 = vunpack.c.l.b16 %v2545
        %v2620 = vunpack.c.l.b16 %v2546
        %v2621 = vunpack.c.l.b16 %v2547
        %v2622 = vunpack.c.l.b16 %v2548
        %v2623 = vunpack.c.l.b16 %v2549
        %v2624 = vunpack.c.l.b16 %v2550
        %v2625 = vunpack.c.l.b16 %v2551
        %v2626 = vunpack.c.l.b16 %v2552
        %v2627 = vunpack.c.l.b16 %v2553
        %v2628 = vunpack.c.l.b16 %v2554
        %v2629 = vpack.c.b16 %v2593, %v2592
        %v2630 = vpack.c.b16 %v2595, %v2594
        %v2631 = vpack.c.b16 %v2597, %v2596
        %v2632 = vpack.c.b16 %v2599, %v2598
        %v2633 = vpack.c.b16 %v2601, %v2600
        %v2634 = vpack.c.b16 %v2603, %v2602
        %v2635 = vpack.c.b16 %v2605, %v2604
        %v2636 = vpack.c.b16 %v2607, %v2606
        %v2637 = vpack.c.b16 %v2609, %v2608
        %v2638 = vpack.c.b16 %v2611, %v2610
        %v2639 = vpack.c.b16 %v2613, %v2612
        %v2640 = vpack.c.b16 %v2615, %v2614
        %v2641 = vpack.c.b16 %v2617, %v2616
        %v2642 = vpack.c.b16 %v2619, %v2618
        %v2643 = vpack.c.b16 %v2621, %v2620
        %v2644 = vpack.c.b16 %v2623, %v2622
        %v2645 = vpack.c.b16 %v2625, %v2624
        %v2646 = vpack.c.b16 %v2627, %v2626
        %v2647 = vpack.c.b16 %v2628, %v2628
        %vm2648 = vcmask 1044480
        %v2649 = vrot.slane %v2629, 3
        %v2650 = vrot.slane %v2630, 3
        %v2651 = vsel %vm2648, %v2649, %v2650
        %v2652 = vrot.slane %v2631, 3
        %v2653 = vsel %vm2648, %v2650, %v2652
        %v2654 = vrot.slane %v2632, 3
        %v2655 = vsel %vm2648, %v2652, %v2654
        %v2656 = vrot.slane %v2633, 3
        %v2657 = vsel %vm2648, %v2654, %v2656
        %v2658 = vrot.slane %v2634, 3
        %v2659 = vsel %vm2648, %v2656, %v2658
        %v2660 = vrot.slane %v2635, 3
        %v2661 = vsel %vm2648, %v2658, %v2660
        %v2662 = vrot.slane %v2636, 3
        %v2663 = vsel %vm2648, %v2660, %v2662
        %v2664 = vrot.slane %v2637, 3
        %v2665 = vsel %vm2648, %v2662, %v2664
        %v2666 = vrot.slane %v2638, 3
        %v2667 = vsel %vm2648, %v2664, %v2666
        %v2668 = vrot.slane %v2639, 3
        %v2669 = vsel %vm2648, %v2666, %v2668
        %v2670 = vrot.slane %v2640, 3
        %v2671 = vsel %vm2648, %v2668, %v2670
        %v2672 = vrot.slane %v2641, 3
        %v2673 = vsel %vm2648, %v2670, %v2672
        %v2674 = vrot.slane %v2642, 3
        %v2675 = vsel %vm2648, %v2672, %v2674
        %v2676 = vrot.slane %v2643, 3
        %v2677 = vsel %vm2648, %v2674, %v2676
        %v2678 = vrot.slane %v2644, 3
        %v2679 = vsel %vm2648, %v2676, %v2678
        %v2680 = vrot.slane %v2645, 3
        %v2681 = vsel %vm2648, %v2678, %v2680
        %v2682 = vrot.slane %v2646, 3
        %v2683 = vsel %vm2648, %v2680, %v2682
        %v2684 = vrot.slane %v2647, 3
        %v2685 = vsel %vm2648, %v2682, %v2684
        %2686 = vrot.lane.b32.xlu0 %v2651, 32
        %v2687 = vpop.permute.xlu0 %2686
        %2688 = vrot.lane.b32.xlu0 %v2653, 32
        %v2689 = vpop.permute.xlu0 %2688
        %2690 = vrot.lane.b32.xlu0 %v2655, 32
        %v2691 = vpop.permute.xlu0 %2690
        %2692 = vrot.lane.b32.xlu0 %v2657, 32
        %v2693 = vpop.permute.xlu0 %2692
        %2694 = vrot.lane.b32.xlu0 %v2659, 32
        %v2695 = vpop.permute.xlu0 %2694
        %2696 = vrot.lane.b32.xlu0 %v2661, 32
        %v2697 = vpop.permute.xlu0 %2696
        %2698 = vrot.lane.b32.xlu0 %v2663, 32
        %v2699 = vpop.permute.xlu0 %2698
        %2700 = vrot.lane.b32.xlu0 %v2665, 32
        %v2701 = vpop.permute.xlu0 %2700
        %2702 = vrot.lane.b32.xlu0 %v2667, 32
        %v2703 = vpop.permute.xlu0 %2702
        %2704 = vrot.lane.b32.xlu0 %v2669, 32
        %v2705 = vpop.permute.xlu0 %2704
        %2706 = vrot.lane.b32.xlu0 %v2671, 32
        %v2707 = vpop.permute.xlu0 %2706
        %2708 = vrot.lane.b32.xlu0 %v2673, 32
        %v2709 = vpop.permute.xlu0 %2708
        %2710 = vrot.lane.b32.xlu0 %v2675, 32
        %v2711 = vpop.permute.xlu0 %2710
        %2712 = vrot.lane.b32.xlu0 %v2677, 32
        %v2713 = vpop.permute.xlu0 %2712
        %2714 = vrot.lane.b32.xlu0 %v2679, 32
        %v2715 = vpop.permute.xlu0 %2714
        %2716 = vrot.lane.b32.xlu0 %v2681, 32
        %v2717 = vpop.permute.xlu0 %2716
        %2718 = vrot.lane.b32.xlu0 %v2683, 32
        %v2719 = vpop.permute.xlu0 %2718
        %2720 = vrot.lane.b32.xlu0 %v2685, 32
        %v2721 = vpop.permute.xlu0 %2720
        %vm2740 = vcmask 294144
        %2741 = vst.msk [vmem:[#allocation2] sm:$0xff] %vm2740, %v2687
        %2742 = vst.msk [vmem:[#allocation2 + $0x8] sm:$0xff] %vm2740, %v2689
        %2743 = vst.msk [vmem:[#allocation2 + $0x10] sm:$0xff] %vm2740, %v2691
        %2744 = vst.msk [vmem:[#allocation2 + $0x18] sm:$0xff] %vm2740, %v2693
        %2745 = vst.msk [vmem:[#allocation2 + $0x20] sm:$0xff] %vm2740, %v2695
        %2746 = vst.msk [vmem:[#allocation2 + $0x28] sm:$0xff] %vm2740, %v2697
        %2747 = vst.msk [vmem:[#allocation2 + $0x30] sm:$0xff] %vm2740, %v2699
        %2748 = vst.msk [vmem:[#allocation2 + $0x38] sm:$0xff] %vm2740, %v2701
        %2749 = vst.msk [vmem:[#allocation2 + $0x40] sm:$0xff] %vm2740, %v2703
        %2750 = vst.msk [vmem:[#allocation2 + $0x48] sm:$0xff] %vm2740, %v2705
        %2751 = vst.msk [vmem:[#allocation2 + $0x50] sm:$0xff] %vm2740, %v2707
        %2752 = vst.msk [vmem:[#allocation2 + $0x58] sm:$0xff] %vm2740, %v2709
        %2753 = vst.msk [vmem:[#allocation2 + $0x60] sm:$0xff] %vm2740, %v2711
        %2754 = vst.msk [vmem:[#allocation2 + $0x68] sm:$0xff] %vm2740, %v2713
        %2755 = vst.msk [vmem:[#allocation2 + $0x70] sm:$0xff] %vm2740, %v2715
        %2756 = vst.msk [vmem:[#allocation2 + $0x78] sm:$0xff] %vm2740, %v2717
        %2757 = vst.msk [vmem:[#allocation2 + $0x80] sm:$0xff] %vm2740, %v2719
        %2758 = vst.msk [vmem:[#allocation2 + $0x88] sm:$0xff] %vm2740, %v2721
        %v2759 = vld [vmem:[#allocation2] sm:$0xff]
        %v2760 = vld [vmem:[#allocation2 + $0x8] sm:$0xff]
        %v2761 = vld [vmem:[#allocation2 + $0x10] sm:$0xff]
        %v2762 = vld [vmem:[#allocation2 + $0x18] sm:$0xff]
        %v2763 = vld [vmem:[#allocation2 + $0x20] sm:$0xff]
        %v2764 = vld [vmem:[#allocation2 + $0x28] sm:$0xff]
        %v2765 = vld [vmem:[#allocation2 + $0x30] sm:$0xff]
        %v2766 = vld [vmem:[#allocation2 + $0x38] sm:$0xff]
        %v2767 = vld [vmem:[#allocation2 + $0x40] sm:$0xff]
        %v2768 = vld [vmem:[#allocation2 + $0x48] sm:$0xff]
        %v2769 = vld [vmem:[#allocation2 + $0x50] sm:$0xff]
        %v2770 = vld [vmem:[#allocation2 + $0x58] sm:$0xff]
        %v2771 = vld [vmem:[#allocation2 + $0x60] sm:$0xff]
        %v2772 = vld [vmem:[#allocation2 + $0x68] sm:$0xff]
        %v2773 = vld [vmem:[#allocation2 + $0x70] sm:$0xff]
        %v2774 = vld [vmem:[#allocation2 + $0x78] sm:$0xff]
        %v2775 = vld [vmem:[#allocation2 + $0x80] sm:$0xff]
        %v2776 = vld [vmem:[#allocation2 + $0x88] sm:$0xff]
        %v2777 = vld [vmem:[%s1] sm:$0xf]
        %v2778 = vld [vmem:[%s1 + $0x4] sm:$0xf]
        %v2779 = vld [vmem:[%s1 + $0x8] sm:$0xf]
        %v2780 = vld [vmem:[%s1 + $0xc] sm:$0xf]
        %v2781 = vld [vmem:[%s1 + $0x10] sm:$0x3]
        %v2787 = vunpack.c.l.b16 %v2777
        %v2788 = vunpack.c.l.b16 %v2778
        %v2789 = vunpack.c.l.b16 %v2779
        %v2790 = vunpack.c.l.b16 %v2780
        %v2791 = vunpack.c.l.b16 %v2781
        %v2792 = vpack.c.b16 %v2788, %v2787
        %v2793 = vpack.c.b16 %v2790, %v2789
        %v2794 = vpack.c.b16 %v2791, %v2791
        %vm2797 = vcmask 293888
        %v2799 = vsel %vm2797, %v2759, 0
        %v2802 = vsel %vm2797, %v2760, 0
        %v2805 = vsel %vm2797, %v2761, 0
        %v2808 = vsel %vm2797, %v2762, 0
        %v2811 = vsel %vm2797, %v2763, 0
        %v2814 = vsel %vm2797, %v2764, 0
        %v2817 = vsel %vm2797, %v2765, 0
        %v2820 = vsel %vm2797, %v2766, 0
        %v2823 = vsel %vm2797, %v2767, 0
        %v2826 = vsel %vm2797, %v2768, 0
        %v2829 = vsel %vm2797, %v2769, 0
        %v2832 = vsel %vm2797, %v2770, 0
        %v2835 = vsel %vm2797, %v2771, 0
        %v2838 = vsel %vm2797, %v2772, 0
        %v2841 = vsel %vm2797, %v2773, 0
        %v2844 = vsel %vm2797, %v2774, 0
        %v2847 = vsel %vm2797, %v2775, 0
        %v2850 = vsel %vm2797, %v2776, 0
        %vm2852 = vcmask 1041408
        %v2854 = vsel %vm2852, %v2794, 0
        %2856 = vmatprep.subr.bf16.mxu0 0
        %2857 = vmatpush1.bf16.msra.mxu0 %v2792
        %2858 = vmatprep.subr.bf16.mxu0 0
        %2859 = vmatpush1.bf16.msra.mxu0 %v2793
        %2860 = vmatprep.subr.bf16.mxu0 0
        %2861 = vmatpush1.bf16.msra.mxu0 %v2854
        %2862 = vmatprep.subr.bf16.mxu0 0
        %2863 = vmatpush1.bf16.msra.mxu0 0
        %2864 = vmatprep.subr.bf16.mxu0 0
        %2865 = vmatpush1.bf16.msra.mxu0 0
        %2866 = vmatprep.subr.bf16.mxu0 0
        %2867 = vmatpush1.bf16.msra.mxu0 0
        %2868 = vmatprep.subr.bf16.mxu0 0
        %2869 = vmatpush1.bf16.msra.mxu0 0
        %2870 = vmatprep.subr.bf16.mxu0 0
        %2871 = vmatpush1.bf16.msra.mxu0 0
        %2872 = vmatprep.subr.bf16.mxu0 0
        %2873 = vmatpush1.bf16.msra.mxu0 0
        %2874 = vmatprep.subr.bf16.mxu0 0
        %2875 = vmatpush1.bf16.msra.mxu0 0
        %2876 = vmatprep.subr.bf16.mxu0 0
        %2877 = vmatpush1.bf16.msra.mxu0 0
        %2878 = vmatprep.subr.bf16.mxu0 0
        %2879 = vmatpush1.bf16.msra.mxu0 0
        %2880 = vmatprep.subr.bf16.mxu0 0
        %2881 = vmatpush1.bf16.msra.mxu0 0
        %2882 = vmatprep.subr.bf16.mxu0 0
        %2883 = vmatpush1.bf16.msra.mxu0 0
        %2884 = vmatprep.subr.bf16.mxu0 0
        %2885 = vmatpush1.bf16.msra.mxu0 0
        %2886 = vmatprep.subr.bf16.mxu0 0
        %2887 = vmatpush1.bf16.msra.mxu0 0
        %2888 = vmatprep.mubr.bf16.mxu0 0
        %2889 = vmatmul.mubr.bf16.gmra.mrb[0].mxu0 %v2799
        %v2890 = vpop.f32.mrb[0].mxu0
        %v2891 = vadd.f32 0.0, %v2890
        %v2892 = vpop.f32.mrb[0].mxu0
        %v2893 = vpop.f32.mrb[0].mxu0
        %v2894 = vadd.f32 0.0, %v2893
        %v2895 = vpop.f32.mrb[0].mxu0
        %2896 = vmatprep.mubr.bf16.mxu0 0
        %2897 = vmatmul.mubr.bf16.gmra.mrb[0].mxu0 %v2802
        %v2898 = vpop.f32.mrb[0].mxu0
        %v2899 = vadd.f32 0.0, %v2898
        %v2900 = vpop.f32.mrb[0].mxu0
        %v2901 = vpop.f32.mrb[0].mxu0
        %v2902 = vadd.f32 0.0, %v2901
        %v2903 = vpop.f32.mrb[0].mxu0
        %2904 = vmatprep.mubr.bf16.mxu0 0
        %2905 = vmatmul.mubr.bf16.gmra.mrb[0].mxu0 %v2805
        %v2906 = vpop.f32.mrb[0].mxu0
        %v2907 = vadd.f32 0.0, %v2906
        %v2908 = vpop.f32.mrb[0].mxu0
        %v2909 = vpop.f32.mrb[0].mxu0
        %v2910 = vadd.f32 0.0, %v2909
        %v2911 = vpop.f32.mrb[0].mxu0
        %2912 = vmatprep.mubr.bf16.mxu0 0
        %2913 = vmatmul.mubr.bf16.gmra.mrb[0].mxu0 %v2808
        %v2914 = vpop.f32.mrb[0].mxu0
        %v2915 = vadd.f32 0.0, %v2914
        %v2916 = vpop.f32.mrb[0].mxu0
        %v2917 = vpop.f32.mrb[0].mxu0
        %v2918 = vadd.f32 0.0, %v2917
        %v2919 = vpop.f32.mrb[0].mxu0
        %2920 = vmatprep.mubr.bf16.mxu0 0
        %2921 = vmatmul.mubr.bf16.gmra.mrb[0].mxu0 %v2811
        %v2922 = vpop.f32.mrb[0].mxu0
        %v2923 = vadd.f32 0.0, %v2922
        %v2924 = vpop.f32.mrb[0].mxu0
        %v2925 = vpop.f32.mrb[0].mxu0
        %v2926 = vadd.f32 0.0, %v2925
        %v2927 = vpop.f32.mrb[0].mxu0
        %2928 = vmatprep.mubr.bf16.mxu0 0
        %2929 = vmatmul.mubr.bf16.gmra.mrb[0].mxu0 %v2814
        %v2930 = vpop.f32.mrb[0].mxu0
        %v2931 = vadd.f32 0.0, %v2930
        %v2932 = vpop.f32.mrb[0].mxu0
        %v2933 = vpop.f32.mrb[0].mxu0
        %v2934 = vadd.f32 0.0, %v2933
        %v2935 = vpop.f32.mrb[0].mxu0
        %2936 = vmatprep.mubr.bf16.mxu0 0
        %2937 = vmatmul.mubr.bf16.gmra.mrb[0].mxu0 %v2817
        %v2938 = vpop.f32.mrb[0].mxu0
        %v2939 = vadd.f32 0.0, %v2938
        %v2940 = vpop.f32.mrb[0].mxu0
        %v2941 = vpop.f32.mrb[0].mxu0
        %v2942 = vadd.f32 0.0, %v2941
        %v2943 = vpop.f32.mrb[0].mxu0
        %2944 = vmatprep.mubr.bf16.mxu0 0
        %2945 = vmatmul.mubr.bf16.gmra.mrb[0].mxu0 %v2820
        %v2946 = vpop.f32.mrb[0].mxu0
        %v2947 = vadd.f32 0.0, %v2946
        %v2948 = vpop.f32.mrb[0].mxu0
        %v2949 = vpop.f32.mrb[0].mxu0
        %v2950 = vadd.f32 0.0, %v2949
        %v2951 = vpop.f32.mrb[0].mxu0
        %2952 = vmatprep.mubr.bf16.mxu0 0
        %2953 = vmatmul.mubr.bf16.gmra.mrb[0].mxu0 %v2823
        %v2954 = vpop.f32.mrb[0].mxu0
        %v2955 = vadd.f32 0.0, %v2954
        %v2956 = vpop.f32.mrb[0].mxu0
        %v2957 = vpop.f32.mrb[0].mxu0
        %v2958 = vadd.f32 0.0, %v2957
        %v2959 = vpop.f32.mrb[0].mxu0
        %2960 = vmatprep.mubr.bf16.mxu0 0
        %2961 = vmatmul.mubr.bf16.gmra.mrb[0].mxu0 %v2826
        %v2962 = vpop.f32.mrb[0].mxu0
        %v2963 = vadd.f32 0.0, %v2962
        %v2964 = vpop.f32.mrb[0].mxu0
        %v2965 = vpop.f32.mrb[0].mxu0
        %v2966 = vadd.f32 0.0, %v2965
        %v2967 = vpop.f32.mrb[0].mxu0
        %2968 = vmatprep.mubr.bf16.mxu0 0
        %2969 = vmatmul.mubr.bf16.gmra.mrb[0].mxu0 %v2829
        %v2970 = vpop.f32.mrb[0].mxu0
        %v2971 = vadd.f32 0.0, %v2970
        %v2972 = vpop.f32.mrb[0].mxu0
        %v2973 = vpop.f32.mrb[0].mxu0
        %v2974 = vadd.f32 0.0, %v2973
        %v2975 = vpop.f32.mrb[0].mxu0
        %2976 = vmatprep.mubr.bf16.mxu0 0
        %2977 = vmatmul.mubr.bf16.gmra.mrb[0].mxu0 %v2832
        %v2978 = vpop.f32.mrb[0].mxu0
        %v2979 = vadd.f32 0.0, %v2978
        %v2980 = vpop.f32.mrb[0].mxu0
        %v2981 = vpop.f32.mrb[0].mxu0
        %v2982 = vadd.f32 0.0, %v2981
        %v2983 = vpop.f32.mrb[0].mxu0
        %2984 = vmatprep.mubr.bf16.mxu0 0
        %2985 = vmatmul.mubr.bf16.gmra.mrb[0].mxu0 %v2835
        %v2986 = vpop.f32.mrb[0].mxu0
        %v2987 = vadd.f32 0.0, %v2986
        %v2988 = vpop.f32.mrb[0].mxu0
        %v2989 = vpop.f32.mrb[0].mxu0
        %v2990 = vadd.f32 0.0, %v2989
        %v2991 = vpop.f32.mrb[0].mxu0
        %2992 = vmatprep.mubr.bf16.mxu0 0
        %2993 = vmatmul.mubr.bf16.gmra.mrb[0].mxu0 %v2838
        %v2994 = vpop.f32.mrb[0].mxu0
        %v2995 = vadd.f32 0.0, %v2994
        %v2996 = vpop.f32.mrb[0].mxu0
        %v2997 = vpop.f32.mrb[0].mxu0
        %v2998 = vadd.f32 0.0, %v2997
        %v2999 = vpop.f32.mrb[0].mxu0
        %3000 = vmatprep.mubr.bf16.mxu0 0
        %3001 = vmatmul.mubr.bf16.gmra.mrb[0].mxu0 %v2841
        %v3002 = vpop.f32.mrb[0].mxu0
        %v3003 = vadd.f32 0.0, %v3002
        %v3004 = vpop.f32.mrb[0].mxu0
        %v3005 = vpop.f32.mrb[0].mxu0
        %v3006 = vadd.f32 0.0, %v3005
        %v3007 = vpop.f32.mrb[0].mxu0
        %3008 = vmatprep.mubr.bf16.mxu0 0
        %3009 = vmatmul.mubr.bf16.gmra.mrb[0].mxu0 %v2844
        %v3010 = vpop.f32.mrb[0].mxu0
        %v3011 = vadd.f32 0.0, %v3010
        %v3012 = vpop.f32.mrb[0].mxu0
        %v3013 = vpop.f32.mrb[0].mxu0
        %v3014 = vadd.f32 0.0, %v3013
        %v3015 = vpop.f32.mrb[0].mxu0
        %3016 = vmatprep.mubr.bf16.mxu0 0
        %3017 = vmatmul.mubr.bf16.gmra.mrb[0].mxu0 %v2847
        %v3018 = vpop.f32.mrb[0].mxu0
        %v3019 = vadd.f32 0.0, %v3018
        %v3020 = vpop.f32.mrb[0].mxu0
        %v3021 = vpop.f32.mrb[0].mxu0
        %v3022 = vadd.f32 0.0, %v3021
        %v3023 = vpop.f32.mrb[0].mxu0
        %3024 = vmatprep.mubr.bf16.mxu0 0
        %3025 = vmatmul.mubr.bf16.gmra.mrb[0].mxu0 %v2850
        %v3026 = vpop.f32.mrb[0].mxu0
        %v3027 = vadd.f32 0.0, %v3026
        %v3028 = vpop.f32.mrb[0].mxu0
        %v3029 = vpop.f32.mrb[0].mxu0
        %v3030 = vadd.f32 0.0, %v3029
        %v3031 = vpop.f32.mrb[0].mxu0
        %3032 = vdwg.mxu0
        %v3033 = vld [vmem:[%s2] sm:$0x1]
        %v3035 = vlaneseq
        %v3036 = vshrl.u32 %v3035, 7
        %v3037 = vsub.s32 0, %v3036
        %v3038 = vrot.slane %v3033, %v3037
        %v3040 = vmul.f32 %v2891, %v3038
        %v3041 = vmul.f32 %v2894, %v3038
        %v3042 = vmul.f32 %v2899, %v3038
        %v3043 = vmul.f32 %v2902, %v3038
        %v3044 = vmul.f32 %v2907, %v3038
        %v3045 = vmul.f32 %v2910, %v3038
        %v3046 = vmul.f32 %v2915, %v3038
        %v3047 = vmul.f32 %v2918, %v3038
        %v3048 = vmul.f32 %v2923, %v3038
        %v3049 = vmul.f32 %v2926, %v3038
        %v3050 = vmul.f32 %v2931, %v3038
        %v3051 = vmul.f32 %v2934, %v3038
        %v3052 = vmul.f32 %v2939, %v3038
        %v3053 = vmul.f32 %v2942, %v3038
        %v3054 = vmul.f32 %v2947, %v3038
        %v3055 = vmul.f32 %v2950, %v3038
        %v3056 = vmul.f32 %v2955, %v3038
        %v3057 = vmul.f32 %v2958, %v3038
        %v3058 = vmul.f32 %v2963, %v3038
        %v3059 = vmul.f32 %v2966, %v3038
        %v3060 = vmul.f32 %v2971, %v3038
        %v3061 = vmul.f32 %v2974, %v3038
        %v3062 = vmul.f32 %v2979, %v3038
        %v3063 = vmul.f32 %v2982, %v3038
        %v3064 = vmul.f32 %v2987, %v3038
        %v3065 = vmul.f32 %v2990, %v3038
        %v3066 = vmul.f32 %v2995, %v3038
        %v3067 = vmul.f32 %v2998, %v3038
        %v3068 = vmul.f32 %v3003, %v3038
        %v3069 = vmul.f32 %v3006, %v3038
        %v3070 = vmul.f32 %v3011, %v3038
        %v3071 = vmul.f32 %v3014, %v3038
        %v3072 = vmul.f32 %v3019, %v3038
        %v3073 = vmul.f32 %v3022, %v3038
        %v3074 = vmul.f32 %v3027, %v3038
        %v3075 = vmul.f32 %v3030, %v3038
        %v3076 = vld [vmem:[%s3] sm:$0x1]
        %v3078 = vlaneseq
        %v3079 = vshrl.u32 %v3078, 7
        %v3080 = vsub.s32 0, %v3079
        %v3081 = vrot.slane %v3076, %v3080
        %v3083 = vadd.f32 %v3040, %v3081
        %v3084 = vadd.f32 %v3041, %v3081
        %v3085 = vadd.f32 %v3042, %v3081
        %v3086 = vadd.f32 %v3043, %v3081
        %v3087 = vadd.f32 %v3044, %v3081
        %v3088 = vadd.f32 %v3045, %v3081
        %v3089 = vadd.f32 %v3046, %v3081
        %v3090 = vadd.f32 %v3047, %v3081
        %v3091 = vadd.f32 %v3048, %v3081
        %v3092 = vadd.f32 %v3049, %v3081
        %v3093 = vadd.f32 %v3050, %v3081
        %v3094 = vadd.f32 %v3051, %v3081
        %v3095 = vadd.f32 %v3052, %v3081
        %v3096 = vadd.f32 %v3053, %v3081
        %v3097 = vadd.f32 %v3054, %v3081
        %v3098 = vadd.f32 %v3055, %v3081
        %v3099 = vadd.f32 %v3056, %v3081
        %v3100 = vadd.f32 %v3057, %v3081
        %v3101 = vadd.f32 %v3058, %v3081
        %v3102 = vadd.f32 %v3059, %v3081
        %v3103 = vadd.f32 %v3060, %v3081
        %v3104 = vadd.f32 %v3061, %v3081
        %v3105 = vadd.f32 %v3062, %v3081
        %v3106 = vadd.f32 %v3063, %v3081
        %v3107 = vadd.f32 %v3064, %v3081
        %v3108 = vadd.f32 %v3065, %v3081
        %v3109 = vadd.f32 %v3066, %v3081
        %v3110 = vadd.f32 %v3067, %v3081
        %v3111 = vadd.f32 %v3068, %v3081
        %v3112 = vadd.f32 %v3069, %v3081
        %v3113 = vadd.f32 %v3070, %v3081
        %v3114 = vadd.f32 %v3071, %v3081
        %v3115 = vadd.f32 %v3072, %v3081
        %v3116 = vadd.f32 %v3073, %v3081
        %v3117 = vadd.f32 %v3074, %v3081
        %v3118 = vadd.f32 %v3075, %v3081
        %v3119 = vmax.f32 %v3083, 0.0
        %v3120 = vmax.f32 %v3084, 0.0
        %v3121 = vmax.f32 %v3085, 0.0
        %v3122 = vmax.f32 %v3086, 0.0
        %v3123 = vmax.f32 %v3087, 0.0
        %v3124 = vmax.f32 %v3088, 0.0
        %v3125 = vmax.f32 %v3089, 0.0
        %v3126 = vmax.f32 %v3090, 0.0
        %v3127 = vmax.f32 %v3091, 0.0
        %v3128 = vmax.f32 %v3092, 0.0
        %v3129 = vmax.f32 %v3093, 0.0
        %v3130 = vmax.f32 %v3094, 0.0
        %v3131 = vmax.f32 %v3095, 0.0
        %v3132 = vmax.f32 %v3096, 0.0
        %v3133 = vmax.f32 %v3097, 0.0
        %v3134 = vmax.f32 %v3098, 0.0
        %v3135 = vmax.f32 %v3099, 0.0
        %v3136 = vmax.f32 %v3100, 0.0
        %v3137 = vmax.f32 %v3101, 0.0
        %v3138 = vmax.f32 %v3102, 0.0
        %v3139 = vmax.f32 %v3103, 0.0
        %v3140 = vmax.f32 %v3104, 0.0
        %v3141 = vmax.f32 %v3105, 0.0
        %v3142 = vmax.f32 %v3106, 0.0
        %v3143 = vmax.f32 %v3107, 0.0
        %v3144 = vmax.f32 %v3108, 0.0
        %v3145 = vmax.f32 %v3109, 0.0
        %v3146 = vmax.f32 %v3110, 0.0
        %v3147 = vmax.f32 %v3111, 0.0
        %v3148 = vmax.f32 %v3112, 0.0
        %v3149 = vmax.f32 %v3113, 0.0
        %v3150 = vmax.f32 %v3114, 0.0
        %v3151 = vmax.f32 %v3115, 0.0
        %v3152 = vmax.f32 %v3116, 0.0
        %v3153 = vmax.f32 %v3117, 0.0
        %v3154 = vmax.f32 %v3118, 0.0
        %v3155 = vlaneseq
        %v3156 = vshrl.u32 %v3155, 7
        %v3157 = vadd.s32 %v3156, 8
        %v3158 = vadd.s32 %v3156, 16
        %v3159 = vadd.s32 %v3156, 24
        %v3160 = vadd.s32 %v3156, 32
        %v3161 = vadd.s32 %v3156, 40
        %v3162 = vadd.s32 %v3156, 48
        %v3163 = vadd.s32 %v3156, 56
        %v3164 = vadd.s32 %v3156, 64
        %v3165 = vadd.s32 %v3156, 72
        %v3166 = vadd.s32 %v3156, 80
        %v3167 = vadd.s32 %v3156, 88
        %v3168 = vadd.s32 %v3156, 96
        %v3169 = vadd.s32 %v3156, 104
        %v3170 = vadd.s32 %v3156, 112
        %v3171 = vadd.s32 %v3156, 120
        %v3172 = vadd.s32 %v3156, 128
        %v3173 = vadd.s32 %v3156, 136
        %v3174 = vadd.s32 %v3156, 144
        %v3175 = vadd.s32 %v3156, 152
        %v3176 = vadd.s32 %v3156, 160
        %v3177 = vadd.s32 %v3156, 168
        %v3178 = vadd.s32 %v3156, 176
        %v3179 = vadd.s32 %v3156, 184
        %v3180 = vadd.s32 %v3156, 192
        %v3181 = vadd.s32 %v3156, 200
        %v3182 = vadd.s32 %v3156, 208
        %v3183 = vadd.s32 %v3156, 216
        %v3184 = vadd.s32 %v3156, 224
        %v3185 = vadd.s32 %v3156, 232
        %v3186 = vadd.s32 %v3156, 240
        %v3187 = vadd.s32 %v3156, 248
        %v3188 = vadd.s32 %v3156, 256
        %v3189 = vadd.s32 %v3156, 264
        %v3190 = vadd.s32 %v3156, 272
        %v3191 = vadd.s32 %v3156, 280
        %vm3192 = vcmp.lt.s32.totalorder %v3156, 0
        %v3193 = vsub.s32 0, %v3156
        %v3194 = vsel %vm3192, %v3193, %v3156
        %v3195 = vmul.u32.u64.compose %v3194, 3817748708
        %v3196 = vextract.low.u32 %v3195
        %v3197 = vextract.high.u32 %v3195
        %v3198 = vshrl.u32 %v3197, 4
        %v3199 = vmul.u32 %v3198, 18
        %v3200 = vsub.s32 %v3194, %v3199
        %v3201 = vsub.s32 0, %v3200
        %v3202 = vsel %vm3192, %v3201, %v3200
        %vm3203 = vcmp.lt.s32.totalorder %v3157, 0
        %v3204 = vsub.s32 0, %v3157
        %v3205 = vsel %vm3203, %v3204, %v3157
        %v3206 = vmul.u32.u64.compose %v3205, 3817748708
        %v3207 = vextract.low.u32 %v3206
        %v3208 = vextract.high.u32 %v3206
        %v3209 = vshrl.u32 %v3208, 4
        %v3210 = vmul.u32 %v3209, 18
        %v3211 = vsub.s32 %v3205, %v3210
        %v3212 = vsub.s32 0, %v3211
        %v3213 = vsel %vm3203, %v3212, %v3211
        %vm3214 = vcmp.lt.s32.totalorder %v3158, 0
        %v3215 = vsub.s32 0, %v3158
        %v3216 = vsel %vm3214, %v3215, %v3158
        %v3217 = vmul.u32.u64.compose %v3216, 3817748708
        %v3218 = vextract.low.u32 %v3217
        %v3219 = vextract.high.u32 %v3217
        %v3220 = vshrl.u32 %v3219, 4
        %v3221 = vmul.u32 %v3220, 18
        %v3222 = vsub.s32 %v3216, %v3221
        %v3223 = vsub.s32 0, %v3222
        %v3224 = vsel %vm3214, %v3223, %v3222
        %vm3225 = vcmp.lt.s32.totalorder %v3159, 0
        %v3226 = vsub.s32 0, %v3159
        %v3227 = vsel %vm3225, %v3226, %v3159
        %v3228 = vmul.u32.u64.compose %v3227, 3817748708
        %v3229 = vextract.low.u32 %v3228
        %v3230 = vextract.high.u32 %v3228
        %v3231 = vshrl.u32 %v3230, 4
        %v3232 = vmul.u32 %v3231, 18
        %v3233 = vsub.s32 %v3227, %v3232
        %v3234 = vsub.s32 0, %v3233
        %v3235 = vsel %vm3225, %v3234, %v3233
        %vm3236 = vcmp.lt.s32.totalorder %v3160, 0
        %v3237 = vsub.s32 0, %v3160
        %v3238 = vsel %vm3236, %v3237, %v3160
        %v3239 = vmul.u32.u64.compose %v3238, 3817748708
        %v3240 = vextract.low.u32 %v3239
        %v3241 = vextract.high.u32 %v3239
        %v3242 = vshrl.u32 %v3241, 4
        %v3243 = vmul.u32 %v3242, 18
        %v3244 = vsub.s32 %v3238, %v3243
        %v3245 = vsub.s32 0, %v3244
        %v3246 = vsel %vm3236, %v3245, %v3244
        %vm3247 = vcmp.lt.s32.totalorder %v3161, 0
        %v3248 = vsub.s32 0, %v3161
        %v3249 = vsel %vm3247, %v3248, %v3161
        %v3250 = vmul.u32.u64.compose %v3249, 3817748708
        %v3251 = vextract.low.u32 %v3250
        %v3252 = vextract.high.u32 %v3250
        %v3253 = vshrl.u32 %v3252, 4
        %v3254 = vmul.u32 %v3253, 18
        %v3255 = vsub.s32 %v3249, %v3254
        %v3256 = vsub.s32 0, %v3255
        %v3257 = vsel %vm3247, %v3256, %v3255
        %vm3258 = vcmp.lt.s32.totalorder %v3162, 0
        %v3259 = vsub.s32 0, %v3162
        %v3260 = vsel %vm3258, %v3259, %v3162
        %v3261 = vmul.u32.u64.compose %v3260, 3817748708
        %v3262 = vextract.low.u32 %v3261
        %v3263 = vextract.high.u32 %v3261
        %v3264 = vshrl.u32 %v3263, 4
        %v3265 = vmul.u32 %v3264, 18
        %v3266 = vsub.s32 %v3260, %v3265
        %v3267 = vsub.s32 0, %v3266
        %v3268 = vsel %vm3258, %v3267, %v3266
        %vm3269 = vcmp.lt.s32.totalorder %v3163, 0
        %v3270 = vsub.s32 0, %v3163
        %v3271 = vsel %vm3269, %v3270, %v3163
        %v3272 = vmul.u32.u64.compose %v3271, 3817748708
        %v3273 = vextract.low.u32 %v3272
        %v3274 = vextract.high.u32 %v3272
        %v3275 = vshrl.u32 %v3274, 4
        %v3276 = vmul.u32 %v3275, 18
        %v3277 = vsub.s32 %v3271, %v3276
        %v3278 = vsub.s32 0, %v3277
        %v3279 = vsel %vm3269, %v3278, %v3277
        %vm3280 = vcmp.lt.s32.totalorder %v3164, 0
        %v3281 = vsub.s32 0, %v3164
        %v3282 = vsel %vm3280, %v3281, %v3164
        %v3283 = vmul.u32.u64.compose %v3282, 3817748708
        %v3284 = vextract.low.u32 %v3283
        %v3285 = vextract.high.u32 %v3283
        %v3286 = vshrl.u32 %v3285, 4
        %v3287 = vmul.u32 %v3286, 18
        %v3288 = vsub.s32 %v3282, %v3287
        %v3289 = vsub.s32 0, %v3288
        %v3290 = vsel %vm3280, %v3289, %v3288
        %vm3291 = vcmp.lt.s32.totalorder %v3165, 0
        %v3292 = vsub.s32 0, %v3165
        %v3293 = vsel %vm3291, %v3292, %v3165
        %v3294 = vmul.u32.u64.compose %v3293, 3817748708
        %v3295 = vextract.low.u32 %v3294
        %v3296 = vextract.high.u32 %v3294
        %v3297 = vshrl.u32 %v3296, 4
        %v3298 = vmul.u32 %v3297, 18
        %v3299 = vsub.s32 %v3293, %v3298
        %v3300 = vsub.s32 0, %v3299
        %v3301 = vsel %vm3291, %v3300, %v3299
        %vm3302 = vcmp.lt.s32.totalorder %v3166, 0
        %v3303 = vsub.s32 0, %v3166
        %v3304 = vsel %vm3302, %v3303, %v3166
        %v3305 = vmul.u32.u64.compose %v3304, 3817748708
        %v3306 = vextract.low.u32 %v3305
        %v3307 = vextract.high.u32 %v3305
        %v3308 = vshrl.u32 %v3307, 4
        %v3309 = vmul.u32 %v3308, 18
        %v3310 = vsub.s32 %v3304, %v3309
        %v3311 = vsub.s32 0, %v3310
        %v3312 = vsel %vm3302, %v3311, %v3310
        %vm3313 = vcmp.lt.s32.totalorder %v3167, 0
        %v3314 = vsub.s32 0, %v3167
        %v3315 = vsel %vm3313, %v3314, %v3167
        %v3316 = vmul.u32.u64.compose %v3315, 3817748708
        %v3317 = vextract.low.u32 %v3316
        %v3318 = vextract.high.u32 %v3316
        %v3319 = vshrl.u32 %v3318, 4
        %v3320 = vmul.u32 %v3319, 18
        %v3321 = vsub.s32 %v3315, %v3320
        %v3322 = vsub.s32 0, %v3321
        %v3323 = vsel %vm3313, %v3322, %v3321
        %vm3324 = vcmp.lt.s32.totalorder %v3168, 0
        %v3325 = vsub.s32 0, %v3168
        %v3326 = vsel %vm3324, %v3325, %v3168
        %v3327 = vmul.u32.u64.compose %v3326, 3817748708
        %v3328 = vextract.low.u32 %v3327
        %v3329 = vextract.high.u32 %v3327
        %v3330 = vshrl.u32 %v3329, 4
        %v3331 = vmul.u32 %v3330, 18
        %v3332 = vsub.s32 %v3326, %v3331
        %v3333 = vsub.s32 0, %v3332
        %v3334 = vsel %vm3324, %v3333, %v3332
        %vm3335 = vcmp.lt.s32.totalorder %v3169, 0
        %v3336 = vsub.s32 0, %v3169
        %v3337 = vsel %vm3335, %v3336, %v3169
        %v3338 = vmul.u32.u64.compose %v3337, 3817748708
        %v3339 = vextract.low.u32 %v3338
        %v3340 = vextract.high.u32 %v3338
        %v3341 = vshrl.u32 %v3340, 4
        %v3342 = vmul.u32 %v3341, 18
        %v3343 = vsub.s32 %v3337, %v3342
        %v3344 = vsub.s32 0, %v3343
        %v3345 = vsel %vm3335, %v3344, %v3343
        %vm3346 = vcmp.lt.s32.totalorder %v3170, 0
        %v3347 = vsub.s32 0, %v3170
        %v3348 = vsel %vm3346, %v3347, %v3170
        %v3349 = vmul.u32.u64.compose %v3348, 3817748708
        %v3350 = vextract.low.u32 %v3349
        %v3351 = vextract.high.u32 %v3349
        %v3352 = vshrl.u32 %v3351, 4
        %v3353 = vmul.u32 %v3352, 18
        %v3354 = vsub.s32 %v3348, %v3353
        %v3355 = vsub.s32 0, %v3354
        %v3356 = vsel %vm3346, %v3355, %v3354
        %vm3357 = vcmp.lt.s32.totalorder %v3171, 0
        %v3358 = vsub.s32 0, %v3171
        %v3359 = vsel %vm3357, %v3358, %v3171
        %v3360 = vmul.u32.u64.compose %v3359, 3817748708
        %v3361 = vextract.low.u32 %v3360
        %v3362 = vextract.high.u32 %v3360
        %v3363 = vshrl.u32 %v3362, 4
        %v3364 = vmul.u32 %v3363, 18
        %v3365 = vsub.s32 %v3359, %v3364
        %v3366 = vsub.s32 0, %v3365
        %v3367 = vsel %vm3357, %v3366, %v3365
        %vm3368 = vcmp.lt.s32.totalorder %v3172, 0
        %v3369 = vsub.s32 0, %v3172
        %v3370 = vsel %vm3368, %v3369, %v3172
        %v3371 = vmul.u32.u64.compose %v3370, 3817748708
        %v3372 = vextract.low.u32 %v3371
        %v3373 = vextract.high.u32 %v3371
        %v3374 = vshrl.u32 %v3373, 4
        %v3375 = vmul.u32 %v3374, 18
        %v3376 = vsub.s32 %v3370, %v3375
        %v3377 = vsub.s32 0, %v3376
        %v3378 = vsel %vm3368, %v3377, %v3376
        %vm3379 = vcmp.lt.s32.totalorder %v3173, 0
        %v3380 = vsub.s32 0, %v3173
        %v3381 = vsel %vm3379, %v3380, %v3173
        %v3382 = vmul.u32.u64.compose %v3381, 3817748708
        %v3383 = vextract.low.u32 %v3382
        %v3384 = vextract.high.u32 %v3382
        %v3385 = vshrl.u32 %v3384, 4
        %v3386 = vmul.u32 %v3385, 18
        %v3387 = vsub.s32 %v3381, %v3386
        %v3388 = vsub.s32 0, %v3387
        %v3389 = vsel %vm3379, %v3388, %v3387
        %vm3390 = vcmp.lt.s32.totalorder %v3174, 0
        %v3391 = vsub.s32 0, %v3174
        %v3392 = vsel %vm3390, %v3391, %v3174
        %v3393 = vmul.u32.u64.compose %v3392, 3817748708
        %v3394 = vextract.low.u32 %v3393
        %v3395 = vextract.high.u32 %v3393
        %v3396 = vshrl.u32 %v3395, 4
        %v3397 = vmul.u32 %v3396, 18
        %v3398 = vsub.s32 %v3392, %v3397
        %v3399 = vsub.s32 0, %v3398
        %v3400 = vsel %vm3390, %v3399, %v3398
        %vm3401 = vcmp.lt.s32.totalorder %v3175, 0
        %v3402 = vsub.s32 0, %v3175
        %v3403 = vsel %vm3401, %v3402, %v3175
        %v3404 = vmul.u32.u64.compose %v3403, 3817748708
        %v3405 = vextract.low.u32 %v3404
        %v3406 = vextract.high.u32 %v3404
        %v3407 = vshrl.u32 %v3406, 4
        %v3408 = vmul.u32 %v3407, 18
        %v3409 = vsub.s32 %v3403, %v3408
        %v3410 = vsub.s32 0, %v3409
        %v3411 = vsel %vm3401, %v3410, %v3409
        %vm3412 = vcmp.lt.s32.totalorder %v3176, 0
        %v3413 = vsub.s32 0, %v3176
        %v3414 = vsel %vm3412, %v3413, %v3176
        %v3415 = vmul.u32.u64.compose %v3414, 3817748708
        %v3416 = vextract.low.u32 %v3415
        %v3417 = vextract.high.u32 %v3415
        %v3418 = vshrl.u32 %v3417, 4
        %v3419 = vmul.u32 %v3418, 18
        %v3420 = vsub.s32 %v3414, %v3419
        %v3421 = vsub.s32 0, %v3420
        %v3422 = vsel %vm3412, %v3421, %v3420
        %vm3423 = vcmp.lt.s32.totalorder %v3177, 0
        %v3424 = vsub.s32 0, %v3177
        %v3425 = vsel %vm3423, %v3424, %v3177
        %v3426 = vmul.u32.u64.compose %v3425, 3817748708
        %v3427 = vextract.low.u32 %v3426
        %v3428 = vextract.high.u32 %v3426
        %v3429 = vshrl.u32 %v3428, 4
        %v3430 = vmul.u32 %v3429, 18
        %v3431 = vsub.s32 %v3425, %v3430
        %v3432 = vsub.s32 0, %v3431
        %v3433 = vsel %vm3423, %v3432, %v3431
        %vm3434 = vcmp.lt.s32.totalorder %v3178, 0
        %v3435 = vsub.s32 0, %v3178
        %v3436 = vsel %vm3434, %v3435, %v3178
        %v3437 = vmul.u32.u64.compose %v3436, 3817748708
        %v3438 = vextract.low.u32 %v3437
        %v3439 = vextract.high.u32 %v3437
        %v3440 = vshrl.u32 %v3439, 4
        %v3441 = vmul.u32 %v3440, 18
        %v3442 = vsub.s32 %v3436, %v3441
        %v3443 = vsub.s32 0, %v3442
        %v3444 = vsel %vm3434, %v3443, %v3442
        %vm3445 = vcmp.lt.s32.totalorder %v3179, 0
        %v3446 = vsub.s32 0, %v3179
        %v3447 = vsel %vm3445, %v3446, %v3179
        %v3448 = vmul.u32.u64.compose %v3447, 3817748708
        %v3449 = vextract.low.u32 %v3448
        %v3450 = vextract.high.u32 %v3448
        %v3451 = vshrl.u32 %v3450, 4
        %v3452 = vmul.u32 %v3451, 18
        %v3453 = vsub.s32 %v3447, %v3452
        %v3454 = vsub.s32 0, %v3453
        %v3455 = vsel %vm3445, %v3454, %v3453
        %vm3456 = vcmp.lt.s32.totalorder %v3180, 0
        %v3457 = vsub.s32 0, %v3180
        %v3458 = vsel %vm3456, %v3457, %v3180
        %v3459 = vmul.u32.u64.compose %v3458, 3817748708
        %v3460 = vextract.low.u32 %v3459
        %v3461 = vextract.high.u32 %v3459
        %v3462 = vshrl.u32 %v3461, 4
        %v3463 = vmul.u32 %v3462, 18
        %v3464 = vsub.s32 %v3458, %v3463
        %v3465 = vsub.s32 0, %v3464
        %v3466 = vsel %vm3456, %v3465, %v3464
        %vm3467 = vcmp.lt.s32.totalorder %v3181, 0
        %v3468 = vsub.s32 0, %v3181
        %v3469 = vsel %vm3467, %v3468, %v3181
        %v3470 = vmul.u32.u64.compose %v3469, 3817748708
        %v3471 = vextract.low.u32 %v3470
        %v3472 = vextract.high.u32 %v3470
        %v3473 = vshrl.u32 %v3472, 4
        %v3474 = vmul.u32 %v3473, 18
        %v3475 = vsub.s32 %v3469, %v3474
        %v3476 = vsub.s32 0, %v3475
        %v3477 = vsel %vm3467, %v3476, %v3475
        %vm3478 = vcmp.lt.s32.totalorder %v3182, 0
        %v3479 = vsub.s32 0, %v3182
        %v3480 = vsel %vm3478, %v3479, %v3182
        %v3481 = vmul.u32.u64.compose %v3480, 3817748708
        %v3482 = vextract.low.u32 %v3481
        %v3483 = vextract.high.u32 %v3481
        %v3484 = vshrl.u32 %v3483, 4
        %v3485 = vmul.u32 %v3484, 18
        %v3486 = vsub.s32 %v3480, %v3485
        %v3487 = vsub.s32 0, %v3486
        %v3488 = vsel %vm3478, %v3487, %v3486
        %vm3489 = vcmp.lt.s32.totalorder %v3183, 0
        %v3490 = vsub.s32 0, %v3183
        %v3491 = vsel %vm3489, %v3490, %v3183
        %v3492 = vmul.u32.u64.compose %v3491, 3817748708
        %v3493 = vextract.low.u32 %v3492
        %v3494 = vextract.high.u32 %v3492
        %v3495 = vshrl.u32 %v3494, 4
        %v3496 = vmul.u32 %v3495, 18
        %v3497 = vsub.s32 %v3491, %v3496
        %v3498 = vsub.s32 0, %v3497
        %v3499 = vsel %vm3489, %v3498, %v3497
        %vm3500 = vcmp.lt.s32.totalorder %v3184, 0
        %v3501 = vsub.s32 0, %v3184
        %v3502 = vsel %vm3500, %v3501, %v3184
        %v3503 = vmul.u32.u64.compose %v3502, 3817748708
        %v3504 = vextract.low.u32 %v3503
        %v3505 = vextract.high.u32 %v3503
        %v3506 = vshrl.u32 %v3505, 4
        %v3507 = vmul.u32 %v3506, 18
        %v3508 = vsub.s32 %v3502, %v3507
        %v3509 = vsub.s32 0, %v3508
        %v3510 = vsel %vm3500, %v3509, %v3508
        %vm3511 = vcmp.lt.s32.totalorder %v3185, 0
        %v3512 = vsub.s32 0, %v3185
        %v3513 = vsel %vm3511, %v3512, %v3185
        %v3514 = vmul.u32.u64.compose %v3513, 3817748708
        %v3515 = vextract.low.u32 %v3514
        %v3516 = vextract.high.u32 %v3514
        %v3517 = vshrl.u32 %v3516, 4
        %v3518 = vmul.u32 %v3517, 18
        %v3519 = vsub.s32 %v3513, %v3518
        %v3520 = vsub.s32 0, %v3519
        %v3521 = vsel %vm3511, %v3520, %v3519
        %vm3522 = vcmp.lt.s32.totalorder %v3186, 0
        %v3523 = vsub.s32 0, %v3186
        %v3524 = vsel %vm3522, %v3523, %v3186
        %v3525 = vmul.u32.u64.compose %v3524, 3817748708
        %v3526 = vextract.low.u32 %v3525
        %v3527 = vextract.high.u32 %v3525
        %v3528 = vshrl.u32 %v3527, 4
        %v3529 = vmul.u32 %v3528, 18
        %v3530 = vsub.s32 %v3524, %v3529
        %v3531 = vsub.s32 0, %v3530
        %v3532 = vsel %vm3522, %v3531, %v3530
        %vm3533 = vcmp.lt.s32.totalorder %v3187, 0
        %v3534 = vsub.s32 0, %v3187
        %v3535 = vsel %vm3533, %v3534, %v3187
        %v3536 = vmul.u32.u64.compose %v3535, 3817748708
        %v3537 = vextract.low.u32 %v3536
        %v3538 = vextract.high.u32 %v3536
        %v3539 = vshrl.u32 %v3538, 4
        %v3540 = vmul.u32 %v3539, 18
        %v3541 = vsub.s32 %v3535, %v3540
        %v3542 = vsub.s32 0, %v3541
        %v3543 = vsel %vm3533, %v3542, %v3541
        %vm3544 = vcmp.lt.s32.totalorder %v3188, 0
        %v3545 = vsub.s32 0, %v3188
        %v3546 = vsel %vm3544, %v3545, %v3188
        %v3547 = vmul.u32.u64.compose %v3546, 3817748708
        %v3548 = vextract.low.u32 %v3547
        %v3549 = vextract.high.u32 %v3547
        %v3550 = vshrl.u32 %v3549, 4
        %v3551 = vmul.u32 %v3550, 18
        %v3552 = vsub.s32 %v3546, %v3551
        %v3553 = vsub.s32 0, %v3552
        %v3554 = vsel %vm3544, %v3553, %v3552
        %vm3555 = vcmp.lt.s32.totalorder %v3189, 0
        %v3556 = vsub.s32 0, %v3189
        %v3557 = vsel %vm3555, %v3556, %v3189
        %v3558 = vmul.u32.u64.compose %v3557, 3817748708
        %v3559 = vextract.low.u32 %v3558
        %v3560 = vextract.high.u32 %v3558
        %v3561 = vshrl.u32 %v3560, 4
        %v3562 = vmul.u32 %v3561, 18
        %v3563 = vsub.s32 %v3557, %v3562
        %v3564 = vsub.s32 0, %v3563
        %v3565 = vsel %vm3555, %v3564, %v3563
        %vm3566 = vcmp.lt.s32.totalorder %v3190, 0
        %v3567 = vsub.s32 0, %v3190
        %v3568 = vsel %vm3566, %v3567, %v3190
        %v3569 = vmul.u32.u64.compose %v3568, 3817748708
        %v3570 = vextract.low.u32 %v3569
        %v3571 = vextract.high.u32 %v3569
        %v3572 = vshrl.u32 %v3571, 4
        %v3573 = vmul.u32 %v3572, 18
        %v3574 = vsub.s32 %v3568, %v3573
        %v3575 = vsub.s32 0, %v3574
        %v3576 = vsel %vm3566, %v3575, %v3574
        %vm3577 = vcmp.lt.s32.totalorder %v3191, 0
        %v3578 = vsub.s32 0, %v3191
        %v3579 = vsel %vm3577, %v3578, %v3191
        %v3580 = vmul.u32.u64.compose %v3579, 3817748708
        %v3581 = vextract.low.u32 %v3580
        %v3582 = vextract.high.u32 %v3580
        %v3583 = vshrl.u32 %v3582, 4
        %v3584 = vmul.u32 %v3583, 18
        %v3585 = vsub.s32 %v3579, %v3584
        %v3586 = vsub.s32 0, %v3585
        %v3587 = vsel %vm3577, %v3586, %v3585
        %vm3588 = vcmp.ne.s32.totalorder %v3202, 0
        %vm3589 = vcmp.ne.s32.totalorder %v3213, 0
        %vm3590 = vcmp.ne.s32.totalorder %v3224, 0
        %vm3591 = vcmp.ne.s32.totalorder %v3235, 0
        %vm3592 = vcmp.ne.s32.totalorder %v3246, 0
        %vm3593 = vcmp.ne.s32.totalorder %v3257, 0
        %vm3594 = vcmp.ne.s32.totalorder %v3268, 0
        %vm3595 = vcmp.ne.s32.totalorder %v3279, 0
        %vm3596 = vcmp.ne.s32.totalorder %v3290, 0
        %vm3597 = vcmp.ne.s32.totalorder %v3301, 0
        %vm3598 = vcmp.ne.s32.totalorder %v3312, 0
        %vm3599 = vcmp.ne.s32.totalorder %v3323, 0
        %vm3600 = vcmp.ne.s32.totalorder %v3334, 0
        %vm3601 = vcmp.ne.s32.totalorder %v3345, 0
        %vm3602 = vcmp.ne.s32.totalorder %v3356, 0
        %vm3603 = vcmp.ne.s32.totalorder %v3367, 0
        %vm3604 = vcmp.ne.s32.totalorder %v3378, 0
        %vm3605 = vcmp.ne.s32.totalorder %v3389, 0
        %vm3606 = vcmp.ne.s32.totalorder %v3400, 0
        %vm3607 = vcmp.ne.s32.totalorder %v3411, 0
        %vm3608 = vcmp.ne.s32.totalorder %v3422, 0
        %vm3609 = vcmp.ne.s32.totalorder %v3433, 0
        %vm3610 = vcmp.ne.s32.totalorder %v3444, 0
        %vm3611 = vcmp.ne.s32.totalorder %v3455, 0
        %vm3612 = vcmp.ne.s32.totalorder %v3466, 0
        %vm3613 = vcmp.ne.s32.totalorder %v3477, 0
        %vm3614 = vcmp.ne.s32.totalorder %v3488, 0
        %vm3615 = vcmp.ne.s32.totalorder %v3499, 0
        %vm3616 = vcmp.ne.s32.totalorder %v3510, 0
        %vm3617 = vcmp.ne.s32.totalorder %v3521, 0
        %vm3618 = vcmp.ne.s32.totalorder %v3532, 0
        %vm3619 = vcmp.ne.s32.totalorder %v3543, 0
        %vm3620 = vcmp.ne.s32.totalorder %v3554, 0
        %vm3621 = vcmp.ne.s32.totalorder %v3565, 0
        %vm3622 = vcmp.ne.s32.totalorder %v3576, 0
        %vm3623 = vcmp.ne.s32.totalorder %v3587, 0
        %vm3624 = vcmp.lt.s32.totalorder %v3202, 0
        %vm3625 = vcmp.lt.s32.totalorder %v3213, 0
        %vm3626 = vcmp.lt.s32.totalorder %v3224, 0
        %vm3627 = vcmp.lt.s32.totalorder %v3235, 0
        %vm3628 = vcmp.lt.s32.totalorder %v3246, 0
        %vm3629 = vcmp.lt.s32.totalorder %v3257, 0
        %vm3630 = vcmp.lt.s32.totalorder %v3268, 0
        %vm3631 = vcmp.lt.s32.totalorder %v3279, 0
        %vm3632 = vcmp.lt.s32.totalorder %v3290, 0
        %vm3633 = vcmp.lt.s32.totalorder %v3301, 0
        %vm3634 = vcmp.lt.s32.totalorder %v3312, 0
        %vm3635 = vcmp.lt.s32.totalorder %v3323, 0
        %vm3636 = vcmp.lt.s32.totalorder %v3334, 0
        %vm3637 = vcmp.lt.s32.totalorder %v3345, 0
        %vm3638 = vcmp.lt.s32.totalorder %v3356, 0
        %vm3639 = vcmp.lt.s32.totalorder %v3367, 0
        %vm3640 = vcmp.lt.s32.totalorder %v3378, 0
        %vm3641 = vcmp.lt.s32.totalorder %v3389, 0
        %vm3642 = vcmp.lt.s32.totalorder %v3400, 0
        %vm3643 = vcmp.lt.s32.totalorder %v3411, 0
        %vm3644 = vcmp.lt.s32.totalorder %v3422, 0
        %vm3645 = vcmp.lt.s32.totalorder %v3433, 0
        %vm3646 = vcmp.lt.s32.totalorder %v3444, 0
        %vm3647 = vcmp.lt.s32.totalorder %v3455, 0
        %vm3648 = vcmp.lt.s32.totalorder %v3466, 0
        %vm3649 = vcmp.lt.s32.totalorder %v3477, 0
        %vm3650 = vcmp.lt.s32.totalorder %v3488, 0
        %vm3651 = vcmp.lt.s32.totalorder %v3499, 0
        %vm3652 = vcmp.lt.s32.totalorder %v3510, 0
        %vm3653 = vcmp.lt.s32.totalorder %v3521, 0
        %vm3654 = vcmp.lt.s32.totalorder %v3532, 0
        %vm3655 = vcmp.lt.s32.totalorder %v3543, 0
        %vm3656 = vcmp.lt.s32.totalorder %v3554, 0
        %vm3657 = vcmp.lt.s32.totalorder %v3565, 0
        %vm3658 = vcmp.lt.s32.totalorder %v3576, 0
        %vm3659 = vcmp.lt.s32.totalorder %v3587, 0
        %vm3660 = vmand %vm3624, %vm3588
        %vm3661 = vmand %vm3625, %vm3589
        %vm3662 = vmand %vm3626, %vm3590
        %vm3663 = vmand %vm3627, %vm3591
        %vm3664 = vmand %vm3628, %vm3592
        %vm3665 = vmand %vm3629, %vm3593
        %vm3666 = vmand %vm3630, %vm3594
        %vm3667 = vmand %vm3631, %vm3595
        %vm3668 = vmand %vm3632, %vm3596
        %vm3669 = vmand %vm3633, %vm3597
        %vm3670 = vmand %vm3634, %vm3598
        %vm3671 = vmand %vm3635, %vm3599
        %vm3672 = vmand %vm3636, %vm3600
        %vm3673 = vmand %vm3637, %vm3601
        %vm3674 = vmand %vm3638, %vm3602
        %vm3675 = vmand %vm3639, %vm3603
        %vm3676 = vmand %vm3640, %vm3604
        %vm3677 = vmand %vm3641, %vm3605
        %vm3678 = vmand %vm3642, %vm3606
        %vm3679 = vmand %vm3643, %vm3607
        %vm3680 = vmand %vm3644, %vm3608
        %vm3681 = vmand %vm3645, %vm3609
        %vm3682 = vmand %vm3646, %vm3610
        %vm3683 = vmand %vm3647, %vm3611
        %vm3684 = vmand %vm3648, %vm3612
        %vm3685 = vmand %vm3649, %vm3613
        %vm3686 = vmand %vm3650, %vm3614
        %vm3687 = vmand %vm3651, %vm3615
        %vm3688 = vmand %vm3652, %vm3616
        %vm3689 = vmand %vm3653, %vm3617
        %vm3690 = vmand %vm3654, %vm3618
        %vm3691 = vmand %vm3655, %vm3619
        %vm3692 = vmand %vm3656, %vm3620
        %vm3693 = vmand %vm3657, %vm3621
        %vm3694 = vmand %vm3658, %vm3622
        %vm3695 = vmand %vm3659, %vm3623
        %v3696 = vadd.s32 %v3202, 18
        %v3697 = vadd.s32 %v3213, 18
        %v3698 = vadd.s32 %v3224, 18
        %v3699 = vadd.s32 %v3235, 18
        %v3700 = vadd.s32 %v3246, 18
        %v3701 = vadd.s32 %v3257, 18
        %v3702 = vadd.s32 %v3268, 18
        %v3703 = vadd.s32 %v3279, 18
        %v3704 = vadd.s32 %v3290, 18
        %v3705 = vadd.s32 %v3301, 18
        %v3706 = vadd.s32 %v3312, 18
        %v3707 = vadd.s32 %v3323, 18
        %v3708 = vadd.s32 %v3334, 18
        %v3709 = vadd.s32 %v3345, 18
        %v3710 = vadd.s32 %v3356, 18
        %v3711 = vadd.s32 %v3367, 18
        %v3712 = vadd.s32 %v3378, 18
        %v3713 = vadd.s32 %v3389, 18
        %v3714 = vadd.s32 %v3400, 18
        %v3715 = vadd.s32 %v3411, 18
        %v3716 = vadd.s32 %v3422, 18
        %v3717 = vadd.s32 %v3433, 18
        %v3718 = vadd.s32 %v3444, 18
        %v3719 = vadd.s32 %v3455, 18
        %v3720 = vadd.s32 %v3466, 18
        %v3721 = vadd.s32 %v3477, 18
        %v3722 = vadd.s32 %v3488, 18
        %v3723 = vadd.s32 %v3499, 18
        %v3724 = vadd.s32 %v3510, 18
        %v3725 = vadd.s32 %v3521, 18
        %v3726 = vadd.s32 %v3532, 18
        %v3727 = vadd.s32 %v3543, 18
        %v3728 = vadd.s32 %v3554, 18
        %v3729 = vadd.s32 %v3565, 18
        %v3730 = vadd.s32 %v3576, 18
        %v3731 = vadd.s32 %v3587, 18
        %v3732 = vsel %vm3660, %v3696, %v3202
        %v3733 = vsel %vm3661, %v3697, %v3213
        %v3734 = vsel %vm3662, %v3698, %v3224
        %v3735 = vsel %vm3663, %v3699, %v3235
        %v3736 = vsel %vm3664, %v3700, %v3246
        %v3737 = vsel %vm3665, %v3701, %v3257
        %v3738 = vsel %vm3666, %v3702, %v3268
        %v3739 = vsel %vm3667, %v3703, %v3279
        %v3740 = vsel %vm3668, %v3704, %v3290
        %v3741 = vsel %vm3669, %v3705, %v3301
        %v3742 = vsel %vm3670, %v3706, %v3312
        %v3743 = vsel %vm3671, %v3707, %v3323
        %v3744 = vsel %vm3672, %v3708, %v3334
        %v3745 = vsel %vm3673, %v3709, %v3345
        %v3746 = vsel %vm3674, %v3710, %v3356
        %v3747 = vsel %vm3675, %v3711, %v3367
        %v3748 = vsel %vm3676, %v3712, %v3378
        %v3749 = vsel %vm3677, %v3713, %v3389
        %v3750 = vsel %vm3678, %v3714, %v3400
        %v3751 = vsel %vm3679, %v3715, %v3411
        %v3752 = vsel %vm3680, %v3716, %v3422
        %v3753 = vsel %vm3681, %v3717, %v3433
        %v3754 = vsel %vm3682, %v3718, %v3444
        %v3755 = vsel %vm3683, %v3719, %v3455
        %v3756 = vsel %vm3684, %v3720, %v3466
        %v3757 = vsel %vm3685, %v3721, %v3477
        %v3758 = vsel %vm3686, %v3722, %v3488
        %v3759 = vsel %vm3687, %v3723, %v3499
        %v3760 = vsel %vm3688, %v3724, %v3510
        %v3761 = vsel %vm3689, %v3725, %v3521
        %v3762 = vsel %vm3690, %v3726, %v3532
        %v3763 = vsel %vm3691, %v3727, %v3543
        %v3764 = vsel %vm3692, %v3728, %v3554
        %v3765 = vsel %vm3693, %v3729, %v3565
        %v3766 = vsel %vm3694, %v3730, %v3576
        %v3767 = vsel %vm3695, %v3731, %v3587
        %vm3768 = vcmp.lt.s32.totalorder %v3732, 16
        %vm3769 = vcmp.lt.s32.totalorder %v3733, 16
        %vm3770 = vcmp.lt.s32.totalorder %v3734, 16
        %vm3771 = vcmp.lt.s32.totalorder %v3735, 16
        %vm3772 = vcmp.lt.s32.totalorder %v3736, 16
        %vm3773 = vcmp.lt.s32.totalorder %v3737, 16
        %vm3774 = vcmp.lt.s32.totalorder %v3738, 16
        %vm3775 = vcmp.lt.s32.totalorder %v3739, 16
        %vm3776 = vcmp.lt.s32.totalorder %v3740, 16
        %vm3777 = vcmp.lt.s32.totalorder %v3741, 16
        %vm3778 = vcmp.lt.s32.totalorder %v3742, 16
        %vm3779 = vcmp.lt.s32.totalorder %v3743, 16
        %vm3780 = vcmp.lt.s32.totalorder %v3744, 16
        %vm3781 = vcmp.lt.s32.totalorder %v3745, 16
        %vm3782 = vcmp.lt.s32.totalorder %v3746, 16
        %vm3783 = vcmp.lt.s32.totalorder %v3747, 16
        %vm3784 = vcmp.lt.s32.totalorder %v3748, 16
        %vm3785 = vcmp.lt.s32.totalorder %v3749, 16
        %vm3786 = vcmp.lt.s32.totalorder %v3750, 16
        %vm3787 = vcmp.lt.s32.totalorder %v3751, 16
        %vm3788 = vcmp.lt.s32.totalorder %v3752, 16
        %vm3789 = vcmp.lt.s32.totalorder %v3753, 16
        %vm3790 = vcmp.lt.s32.totalorder %v3754, 16
        %vm3791 = vcmp.lt.s32.totalorder %v3755, 16
        %vm3792 = vcmp.lt.s32.totalorder %v3756, 16
        %vm3793 = vcmp.lt.s32.totalorder %v3757, 16
        %vm3794 = vcmp.lt.s32.totalorder %v3758, 16
        %vm3795 = vcmp.lt.s32.totalorder %v3759, 16
        %vm3796 = vcmp.lt.s32.totalorder %v3760, 16
        %vm3797 = vcmp.lt.s32.totalorder %v3761, 16
        %vm3798 = vcmp.lt.s32.totalorder %v3762, 16
        %vm3799 = vcmp.lt.s32.totalorder %v3763, 16
        %vm3800 = vcmp.lt.s32.totalorder %v3764, 16
        %vm3801 = vcmp.lt.s32.totalorder %v3765, 16
        %vm3802 = vcmp.lt.s32.totalorder %v3766, 16
        %vm3803 = vcmp.lt.s32.totalorder %v3767, 16
        %v3804 = vsel %vm3768, 1, 0
        %v3805 = vsel %vm3769, 1, 0
        %v3806 = vsel %vm3770, 1, 0
        %v3807 = vsel %vm3771, 1, 0
        %v3808 = vsel %vm3772, 1, 0
        %v3809 = vsel %vm3773, 1, 0
        %v3810 = vsel %vm3774, 1, 0
        %v3811 = vsel %vm3775, 1, 0
        %v3812 = vsel %vm3776, 1, 0
        %v3813 = vsel %vm3777, 1, 0
        %v3814 = vsel %vm3778, 1, 0
        %v3815 = vsel %vm3779, 1, 0
        %v3816 = vsel %vm3780, 1, 0
        %v3817 = vsel %vm3781, 1, 0
        %v3818 = vsel %vm3782, 1, 0
        %v3819 = vsel %vm3783, 1, 0
        %v3820 = vsel %vm3784, 1, 0
        %v3821 = vsel %vm3785, 1, 0
        %v3822 = vsel %vm3786, 1, 0
        %v3823 = vsel %vm3787, 1, 0
        %v3824 = vsel %vm3788, 1, 0
        %v3825 = vsel %vm3789, 1, 0
        %v3826 = vsel %vm3790, 1, 0
        %v3827 = vsel %vm3791, 1, 0
        %v3828 = vsel %vm3792, 1, 0
        %v3829 = vsel %vm3793, 1, 0
        %v3830 = vsel %vm3794, 1, 0
        %v3831 = vsel %vm3795, 1, 0
        %v3832 = vsel %vm3796, 1, 0
        %v3833 = vsel %vm3797, 1, 0
        %v3834 = vsel %vm3798, 1, 0
        %v3835 = vsel %vm3799, 1, 0
        %v3836 = vsel %vm3800, 1, 0
        %v3837 = vsel %vm3801, 1, 0
        %v3838 = vsel %vm3802, 1, 0
        %v3839 = vsel %vm3803, 1, 0
        %vm3840 = vcmp.eq.s32.totalorder %v3804, 1
        %vm3841 = vcmp.eq.s32.totalorder %v3805, 1
        %vm3842 = vcmp.eq.s32.totalorder %v3806, 1
        %vm3843 = vcmp.eq.s32.totalorder %v3807, 1
        %vm3844 = vcmp.eq.s32.totalorder %v3808, 1
        %vm3845 = vcmp.eq.s32.totalorder %v3809, 1
        %vm3846 = vcmp.eq.s32.totalorder %v3810, 1
        %vm3847 = vcmp.eq.s32.totalorder %v3811, 1
        %vm3848 = vcmp.eq.s32.totalorder %v3812, 1
        %vm3849 = vcmp.eq.s32.totalorder %v3813, 1
        %vm3850 = vcmp.eq.s32.totalorder %v3814, 1
        %vm3851 = vcmp.eq.s32.totalorder %v3815, 1
        %vm3852 = vcmp.eq.s32.totalorder %v3816, 1
        %vm3853 = vcmp.eq.s32.totalorder %v3817, 1
        %vm3854 = vcmp.eq.s32.totalorder %v3818, 1
        %vm3855 = vcmp.eq.s32.totalorder %v3819, 1
        %vm3856 = vcmp.eq.s32.totalorder %v3820, 1
        %vm3857 = vcmp.eq.s32.totalorder %v3821, 1
        %vm3858 = vcmp.eq.s32.totalorder %v3822, 1
        %vm3859 = vcmp.eq.s32.totalorder %v3823, 1
        %vm3860 = vcmp.eq.s32.totalorder %v3824, 1
        %vm3861 = vcmp.eq.s32.totalorder %v3825, 1
        %vm3862 = vcmp.eq.s32.totalorder %v3826, 1
        %vm3863 = vcmp.eq.s32.totalorder %v3827, 1
        %vm3864 = vcmp.eq.s32.totalorder %v3828, 1
        %vm3865 = vcmp.eq.s32.totalorder %v3829, 1
        %vm3866 = vcmp.eq.s32.totalorder %v3830, 1
        %vm3867 = vcmp.eq.s32.totalorder %v3831, 1
        %vm3868 = vcmp.eq.s32.totalorder %v3832, 1
        %vm3869 = vcmp.eq.s32.totalorder %v3833, 1
        %vm3870 = vcmp.eq.s32.totalorder %v3834, 1
        %vm3871 = vcmp.eq.s32.totalorder %v3835, 1
        %vm3872 = vcmp.eq.s32.totalorder %v3836, 1
        %vm3873 = vcmp.eq.s32.totalorder %v3837, 1
        %vm3874 = vcmp.eq.s32.totalorder %v3838, 1
        %vm3875 = vcmp.eq.s32.totalorder %v3839, 1
        %v3876 = vsel %vm3840, %v3119, 0.0
        %v3877 = vsel %vm3841, %v3120, 0.0
        %v3878 = vsel %vm3842, %v3121, 0.0
        %v3879 = vsel %vm3843, %v3122, 0.0
        %v3880 = vsel %vm3844, %v3123, 0.0
        %v3881 = vsel %vm3845, %v3124, 0.0
        %v3882 = vsel %vm3846, %v3125, 0.0
        %v3883 = vsel %vm3847, %v3126, 0.0
        %v3884 = vsel %vm3848, %v3127, 0.0
        %v3885 = vsel %vm3849, %v3128, 0.0
        %v3886 = vsel %vm3850, %v3129, 0.0
        %v3887 = vsel %vm3851, %v3130, 0.0
        %v3888 = vsel %vm3852, %v3131, 0.0
        %v3889 = vsel %vm3853, %v3132, 0.0
        %v3890 = vsel %vm3854, %v3133, 0.0
        %v3891 = vsel %vm3855, %v3134, 0.0
        %v3892 = vsel %vm3856, %v3135, 0.0
        %v3893 = vsel %vm3857, %v3136, 0.0
        %v3894 = vsel %vm3858, %v3137, 0.0
        %v3895 = vsel %vm3859, %v3138, 0.0
        %v3896 = vsel %vm3860, %v3139, 0.0
        %v3897 = vsel %vm3861, %v3140, 0.0
        %v3898 = vsel %vm3862, %v3141, 0.0
        %v3899 = vsel %vm3863, %v3142, 0.0
        %v3900 = vsel %vm3864, %v3143, 0.0
        %v3901 = vsel %vm3865, %v3144, 0.0
        %v3902 = vsel %vm3866, %v3145, 0.0
        %v3903 = vsel %vm3867, %v3146, 0.0
        %v3904 = vsel %vm3868, %v3147, 0.0
        %v3905 = vsel %vm3869, %v3148, 0.0
        %v3906 = vsel %vm3870, %v3149, 0.0
        %v3907 = vsel %vm3871, %v3150, 0.0
        %v3908 = vsel %vm3872, %v3151, 0.0
        %v3909 = vsel %vm3873, %v3152, 0.0
        %v3910 = vsel %vm3874, %v3153, 0.0
        %v3911 = vsel %vm3875, %v3154, 0.0
        %3912 = vst [vmem:[#allocation3] sm:$0xff] 0
        %3913 = vst [vmem:[#allocation3 + $0x8] sm:$0xf] 0
        %3914 = vst [vmem:[#allocation3 + $0x98] sm:$0xf0] 0
        %3915 = vst [vmem:[#allocation3 + $0xa0] sm:$0xff] 0
        %v3916 = vpack.c.bf16 %v3877, %v3876
        %v3917 = vpack.c.bf16 %v3879, %v3878
        %v3918 = vpack.c.bf16 %v3881, %v3880
        %v3919 = vpack.c.bf16 %v3883, %v3882
        %v3920 = vpack.c.bf16 %v3885, %v3884
        %v3921 = vpack.c.bf16 %v3887, %v3886
        %v3922 = vpack.c.bf16 %v3889, %v3888
        %v3923 = vpack.c.bf16 %v3891, %v3890
        %v3924 = vpack.c.bf16 %v3893, %v3892
        %v3925 = vpack.c.bf16 %v3895, %v3894
        %v3926 = vpack.c.bf16 %v3897, %v3896
        %v3927 = vpack.c.bf16 %v3899, %v3898
        %v3928 = vpack.c.bf16 %v3901, %v3900
        %v3929 = vpack.c.bf16 %v3903, %v3902
        %v3930 = vpack.c.bf16 %v3905, %v3904
        %v3931 = vpack.c.bf16 %v3907, %v3906
        %v3932 = vpack.c.bf16 %v3909, %v3908
        %v3933 = vpack.c.bf16 %v3911, %v3910
        %vm3952 = vcmask 1043456
        %v3953 = vrot.slane %v3916, 4
        %v3954 = vrot.slane %v3917, 4
        %v3955 = vsel %vm3952, %v3953, %v3954
        %v3956 = vrot.slane %v3918, 4
        %v3957 = vsel %vm3952, %v3954, %v3956
        %v3958 = vrot.slane %v3919, 4
        %v3959 = vsel %vm3952, %v3956, %v3958
        %v3960 = vrot.slane %v3920, 4
        %v3961 = vsel %vm3952, %v3958, %v3960
        %v3962 = vrot.slane %v3921, 4
        %v3963 = vsel %vm3952, %v3960, %v3962
        %v3964 = vrot.slane %v3922, 4
        %v3965 = vsel %vm3952, %v3962, %v3964
        %v3966 = vrot.slane %v3923, 4
        %v3967 = vsel %vm3952, %v3964, %v3966
        %v3968 = vrot.slane %v3924, 4
        %v3969 = vsel %vm3952, %v3966, %v3968
        %v3970 = vrot.slane %v3925, 4
        %v3971 = vsel %vm3952, %v3968, %v3970
        %v3972 = vrot.slane %v3926, 4
        %v3973 = vsel %vm3952, %v3970, %v3972
        %v3974 = vrot.slane %v3927, 4
        %v3975 = vsel %vm3952, %v3972, %v3974
        %v3976 = vrot.slane %v3928, 4
        %v3977 = vsel %vm3952, %v3974, %v3976
        %v3978 = vrot.slane %v3929, 4
        %v3979 = vsel %vm3952, %v3976, %v3978
        %v3980 = vrot.slane %v3930, 4
        %v3981 = vsel %vm3952, %v3978, %v3980
        %v3982 = vrot.slane %v3931, 4
        %v3983 = vsel %vm3952, %v3980, %v3982
        %v3984 = vrot.slane %v3932, 4
        %v3985 = vsel %vm3952, %v3982, %v3984
        %v3986 = vrot.slane %v3933, 4
        %v3987 = vsel %vm3952, %v3984, %v3986
        %4007 = vst [vmem:[#allocation3 + $0x8] sm:$0xf0] %v3953
        %4008 = vst [vmem:[#allocation3 + $0x10] sm:$0xff] %v3955
        %4009 = vst [vmem:[#allocation3 + $0x18] sm:$0xff] %v3957
        %4010 = vst [vmem:[#allocation3 + $0x20] sm:$0xff] %v3959
        %4011 = vst [vmem:[#allocation3 + $0x28] sm:$0xff] %v3961
        %4012 = vst [vmem:[#allocation3 + $0x30] sm:$0xff] %v3963
        %4013 = vst [vmem:[#allocation3 + $0x38] sm:$0xff] %v3965
        %4014 = vst [vmem:[#allocation3 + $0x40] sm:$0xff] %v3967
        %4015 = vst [vmem:[#allocation3 + $0x48] sm:$0xff] %v3969
        %4016 = vst [vmem:[#allocation3 + $0x50] sm:$0xff] %v3971
        %4017 = vst [vmem:[#allocation3 + $0x58] sm:$0xff] %v3973
        %4018 = vst [vmem:[#allocation3 + $0x60] sm:$0xff] %v3975
        %4019 = vst [vmem:[#allocation3 + $0x68] sm:$0xff] %v3977
        %4020 = vst [vmem:[#allocation3 + $0x70] sm:$0xff] %v3979
        %4021 = vst [vmem:[#allocation3 + $0x78] sm:$0xff] %v3981
        %4022 = vst [vmem:[#allocation3 + $0x80] sm:$0xff] %v3983
        %4023 = vst [vmem:[#allocation3 + $0x88] sm:$0xff] %v3985
        %4024 = vst [vmem:[#allocation3 + $0x90] sm:$0xff] %v3987
        %4025 = vst [vmem:[#allocation3 + $0x98] sm:$0xf] %v3986
        %v4026 = vld [vmem:[#allocation3] sm:$0xfc]
        %v4027 = vld [vmem:[#allocation3 + $0x8] sm:$0xff]
        %v4028 = vld [vmem:[#allocation3 + $0x10] sm:$0xff]
        %v4029 = vld [vmem:[#allocation3 + $0x18] sm:$0xff]
        %v4030 = vld [vmem:[#allocation3 + $0x20] sm:$0xff]
        %v4031 = vld [vmem:[#allocation3 + $0x28] sm:$0xff]
        %v4032 = vld [vmem:[#allocation3 + $0x30] sm:$0xff]
        %v4033 = vld [vmem:[#allocation3 + $0x38] sm:$0xff]
        %v4034 = vld [vmem:[#allocation3 + $0x40] sm:$0xff]
        %v4035 = vld [vmem:[#allocation3 + $0x48] sm:$0xff]
        %v4036 = vld [vmem:[#allocation3 + $0x50] sm:$0xff]
        %v4037 = vld [vmem:[#allocation3 + $0x58] sm:$0xff]
        %v4038 = vld [vmem:[#allocation3 + $0x60] sm:$0xff]
        %v4039 = vld [vmem:[#allocation3 + $0x68] sm:$0xff]
        %v4040 = vld [vmem:[#allocation3 + $0x70] sm:$0xff]
        %v4041 = vld [vmem:[#allocation3 + $0x78] sm:$0xff]
        %v4042 = vld [vmem:[#allocation3 + $0x80] sm:$0xff]
        %v4043 = vld [vmem:[#allocation3 + $0x88] sm:$0xff]
        %v4044 = vld [vmem:[#allocation3 + $0x90] sm:$0x7]
        %v4046 = vshrl.u32 %v4026, 16
        %v4048 = vrot.slane %v4046, 2
        %v4049 = vshll.u32 %v4026, 16
        %v4051 = vrot.slane %v4049, 3
        %v4052 = vor.u32 %v4048, %v4051
        %v4054 = vshrl.u32 %v4027, 16
        %v4056 = vrot.slane %v4054, 2
        %v4057 = vshll.u32 %v4027, 16
        %v4059 = vrot.slane %v4057, 3
        %v4060 = vor.u32 %v4056, %v4059
        %v4061 = vsel %vm2274, %v4052, %v4060
        %v4063 = vshrl.u32 %v4028, 16
        %v4065 = vrot.slane %v4063, 2
        %v4066 = vshll.u32 %v4028, 16
        %v4068 = vrot.slane %v4066, 3
        %v4069 = vor.u32 %v4065, %v4068
        %v4070 = vsel %vm2274, %v4060, %v4069
        %v4072 = vshrl.u32 %v4029, 16
        %v4074 = vrot.slane %v4072, 2
        %v4075 = vshll.u32 %v4029, 16
        %v4077 = vrot.slane %v4075, 3
        %v4078 = vor.u32 %v4074, %v4077
        %v4079 = vsel %vm2274, %v4069, %v4078
        %v4081 = vshrl.u32 %v4030, 16
        %v4083 = vrot.slane %v4081, 2
        %v4084 = vshll.u32 %v4030, 16
        %v4086 = vrot.slane %v4084, 3
        %v4087 = vor.u32 %v4083, %v4086
        %v4088 = vsel %vm2274, %v4078, %v4087
        %v4090 = vshrl.u32 %v4031, 16
        %v4092 = vrot.slane %v4090, 2
        %v4093 = vshll.u32 %v4031, 16
        %v4095 = vrot.slane %v4093, 3
        %v4096 = vor.u32 %v4092, %v4095
        %v4097 = vsel %vm2274, %v4087, %v4096
        %v4099 = vshrl.u32 %v4032, 16
        %v4101 = vrot.slane %v4099, 2
        %v4102 = vshll.u32 %v4032, 16
        %v4104 = vrot.slane %v4102, 3
        %v4105 = vor.u32 %v4101, %v4104
        %v4106 = vsel %vm2274, %v4096, %v4105
        %v4108 = vshrl.u32 %v4033, 16
        %v4110 = vrot.slane %v4108, 2
        %v4111 = vshll.u32 %v4033, 16
        %v4113 = vrot.slane %v4111, 3
        %v4114 = vor.u32 %v4110, %v4113
        %v4115 = vsel %vm2274, %v4105, %v4114
        %v4117 = vshrl.u32 %v4034, 16
        %v4119 = vrot.slane %v4117, 2
        %v4120 = vshll.u32 %v4034, 16
        %v4122 = vrot.slane %v4120, 3
        %v4123 = vor.u32 %v4119, %v4122
        %v4124 = vsel %vm2274, %v4114, %v4123
        %v4126 = vshrl.u32 %v4035, 16
        %v4128 = vrot.slane %v4126, 2
        %v4129 = vshll.u32 %v4035, 16
        %v4131 = vrot.slane %v4129, 3
        %v4132 = vor.u32 %v4128, %v4131
        %v4133 = vsel %vm2274, %v4123, %v4132
        %v4135 = vshrl.u32 %v4036, 16
        %v4137 = vrot.slane %v4135, 2
        %v4138 = vshll.u32 %v4036, 16
        %v4140 = vrot.slane %v4138, 3
        %v4141 = vor.u32 %v4137, %v4140
        %v4142 = vsel %vm2274, %v4132, %v4141
        %v4144 = vshrl.u32 %v4037, 16
        %v4146 = vrot.slane %v4144, 2
        %v4147 = vshll.u32 %v4037, 16
        %v4149 = vrot.slane %v4147, 3
        %v4150 = vor.u32 %v4146, %v4149
        %v4151 = vsel %vm2274, %v4141, %v4150
        %v4153 = vshrl.u32 %v4038, 16
        %v4155 = vrot.slane %v4153, 2
        %v4156 = vshll.u32 %v4038, 16
        %v4158 = vrot.slane %v4156, 3
        %v4159 = vor.u32 %v4155, %v4158
        %v4160 = vsel %vm2274, %v4150, %v4159
        %v4162 = vshrl.u32 %v4039, 16
        %v4164 = vrot.slane %v4162, 2
        %v4165 = vshll.u32 %v4039, 16
        %v4167 = vrot.slane %v4165, 3
        %v4168 = vor.u32 %v4164, %v4167
        %v4169 = vsel %vm2274, %v4159, %v4168
        %v4171 = vshrl.u32 %v4040, 16
        %v4173 = vrot.slane %v4171, 2
        %v4174 = vshll.u32 %v4040, 16
        %v4176 = vrot.slane %v4174, 3
        %v4177 = vor.u32 %v4173, %v4176
        %v4178 = vsel %vm2274, %v4168, %v4177
        %v4180 = vshrl.u32 %v4041, 16
        %v4182 = vrot.slane %v4180, 2
        %v4183 = vshll.u32 %v4041, 16
        %v4185 = vrot.slane %v4183, 3
        %v4186 = vor.u32 %v4182, %v4185
        %v4187 = vsel %vm2274, %v4177, %v4186
        %v4189 = vshrl.u32 %v4042, 16
        %v4191 = vrot.slane %v4189, 2
        %v4192 = vshll.u32 %v4042, 16
        %v4194 = vrot.slane %v4192, 3
        %v4195 = vor.u32 %v4191, %v4194
        %v4196 = vsel %vm2274, %v4186, %v4195
        %v4198 = vshrl.u32 %v4043, 16
        %v4200 = vrot.slane %v4198, 2
        %v4201 = vshll.u32 %v4043, 16
        %v4203 = vrot.slane %v4201, 3
        %v4204 = vor.u32 %v4200, %v4203
        %v4205 = vsel %vm2274, %v4195, %v4204
        %v4207 = vshrl.u32 %v4044, 16
        %v4209 = vrot.slane %v4207, 2
        %v4210 = vshll.u32 %v4044, 16
        %v4212 = vrot.slane %v4210, 3
        %v4213 = vor.u32 %v4209, %v4212
        %v4214 = vsel %vm2274, %v4204, %v4213
        %4233 = vst [vmem:[#allocation4] sm:$0xff] %v4061
        %4234 = vst [vmem:[#allocation4 + $0x48] sm:$0xff] %v4070
        %4235 = vst [vmem:[#allocation4 + $0x90] sm:$0xff] %v4079
        %4236 = vst [vmem:[#allocation4 + $0xd8] sm:$0xff] %v4088
        %4237 = vst [vmem:[#allocation4 + $0x120] sm:$0xff] %v4097
        %4238 = vst [vmem:[#allocation4 + $0x168] sm:$0xff] %v4106
        %4239 = vst [vmem:[#allocation4 + $0x1b0] sm:$0xff] %v4115
        %4240 = vst [vmem:[#allocation4 + $0x1f8] sm:$0xff] %v4124
        %4241 = vst [vmem:[#allocation4 + $0x240] sm:$0xff] %v4133
        %4242 = vst [vmem:[#allocation4 + $0x288] sm:$0xff] %v4142
        %4243 = vst [vmem:[#allocation4 + $0x2d0] sm:$0xff] %v4151
        %4244 = vst [vmem:[#allocation4 + $0x318] sm:$0xff] %v4160
        %4245 = vst [vmem:[#allocation4 + $0x360] sm:$0xff] %v4169
        %4246 = vst [vmem:[#allocation4 + $0x3a8] sm:$0xff] %v4178
        %4247 = vst [vmem:[#allocation4 + $0x3f0] sm:$0xff] %v4187
        %4248 = vst [vmem:[#allocation4 + $0x438] sm:$0xff] %v4196
        %4249 = vst [vmem:[#allocation4 + $0x480] sm:$0xff] %v4205
        %4250 = vst [vmem:[#allocation4 + $0x4c8] sm:$0xff] %v4214
        %v4251 = vld [vmem:[#allocation3] sm:$0xf8]
        %v4252 = vld [vmem:[#allocation3 + $0x8] sm:$0xff]
        %v4253 = vld [vmem:[#allocation3 + $0x10] sm:$0xff]
        %v4254 = vld [vmem:[#allocation3 + $0x18] sm:$0xff]
        %v4255 = vld [vmem:[#allocation3 + $0x20] sm:$0xff]
        %v4256 = vld [vmem:[#allocation3 + $0x28] sm:$0xff]
        %v4257 = vld [vmem:[#allocation3 + $0x30] sm:$0xff]
        %v4258 = vld [vmem:[#allocation3 + $0x38] sm:$0xff]
        %v4259 = vld [vmem:[#allocation3 + $0x40] sm:$0xff]
        %v4260 = vld [vmem:[#allocation3 + $0x48] sm:$0xff]
        %v4261 = vld [vmem:[#allocation3 + $0x50] sm:$0xff]
        %v4262 = vld [vmem:[#allocation3 + $0x58] sm:$0xff]
        %v4263 = vld [vmem:[#allocation3 + $0x60] sm:$0xff]
        %v4264 = vld [vmem:[#allocation3 + $0x68] sm:$0xff]
        %v4265 = vld [vmem:[#allocation3 + $0x70] sm:$0xff]
        %v4266 = vld [vmem:[#allocation3 + $0x78] sm:$0xff]
        %v4267 = vld [vmem:[#allocation3 + $0x80] sm:$0xff]
        %v4268 = vld [vmem:[#allocation3 + $0x88] sm:$0xff]
        %v4269 = vld [vmem:[#allocation3 + $0x90] sm:$0x7]
        %v4289 = vrot.slane %v4251, 3
        %v4290 = vrot.slane %v4252, 3
        %v4291 = vsel %vm2648, %v4289, %v4290
        %v4292 = vrot.slane %v4253, 3
        %v4293 = vsel %vm2648, %v4290, %v4292
        %v4294 = vrot.slane %v4254, 3
        %v4295 = vsel %vm2648, %v4292, %v4294
        %v4296 = vrot.slane %v4255, 3
        %v4297 = vsel %vm2648, %v4294, %v4296
        %v4298 = vrot.slane %v4256, 3
        %v4299 = vsel %vm2648, %v4296, %v4298
        %v4300 = vrot.slane %v4257, 3
        %v4301 = vsel %vm2648, %v4298, %v4300
        %v4302 = vrot.slane %v4258, 3
        %v4303 = vsel %vm2648, %v4300, %v4302
        %v4304 = vrot.slane %v4259, 3
        %v4305 = vsel %vm2648, %v4302, %v4304
        %v4306 = vrot.slane %v4260, 3
        %v4307 = vsel %vm2648, %v4304, %v4306
        %v4308 = vrot.slane %v4261, 3
        %v4309 = vsel %vm2648, %v4306, %v4308
        %v4310 = vrot.slane %v4262, 3
        %v4311 = vsel %vm2648, %v4308, %v4310
        %v4312 = vrot.slane %v4263, 3
        %v4313 = vsel %vm2648, %v4310, %v4312
        %v4314 = vrot.slane %v4264, 3
        %v4315 = vsel %vm2648, %v4312, %v4314
        %v4316 = vrot.slane %v4265, 3
        %v4317 = vsel %vm2648, %v4314, %v4316
        %v4318 = vrot.slane %v4266, 3
        %v4319 = vsel %vm2648, %v4316, %v4318
        %v4320 = vrot.slane %v4267, 3
        %v4321 = vsel %vm2648, %v4318, %v4320
        %v4322 = vrot.slane %v4268, 3
        %v4323 = vsel %vm2648, %v4320, %v4322
        %v4324 = vrot.slane %v4269, 3
        %v4325 = vsel %vm2648, %v4322, %v4324
        %4344 = vst [vmem:[#allocation4 + $0x8] sm:$0xff] %v4291
        %4345 = vst [vmem:[#allocation4 + $0x50] sm:$0xff] %v4293
        %4346 = vst [vmem:[#allocation4 + $0x98] sm:$0xff] %v4295
        %4347 = vst [vmem:[#allocation4 + $0xe0] sm:$0xff] %v4297
        %4348 = vst [vmem:[#allocation4 + $0x128] sm:$0xff] %v4299
        %4349 = vst [vmem:[#allocation4 + $0x170] sm:$0xff] %v4301
        %4350 = vst [vmem:[#allocation4 + $0x1b8] sm:$0xff] %v4303
        %4351 = vst [vmem:[#allocation4 + $0x200] sm:$0xff] %v4305
        %4352 = vst [vmem:[#allocation4 + $0x248] sm:$0xff] %v4307
        %4353 = vst [vmem:[#allocation4 + $0x290] sm:$0xff] %v4309
        %4354 = vst [vmem:[#allocation4 + $0x2d8] sm:$0xff] %v4311
        %4355 = vst [vmem:[#allocation4 + $0x320] sm:$0xff] %v4313
        %4356 = vst [vmem:[#allocation4 + $0x368] sm:$0xff] %v4315
        %4357 = vst [vmem:[#allocation4 + $0x3b0] sm:$0xff] %v4317
        %4358 = vst [vmem:[#allocation4 + $0x3f8] sm:$0xff] %v4319
        %4359 = vst [vmem:[#allocation4 + $0x440] sm:$0xff] %v4321
        %4360 = vst [vmem:[#allocation4 + $0x488] sm:$0xff] %v4323
        %4361 = vst [vmem:[#allocation4 + $0x4d0] sm:$0xff] %v4325
        %v4362 = vld [vmem:[#allocation3] sm:$0xf8]
        %v4363 = vld [vmem:[#allocation3 + $0x8] sm:$0xff]
        %v4364 = vld [vmem:[#allocation3 + $0x10] sm:$0xff]
        %v4365 = vld [vmem:[#allocation3 + $0x18] sm:$0xff]
        %v4366 = vld [vmem:[#allocation3 + $0x20] sm:$0xff]
        %v4367 = vld [vmem:[#allocation3 + $0x28] sm:$0xff]
        %v4368 = vld [vmem:[#allocation3 + $0x30] sm:$0xff]
        %v4369 = vld [vmem:[#allocation3 + $0x38] sm:$0xff]
        %v4370 = vld [vmem:[#allocation3 + $0x40] sm:$0xff]
        %v4371 = vld [vmem:[#allocation3 + $0x48] sm:$0xff]
        %v4372 = vld [vmem:[#allocation3 + $0x50] sm:$0xff]
        %v4373 = vld [vmem:[#allocation3 + $0x58] sm:$0xff]
        %v4374 = vld [vmem:[#allocation3 + $0x60] sm:$0xff]
        %v4375 = vld [vmem:[#allocation3 + $0x68] sm:$0xff]
        %v4376 = vld [vmem:[#allocation3 + $0x70] sm:$0xff]
        %v4377 = vld [vmem:[#allocation3 + $0x78] sm:$0xff]
        %v4378 = vld [vmem:[#allocation3 + $0x80] sm:$0xff]
        %v4379 = vld [vmem:[#allocation3 + $0x88] sm:$0xff]
        %v4380 = vld [vmem:[#allocation3 + $0x90] sm:$0xf]
        %vm4381 = vsmask.f32 4352
        %v4383 = vshrl.u32 %v4362, 16
        %v4385 = vrot.slane %v4383, 3
        %v4386 = vshll.u32 %v4362, 16
        %v4388 = vrot.slane %v4386, 4
        %v4389 = vor.u32 %v4385, %v4388
        %v4391 = vshrl.u32 %v4363, 16
        %v4393 = vrot.slane %v4391, 3
        %v4394 = vshll.u32 %v4363, 16
        %v4396 = vrot.slane %v4394, 4
        %v4397 = vor.u32 %v4393, %v4396
        %v4398 = vsel %vm4381, %v4389, %v4397
        %v4400 = vshrl.u32 %v4364, 16
        %v4402 = vrot.slane %v4400, 3
        %v4403 = vshll.u32 %v4364, 16
        %v4405 = vrot.slane %v4403, 4
        %v4406 = vor.u32 %v4402, %v4405
        %v4407 = vsel %vm4381, %v4397, %v4406
        %v4409 = vshrl.u32 %v4365, 16
        %v4411 = vrot.slane %v4409, 3
        %v4412 = vshll.u32 %v4365, 16
        %v4414 = vrot.slane %v4412, 4
        %v4415 = vor.u32 %v4411, %v4414
        %v4416 = vsel %vm4381, %v4406, %v4415
        %v4418 = vshrl.u32 %v4366, 16
        %v4420 = vrot.slane %v4418, 3
        %v4421 = vshll.u32 %v4366, 16
        %v4423 = vrot.slane %v4421, 4
        %v4424 = vor.u32 %v4420, %v4423
        %v4425 = vsel %vm4381, %v4415, %v4424
        %v4427 = vshrl.u32 %v4367, 16
        %v4429 = vrot.slane %v4427, 3
        %v4430 = vshll.u32 %v4367, 16
        %v4432 = vrot.slane %v4430, 4
        %v4433 = vor.u32 %v4429, %v4432
        %v4434 = vsel %vm4381, %v4424, %v4433
        %v4436 = vshrl.u32 %v4368, 16
        %v4438 = vrot.slane %v4436, 3
        %v4439 = vshll.u32 %v4368, 16
        %v4441 = vrot.slane %v4439, 4
        %v4442 = vor.u32 %v4438, %v4441
        %v4443 = vsel %vm4381, %v4433, %v4442
        %v4445 = vshrl.u32 %v4369, 16
        %v4447 = vrot.slane %v4445, 3
        %v4448 = vshll.u32 %v4369, 16
        %v4450 = vrot.slane %v4448, 4
        %v4451 = vor.u32 %v4447, %v4450
        %v4452 = vsel %vm4381, %v4442, %v4451
        %v4454 = vshrl.u32 %v4370, 16
        %v4456 = vrot.slane %v4454, 3
        %v4457 = vshll.u32 %v4370, 16
        %v4459 = vrot.slane %v4457, 4
        %v4460 = vor.u32 %v4456, %v4459
        %v4461 = vsel %vm4381, %v4451, %v4460
        %v4463 = vshrl.u32 %v4371, 16
        %v4465 = vrot.slane %v4463, 3
        %v4466 = vshll.u32 %v4371, 16
        %v4468 = vrot.slane %v4466, 4
        %v4469 = vor.u32 %v4465, %v4468
        %v4470 = vsel %vm4381, %v4460, %v4469
        %v4472 = vshrl.u32 %v4372, 16
        %v4474 = vrot.slane %v4472, 3
        %v4475 = vshll.u32 %v4372, 16
        %v4477 = vrot.slane %v4475, 4
        %v4478 = vor.u32 %v4474, %v4477
        %v4479 = vsel %vm4381, %v4469, %v4478
        %v4481 = vshrl.u32 %v4373, 16
        %v4483 = vrot.slane %v4481, 3
        %v4484 = vshll.u32 %v4373, 16
        %v4486 = vrot.slane %v4484, 4
        %v4487 = vor.u32 %v4483, %v4486
        %v4488 = vsel %vm4381, %v4478, %v4487
        %v4490 = vshrl.u32 %v4374, 16
        %v4492 = vrot.slane %v4490, 3
        %v4493 = vshll.u32 %v4374, 16
        %v4495 = vrot.slane %v4493, 4
        %v4496 = vor.u32 %v4492, %v4495
        %v4497 = vsel %vm4381, %v4487, %v4496
        %v4499 = vshrl.u32 %v4375, 16
        %v4501 = vrot.slane %v4499, 3
        %v4502 = vshll.u32 %v4375, 16
        %v4504 = vrot.slane %v4502, 4
        %v4505 = vor.u32 %v4501, %v4504
        %v4506 = vsel %vm4381, %v4496, %v4505
        %v4508 = vshrl.u32 %v4376, 16
        %v4510 = vrot.slane %v4508, 3
        %v4511 = vshll.u32 %v4376, 16
        %v4513 = vrot.slane %v4511, 4
        %v4514 = vor.u32 %v4510, %v4513
        %v4515 = vsel %vm4381, %v4505, %v4514
        %v4517 = vshrl.u32 %v4377, 16
        %v4519 = vrot.slane %v4517, 3
        %v4520 = vshll.u32 %v4377, 16
        %v4522 = vrot.slane %v4520, 4
        %v4523 = vor.u32 %v4519, %v4522
        %v4524 = vsel %vm4381, %v4514, %v4523
        %v4526 = vshrl.u32 %v4378, 16
        %v4528 = vrot.slane %v4526, 3
        %v4529 = vshll.u32 %v4378, 16
        %v4531 = vrot.slane %v4529, 4
        %v4532 = vor.u32 %v4528, %v4531
        %v4533 = vsel %vm4381, %v4523, %v4532
        %v4535 = vshrl.u32 %v4379, 16
        %v4537 = vrot.slane %v4535, 3
        %v4538 = vshll.u32 %v4379, 16
        %v4540 = vrot.slane %v4538, 4
        %v4541 = vor.u32 %v4537, %v4540
        %v4542 = vsel %vm4381, %v4532, %v4541
        %v4544 = vshrl.u32 %v4380, 16
        %v4546 = vrot.slane %v4544, 3
        %v4547 = vshll.u32 %v4380, 16
        %v4549 = vrot.slane %v4547, 4
        %v4550 = vor.u32 %v4546, %v4549
        %v4551 = vsel %vm4381, %v4541, %v4550
        %4570 = vst [vmem:[#allocation4 + $0x10] sm:$0xff] %v4398
        %4571 = vst [vmem:[#allocation4 + $0x58] sm:$0xff] %v4407
        %4572 = vst [vmem:[#allocation4 + $0xa0] sm:$0xff] %v4416
        %4573 = vst [vmem:[#allocation4 + $0xe8] sm:$0xff] %v4425
        %4574 = vst [vmem:[#allocation4 + $0x130] sm:$0xff] %v4434
        %4575 = vst [vmem:[#allocation4 + $0x178] sm:$0xff] %v4443
        %4576 = vst [vmem:[#allocation4 + $0x1c0] sm:$0xff] %v4452
        %4577 = vst [vmem:[#allocation4 + $0x208] sm:$0xff] %v4461
        %4578 = vst [vmem:[#allocation4 + $0x250] sm:$0xff] %v4470
        %4579 = vst [vmem:[#allocation4 + $0x298] sm:$0xff] %v4479
        %4580 = vst [vmem:[#allocation4 + $0x2e0] sm:$0xff] %v4488
        %4581 = vst [vmem:[#allocation4 + $0x328] sm:$0xff] %v4497
        %4582 = vst [vmem:[#allocation4 + $0x370] sm:$0xff] %v4506
        %4583 = vst [vmem:[#allocation4 + $0x3b8] sm:$0xff] %v4515
        %4584 = vst [vmem:[#allocation4 + $0x400] sm:$0xff] %v4524
        %4585 = vst [vmem:[#allocation4 + $0x448] sm:$0xff] %v4533
        %4586 = vst [vmem:[#allocation4 + $0x490] sm:$0xff] %v4542
        %4587 = vst [vmem:[#allocation4 + $0x4d8] sm:$0xff] %v4551
        %v4588 = vld [vmem:[#allocation3 + $0x8] sm:$0xf8]
        %v4589 = vld [vmem:[#allocation3 + $0x10] sm:$0xff]
        %v4590 = vld [vmem:[#allocation3 + $0x18] sm:$0xff]
        %v4591 = vld [vmem:[#allocation3 + $0x20] sm:$0xff]
        %v4592 = vld [vmem:[#allocation3 + $0x28] sm:$0xff]
        %v4593 = vld [vmem:[#allocation3 + $0x30] sm:$0xff]
        %v4594 = vld [vmem:[#allocation3 + $0x38] sm:$0xff]
        %v4595 = vld [vmem:[#allocation3 + $0x40] sm:$0xff]
        %v4596 = vld [vmem:[#allocation3 + $0x48] sm:$0xff]
        %v4597 = vld [vmem:[#allocation3 + $0x50] sm:$0xff]
        %v4598 = vld [vmem:[#allocation3 + $0x58] sm:$0xff]
        %v4599 = vld [vmem:[#allocation3 + $0x60] sm:$0xff]
        %v4600 = vld [vmem:[#allocation3 + $0x68] sm:$0xff]
        %v4601 = vld [vmem:[#allocation3 + $0x70] sm:$0xff]
        %v4602 = vld [vmem:[#allocation3 + $0x78] sm:$0xff]
        %v4603 = vld [vmem:[#allocation3 + $0x80] sm:$0xff]
        %v4604 = vld [vmem:[#allocation3 + $0x88] sm:$0xff]
        %v4605 = vld [vmem:[#allocation3 + $0x90] sm:$0xff]
        %v4606 = vld [vmem:[#allocation3 + $0x98] sm:$0xf]
        %v4608 = vshrl.u32 %v4588, 16
        %v4610 = vrot.slane %v4608, 3
        %v4611 = vshll.u32 %v4588, 16
        %v4613 = vrot.slane %v4611, 4
        %v4614 = vor.u32 %v4610, %v4613
        %v4616 = vshrl.u32 %v4589, 16
        %v4618 = vrot.slane %v4616, 3
        %v4619 = vshll.u32 %v4589, 16
        %v4621 = vrot.slane %v4619, 4
        %v4622 = vor.u32 %v4618, %v4621
        %v4623 = vsel %vm4381, %v4614, %v4622
        %v4625 = vshrl.u32 %v4590, 16
        %v4627 = vrot.slane %v4625, 3
        %v4628 = vshll.u32 %v4590, 16
        %v4630 = vrot.slane %v4628, 4
        %v4631 = vor.u32 %v4627, %v4630
        %v4632 = vsel %vm4381, %v4622, %v4631
        %v4634 = vshrl.u32 %v4591, 16
        %v4636 = vrot.slane %v4634, 3
        %v4637 = vshll.u32 %v4591, 16
        %v4639 = vrot.slane %v4637, 4
        %v4640 = vor.u32 %v4636, %v4639
        %v4641 = vsel %vm4381, %v4631, %v4640
        %v4643 = vshrl.u32 %v4592, 16
        %v4645 = vrot.slane %v4643, 3
        %v4646 = vshll.u32 %v4592, 16
        %v4648 = vrot.slane %v4646, 4
        %v4649 = vor.u32 %v4645, %v4648
        %v4650 = vsel %vm4381, %v4640, %v4649
        %v4652 = vshrl.u32 %v4593, 16
        %v4654 = vrot.slane %v4652, 3
        %v4655 = vshll.u32 %v4593, 16
        %v4657 = vrot.slane %v4655, 4
        %v4658 = vor.u32 %v4654, %v4657
        %v4659 = vsel %vm4381, %v4649, %v4658
        %v4661 = vshrl.u32 %v4594, 16
        %v4663 = vrot.slane %v4661, 3
        %v4664 = vshll.u32 %v4594, 16
        %v4666 = vrot.slane %v4664, 4
        %v4667 = vor.u32 %v4663, %v4666
        %v4668 = vsel %vm4381, %v4658, %v4667
        %v4670 = vshrl.u32 %v4595, 16
        %v4672 = vrot.slane %v4670, 3
        %v4673 = vshll.u32 %v4595, 16
        %v4675 = vrot.slane %v4673, 4
        %v4676 = vor.u32 %v4672, %v4675
        %v4677 = vsel %vm4381, %v4667, %v4676
        %v4679 = vshrl.u32 %v4596, 16
        %v4681 = vrot.slane %v4679, 3
        %v4682 = vshll.u32 %v4596, 16
        %v4684 = vrot.slane %v4682, 4
        %v4685 = vor.u32 %v4681, %v4684
        %v4686 = vsel %vm4381, %v4676, %v4685
        %v4688 = vshrl.u32 %v4597, 16
        %v4690 = vrot.slane %v4688, 3
        %v4691 = vshll.u32 %v4597, 16
        %v4693 = vrot.slane %v4691, 4
        %v4694 = vor.u32 %v4690, %v4693
        %v4695 = vsel %vm4381, %v4685, %v4694
        %v4697 = vshrl.u32 %v4598, 16
        %v4699 = vrot.slane %v4697, 3
        %v4700 = vshll.u32 %v4598, 16
        %v4702 = vrot.slane %v4700, 4
        %v4703 = vor.u32 %v4699, %v4702
        %v4704 = vsel %vm4381, %v4694, %v4703
        %v4706 = vshrl.u32 %v4599, 16
        %v4708 = vrot.slane %v4706, 3
        %v4709 = vshll.u32 %v4599, 16
        %v4711 = vrot.slane %v4709, 4
        %v4712 = vor.u32 %v4708, %v4711
        %v4713 = vsel %vm4381, %v4703, %v4712
        %v4715 = vshrl.u32 %v4600, 16
        %v4717 = vrot.slane %v4715, 3
        %v4718 = vshll.u32 %v4600, 16
        %v4720 = vrot.slane %v4718, 4
        %v4721 = vor.u32 %v4717, %v4720
        %v4722 = vsel %vm4381, %v4712, %v4721
        %v4724 = vshrl.u32 %v4601, 16
        %v4726 = vrot.slane %v4724, 3
        %v4727 = vshll.u32 %v4601, 16
        %v4729 = vrot.slane %v4727, 4
        %v4730 = vor.u32 %v4726, %v4729
        %v4731 = vsel %vm4381, %v4721, %v4730
        %v4733 = vshrl.u32 %v4602, 16
        %v4735 = vrot.slane %v4733, 3
        %v4736 = vshll.u32 %v4602, 16
        %v4738 = vrot.slane %v4736, 4
        %v4739 = vor.u32 %v4735, %v4738
        %v4740 = vsel %vm4381, %v4730, %v4739
        %v4742 = vshrl.u32 %v4603, 16
        %v4744 = vrot.slane %v4742, 3
        %v4745 = vshll.u32 %v4603, 16
        %v4747 = vrot.slane %v4745, 4
        %v4748 = vor.u32 %v4744, %v4747
        %v4749 = vsel %vm4381, %v4739, %v4748
        %v4751 = vshrl.u32 %v4604, 16
        %v4753 = vrot.slane %v4751, 3
        %v4754 = vshll.u32 %v4604, 16
        %v4756 = vrot.slane %v4754, 4
        %v4757 = vor.u32 %v4753, %v4756
        %v4758 = vsel %vm4381, %v4748, %v4757
        %v4760 = vshrl.u32 %v4605, 16
        %v4762 = vrot.slane %v4760, 3
        %v4763 = vshll.u32 %v4605, 16
        %v4765 = vrot.slane %v4763, 4
        %v4766 = vor.u32 %v4762, %v4765
        %v4767 = vsel %vm4381, %v4757, %v4766
        %v4769 = vshrl.u32 %v4606, 16
        %v4771 = vrot.slane %v4769, 3
        %v4772 = vshll.u32 %v4606, 16
        %v4774 = vrot.slane %v4772, 4
        %v4775 = vor.u32 %v4771, %v4774
        %v4776 = vsel %vm4381, %v4766, %v4775
        %4795 = vst [vmem:[#allocation4 + $0x18] sm:$0xff] %v4623
        %4796 = vst [vmem:[#allocation4 + $0x60] sm:$0xff] %v4632
        %4797 = vst [vmem:[#allocation4 + $0xa8] sm:$0xff] %v4641
        %4798 = vst [vmem:[#allocation4 + $0xf0] sm:$0xff] %v4650
        %4799 = vst [vmem:[#allocation4 + $0x138] sm:$0xff] %v4659
        %4800 = vst [vmem:[#allocation4 + $0x180] sm:$0xff] %v4668
        %4801 = vst [vmem:[#allocation4 + $0x1c8] sm:$0xff] %v4677
        %4802 = vst [vmem:[#allocation4 + $0x210] sm:$0xff] %v4686
        %4803 = vst [vmem:[#allocation4 + $0x258] sm:$0xff] %v4695
        %4804 = vst [vmem:[#allocation4 + $0x2a0] sm:$0xff] %v4704
        %4805 = vst [vmem:[#allocation4 + $0x2e8] sm:$0xff] %v4713
        %4806 = vst [vmem:[#allocation4 + $0x330] sm:$0xff] %v4722
        %4807 = vst [vmem:[#allocation4 + $0x378] sm:$0xff] %v4731
        %4808 = vst [vmem:[#allocation4 + $0x3c0] sm:$0xff] %v4740
        %4809 = vst [vmem:[#allocation4 + $0x408] sm:$0xff] %v4749
        %4810 = vst [vmem:[#allocation4 + $0x450] sm:$0xff] %v4758
        %4811 = vst [vmem:[#allocation4 + $0x498] sm:$0xff] %v4767
        %4812 = vst [vmem:[#allocation4 + $0x4e0] sm:$0xff] %v4776
        %v4813 = vld [vmem:[#allocation3 + $0x8] sm:$0xf0]
        %v4814 = vld [vmem:[#allocation3 + $0x10] sm:$0xff]
        %v4815 = vld [vmem:[#allocation3 + $0x18] sm:$0xff]
        %v4816 = vld [vmem:[#allocation3 + $0x20] sm:$0xff]
        %v4817 = vld [vmem:[#allocation3 + $0x28] sm:$0xff]
        %v4818 = vld [vmem:[#allocation3 + $0x30] sm:$0xff]
        %v4819 = vld [vmem:[#allocation3 + $0x38] sm:$0xff]
        %v4820 = vld [vmem:[#allocation3 + $0x40] sm:$0xff]
        %v4821 = vld [vmem:[#allocation3 + $0x48] sm:$0xff]
        %v4822 = vld [vmem:[#allocation3 + $0x50] sm:$0xff]
        %v4823 = vld [vmem:[#allocation3 + $0x58] sm:$0xff]
        %v4824 = vld [vmem:[#allocation3 + $0x60] sm:$0xff]
        %v4825 = vld [vmem:[#allocation3 + $0x68] sm:$0xff]
        %v4826 = vld [vmem:[#allocation3 + $0x70] sm:$0xff]
        %v4827 = vld [vmem:[#allocation3 + $0x78] sm:$0xff]
        %v4828 = vld [vmem:[#allocation3 + $0x80] sm:$0xff]
        %v4829 = vld [vmem:[#allocation3 + $0x88] sm:$0xff]
        %v4830 = vld [vmem:[#allocation3 + $0x90] sm:$0xff]
        %v4831 = vld [vmem:[#allocation3 + $0x98] sm:$0xf]
        %v4851 = vrot.slane %v4813, 4
        %v4852 = vrot.slane %v4814, 4
        %v4853 = vsel %vm3952, %v4851, %v4852
        %v4854 = vrot.slane %v4815, 4
        %v4855 = vsel %vm3952, %v4852, %v4854
        %v4856 = vrot.slane %v4816, 4
        %v4857 = vsel %vm3952, %v4854, %v4856
        %v4858 = vrot.slane %v4817, 4
        %v4859 = vsel %vm3952, %v4856, %v4858
        %v4860 = vrot.slane %v4818, 4
        %v4861 = vsel %vm3952, %v4858, %v4860
        %v4862 = vrot.slane %v4819, 4
        %v4863 = vsel %vm3952, %v4860, %v4862
        %v4864 = vrot.slane %v4820, 4
        %v4865 = vsel %vm3952, %v4862, %v4864
        %v4866 = vrot.slane %v4821, 4
        %v4867 = vsel %vm3952, %v4864, %v4866
        %v4868 = vrot.slane %v4822, 4
        %v4869 = vsel %vm3952, %v4866, %v4868
        %v4870 = vrot.slane %v4823, 4
        %v4871 = vsel %vm3952, %v4868, %v4870
        %v4872 = vrot.slane %v4824, 4
        %v4873 = vsel %vm3952, %v4870, %v4872
        %v4874 = vrot.slane %v4825, 4
        %v4875 = vsel %vm3952, %v4872, %v4874
        %v4876 = vrot.slane %v4826, 4
        %v4877 = vsel %vm3952, %v4874, %v4876
        %v4878 = vrot.slane %v4827, 4
        %v4879 = vsel %vm3952, %v4876, %v4878
        %v4880 = vrot.slane %v4828, 4
        %v4881 = vsel %vm3952, %v4878, %v4880
        %v4882 = vrot.slane %v4829, 4
        %v4883 = vsel %vm3952, %v4880, %v4882
        %v4884 = vrot.slane %v4830, 4
        %v4885 = vsel %vm3952, %v4882, %v4884
        %v4886 = vrot.slane %v4831, 4
        %v4887 = vsel %vm3952, %v4884, %v4886
        %4906 = vst [vmem:[#allocation4 + $0x20] sm:$0xff] %v4853
        %4907 = vst [vmem:[#allocation4 + $0x68] sm:$0xff] %v4855
        %4908 = vst [vmem:[#allocation4 + $0xb0] sm:$0xff] %v4857
        %4909 = vst [vmem:[#allocation4 + $0xf8] sm:$0xff] %v4859
        %4910 = vst [vmem:[#allocation4 + $0x140] sm:$0xff] %v4861
        %4911 = vst [vmem:[#allocation4 + $0x188] sm:$0xff] %v4863
        %4912 = vst [vmem:[#allocation4 + $0x1d0] sm:$0xff] %v4865
        %4913 = vst [vmem:[#allocation4 + $0x218] sm:$0xff] %v4867
        %4914 = vst [vmem:[#allocation4 + $0x260] sm:$0xff] %v4869
        %4915 = vst [vmem:[#allocation4 + $0x2a8] sm:$0xff] %v4871
        %4916 = vst [vmem:[#allocation4 + $0x2f0] sm:$0xff] %v4873
        %4917 = vst [vmem:[#allocation4 + $0x338] sm:$0xff] %v4875
        %4918 = vst [vmem:[#allocation4 + $0x380] sm:$0xff] %v4877
        %4919 = vst [vmem:[#allocation4 + $0x3c8] sm:$0xff] %v4879
        %4920 = vst [vmem:[#allocation4 + $0x410] sm:$0xff] %v4881
        %4921 = vst [vmem:[#allocation4 + $0x458] sm:$0xff] %v4883
        %4922 = vst [vmem:[#allocation4 + $0x4a0] sm:$0xff] %v4885
        %4923 = vst [vmem:[#allocation4 + $0x4e8] sm:$0xff] %v4887
        %v4924 = vld [vmem:[#allocation3 + $0x8] sm:$0xf0]
        %v4925 = vld [vmem:[#allocation3 + $0x10] sm:$0xff]
        %v4926 = vld [vmem:[#allocation3 + $0x18] sm:$0xff]
        %v4927 = vld [vmem:[#allocation3 + $0x20] sm:$0xff]
        %v4928 = vld [vmem:[#allocation3 + $0x28] sm:$0xff]
        %v4929 = vld [vmem:[#allocation3 + $0x30] sm:$0xff]
        %v4930 = vld [vmem:[#allocation3 + $0x38] sm:$0xff]
        %v4931 = vld [vmem:[#allocation3 + $0x40] sm:$0xff]
        %v4932 = vld [vmem:[#allocation3 + $0x48] sm:$0xff]
        %v4933 = vld [vmem:[#allocation3 + $0x50] sm:$0xff]
        %v4934 = vld [vmem:[#allocation3 + $0x58] sm:$0xff]
        %v4935 = vld [vmem:[#allocation3 + $0x60] sm:$0xff]
        %v4936 = vld [vmem:[#allocation3 + $0x68] sm:$0xff]
        %v4937 = vld [vmem:[#allocation3 + $0x70] sm:$0xff]
        %v4938 = vld [vmem:[#allocation3 + $0x78] sm:$0xff]
        %v4939 = vld [vmem:[#allocation3 + $0x80] sm:$0xff]
        %v4940 = vld [vmem:[#allocation3 + $0x88] sm:$0xff]
        %v4941 = vld [vmem:[#allocation3 + $0x90] sm:$0xff]
        %v4942 = vld [vmem:[#allocation3 + $0x98] sm:$0x1f]
        %vm4943 = vsmask.f32 3328
        %v4945 = vshrl.u32 %v4924, 16
        %v4947 = vrot.slane %v4945, 4
        %v4948 = vshll.u32 %v4924, 16
        %v4950 = vrot.slane %v4948, 5
        %v4951 = vor.u32 %v4947, %v4950
        %v4953 = vshrl.u32 %v4925, 16
        %v4955 = vrot.slane %v4953, 4
        %v4956 = vshll.u32 %v4925, 16
        %v4958 = vrot.slane %v4956, 5
        %v4959 = vor.u32 %v4955, %v4958
        %v4960 = vsel %vm4943, %v4951, %v4959
        %v4962 = vshrl.u32 %v4926, 16
        %v4964 = vrot.slane %v4962, 4
        %v4965 = vshll.u32 %v4926, 16
        %v4967 = vrot.slane %v4965, 5
        %v4968 = vor.u32 %v4964, %v4967
        %v4969 = vsel %vm4943, %v4959, %v4968
        %v4971 = vshrl.u32 %v4927, 16
        %v4973 = vrot.slane %v4971, 4
        %v4974 = vshll.u32 %v4927, 16
        %v4976 = vrot.slane %v4974, 5
        %v4977 = vor.u32 %v4973, %v4976
        %v4978 = vsel %vm4943, %v4968, %v4977
        %v4980 = vshrl.u32 %v4928, 16
        %v4982 = vrot.slane %v4980, 4
        %v4983 = vshll.u32 %v4928, 16
        %v4985 = vrot.slane %v4983, 5
        %v4986 = vor.u32 %v4982, %v4985
        %v4987 = vsel %vm4943, %v4977, %v4986
        %v4989 = vshrl.u32 %v4929, 16
        %v4991 = vrot.slane %v4989, 4
        %v4992 = vshll.u32 %v4929, 16
        %v4994 = vrot.slane %v4992, 5
        %v4995 = vor.u32 %v4991, %v4994
        %v4996 = vsel %vm4943, %v4986, %v4995
        %v4998 = vshrl.u32 %v4930, 16
        %v5000 = vrot.slane %v4998, 4
        %v5001 = vshll.u32 %v4930, 16
        %v5003 = vrot.slane %v5001, 5
        %v5004 = vor.u32 %v5000, %v5003
        %v5005 = vsel %vm4943, %v4995, %v5004
        %v5007 = vshrl.u32 %v4931, 16
        %v5009 = vrot.slane %v5007, 4
        %v5010 = vshll.u32 %v4931, 16
        %v5012 = vrot.slane %v5010, 5
        %v5013 = vor.u32 %v5009, %v5012
        %v5014 = vsel %vm4943, %v5004, %v5013
        %v5016 = vshrl.u32 %v4932, 16
        %v5018 = vrot.slane %v5016, 4
        %v5019 = vshll.u32 %v4932, 16
        %v5021 = vrot.slane %v5019, 5
        %v5022 = vor.u32 %v5018, %v5021
        %v5023 = vsel %vm4943, %v5013, %v5022
        %v5025 = vshrl.u32 %v4933, 16
        %v5027 = vrot.slane %v5025, 4
        %v5028 = vshll.u32 %v4933, 16
        %v5030 = vrot.slane %v5028, 5
        %v5031 = vor.u32 %v5027, %v5030
        %v5032 = vsel %vm4943, %v5022, %v5031
        %v5034 = vshrl.u32 %v4934, 16
        %v5036 = vrot.slane %v5034, 4
        %v5037 = vshll.u32 %v4934, 16
        %v5039 = vrot.slane %v5037, 5
        %v5040 = vor.u32 %v5036, %v5039
        %v5041 = vsel %vm4943, %v5031, %v5040
        %v5043 = vshrl.u32 %v4935, 16
        %v5045 = vrot.slane %v5043, 4
        %v5046 = vshll.u32 %v4935, 16
        %v5048 = vrot.slane %v5046, 5
        %v5049 = vor.u32 %v5045, %v5048
        %v5050 = vsel %vm4943, %v5040, %v5049
        %v5052 = vshrl.u32 %v4936, 16
        %v5054 = vrot.slane %v5052, 4
        %v5055 = vshll.u32 %v4936, 16
        %v5057 = vrot.slane %v5055, 5
        %v5058 = vor.u32 %v5054, %v5057
        %v5059 = vsel %vm4943, %v5049, %v5058
        %v5061 = vshrl.u32 %v4937, 16
        %v5063 = vrot.slane %v5061, 4
        %v5064 = vshll.u32 %v4937, 16
        %v5066 = vrot.slane %v5064, 5
        %v5067 = vor.u32 %v5063, %v5066
        %v5068 = vsel %vm4943, %v5058, %v5067
        %v5070 = vshrl.u32 %v4938, 16
        %v5072 = vrot.slane %v5070, 4
        %v5073 = vshll.u32 %v4938, 16
        %v5075 = vrot.slane %v5073, 5
        %v5076 = vor.u32 %v5072, %v5075
        %v5077 = vsel %vm4943, %v5067, %v5076
        %v5079 = vshrl.u32 %v4939, 16
        %v5081 = vrot.slane %v5079, 4
        %v5082 = vshll.u32 %v4939, 16
        %v5084 = vrot.slane %v5082, 5
        %v5085 = vor.u32 %v5081, %v5084
        %v5086 = vsel %vm4943, %v5076, %v5085
        %v5088 = vshrl.u32 %v4940, 16
        %v5090 = vrot.slane %v5088, 4
        %v5091 = vshll.u32 %v4940, 16
        %v5093 = vrot.slane %v5091, 5
        %v5094 = vor.u32 %v5090, %v5093
        %v5095 = vsel %vm4943, %v5085, %v5094
        %v5097 = vshrl.u32 %v4941, 16
        %v5099 = vrot.slane %v5097, 4
        %v5100 = vshll.u32 %v4941, 16
        %v5102 = vrot.slane %v5100, 5
        %v5103 = vor.u32 %v5099, %v5102
        %v5104 = vsel %vm4943, %v5094, %v5103
        %v5106 = vshrl.u32 %v4942, 16
        %v5108 = vrot.slane %v5106, 4
        %v5109 = vshll.u32 %v4942, 16
        %v5111 = vrot.slane %v5109, 5
        %v5112 = vor.u32 %v5108, %v5111
        %v5113 = vsel %vm4943, %v5103, %v5112
        %5132 = vst [vmem:[#allocation4 + $0x28] sm:$0xff] %v4960
        %5133 = vst [vmem:[#allocation4 + $0x70] sm:$0xff] %v4969
        %5134 = vst [vmem:[#allocation4 + $0xb8] sm:$0xff] %v4978
        %5135 = vst [vmem:[#allocation4 + $0x100] sm:$0xff] %v4987
        %5136 = vst [vmem:[#allocation4 + $0x148] sm:$0xff] %v4996
        %5137 = vst [vmem:[#allocation4 + $0x190] sm:$0xff] %v5005
        %5138 = vst [vmem:[#allocation4 + $0x1d8] sm:$0xff] %v5014
        %5139 = vst [vmem:[#allocation4 + $0x220] sm:$0xff] %v5023
        %5140 = vst [vmem:[#allocation4 + $0x268] sm:$0xff] %v5032
        %5141 = vst [vmem:[#allocation4 + $0x2b0] sm:$0xff] %v5041
        %5142 = vst [vmem:[#allocation4 + $0x2f8] sm:$0xff] %v5050
        %5143 = vst [vmem:[#allocation4 + $0x340] sm:$0xff] %v5059
        %5144 = vst [vmem:[#allocation4 + $0x388] sm:$0xff] %v5068
        %5145 = vst [vmem:[#allocation4 + $0x3d0] sm:$0xff] %v5077
        %5146 = vst [vmem:[#allocation4 + $0x418] sm:$0xff] %v5086
        %5147 = vst [vmem:[#allocation4 + $0x460] sm:$0xff] %v5095
        %5148 = vst [vmem:[#allocation4 + $0x4a8] sm:$0xff] %v5104
        %5149 = vst [vmem:[#allocation4 + $0x4f0] sm:$0xff] %v5113
        %v5150 = vld [vmem:[#allocation3 + $0x10] sm:$0xf0]
        %v5151 = vld [vmem:[#allocation3 + $0x18] sm:$0xff]
        %v5152 = vld [vmem:[#allocation3 + $0x20] sm:$0xff]
        %v5153 = vld [vmem:[#allocation3 + $0x28] sm:$0xff]
        %v5154 = vld [vmem:[#allocation3 + $0x30] sm:$0xff]
        %v5155 = vld [vmem:[#allocation3 + $0x38] sm:$0xff]
        %v5156 = vld [vmem:[#allocation3 + $0x40] sm:$0xff]
        %v5157 = vld [vmem:[#allocation3 + $0x48] sm:$0xff]
        %v5158 = vld [vmem:[#allocation3 + $0x50] sm:$0xff]
        %v5159 = vld [vmem:[#allocation3 + $0x58] sm:$0xff]
        %v5160 = vld [vmem:[#allocation3 + $0x60] sm:$0xff]
        %v5161 = vld [vmem:[#allocation3 + $0x68] sm:$0xff]
        %v5162 = vld [vmem:[#allocation3 + $0x70] sm:$0xff]
        %v5163 = vld [vmem:[#allocation3 + $0x78] sm:$0xff]
        %v5164 = vld [vmem:[#allocation3 + $0x80] sm:$0xff]
        %v5165 = vld [vmem:[#allocation3 + $0x88] sm:$0xff]
        %v5166 = vld [vmem:[#allocation3 + $0x90] sm:$0xff]
        %v5167 = vld [vmem:[#allocation3 + $0x98] sm:$0xff]
        %v5168 = vld [vmem:[#allocation3 + $0xa0] sm:$0x1f]
        %v5170 = vshrl.u32 %v5150, 16
        %v5172 = vrot.slane %v5170, 4
        %v5173 = vshll.u32 %v5150, 16
        %v5175 = vrot.slane %v5173, 5
        %v5176 = vor.u32 %v5172, %v5175
        %v5178 = vshrl.u32 %v5151, 16
        %v5180 = vrot.slane %v5178, 4
        %v5181 = vshll.u32 %v5151, 16
        %v5183 = vrot.slane %v5181, 5
        %v5184 = vor.u32 %v5180, %v5183
        %v5185 = vsel %vm4943, %v5176, %v5184
        %v5187 = vshrl.u32 %v5152, 16
        %v5189 = vrot.slane %v5187, 4
        %v5190 = vshll.u32 %v5152, 16
        %v5192 = vrot.slane %v5190, 5
        %v5193 = vor.u32 %v5189, %v5192
        %v5194 = vsel %vm4943, %v5184, %v5193
        %v5196 = vshrl.u32 %v5153, 16
        %v5198 = vrot.slane %v5196, 4
        %v5199 = vshll.u32 %v5153, 16
        %v5201 = vrot.slane %v5199, 5
        %v5202 = vor.u32 %v5198, %v5201
        %v5203 = vsel %vm4943, %v5193, %v5202
        %v5205 = vshrl.u32 %v5154, 16
        %v5207 = vrot.slane %v5205, 4
        %v5208 = vshll.u32 %v5154, 16
        %v5210 = vrot.slane %v5208, 5
        %v5211 = vor.u32 %v5207, %v5210
        %v5212 = vsel %vm4943, %v5202, %v5211
        %v5214 = vshrl.u32 %v5155, 16
        %v5216 = vrot.slane %v5214, 4
        %v5217 = vshll.u32 %v5155, 16
        %v5219 = vrot.slane %v5217, 5
        %v5220 = vor.u32 %v5216, %v5219
        %v5221 = vsel %vm4943, %v5211, %v5220
        %v5223 = vshrl.u32 %v5156, 16
        %v5225 = vrot.slane %v5223, 4
        %v5226 = vshll.u32 %v5156, 16
        %v5228 = vrot.slane %v5226, 5
        %v5229 = vor.u32 %v5225, %v5228
        %v5230 = vsel %vm4943, %v5220, %v5229
        %v5232 = vshrl.u32 %v5157, 16
        %v5234 = vrot.slane %v5232, 4
        %v5235 = vshll.u32 %v5157, 16
        %v5237 = vrot.slane %v5235, 5
        %v5238 = vor.u32 %v5234, %v5237
        %v5239 = vsel %vm4943, %v5229, %v5238
        %v5241 = vshrl.u32 %v5158, 16
        %v5243 = vrot.slane %v5241, 4
        %v5244 = vshll.u32 %v5158, 16
        %v5246 = vrot.slane %v5244, 5
        %v5247 = vor.u32 %v5243, %v5246
        %v5248 = vsel %vm4943, %v5238, %v5247
        %v5250 = vshrl.u32 %v5159, 16
        %v5252 = vrot.slane %v5250, 4
        %v5253 = vshll.u32 %v5159, 16
        %v5255 = vrot.slane %v5253, 5
        %v5256 = vor.u32 %v5252, %v5255
        %v5257 = vsel %vm4943, %v5247, %v5256
        %v5259 = vshrl.u32 %v5160, 16
        %v5261 = vrot.slane %v5259, 4
        %v5262 = vshll.u32 %v5160, 16
        %v5264 = vrot.slane %v5262, 5
        %v5265 = vor.u32 %v5261, %v5264
        %v5266 = vsel %vm4943, %v5256, %v5265
        %v5268 = vshrl.u32 %v5161, 16
        %v5270 = vrot.slane %v5268, 4
        %v5271 = vshll.u32 %v5161, 16
        %v5273 = vrot.slane %v5271, 5
        %v5274 = vor.u32 %v5270, %v5273
        %v5275 = vsel %vm4943, %v5265, %v5274
        %v5277 = vshrl.u32 %v5162, 16
        %v5279 = vrot.slane %v5277, 4
        %v5280 = vshll.u32 %v5162, 16
        %v5282 = vrot.slane %v5280, 5
        %v5283 = vor.u32 %v5279, %v5282
        %v5284 = vsel %vm4943, %v5274, %v5283
        %v5286 = vshrl.u32 %v5163, 16
        %v5288 = vrot.slane %v5286, 4
        %v5289 = vshll.u32 %v5163, 16
        %v5291 = vrot.slane %v5289, 5
        %v5292 = vor.u32 %v5288, %v5291
        %v5293 = vsel %vm4943, %v5283, %v5292
        %v5295 = vshrl.u32 %v5164, 16
        %v5297 = vrot.slane %v5295, 4
        %v5298 = vshll.u32 %v5164, 16
        %v5300 = vrot.slane %v5298, 5
        %v5301 = vor.u32 %v5297, %v5300
        %v5302 = vsel %vm4943, %v5292, %v5301
        %v5304 = vshrl.u32 %v5165, 16
        %v5306 = vrot.slane %v5304, 4
        %v5307 = vshll.u32 %v5165, 16
        %v5309 = vrot.slane %v5307, 5
        %v5310 = vor.u32 %v5306, %v5309
        %v5311 = vsel %vm4943, %v5301, %v5310
        %v5313 = vshrl.u32 %v5166, 16
        %v5315 = vrot.slane %v5313, 4
        %v5316 = vshll.u32 %v5166, 16
        %v5318 = vrot.slane %v5316, 5
        %v5319 = vor.u32 %v5315, %v5318
        %v5320 = vsel %vm4943, %v5310, %v5319
        %v5322 = vshrl.u32 %v5167, 16
        %v5324 = vrot.slane %v5322, 4
        %v5325 = vshll.u32 %v5167, 16
        %v5327 = vrot.slane %v5325, 5
        %v5328 = vor.u32 %v5324, %v5327
        %v5329 = vsel %vm4943, %v5319, %v5328
        %v5331 = vshrl.u32 %v5168, 16
        %v5333 = vrot.slane %v5331, 4
        %v5334 = vshll.u32 %v5168, 16
        %v5336 = vrot.slane %v5334, 5
        %v5337 = vor.u32 %v5333, %v5336
        %v5338 = vsel %vm4943, %v5328, %v5337
        %5357 = vst [vmem:[#allocation4 + $0x30] sm:$0xff] %v5185
        %5358 = vst [vmem:[#allocation4 + $0x78] sm:$0xff] %v5194
        %5359 = vst [vmem:[#allocation4 + $0xc0] sm:$0xff] %v5203
        %5360 = vst [vmem:[#allocation4 + $0x108] sm:$0xff] %v5212
        %5361 = vst [vmem:[#allocation4 + $0x150] sm:$0xff] %v5221
        %5362 = vst [vmem:[#allocation4 + $0x198] sm:$0xff] %v5230
        %5363 = vst [vmem:[#allocation4 + $0x1e0] sm:$0xff] %v5239
        %5364 = vst [vmem:[#allocation4 + $0x228] sm:$0xff] %v5248
        %5365 = vst [vmem:[#allocation4 + $0x270] sm:$0xff] %v5257
        %5366 = vst [vmem:[#allocation4 + $0x2b8] sm:$0xff] %v5266
        %5367 = vst [vmem:[#allocation4 + $0x300] sm:$0xff] %v5275
        %5368 = vst [vmem:[#allocation4 + $0x348] sm:$0xff] %v5284
        %5369 = vst [vmem:[#allocation4 + $0x390] sm:$0xff] %v5293
        %5370 = vst [vmem:[#allocation4 + $0x3d8] sm:$0xff] %v5302
        %5371 = vst [vmem:[#allocation4 + $0x420] sm:$0xff] %v5311
        %5372 = vst [vmem:[#allocation4 + $0x468] sm:$0xff] %v5320
        %5373 = vst [vmem:[#allocation4 + $0x4b0] sm:$0xff] %v5329
        %5374 = vst [vmem:[#allocation4 + $0x4f8] sm:$0xff] %v5338
        %v5375 = vld [vmem:[#allocation3 + $0x10] sm:$0xe0]
        %v5376 = vld [vmem:[#allocation3 + $0x18] sm:$0xff]
        %v5377 = vld [vmem:[#allocation3 + $0x20] sm:$0xff]
        %v5378 = vld [vmem:[#allocation3 + $0x28] sm:$0xff]
        %v5379 = vld [vmem:[#allocation3 + $0x30] sm:$0xff]
        %v5380 = vld [vmem:[#allocation3 + $0x38] sm:$0xff]
        %v5381 = vld [vmem:[#allocation3 + $0x40] sm:$0xff]
        %v5382 = vld [vmem:[#allocation3 + $0x48] sm:$0xff]
        %v5383 = vld [vmem:[#allocation3 + $0x50] sm:$0xff]
        %v5384 = vld [vmem:[#allocation3 + $0x58] sm:$0xff]
        %v5385 = vld [vmem:[#allocation3 + $0x60] sm:$0xff]
        %v5386 = vld [vmem:[#allocation3 + $0x68] sm:$0xff]
        %v5387 = vld [vmem:[#allocation3 + $0x70] sm:$0xff]
        %v5388 = vld [vmem:[#allocation3 + $0x78] sm:$0xff]
        %v5389 = vld [vmem:[#allocation3 + $0x80] sm:$0xff]
        %v5390 = vld [vmem:[#allocation3 + $0x88] sm:$0xff]
        %v5391 = vld [vmem:[#allocation3 + $0x90] sm:$0xff]
        %v5392 = vld [vmem:[#allocation3 + $0x98] sm:$0xff]
        %v5393 = vld [vmem:[#allocation3 + $0xa0] sm:$0x1f]
        %vm5413 = vcmask 1042432
        %v5414 = vrot.slane %v5375, 5
        %v5415 = vrot.slane %v5376, 5
        %v5416 = vsel %vm5413, %v5414, %v5415
        %v5417 = vrot.slane %v5377, 5
        %v5418 = vsel %vm5413, %v5415, %v5417
        %v5419 = vrot.slane %v5378, 5
        %v5420 = vsel %vm5413, %v5417, %v5419
        %v5421 = vrot.slane %v5379, 5
        %v5422 = vsel %vm5413, %v5419, %v5421
        %v5423 = vrot.slane %v5380, 5
        %v5424 = vsel %vm5413, %v5421, %v5423
        %v5425 = vrot.slane %v5381, 5
        %v5426 = vsel %vm5413, %v5423, %v5425
        %v5427 = vrot.slane %v5382, 5
        %v5428 = vsel %vm5413, %v5425, %v5427
        %v5429 = vrot.slane %v5383, 5
        %v5430 = vsel %vm5413, %v5427, %v5429
        %v5431 = vrot.slane %v5384, 5
        %v5432 = vsel %vm5413, %v5429, %v5431
        %v5433 = vrot.slane %v5385, 5
        %v5434 = vsel %vm5413, %v5431, %v5433
        %v5435 = vrot.slane %v5386, 5
        %v5436 = vsel %vm5413, %v5433, %v5435
        %v5437 = vrot.slane %v5387, 5
        %v5438 = vsel %vm5413, %v5435, %v5437
        %v5439 = vrot.slane %v5388, 5
        %v5440 = vsel %vm5413, %v5437, %v5439
        %v5441 = vrot.slane %v5389, 5
        %v5442 = vsel %vm5413, %v5439, %v5441
        %v5443 = vrot.slane %v5390, 5
        %v5444 = vsel %vm5413, %v5441, %v5443
        %v5445 = vrot.slane %v5391, 5
        %v5446 = vsel %vm5413, %v5443, %v5445
        %v5447 = vrot.slane %v5392, 5
        %v5448 = vsel %vm5413, %v5445, %v5447
        %v5449 = vrot.slane %v5393, 5
        %v5450 = vsel %vm5413, %v5447, %v5449
        %5469 = vst [vmem:[#allocation4 + $0x38] sm:$0xff] %v5416
        %5470 = vst [vmem:[#allocation4 + $0x80] sm:$0xff] %v5418
        %5471 = vst [vmem:[#allocation4 + $0xc8] sm:$0xff] %v5420
        %5472 = vst [vmem:[#allocation4 + $0x110] sm:$0xff] %v5422
        %5473 = vst [vmem:[#allocation4 + $0x158] sm:$0xff] %v5424
        %5474 = vst [vmem:[#allocation4 + $0x1a0] sm:$0xff] %v5426
        %5475 = vst [vmem:[#allocation4 + $0x1e8] sm:$0xff] %v5428
        %5476 = vst [vmem:[#allocation4 + $0x230] sm:$0xff] %v5430
        %5477 = vst [vmem:[#allocation4 + $0x278] sm:$0xff] %v5432
        %5478 = vst [vmem:[#allocation4 + $0x2c0] sm:$0xff] %v5434
        %5479 = vst [vmem:[#allocation4 + $0x308] sm:$0xff] %v5436
        %5480 = vst [vmem:[#allocation4 + $0x350] sm:$0xff] %v5438
        %5481 = vst [vmem:[#allocation4 + $0x398] sm:$0xff] %v5440
        %5482 = vst [vmem:[#allocation4 + $0x3e0] sm:$0xff] %v5442
        %5483 = vst [vmem:[#allocation4 + $0x428] sm:$0xff] %v5444
        %5484 = vst [vmem:[#allocation4 + $0x470] sm:$0xff] %v5446
        %5485 = vst [vmem:[#allocation4 + $0x4b8] sm:$0xff] %v5448
        %5486 = vst [vmem:[#allocation4 + $0x500] sm:$0xff] %v5450
        %v5487 = vld [vmem:[#allocation3 + $0x10] sm:$0xe0]
        %v5488 = vld [vmem:[#allocation3 + $0x18] sm:$0xff]
        %v5489 = vld [vmem:[#allocation3 + $0x20] sm:$0xff]
        %v5490 = vld [vmem:[#allocation3 + $0x28] sm:$0xff]
        %v5491 = vld [vmem:[#allocation3 + $0x30] sm:$0xff]
        %v5492 = vld [vmem:[#allocation3 + $0x38] sm:$0xff]
        %v5493 = vld [vmem:[#allocation3 + $0x40] sm:$0xff]
        %v5494 = vld [vmem:[#allocation3 + $0x48] sm:$0xff]
        %v5495 = vld [vmem:[#allocation3 + $0x50] sm:$0xff]
        %v5496 = vld [vmem:[#allocation3 + $0x58] sm:$0xff]
        %v5497 = vld [vmem:[#allocation3 + $0x60] sm:$0xff]
        %v5498 = vld [vmem:[#allocation3 + $0x68] sm:$0xff]
        %v5499 = vld [vmem:[#allocation3 + $0x70] sm:$0xff]
        %v5500 = vld [vmem:[#allocation3 + $0x78] sm:$0xff]
        %v5501 = vld [vmem:[#allocation3 + $0x80] sm:$0xff]
        %v5502 = vld [vmem:[#allocation3 + $0x88] sm:$0xff]
        %v5503 = vld [vmem:[#allocation3 + $0x90] sm:$0xff]
        %v5504 = vld [vmem:[#allocation3 + $0x98] sm:$0xff]
        %v5505 = vld [vmem:[#allocation3 + $0xa0] sm:$0x3f]
        %vm5506 = vsmask.f32 2304
        %v5508 = vshrl.u32 %v5487, 16
        %v5510 = vrot.slane %v5508, 5
        %v5511 = vshll.u32 %v5487, 16
        %v5513 = vrot.slane %v5511, 6
        %v5514 = vor.u32 %v5510, %v5513
        %v5516 = vshrl.u32 %v5488, 16
        %v5518 = vrot.slane %v5516, 5
        %v5519 = vshll.u32 %v5488, 16
        %v5521 = vrot.slane %v5519, 6
        %v5522 = vor.u32 %v5518, %v5521
        %v5523 = vsel %vm5506, %v5514, %v5522
        %v5525 = vshrl.u32 %v5489, 16
        %v5527 = vrot.slane %v5525, 5
        %v5528 = vshll.u32 %v5489, 16
        %v5530 = vrot.slane %v5528, 6
        %v5531 = vor.u32 %v5527, %v5530
        %v5532 = vsel %vm5506, %v5522, %v5531
        %v5534 = vshrl.u32 %v5490, 16
        %v5536 = vrot.slane %v5534, 5
        %v5537 = vshll.u32 %v5490, 16
        %v5539 = vrot.slane %v5537, 6
        %v5540 = vor.u32 %v5536, %v5539
        %v5541 = vsel %vm5506, %v5531, %v5540
        %v5543 = vshrl.u32 %v5491, 16
        %v5545 = vrot.slane %v5543, 5
        %v5546 = vshll.u32 %v5491, 16
        %v5548 = vrot.slane %v5546, 6
        %v5549 = vor.u32 %v5545, %v5548
        %v5550 = vsel %vm5506, %v5540, %v5549
        %v5552 = vshrl.u32 %v5492, 16
        %v5554 = vrot.slane %v5552, 5
        %v5555 = vshll.u32 %v5492, 16
        %v5557 = vrot.slane %v5555, 6
        %v5558 = vor.u32 %v5554, %v5557
        %v5559 = vsel %vm5506, %v5549, %v5558
        %v5561 = vshrl.u32 %v5493, 16
        %v5563 = vrot.slane %v5561, 5
        %v5564 = vshll.u32 %v5493, 16
        %v5566 = vrot.slane %v5564, 6
        %v5567 = vor.u32 %v5563, %v5566
        %v5568 = vsel %vm5506, %v5558, %v5567
        %v5570 = vshrl.u32 %v5494, 16
        %v5572 = vrot.slane %v5570, 5
        %v5573 = vshll.u32 %v5494, 16
        %v5575 = vrot.slane %v5573, 6
        %v5576 = vor.u32 %v5572, %v5575
        %v5577 = vsel %vm5506, %v5567, %v5576
        %v5579 = vshrl.u32 %v5495, 16
        %v5581 = vrot.slane %v5579, 5
        %v5582 = vshll.u32 %v5495, 16
        %v5584 = vrot.slane %v5582, 6
        %v5585 = vor.u32 %v5581, %v5584
        %v5586 = vsel %vm5506, %v5576, %v5585
        %v5588 = vshrl.u32 %v5496, 16
        %v5590 = vrot.slane %v5588, 5
        %v5591 = vshll.u32 %v5496, 16
        %v5593 = vrot.slane %v5591, 6
        %v5594 = vor.u32 %v5590, %v5593
        %v5595 = vsel %vm5506, %v5585, %v5594
        %v5597 = vshrl.u32 %v5497, 16
        %v5599 = vrot.slane %v5597, 5
        %v5600 = vshll.u32 %v5497, 16
        %v5602 = vrot.slane %v5600, 6
        %v5603 = vor.u32 %v5599, %v5602
        %v5604 = vsel %vm5506, %v5594, %v5603
        %v5606 = vshrl.u32 %v5498, 16
        %v5608 = vrot.slane %v5606, 5
        %v5609 = vshll.u32 %v5498, 16
        %v5611 = vrot.slane %v5609, 6
        %v5612 = vor.u32 %v5608, %v5611
        %v5613 = vsel %vm5506, %v5603, %v5612
        %v5615 = vshrl.u32 %v5499, 16
        %v5617 = vrot.slane %v5615, 5
        %v5618 = vshll.u32 %v5499, 16
        %v5620 = vrot.slane %v5618, 6
        %v5621 = vor.u32 %v5617, %v5620
        %v5622 = vsel %vm5506, %v5612, %v5621
        %v5624 = vshrl.u32 %v5500, 16
        %v5626 = vrot.slane %v5624, 5
        %v5627 = vshll.u32 %v5500, 16
        %v5629 = vrot.slane %v5627, 6
        %v5630 = vor.u32 %v5626, %v5629
        %v5631 = vsel %vm5506, %v5621, %v5630
        %v5633 = vshrl.u32 %v5501, 16
        %v5635 = vrot.slane %v5633, 5
        %v5636 = vshll.u32 %v5501, 16
        %v5638 = vrot.slane %v5636, 6
        %v5639 = vor.u32 %v5635, %v5638
        %v5640 = vsel %vm5506, %v5630, %v5639
        %v5642 = vshrl.u32 %v5502, 16
        %v5644 = vrot.slane %v5642, 5
        %v5645 = vshll.u32 %v5502, 16
        %v5647 = vrot.slane %v5645, 6
        %v5648 = vor.u32 %v5644, %v5647
        %v5649 = vsel %vm5506, %v5639, %v5648
        %v5651 = vshrl.u32 %v5503, 16
        %v5653 = vrot.slane %v5651, 5
        %v5654 = vshll.u32 %v5503, 16
        %v5656 = vrot.slane %v5654, 6
        %v5657 = vor.u32 %v5653, %v5656
        %v5658 = vsel %vm5506, %v5648, %v5657
        %v5660 = vshrl.u32 %v5504, 16
        %v5662 = vrot.slane %v5660, 5
        %v5663 = vshll.u32 %v5504, 16
        %v5665 = vrot.slane %v5663, 6
        %v5666 = vor.u32 %v5662, %v5665
        %v5667 = vsel %vm5506, %v5657, %v5666
        %v5669 = vshrl.u32 %v5505, 16
        %v5671 = vrot.slane %v5669, 5
        %v5672 = vshll.u32 %v5505, 16
        %v5674 = vrot.slane %v5672, 6
        %v5675 = vor.u32 %v5671, %v5674
        %v5676 = vsel %vm5506, %v5666, %v5675
        %5695 = vst [vmem:[#allocation4 + $0x40] sm:$0xff] %v5523
        %5696 = vst [vmem:[#allocation4 + $0x88] sm:$0xff] %v5532
        %5697 = vst [vmem:[#allocation4 + $0xd0] sm:$0xff] %v5541
        %5698 = vst [vmem:[#allocation4 + $0x118] sm:$0xff] %v5550
        %5699 = vst [vmem:[#allocation4 + $0x160] sm:$0xff] %v5559
        %5700 = vst [vmem:[#allocation4 + $0x1a8] sm:$0xff] %v5568
        %5701 = vst [vmem:[#allocation4 + $0x1f0] sm:$0xff] %v5577
        %5702 = vst [vmem:[#allocation4 + $0x238] sm:$0xff] %v5586
        %5703 = vst [vmem:[#allocation4 + $0x280] sm:$0xff] %v5595
        %5704 = vst [vmem:[#allocation4 + $0x2c8] sm:$0xff] %v5604
        %5705 = vst [vmem:[#allocation4 + $0x310] sm:$0xff] %v5613
        %5706 = vst [vmem:[#allocation4 + $0x358] sm:$0xff] %v5622
        %5707 = vst [vmem:[#allocation4 + $0x3a0] sm:$0xff] %v5631
        %5708 = vst [vmem:[#allocation4 + $0x3e8] sm:$0xff] %v5640
        %5709 = vst [vmem:[#allocation4 + $0x430] sm:$0xff] %v5649
        %5710 = vst [vmem:[#allocation4 + $0x478] sm:$0xff] %v5658
        %5711 = vst [vmem:[#allocation4 + $0x4c0] sm:$0xff] %v5667
        %5712 = vst [vmem:[#allocation4 + $0x508] sm:$0xff] %v5676
        %v5713 = vld [vmem:[#allocation4] sm:$0xff]
        %v5714 = vld [vmem:[#allocation4 + $0x8] sm:$0xff]
        %v5715 = vld [vmem:[#allocation4 + $0x10] sm:$0xff]
        %v5716 = vld [vmem:[#allocation4 + $0x18] sm:$0xff]
        %v5717 = vld [vmem:[#allocation4 + $0x20] sm:$0xff]
        %v5718 = vld [vmem:[#allocation4 + $0x28] sm:$0xff]
        %v5719 = vld [vmem:[#allocation4 + $0x30] sm:$0xff]
        %v5720 = vld [vmem:[#allocation4 + $0x38] sm:$0xff]
        %v5721 = vld [vmem:[#allocation4 + $0x40] sm:$0xff]
        %v5722 = vld [vmem:[#allocation4 + $0x48] sm:$0xff]
        %v5723 = vld [vmem:[#allocation4 + $0x50] sm:$0xff]
        %v5724 = vld [vmem:[#allocation4 + $0x58] sm:$0xff]
        %v5725 = vld [vmem:[#allocation4 + $0x60] sm:$0xff]
        %v5726 = vld [vmem:[#allocation4 + $0x68] sm:$0xff]
        %v5727 = vld [vmem:[#allocation4 + $0x70] sm:$0xff]
        %v5728 = vld [vmem:[#allocation4 + $0x78] sm:$0xff]
        %v5729 = vld [vmem:[#allocation4 + $0x80] sm:$0xff]
        %v5730 = vld [vmem:[#allocation4 + $0x88] sm:$0xff]
        %v5731 = vld [vmem:[#allocation4 + $0x90] sm:$0xff]
        %v5732 = vld [vmem:[#allocation4 + $0x98] sm:$0xff]
        %v5733 = vld [vmem:[#allocation4 + $0xa0] sm:$0xff]
        %v5734 = vld [vmem:[#allocation4 + $0xa8] sm:$0xff]
        %v5735 = vld [vmem:[#allocation4 + $0xb0] sm:$0xff]
        %v5736 = vld [vmem:[#allocation4 + $0xb8] sm:$0xff]
        %v5737 = vld [vmem:[#allocation4 + $0xc0] sm:$0xff]
        %v5738 = vld [vmem:[#allocation4 + $0xc8] sm:$0xff]
        %v5739 = vld [vmem:[#allocation4 + $0xd0] sm:$0xff]
        %v5740 = vld [vmem:[#allocation4 + $0xd8] sm:$0xff]
        %v5741 = vld [vmem:[#allocation4 + $0xe0] sm:$0xff]
        %v5742 = vld [vmem:[#allocation4 + $0xe8] sm:$0xff]
        %v5743 = vld [vmem:[#allocation4 + $0xf0] sm:$0xff]
        %v5744 = vld [vmem:[#allocation4 + $0xf8] sm:$0xff]
        %v5745 = vld [vmem:[#allocation4 + $0x100] sm:$0xff]
        %v5746 = vld [vmem:[#allocation4 + $0x108] sm:$0xff]
        %v5747 = vld [vmem:[#allocation4 + $0x110] sm:$0xff]
        %v5748 = vld [vmem:[#allocation4 + $0x118] sm:$0xff]
        %v5749 = vld [vmem:[#allocation4 + $0x120] sm:$0xff]
        %v5750 = vld [vmem:[#allocation4 + $0x128] sm:$0xff]
        %v5751 = vld [vmem:[#allocation4 + $0x130] sm:$0xff]
        %v5752 = vld [vmem:[#allocation4 + $0x138] sm:$0xff]
        %v5753 = vld [vmem:[#allocation4 + $0x140] sm:$0xff]
        %v5754 = vld [vmem:[#allocation4 + $0x148] sm:$0xff]
        %v5755 = vld [vmem:[#allocation4 + $0x150] sm:$0xff]
        %v5756 = vld [vmem:[#allocation4 + $0x158] sm:$0xff]
        %v5757 = vld [vmem:[#allocation4 + $0x160] sm:$0xff]
        %v5758 = vld [vmem:[#allocation4 + $0x168] sm:$0xff]
        %v5759 = vld [vmem:[#allocation4 + $0x170] sm:$0xff]
        %v5760 = vld [vmem:[#allocation4 + $0x178] sm:$0xff]
        %v5761 = vld [vmem:[#allocation4 + $0x180] sm:$0xff]
        %v5762 = vld [vmem:[#allocation4 + $0x188] sm:$0xff]
        %v5763 = vld [vmem:[#allocation4 + $0x190] sm:$0xff]
        %v5764 = vld [vmem:[#allocation4 + $0x198] sm:$0xff]
        %v5765 = vld [vmem:[#allocation4 + $0x1a0] sm:$0xff]
        %v5766 = vld [vmem:[#allocation4 + $0x1a8] sm:$0xff]
        %v5767 = vld [vmem:[#allocation4 + $0x1b0] sm:$0xff]
        %v5768 = vld [vmem:[#allocation4 + $0x1b8] sm:$0xff]
        %v5769 = vld [vmem:[#allocation4 + $0x1c0] sm:$0xff]
        %v5770 = vld [vmem:[#allocation4 + $0x1c8] sm:$0xff]
        %v5771 = vld [vmem:[#allocation4 + $0x1d0] sm:$0xff]
        %v5772 = vld [vmem:[#allocation4 + $0x1d8] sm:$0xff]
        %v5773 = vld [vmem:[#allocation4 + $0x1e0] sm:$0xff]
        %v5774 = vld [vmem:[#allocation4 + $0x1e8] sm:$0xff]
        %v5775 = vld [vmem:[#allocation4 + $0x1f0] sm:$0xff]
        %v5776 = vld [vmem:[#allocation4 + $0x1f8] sm:$0xff]
        %v5777 = vld [vmem:[#allocation4 + $0x200] sm:$0xff]
        %v5778 = vld [vmem:[#allocation4 + $0x208] sm:$0xff]
        %v5779 = vld [vmem:[#allocation4 + $0x210] sm:$0xff]
        %v5780 = vld [vmem:[#allocation4 + $0x218] sm:$0xff]
        %v5781 = vld [vmem:[#allocation4 + $0x220] sm:$0xff]
        %v5782 = vld [vmem:[#allocation4 + $0x228] sm:$0xff]
        %v5783 = vld [vmem:[#allocation4 + $0x230] sm:$0xff]
        %v5784 = vld [vmem:[#allocation4 + $0x238] sm:$0xff]
        %v5785 = vld [vmem:[#allocation4 + $0x240] sm:$0xff]
        %v5786 = vld [vmem:[#allocation4 + $0x248] sm:$0xff]
        %v5787 = vld [vmem:[#allocation4 + $0x250] sm:$0xff]
        %v5788 = vld [vmem:[#allocation4 + $0x258] sm:$0xff]
        %v5789 = vld [vmem:[#allocation4 + $0x260] sm:$0xff]
        %v5790 = vld [vmem:[#allocation4 + $0x268] sm:$0xff]
        %v5791 = vld [vmem:[#allocation4 + $0x270] sm:$0xff]
        %v5792 = vld [vmem:[#allocation4 + $0x278] sm:$0xff]
        %v5793 = vld [vmem:[#allocation4 + $0x280] sm:$0xff]
        %v5794 = vld [vmem:[#allocation4 + $0x288] sm:$0xff]
        %v5795 = vld [vmem:[#allocation4 + $0x290] sm:$0xff]
        %v5796 = vld [vmem:[#allocation4 + $0x298] sm:$0xff]
        %v5797 = vld [vmem:[#allocation4 + $0x2a0] sm:$0xff]
        %v5798 = vld [vmem:[#allocation4 + $0x2a8] sm:$0xff]
        %v5799 = vld [vmem:[#allocation4 + $0x2b0] sm:$0xff]
        %v5800 = vld [vmem:[#allocation4 + $0x2b8] sm:$0xff]
        %v5801 = vld [vmem:[#allocation4 + $0x2c0] sm:$0xff]
        %v5802 = vld [vmem:[#allocation4 + $0x2c8] sm:$0xff]
        %v5803 = vld [vmem:[#allocation4 + $0x2d0] sm:$0xff]
        %v5804 = vld [vmem:[#allocation4 + $0x2d8] sm:$0xff]
        %v5805 = vld [vmem:[#allocation4 + $0x2e0] sm:$0xff]
        %v5806 = vld [vmem:[#allocation4 + $0x2e8] sm:$0xff]
        %v5807 = vld [vmem:[#allocation4 + $0x2f0] sm:$0xff]
        %v5808 = vld [vmem:[#allocation4 + $0x2f8] sm:$0xff]
        %v5809 = vld [vmem:[#allocation4 + $0x300] sm:$0xff]
        %v5810 = vld [vmem:[#allocation4 + $0x308] sm:$0xff]
        %v5811 = vld [vmem:[#allocation4 + $0x310] sm:$0xff]
        %v5812 = vld [vmem:[#allocation4 + $0x318] sm:$0xff]
        %v5813 = vld [vmem:[#allocation4 + $0x320] sm:$0xff]
        %v5814 = vld [vmem:[#allocation4 + $0x328] sm:$0xff]
        %v5815 = vld [vmem:[#allocation4 + $0x330] sm:$0xff]
        %v5816 = vld [vmem:[#allocation4 + $0x338] sm:$0xff]
        %v5817 = vld [vmem:[#allocation4 + $0x340] sm:$0xff]
        %v5818 = vld [vmem:[#allocation4 + $0x348] sm:$0xff]
        %v5819 = vld [vmem:[#allocation4 + $0x350] sm:$0xff]
        %v5820 = vld [vmem:[#allocation4 + $0x358] sm:$0xff]
        %v5821 = vld [vmem:[#allocation4 + $0x360] sm:$0xff]
        %v5822 = vld [vmem:[#allocation4 + $0x368] sm:$0xff]
        %v5823 = vld [vmem:[#allocation4 + $0x370] sm:$0xff]
        %v5824 = vld [vmem:[#allocation4 + $0x378] sm:$0xff]
        %v5825 = vld [vmem:[#allocation4 + $0x380] sm:$0xff]
        %v5826 = vld [vmem:[#allocation4 + $0x388] sm:$0xff]
        %v5827 = vld [vmem:[#allocation4 + $0x390] sm:$0xff]
        %v5828 = vld [vmem:[#allocation4 + $0x398] sm:$0xff]
        %v5829 = vld [vmem:[#allocation4 + $0x3a0] sm:$0xff]
        %v5830 = vld [vmem:[#allocation4 + $0x3a8] sm:$0xff]
        %v5831 = vld [vmem:[#allocation4 + $0x3b0] sm:$0xff]
        %v5832 = vld [vmem:[#allocation4 + $0x3b8] sm:$0xff]
        %v5833 = vld [vmem:[#allocation4 + $0x3c0] sm:$0xff]
        %v5834 = vld [vmem:[#allocation4 + $0x3c8] sm:$0xff]
        %v5835 = vld [vmem:[#allocation4 + $0x3d0] sm:$0xff]
        %v5836 = vld [vmem:[#allocation4 + $0x3d8] sm:$0xff]
        %v5837 = vld [vmem:[#allocation4 + $0x3e0] sm:$0xff]
        %v5838 = vld [vmem:[#allocation4 + $0x3e8] sm:$0xff]
        %v5839 = vld [vmem:[#allocation4 + $0x3f0] sm:$0xff]
        %v5840 = vld [vmem:[#allocation4 + $0x3f8] sm:$0xff]
        %v5841 = vld [vmem:[#allocation4 + $0x400] sm:$0xff]
        %v5842 = vld [vmem:[#allocation4 + $0x408] sm:$0xff]
        %v5843 = vld [vmem:[#allocation4 + $0x410] sm:$0xff]
        %v5844 = vld [vmem:[#allocation4 + $0x418] sm:$0xff]
        %v5845 = vld [vmem:[#allocation4 + $0x420] sm:$0xff]
        %v5846 = vld [vmem:[#allocation4 + $0x428] sm:$0xff]
        %v5847 = vld [vmem:[#allocation4 + $0x430] sm:$0xff]
        %v5848 = vld [vmem:[#allocation4 + $0x438] sm:$0xff]
        %v5849 = vld [vmem:[#allocation4 + $0x440] sm:$0xff]
        %v5850 = vld [vmem:[#allocation4 + $0x448] sm:$0xff]
        %v5851 = vld [vmem:[#allocation4 + $0x450] sm:$0xff]
        %v5852 = vld [vmem:[#allocation4 + $0x458] sm:$0xff]
        %v5853 = vld [vmem:[#allocation4 + $0x460] sm:$0xff]
        %v5854 = vld [vmem:[#allocation4 + $0x468] sm:$0xff]
        %v5855 = vld [vmem:[#allocation4 + $0x470] sm:$0xff]
        %v5856 = vld [vmem:[#allocation4 + $0x478] sm:$0xff]
        %v5857 = vld [vmem:[#allocation4 + $0x480] sm:$0xff]
        %v5858 = vld [vmem:[#allocation4 + $0x488] sm:$0xff]
        %v5859 = vld [vmem:[#allocation4 + $0x490] sm:$0xff]
        %v5860 = vld [vmem:[#allocation4 + $0x498] sm:$0xff]
        %v5861 = vld [vmem:[#allocation4 + $0x4a0] sm:$0xff]
        %v5862 = vld [vmem:[#allocation4 + $0x4a8] sm:$0xff]
        %v5863 = vld [vmem:[#allocation4 + $0x4b0] sm:$0xff]
        %v5864 = vld [vmem:[#allocation4 + $0x4b8] sm:$0xff]
        %v5865 = vld [vmem:[#allocation4 + $0x4c0] sm:$0xff]
        %v5866 = vld [vmem:[#allocation4 + $0x4c8] sm:$0xff]
        %v5867 = vld [vmem:[#allocation4 + $0x4d0] sm:$0xff]
        %v5868 = vld [vmem:[#allocation4 + $0x4d8] sm:$0xff]
        %v5869 = vld [vmem:[#allocation4 + $0x4e0] sm:$0xff]
        %v5870 = vld [vmem:[#allocation4 + $0x4e8] sm:$0xff]
        %v5871 = vld [vmem:[#allocation4 + $0x4f0] sm:$0xff]
        %v5872 = vld [vmem:[#allocation4 + $0x4f8] sm:$0xff]
        %v5873 = vld [vmem:[#allocation4 + $0x500] sm:$0xff]
        %v5874 = vld [vmem:[#allocation4 + $0x508] sm:$0xff]
        %v5875 = vld [vmem:[#allocation5] sm:$0xf]
        %v5876 = vld [vmem:[#allocation5 + $0x4] sm:$0xf]
        %v5877 = vld [vmem:[#allocation5 + $0x8] sm:$0xf]
        %v5878 = vld [vmem:[#allocation5 + $0xc] sm:$0xf]
        %v5879 = vld [vmem:[#allocation5 + $0x10] sm:$0xf]
        %v5880 = vld [vmem:[#allocation5 + $0x14] sm:$0xf]
        %v5881 = vld [vmem:[#allocation5 + $0x18] sm:$0xf]
        %v5882 = vld [vmem:[#allocation5 + $0x1c] sm:$0xf]
        %v5883 = vld [vmem:[#allocation5 + $0x20] sm:$0xf]
        %v5884 = vld [vmem:[#allocation5 + $0x24] sm:$0xf]
        %v5885 = vld [vmem:[#allocation5 + $0x28] sm:$0xf]
        %v5886 = vld [vmem:[#allocation5 + $0x2c] sm:$0xf]
        %v5887 = vld [vmem:[#allocation5 + $0x30] sm:$0xf]
        %v5888 = vld [vmem:[#allocation5 + $0x34] sm:$0xf]
        %v5889 = vld [vmem:[#allocation5 + $0x38] sm:$0xf]
        %v5890 = vld [vmem:[#allocation5 + $0x3c] sm:$0xf]
        %v5891 = vld [vmem:[#allocation5 + $0x40] sm:$0xf]
        %v5892 = vld [vmem:[#allocation5 + $0x44] sm:$0xf]
        %v5893 = vld [vmem:[#allocation5 + $0x48] sm:$0xf]
        %v5894 = vld [vmem:[#allocation5 + $0x4c] sm:$0xf]
        %v5895 = vld [vmem:[#allocation5 + $0x50] sm:$0xf]
        %v5896 = vld [vmem:[#allocation5 + $0x54] sm:$0xf]
        %v5897 = vld [vmem:[#allocation5 + $0x58] sm:$0xf]
        %v5898 = vld [vmem:[#allocation5 + $0x5c] sm:$0xf]
        %v5899 = vld [vmem:[#allocation5 + $0x60] sm:$0xf]
        %v5900 = vld [vmem:[#allocation5 + $0x64] sm:$0xf]
        %v5901 = vld [vmem:[#allocation5 + $0x68] sm:$0xf]
        %v5902 = vld [vmem:[#allocation5 + $0x6c] sm:$0xf]
        %v5903 = vld [vmem:[#allocation5 + $0x70] sm:$0xf]
        %v5904 = vld [vmem:[#allocation5 + $0x74] sm:$0xf]
        %v5905 = vld [vmem:[#allocation5 + $0x78] sm:$0xf]
        %v5906 = vld [vmem:[#allocation5 + $0x7c] sm:$0xf]
        %v5907 = vld [vmem:[#allocation5 + $0x80] sm:$0xf]
        %v5908 = vld [vmem:[#allocation5 + $0x84] sm:$0xf]
        %v5909 = vld [vmem:[#allocation5 + $0x88] sm:$0xf]
        %v5910 = vld [vmem:[#allocation5 + $0x8c] sm:$0xf]
        %v5911 = vld [vmem:[#allocation5 + $0x90] sm:$0xf]
        %v5912 = vld [vmem:[#allocation5 + $0x94] sm:$0xf]
        %v5913 = vld [vmem:[#allocation5 + $0x98] sm:$0xf]
        %v5914 = vld [vmem:[#allocation5 + $0x9c] sm:$0xf]
        %v5915 = vld [vmem:[#allocation5 + $0xa0] sm:$0xf]
        %v5916 = vld [vmem:[#allocation5 + $0xa4] sm:$0xf]
        %v5917 = vld [vmem:[#allocation5 + $0xa8] sm:$0xf]
        %v5918 = vld [vmem:[#allocation5 + $0xac] sm:$0xf]
        %v5919 = vld [vmem:[#allocation5 + $0xb0] sm:$0xf]
        %v5920 = vld [vmem:[#allocation5 + $0xb4] sm:$0xf]
        %v5921 = vld [vmem:[#allocation5 + $0xb8] sm:$0xf]
        %v5922 = vld [vmem:[#allocation5 + $0xbc] sm:$0xf]
        %v5923 = vld [vmem:[#allocation5 + $0xc0] sm:$0xf]
        %v5924 = vld [vmem:[#allocation5 + $0xc4] sm:$0xf]
        %v5925 = vld [vmem:[#allocation5 + $0xc8] sm:$0xf]
        %v5926 = vld [vmem:[#allocation5 + $0xcc] sm:$0xf]
        %v5927 = vld [vmem:[#allocation5 + $0xd0] sm:$0xf]
        %v5928 = vld [vmem:[#allocation5 + $0xd4] sm:$0xf]
        %v5929 = vld [vmem:[#allocation5 + $0xd8] sm:$0xf]
        %v5930 = vld [vmem:[#allocation5 + $0xdc] sm:$0xf]
        %v5931 = vld [vmem:[#allocation5 + $0xe0] sm:$0xf]
        %v5932 = vld [vmem:[#allocation5 + $0xe4] sm:$0xf]
        %v5933 = vld [vmem:[#allocation5 + $0xe8] sm:$0xf]
        %v5934 = vld [vmem:[#allocation5 + $0xec] sm:$0xf]
        %v5935 = vld [vmem:[#allocation5 + $0xf0] sm:$0xf]
        %v5936 = vld [vmem:[#allocation5 + $0xf4] sm:$0xf]
        %v5937 = vld [vmem:[#allocation5 + $0xf8] sm:$0xf]
        %v5938 = vld [vmem:[#allocation5 + $0xfc] sm:$0xf]
        %v5939 = vld [vmem:[#allocation5 + $0x100] sm:$0xf]
        %v5940 = vld [vmem:[#allocation5 + $0x104] sm:$0xf]
        %v5941 = vld [vmem:[#allocation5 + $0x108] sm:$0xf]
        %v5942 = vld [vmem:[#allocation5 + $0x10c] sm:$0xf]
        %v5943 = vld [vmem:[#allocation5 + $0x110] sm:$0xf]
        %v5944 = vld [vmem:[#allocation5 + $0x114] sm:$0xf]
        %v5945 = vld [vmem:[#allocation5 + $0x118] sm:$0xf]
        %v5946 = vld [vmem:[#allocation5 + $0x11c] sm:$0xf]
        %v5947 = vld [vmem:[#allocation5 + $0x120] sm:$0xf]
        %v5948 = vld [vmem:[#allocation5 + $0x124] sm:$0xf]
        %v5949 = vld [vmem:[#allocation5 + $0x128] sm:$0xf]
        %v5950 = vld [vmem:[#allocation5 + $0x12c] sm:$0xf]
        %v5951 = vld [vmem:[#allocation5 + $0x130] sm:$0xf]
        %v5952 = vld [vmem:[#allocation5 + $0x134] sm:$0xf]
        %v5953 = vld [vmem:[#allocation5 + $0x138] sm:$0xf]
        %v5954 = vld [vmem:[#allocation5 + $0x13c] sm:$0xf]
        %v5955 = vld [vmem:[#allocation5 + $0x140] sm:$0xf]
        %v5956 = vld [vmem:[#allocation5 + $0x144] sm:$0xf]
        %v5957 = vld [vmem:[#allocation5 + $0x148] sm:$0xf]
        %v5958 = vld [vmem:[#allocation5 + $0x14c] sm:$0xf]
        %v5959 = vld [vmem:[#allocation5 + $0x150] sm:$0xf]
        %v5960 = vld [vmem:[#allocation5 + $0x154] sm:$0xf]
        %v5961 = vld [vmem:[#allocation5 + $0x158] sm:$0xf]
        %v5962 = vld [vmem:[#allocation5 + $0x15c] sm:$0xf]
        %v5963 = vld [vmem:[#allocation5 + $0x160] sm:$0xf]
        %v5964 = vld [vmem:[#allocation5 + $0x164] sm:$0xf]
        %v5965 = vld [vmem:[#allocation5 + $0x168] sm:$0xf]
        %v5966 = vld [vmem:[#allocation5 + $0x16c] sm:$0xf]
        %v5967 = vld [vmem:[#allocation5 + $0x170] sm:$0xf]
        %v5968 = vld [vmem:[#allocation5 + $0x174] sm:$0xf]
        %v5969 = vld [vmem:[#allocation5 + $0x178] sm:$0xf]
        %v5970 = vld [vmem:[#allocation5 + $0x17c] sm:$0xf]
        %v5971 = vld [vmem:[#allocation5 + $0x180] sm:$0xf]
        %v5972 = vld [vmem:[#allocation5 + $0x184] sm:$0xf]
        %v5973 = vld [vmem:[#allocation5 + $0x188] sm:$0xf]
        %v5974 = vld [vmem:[#allocation5 + $0x18c] sm:$0xf]
        %v5975 = vld [vmem:[#allocation5 + $0x190] sm:$0xf]
        %v5976 = vld [vmem:[#allocation5 + $0x194] sm:$0xf]
        %v5977 = vld [vmem:[#allocation5 + $0x198] sm:$0xf]
        %v5978 = vld [vmem:[#allocation5 + $0x19c] sm:$0xf]
        %v5979 = vld [vmem:[#allocation5 + $0x1a0] sm:$0xf]
        %v5980 = vld [vmem:[#allocation5 + $0x1a4] sm:$0xf]
        %v5981 = vld [vmem:[#allocation5 + $0x1a8] sm:$0xf]
        %v5982 = vld [vmem:[#allocation5 + $0x1ac] sm:$0xf]
        %v5983 = vld [vmem:[#allocation5 + $0x1b0] sm:$0xf]
        %v5984 = vld [vmem:[#allocation5 + $0x1b4] sm:$0xf]
        %v5985 = vld [vmem:[#allocation5 + $0x1b8] sm:$0xf]
        %v5986 = vld [vmem:[#allocation5 + $0x1bc] sm:$0xf]
        %v5987 = vld [vmem:[#allocation5 + $0x1c0] sm:$0xf]
        %v5988 = vld [vmem:[#allocation5 + $0x1c4] sm:$0xf]
        %v5989 = vld [vmem:[#allocation5 + $0x1c8] sm:$0xf]
        %v5990 = vld [vmem:[#allocation5 + $0x1cc] sm:$0xf]
        %v5991 = vld [vmem:[#allocation5 + $0x1d0] sm:$0xf]
        %v5992 = vld [vmem:[#allocation5 + $0x1d4] sm:$0xf]
        %v5993 = vld [vmem:[#allocation5 + $0x1d8] sm:$0xf]
        %v5994 = vld [vmem:[#allocation5 + $0x1dc] sm:$0xf]
        %v5995 = vld [vmem:[#allocation5 + $0x1e0] sm:$0xf]
        %v5996 = vld [vmem:[#allocation5 + $0x1e4] sm:$0xf]
        %v5997 = vld [vmem:[#allocation5 + $0x1e8] sm:$0xf]
        %v5998 = vld [vmem:[#allocation5 + $0x1ec] sm:$0xf]
        %v5999 = vld [vmem:[#allocation5 + $0x1f0] sm:$0xf]
        %v6000 = vld [vmem:[#allocation5 + $0x1f4] sm:$0xf]
        %v6001 = vld [vmem:[#allocation5 + $0x1f8] sm:$0xf]
        %v6002 = vld [vmem:[#allocation5 + $0x1fc] sm:$0xf]
        %v6003 = vld [vmem:[#allocation5 + $0x200] sm:$0xf]
        %v6004 = vld [vmem:[#allocation5 + $0x204] sm:$0xf]
        %v6005 = vld [vmem:[#allocation5 + $0x208] sm:$0xf]
        %v6006 = vld [vmem:[#allocation5 + $0x20c] sm:$0xf]
        %v6007 = vld [vmem:[#allocation5 + $0x210] sm:$0xf]
        %v6008 = vld [vmem:[#allocation5 + $0x214] sm:$0xf]
        %v6009 = vld [vmem:[#allocation5 + $0x218] sm:$0xf]
        %v6010 = vld [vmem:[#allocation5 + $0x21c] sm:$0xf]
        %v6011 = vld [vmem:[#allocation5 + $0x220] sm:$0xf]
        %v6012 = vld [vmem:[#allocation5 + $0x224] sm:$0xf]
        %v6013 = vld [vmem:[#allocation5 + $0x228] sm:$0xf]
        %v6014 = vld [vmem:[#allocation5 + $0x22c] sm:$0xf]
        %v6015 = vld [vmem:[#allocation5 + $0x230] sm:$0xf]
        %v6016 = vld [vmem:[#allocation5 + $0x234] sm:$0xf]
        %v6017 = vld [vmem:[#allocation5 + $0x238] sm:$0xf]
        %v6018 = vld [vmem:[#allocation5 + $0x23c] sm:$0xf]
        %v6163 = vunpack.c.l.b16 %v5875
        %v6164 = vunpack.c.l.b16 %v5876
        %v6165 = vunpack.c.l.b16 %v5877
        %v6166 = vunpack.c.l.b16 %v5878
        %v6167 = vunpack.c.l.b16 %v5879
        %v6168 = vunpack.c.l.b16 %v5880
        %v6169 = vunpack.c.l.b16 %v5881
        %v6170 = vunpack.c.l.b16 %v5882
        %v6171 = vunpack.c.l.b16 %v5883
        %v6172 = vunpack.c.l.b16 %v5884
        %v6173 = vunpack.c.l.b16 %v5885
        %v6174 = vunpack.c.l.b16 %v5886
        %v6175 = vunpack.c.l.b16 %v5887
        %v6176 = vunpack.c.l.b16 %v5888
        %v6177 = vunpack.c.l.b16 %v5889
        %v6178 = vunpack.c.l.b16 %v5890
        %v6179 = vunpack.c.l.b16 %v5891
        %v6180 = vunpack.c.l.b16 %v5892
        %v6181 = vunpack.c.l.b16 %v5893
        %v6182 = vunpack.c.l.b16 %v5894
        %v6183 = vunpack.c.l.b16 %v5895
        %v6184 = vunpack.c.l.b16 %v5896
        %v6185 = vunpack.c.l.b16 %v5897
        %v6186 = vunpack.c.l.b16 %v5898
        %v6187 = vunpack.c.l.b16 %v5899
        %v6188 = vunpack.c.l.b16 %v5900
        %v6189 = vunpack.c.l.b16 %v5901
        %v6190 = vunpack.c.l.b16 %v5902
        %v6191 = vunpack.c.l.b16 %v5903
        %v6192 = vunpack.c.l.b16 %v5904
        %v6193 = vunpack.c.l.b16 %v5905
        %v6194 = vunpack.c.l.b16 %v5906
        %v6195 = vunpack.c.l.b16 %v5907
        %v6196 = vunpack.c.l.b16 %v5908
        %v6197 = vunpack.c.l.b16 %v5909
        %v6198 = vunpack.c.l.b16 %v5910
        %v6199 = vunpack.c.l.b16 %v5911
        %v6200 = vunpack.c.l.b16 %v5912
        %v6201 = vunpack.c.l.b16 %v5913
        %v6202 = vunpack.c.l.b16 %v5914
        %v6203 = vunpack.c.l.b16 %v5915
        %v6204 = vunpack.c.l.b16 %v5916
        %v6205 = vunpack.c.l.b16 %v5917
        %v6206 = vunpack.c.l.b16 %v5918
        %v6207 = vunpack.c.l.b16 %v5919
        %v6208 = vunpack.c.l.b16 %v5920
        %v6209 = vunpack.c.l.b16 %v5921
        %v6210 = vunpack.c.l.b16 %v5922
        %v6211 = vunpack.c.l.b16 %v5923
        %v6212 = vunpack.c.l.b16 %v5924
        %v6213 = vunpack.c.l.b16 %v5925
        %v6214 = vunpack.c.l.b16 %v5926
        %v6215 = vunpack.c.l.b16 %v5927
        %v6216 = vunpack.c.l.b16 %v5928
        %v6217 = vunpack.c.l.b16 %v5929
        %v6218 = vunpack.c.l.b16 %v5930
        %v6219 = vunpack.c.l.b16 %v5931
        %v6220 = vunpack.c.l.b16 %v5932
        %v6221 = vunpack.c.l.b16 %v5933
        %v6222 = vunpack.c.l.b16 %v5934
        %v6223 = vunpack.c.l.b16 %v5935
        %v6224 = vunpack.c.l.b16 %v5936
        %v6225 = vunpack.c.l.b16 %v5937
        %v6226 = vunpack.c.l.b16 %v5938
        %v6227 = vunpack.c.l.b16 %v5939
        %v6228 = vunpack.c.l.b16 %v5940
        %v6229 = vunpack.c.l.b16 %v5941
        %v6230 = vunpack.c.l.b16 %v5942
        %v6231 = vunpack.c.l.b16 %v5943
        %v6232 = vunpack.c.l.b16 %v5944
        %v6233 = vunpack.c.l.b16 %v5945
        %v6234 = vunpack.c.l.b16 %v5946
        %v6235 = vunpack.c.l.b16 %v5947
        %v6236 = vunpack.c.l.b16 %v5948
        %v6237 = vunpack.c.l.b16 %v5949
        %v6238 = vunpack.c.l.b16 %v5950
        %v6239 = vunpack.c.l.b16 %v5951
        %v6240 = vunpack.c.l.b16 %v5952
        %v6241 = vunpack.c.l.b16 %v5953
        %v6242 = vunpack.c.l.b16 %v5954
        %v6243 = vunpack.c.l.b16 %v5955
        %v6244 = vunpack.c.l.b16 %v5956
        %v6245 = vunpack.c.l.b16 %v5957
        %v6246 = vunpack.c.l.b16 %v5958
        %v6247 = vunpack.c.l.b16 %v5959
        %v6248 = vunpack.c.l.b16 %v5960
        %v6249 = vunpack.c.l.b16 %v5961
        %v6250 = vunpack.c.l.b16 %v5962
        %v6251 = vunpack.c.l.b16 %v5963
        %v6252 = vunpack.c.l.b16 %v5964
        %v6253 = vunpack.c.l.b16 %v5965
        %v6254 = vunpack.c.l.b16 %v5966
        %v6255 = vunpack.c.l.b16 %v5967
        %v6256 = vunpack.c.l.b16 %v5968
        %v6257 = vunpack.c.l.b16 %v5969
        %v6258 = vunpack.c.l.b16 %v5970
        %v6259 = vunpack.c.l.b16 %v5971
        %v6260 = vunpack.c.l.b16 %v5972
        %v6261 = vunpack.c.l.b16 %v5973
        %v6262 = vunpack.c.l.b16 %v5974
        %v6263 = vunpack.c.l.b16 %v5975
        %v6264 = vunpack.c.l.b16 %v5976
        %v6265 = vunpack.c.l.b16 %v5977
        %v6266 = vunpack.c.l.b16 %v5978
        %v6267 = vunpack.c.l.b16 %v5979
        %v6268 = vunpack.c.l.b16 %v5980
        %v6269 = vunpack.c.l.b16 %v5981
        %v6270 = vunpack.c.l.b16 %v5982
        %v6271 = vunpack.c.l.b16 %v5983
        %v6272 = vunpack.c.l.b16 %v5984
        %v6273 = vunpack.c.l.b16 %v5985
        %v6274 = vunpack.c.l.b16 %v5986
        %v6275 = vunpack.c.l.b16 %v5987
        %v6276 = vunpack.c.l.b16 %v5988
        %v6277 = vunpack.c.l.b16 %v5989
        %v6278 = vunpack.c.l.b16 %v5990
        %v6279 = vunpack.c.l.b16 %v5991
        %v6280 = vunpack.c.l.b16 %v5992
        %v6281 = vunpack.c.l.b16 %v5993
        %v6282 = vunpack.c.l.b16 %v5994
        %v6283 = vunpack.c.l.b16 %v5995
        %v6284 = vunpack.c.l.b16 %v5996
        %v6285 = vunpack.c.l.b16 %v5997
        %v6286 = vunpack.c.l.b16 %v5998
        %v6287 = vunpack.c.l.b16 %v5999
        %v6288 = vunpack.c.l.b16 %v6000
        %v6289 = vunpack.c.l.b16 %v6001
        %v6290 = vunpack.c.l.b16 %v6002
        %v6291 = vunpack.c.l.b16 %v6003
        %v6292 = vunpack.c.l.b16 %v6004
        %v6293 = vunpack.c.l.b16 %v6005
        %v6294 = vunpack.c.l.b16 %v6006
        %v6295 = vunpack.c.l.b16 %v6007
        %v6296 = vunpack.c.l.b16 %v6008
        %v6297 = vunpack.c.l.b16 %v6009
        %v6298 = vunpack.c.l.b16 %v6010
        %v6299 = vunpack.c.l.b16 %v6011
        %v6300 = vunpack.c.l.b16 %v6012
        %v6301 = vunpack.c.l.b16 %v6013
        %v6302 = vunpack.c.l.b16 %v6014
        %v6303 = vunpack.c.l.b16 %v6015
        %v6304 = vunpack.c.l.b16 %v6016
        %v6305 = vunpack.c.l.b16 %v6017
        %v6306 = vunpack.c.l.b16 %v6018
        %v6307 = vpack.c.b16 %v6164, %v6163
        %v6308 = vpack.c.b16 %v6166, %v6165
        %v6309 = vpack.c.b16 %v6168, %v6167
        %v6310 = vpack.c.b16 %v6170, %v6169
        %v6311 = vpack.c.b16 %v6172, %v6171
        %v6312 = vpack.c.b16 %v6174, %v6173
        %v6313 = vpack.c.b16 %v6176, %v6175
        %v6314 = vpack.c.b16 %v6178, %v6177
        %v6315 = vpack.c.b16 %v6180, %v6179
        %v6316 = vpack.c.b16 %v6182, %v6181
        %v6317 = vpack.c.b16 %v6184, %v6183
        %v6318 = vpack.c.b16 %v6186, %v6185
        %v6319 = vpack.c.b16 %v6188, %v6187
        %v6320 = vpack.c.b16 %v6190, %v6189
        %v6321 = vpack.c.b16 %v6192, %v6191
        %v6322 = vpack.c.b16 %v6194, %v6193
        %v6323 = vpack.c.b16 %v6196, %v6195
        %v6324 = vpack.c.b16 %v6198, %v6197
        %v6325 = vpack.c.b16 %v6200, %v6199
        %v6326 = vpack.c.b16 %v6202, %v6201
        %v6327 = vpack.c.b16 %v6204, %v6203
        %v6328 = vpack.c.b16 %v6206, %v6205
        %v6329 = vpack.c.b16 %v6208, %v6207
        %v6330 = vpack.c.b16 %v6210, %v6209
        %v6331 = vpack.c.b16 %v6212, %v6211
        %v6332 = vpack.c.b16 %v6214, %v6213
        %v6333 = vpack.c.b16 %v6216, %v6215
        %v6334 = vpack.c.b16 %v6218, %v6217
        %v6335 = vpack.c.b16 %v6220, %v6219
        %v6336 = vpack.c.b16 %v6222, %v6221
        %v6337 = vpack.c.b16 %v6224, %v6223
        %v6338 = vpack.c.b16 %v6226, %v6225
        %v6339 = vpack.c.b16 %v6228, %v6227
        %v6340 = vpack.c.b16 %v6230, %v6229
        %v6341 = vpack.c.b16 %v6232, %v6231
        %v6342 = vpack.c.b16 %v6234, %v6233
        %v6343 = vpack.c.b16 %v6236, %v6235
        %v6344 = vpack.c.b16 %v6238, %v6237
        %v6345 = vpack.c.b16 %v6240, %v6239
        %v6346 = vpack.c.b16 %v6242, %v6241
        %v6347 = vpack.c.b16 %v6244, %v6243
        %v6348 = vpack.c.b16 %v6246, %v6245
        %v6349 = vpack.c.b16 %v6248, %v6247
        %v6350 = vpack.c.b16 %v6250, %v6249
        %v6351 = vpack.c.b16 %v6252, %v6251
        %v6352 = vpack.c.b16 %v6254, %v6253
        %v6353 = vpack.c.b16 %v6256, %v6255
        %v6354 = vpack.c.b16 %v6258, %v6257
        %v6355 = vpack.c.b16 %v6260, %v6259
        %v6356 = vpack.c.b16 %v6262, %v6261
        %v6357 = vpack.c.b16 %v6264, %v6263
        %v6358 = vpack.c.b16 %v6266, %v6265
        %v6359 = vpack.c.b16 %v6268, %v6267
        %v6360 = vpack.c.b16 %v6270, %v6269
        %v6361 = vpack.c.b16 %v6272, %v6271
        %v6362 = vpack.c.b16 %v6274, %v6273
        %v6363 = vpack.c.b16 %v6276, %v6275
        %v6364 = vpack.c.b16 %v6278, %v6277
        %v6365 = vpack.c.b16 %v6280, %v6279
        %v6366 = vpack.c.b16 %v6282, %v6281
        %v6367 = vpack.c.b16 %v6284, %v6283
        %v6368 = vpack.c.b16 %v6286, %v6285
        %v6369 = vpack.c.b16 %v6288, %v6287
        %v6370 = vpack.c.b16 %v6290, %v6289
        %v6371 = vpack.c.b16 %v6292, %v6291
        %v6372 = vpack.c.b16 %v6294, %v6293
        %v6373 = vpack.c.b16 %v6296, %v6295
        %v6374 = vpack.c.b16 %v6298, %v6297
        %v6375 = vpack.c.b16 %v6300, %v6299
        %v6376 = vpack.c.b16 %v6302, %v6301
        %v6377 = vpack.c.b16 %v6304, %v6303
        %v6378 = vpack.c.b16 %v6306, %v6305
        %6451 = vmatprep.subr.bf16.mxu0 0
        %6452 = vmatpush1.bf16.msra.mxu0 %v6307
        %6453 = vmatprep.subr.bf16.mxu0 0
        %6454 = vmatpush1.bf16.msra.mxu0 %v6308
        %6455 = vmatprep.subr.bf16.mxu0 0
        %6456 = vmatpush1.bf16.msra.mxu0 %v6309
        %6457 = vmatprep.subr.bf16.mxu0 0
        %6458 = vmatpush1.bf16.msra.mxu0 %v6310
        %6459 = vmatprep.subr.bf16.mxu0 0
        %6460 = vmatpush1.bf16.msra.mxu0 %v6311
        %6461 = vmatprep.subr.bf16.mxu0 0
        %6462 = vmatpush1.bf16.msra.mxu0 %v6312
        %6463 = vmatprep.subr.bf16.mxu0 0
        %6464 = vmatpush1.bf16.msra.mxu0 %v6313
        %6465 = vmatprep.subr.bf16.mxu0 0
        %6466 = vmatpush1.bf16.msra.mxu0 %v6314
        %6467 = vmatprep.subr.bf16.mxu0 0
        %6468 = vmatpush1.bf16.msra.mxu0 %v6315
        %6469 = vmatprep.subr.bf16.mxu0 0
        %6470 = vmatpush1.bf16.msra.mxu0 %v6316
        %6471 = vmatprep.subr.bf16.mxu0 0
        %6472 = vmatpush1.bf16.msra.mxu0 %v6317
        %6473 = vmatprep.subr.bf16.mxu0 0
        %6474 = vmatpush1.bf16.msra.mxu0 %v6318
        %6475 = vmatprep.subr.bf16.mxu0 0
        %6476 = vmatpush1.bf16.msra.mxu0 %v6319
        %6477 = vmatprep.subr.bf16.mxu0 0
        %6478 = vmatpush1.bf16.msra.mxu0 %v6320
        %6479 = vmatprep.subr.bf16.mxu0 0
        %6480 = vmatpush1.bf16.msra.mxu0 %v6321
        %6481 = vmatprep.subr.bf16.mxu0 0
        %6482 = vmatpush1.bf16.msra.mxu0 %v6322
        %6483 = vmatprep.mubr.bf16.mxu0 %v5714
        %6484 = vmatmul.mubr.bf16.gmra.mrb[0].mxu0 %v5713
        %v6485 = vpop.f32.mrb[0].mxu0
        %v6486 = vadd.f32 0.0, %v6485
        %v6487 = vpop.f32.mrb[0].mxu0
        %v6488 = vpop.f32.mrb[0].mxu0
        %v6489 = vadd.f32 0.0, %v6488
        %v6490 = vpop.f32.mrb[0].mxu0
        %6491 = vmatprep.mubr.bf16.mxu0 %v5723
        %6492 = vmatmul.mubr.bf16.gmra.mrb[0].mxu0 %v5722
        %v6493 = vpop.f32.mrb[0].mxu0
        %v6494 = vadd.f32 0.0, %v6493
        %v6495 = vpop.f32.mrb[0].mxu0
        %v6496 = vpop.f32.mrb[0].mxu0
        %v6497 = vadd.f32 0.0, %v6496
        %v6498 = vpop.f32.mrb[0].mxu0
        %6499 = vmatprep.mubr.bf16.mxu0 %v5732
        %6500 = vmatmul.mubr.bf16.gmra.mrb[0].mxu0 %v5731
        %v6501 = vpop.f32.mrb[0].mxu0
        %v6502 = vadd.f32 0.0, %v6501
        %v6503 = vpop.f32.mrb[0].mxu0
        %v6504 = vpop.f32.mrb[0].mxu0
        %v6505 = vadd.f32 0.0, %v6504
        %v6506 = vpop.f32.mrb[0].mxu0
        %6507 = vmatprep.mubr.bf16.mxu0 %v5741
        %6508 = vmatmul.mubr.bf16.gmra.mrb[0].mxu0 %v5740
        %v6509 = vpop.f32.mrb[0].mxu0
        %v6510 = vadd.f32 0.0, %v6509
        %v6511 = vpop.f32.mrb[0].mxu0
        %v6512 = vpop.f32.mrb[0].mxu0
        %v6513 = vadd.f32 0.0, %v6512
        %v6514 = vpop.f32.mrb[0].mxu0
        %6515 = vmatprep.mubr.bf16.mxu0 %v5750
        %6516 = vmatmul.mubr.bf16.gmra.mrb[0].mxu0 %v5749
        %v6517 = vpop.f32.mrb[0].mxu0
        %v6518 = vadd.f32 0.0, %v6517
        %v6519 = vpop.f32.mrb[0].mxu0
        %v6520 = vpop.f32.mrb[0].mxu0
        %v6521 = vadd.f32 0.0, %v6520
        %v6522 = vpop.f32.mrb[0].mxu0
        %6523 = vmatprep.mubr.bf16.mxu0 %v5759
        %6524 = vmatmul.mubr.bf16.gmra.mrb[0].mxu0 %v5758
        %v6525 = vpop.f32.mrb[0].mxu0
        %v6526 = vadd.f32 0.0, %v6525
        %v6527 = vpop.f32.mrb[0].mxu0
        %v6528 = vpop.f32.mrb[0].mxu0
        %v6529 = vadd.f32 0.0, %v6528
        %v6530 = vpop.f32.mrb[0].mxu0
        %6531 = vmatprep.mubr.bf16.mxu0 %v5768
        %6532 = vmatmul.mubr.bf16.gmra.mrb[0].mxu0 %v5767
        %v6533 = vpop.f32.mrb[0].mxu0
        %v6534 = vadd.f32 0.0, %v6533
        %v6535 = vpop.f32.mrb[0].mxu0
        %v6536 = vpop.f32.mrb[0].mxu0
        %v6537 = vadd.f32 0.0, %v6536
        %v6538 = vpop.f32.mrb[0].mxu0
        %6539 = vmatprep.mubr.bf16.mxu0 %v5777
        %6540 = vmatmul.mubr.bf16.gmra.mrb[0].mxu0 %v5776
        %v6541 = vpop.f32.mrb[0].mxu0
        %v6542 = vadd.f32 0.0, %v6541
        %v6543 = vpop.f32.mrb[0].mxu0
        %v6544 = vpop.f32.mrb[0].mxu0
        %v6545 = vadd.f32 0.0, %v6544
        %v6546 = vpop.f32.mrb[0].mxu0
        %6547 = vmatprep.mubr.bf16.mxu0 %v5786
        %6548 = vmatmul.mubr.bf16.gmra.mrb[0].mxu0 %v5785
        %v6549 = vpop.f32.mrb[0].mxu0
        %v6550 = vadd.f32 0.0, %v6549
        %v6551 = vpop.f32.mrb[0].mxu0
        %v6552 = vpop.f32.mrb[0].mxu0
        %v6553 = vadd.f32 0.0, %v6552
        %v6554 = vpop.f32.mrb[0].mxu0
        %6555 = vmatprep.mubr.bf16.mxu0 %v5795
        %6556 = vmatmul.mubr.bf16.gmra.mrb[0].mxu0 %v5794
        %v6557 = vpop.f32.mrb[0].mxu0
        %v6558 = vadd.f32 0.0, %v6557
        %v6559 = vpop.f32.mrb[0].mxu0
        %v6560 = vpop.f32.mrb[0].mxu0
        %v6561 = vadd.f32 0.0, %v6560
        %v6562 = vpop.f32.mrb[0].mxu0
        %6563 = vmatprep.mubr.bf16.mxu0 %v5804
        %6564 = vmatmul.mubr.bf16.gmra.mrb[0].mxu0 %v5803
        %v6565 = vpop.f32.mrb[0].mxu0
        %v6566 = vadd.f32 0.0, %v6565
        %v6567 = vpop.f32.mrb[0].mxu0
        %v6568 = vpop.f32.mrb[0].mxu0
        %v6569 = vadd.f32 0.0, %v6568
        %v6570 = vpop.f32.mrb[0].mxu0
        %6571 = vmatprep.mubr.bf16.mxu0 %v5813
        %6572 = vmatmul.mubr.bf16.gmra.mrb[0].mxu0 %v5812
        %v6573 = vpop.f32.mrb[0].mxu0
        %v6574 = vadd.f32 0.0, %v6573
        %v6575 = vpop.f32.mrb[0].mxu0
        %v6576 = vpop.f32.mrb[0].mxu0
        %v6577 = vadd.f32 0.0, %v6576
        %v6578 = vpop.f32.mrb[0].mxu0
        %6579 = vmatprep.mubr.bf16.mxu0 %v5822
        %6580 = vmatmul.mubr.bf16.gmra.mrb[0].mxu0 %v5821
        %v6581 = vpop.f32.mrb[0].mxu0
        %v6582 = vadd.f32 0.0, %v6581
        %v6583 = vpop.f32.mrb[0].mxu0
        %v6584 = vpop.f32.mrb[0].mxu0
        %v6585 = vadd.f32 0.0, %v6584
        %v6586 = vpop.f32.mrb[0].mxu0
        %6587 = vmatprep.mubr.bf16.mxu0 %v5831
        %6588 = vmatmul.mubr.bf16.gmra.mrb[0].mxu0 %v5830
        %v6589 = vpop.f32.mrb[0].mxu0
        %v6590 = vadd.f32 0.0, %v6589
        %v6591 = vpop.f32.mrb[0].mxu0
        %v6592 = vpop.f32.mrb[0].mxu0
        %v6593 = vadd.f32 0.0, %v6592
        %v6594 = vpop.f32.mrb[0].mxu0
        %6595 = vmatprep.mubr.bf16.mxu0 %v5840
        %6596 = vmatmul.mubr.bf16.gmra.mrb[0].mxu0 %v5839
        %v6597 = vpop.f32.mrb[0].mxu0
        %v6598 = vadd.f32 0.0, %v6597
        %v6599 = vpop.f32.mrb[0].mxu0
        %v6600 = vpop.f32.mrb[0].mxu0
        %v6601 = vadd.f32 0.0, %v6600
        %v6602 = vpop.f32.mrb[0].mxu0
        %6603 = vmatprep.mubr.bf16.mxu0 %v5849
        %6604 = vmatmul.mubr.bf16.gmra.mrb[0].mxu0 %v5848
        %v6605 = vpop.f32.mrb[0].mxu0
        %v6606 = vadd.f32 0.0, %v6605
        %v6607 = vpop.f32.mrb[0].mxu0
        %v6608 = vpop.f32.mrb[0].mxu0
        %v6609 = vadd.f32 0.0, %v6608
        %v6610 = vpop.f32.mrb[0].mxu0
        %6611 = vmatprep.mubr.bf16.mxu0 %v5858
        %6612 = vmatmul.mubr.bf16.gmra.mrb[0].mxu0 %v5857
        %v6613 = vpop.f32.mrb[0].mxu0
        %v6614 = vadd.f32 0.0, %v6613
        %v6615 = vpop.f32.mrb[0].mxu0
        %v6616 = vpop.f32.mrb[0].mxu0
        %v6617 = vadd.f32 0.0, %v6616
        %v6618 = vpop.f32.mrb[0].mxu0
        %6619 = vmatprep.mubr.bf16.mxu0 %v5867
        %6620 = vmatmul.mubr.bf16.gmra.mrb[0].mxu0 %v5866
        %v6621 = vpop.f32.mrb[0].mxu0
        %v6622 = vadd.f32 0.0, %v6621
        %v6623 = vpop.f32.mrb[0].mxu0
        %v6624 = vpop.f32.mrb[0].mxu0
        %v6625 = vadd.f32 0.0, %v6624
        %v6626 = vpop.f32.mrb[0].mxu0
        %6627 = vdwg.mxu0
        %6628 = vmatprep.subr.bf16.mxu0 0
        %6629 = vmatpush1.bf16.msra.mxu0 %v6323
        %6630 = vmatprep.subr.bf16.mxu0 0
        %6631 = vmatpush1.bf16.msra.mxu0 %v6324
        %6632 = vmatprep.subr.bf16.mxu0 0
        %6633 = vmatpush1.bf16.msra.mxu0 %v6325
        %6634 = vmatprep.subr.bf16.mxu0 0
        %6635 = vmatpush1.bf16.msra.mxu0 %v6326
        %6636 = vmatprep.subr.bf16.mxu0 0
        %6637 = vmatpush1.bf16.msra.mxu0 %v6327
        %6638 = vmatprep.subr.bf16.mxu0 0
        %6639 = vmatpush1.bf16.msra.mxu0 %v6328
        %6640 = vmatprep.subr.bf16.mxu0 0
        %6641 = vmatpush1.bf16.msra.mxu0 %v6329
        %6642 = vmatprep.subr.bf16.mxu0 0
        %6643 = vmatpush1.bf16.msra.mxu0 %v6330
        %6644 = vmatprep.subr.bf16.mxu0 0
        %6645 = vmatpush1.bf16.msra.mxu0 %v6331
        %6646 = vmatprep.subr.bf16.mxu0 0
        %6647 = vmatpush1.bf16.msra.mxu0 %v6332
        %6648 = vmatprep.subr.bf16.mxu0 0
        %6649 = vmatpush1.bf16.msra.mxu0 %v6333
        %6650 = vmatprep.subr.bf16.mxu0 0
        %6651 = vmatpush1.bf16.msra.mxu0 %v6334
        %6652 = vmatprep.subr.bf16.mxu0 0
        %6653 = vmatpush1.bf16.msra.mxu0 %v6335
        %6654 = vmatprep.subr.bf16.mxu0 0
        %6655 = vmatpush1.bf16.msra.mxu0 %v6336
        %6656 = vmatprep.subr.bf16.mxu0 0
        %6657 = vmatpush1.bf16.msra.mxu0 %v6337
        %6658 = vmatprep.subr.bf16.mxu0 0
        %6659 = vmatpush1.bf16.msra.mxu0 %v6338
        %6660 = vmatprep.mubr.bf16.mxu0 %v5716
        %6661 = vmatmul.mubr.bf16.gmra.mrb[0].mxu0 %v5715
        %v6662 = vpop.f32.mrb[0].mxu0
        %v6663 = vadd.f32 %v6486, %v6662
        %v6664 = vpop.f32.mrb[0].mxu0
        %v6665 = vpop.f32.mrb[0].mxu0
        %v6666 = vadd.f32 %v6489, %v6665
        %v6667 = vpop.f32.mrb[0].mxu0
        %6668 = vmatprep.mubr.bf16.mxu0 %v5725
        %6669 = vmatmul.mubr.bf16.gmra.mrb[0].mxu0 %v5724
        %v6670 = vpop.f32.mrb[0].mxu0
        %v6671 = vadd.f32 %v6494, %v6670
        %v6672 = vpop.f32.mrb[0].mxu0
        %v6673 = vpop.f32.mrb[0].mxu0
        %v6674 = vadd.f32 %v6497, %v6673
        %v6675 = vpop.f32.mrb[0].mxu0
        %6676 = vmatprep.mubr.bf16.mxu0 %v5734
        %6677 = vmatmul.mubr.bf16.gmra.mrb[0].mxu0 %v5733
        %v6678 = vpop.f32.mrb[0].mxu0
        %v6679 = vadd.f32 %v6502, %v6678
        %v6680 = vpop.f32.mrb[0].mxu0
        %v6681 = vpop.f32.mrb[0].mxu0
        %v6682 = vadd.f32 %v6505, %v6681
        %v6683 = vpop.f32.mrb[0].mxu0
        %6684 = vmatprep.mubr.bf16.mxu0 %v5743
        %6685 = vmatmul.mubr.bf16.gmra.mrb[0].mxu0 %v5742
        %v6686 = vpop.f32.mrb[0].mxu0
        %v6687 = vadd.f32 %v6510, %v6686
        %v6688 = vpop.f32.mrb[0].mxu0
        %v6689 = vpop.f32.mrb[0].mxu0
        %v6690 = vadd.f32 %v6513, %v6689
        %v6691 = vpop.f32.mrb[0].mxu0
        %6692 = vmatprep.mubr.bf16.mxu0 %v5752
        %6693 = vmatmul.mubr.bf16.gmra.mrb[0].mxu0 %v5751
        %v6694 = vpop.f32.mrb[0].mxu0
        %v6695 = vadd.f32 %v6518, %v6694
        %v6696 = vpop.f32.mrb[0].mxu0
        %v6697 = vpop.f32.mrb[0].mxu0
        %v6698 = vadd.f32 %v6521, %v6697
        %v6699 = vpop.f32.mrb[0].mxu0
        %6700 = vmatprep.mubr.bf16.mxu0 %v5761
        %6701 = vmatmul.mubr.bf16.gmra.mrb[0].mxu0 %v5760
        %v6702 = vpop.f32.mrb[0].mxu0
        %v6703 = vadd.f32 %v6526, %v6702
        %v6704 = vpop.f32.mrb[0].mxu0
        %v6705 = vpop.f32.mrb[0].mxu0
        %v6706 = vadd.f32 %v6529, %v6705
        %v6707 = vpop.f32.mrb[0].mxu0
        %6708 = vmatprep.mubr.bf16.mxu0 %v5770
        %6709 = vmatmul.mubr.bf16.gmra.mrb[0].mxu0 %v5769
        %v6710 = vpop.f32.mrb[0].mxu0
        %v6711 = vadd.f32 %v6534, %v6710
        %v6712 = vpop.f32.mrb[0].mxu0
        %v6713 = vpop.f32.mrb[0].mxu0
        %v6714 = vadd.f32 %v6537, %v6713
        %v6715 = vpop.f32.mrb[0].mxu0
        %6716 = vmatprep.mubr.bf16.mxu0 %v5779
        %6717 = vmatmul.mubr.bf16.gmra.mrb[0].mxu0 %v5778
        %v6718 = vpop.f32.mrb[0].mxu0
        %v6719 = vadd.f32 %v6542, %v6718
        %v6720 = vpop.f32.mrb[0].mxu0
        %v6721 = vpop.f32.mrb[0].mxu0
        %v6722 = vadd.f32 %v6545, %v6721
        %v6723 = vpop.f32.mrb[0].mxu0
        %6724 = vmatprep.mubr.bf16.mxu0 %v5788
        %6725 = vmatmul.mubr.bf16.gmra.mrb[0].mxu0 %v5787
        %v6726 = vpop.f32.mrb[0].mxu0
        %v6727 = vadd.f32 %v6550, %v6726
        %v6728 = vpop.f32.mrb[0].mxu0
        %v6729 = vpop.f32.mrb[0].mxu0
        %v6730 = vadd.f32 %v6553, %v6729
        %v6731 = vpop.f32.mrb[0].mxu0
        %6732 = vmatprep.mubr.bf16.mxu0 %v5797
        %6733 = vmatmul.mubr.bf16.gmra.mrb[0].mxu0 %v5796
        %v6734 = vpop.f32.mrb[0].mxu0
        %v6735 = vadd.f32 %v6558, %v6734
        %v6736 = vpop.f32.mrb[0].mxu0
        %v6737 = vpop.f32.mrb[0].mxu0
        %v6738 = vadd.f32 %v6561, %v6737
        %v6739 = vpop.f32.mrb[0].mxu0
        %6740 = vmatprep.mubr.bf16.mxu0 %v5806
        %6741 = vmatmul.mubr.bf16.gmra.mrb[0].mxu0 %v5805
        %v6742 = vpop.f32.mrb[0].mxu0
        %v6743 = vadd.f32 %v6566, %v6742
        %v6744 = vpop.f32.mrb[0].mxu0
        %v6745 = vpop.f32.mrb[0].mxu0
        %v6746 = vadd.f32 %v6569, %v6745
        %v6747 = vpop.f32.mrb[0].mxu0
        %6748 = vmatprep.mubr.bf16.mxu0 %v5815
        %6749 = vmatmul.mubr.bf16.gmra.mrb[0].mxu0 %v5814
        %v6750 = vpop.f32.mrb[0].mxu0
        %v6751 = vadd.f32 %v6574, %v6750
        %v6752 = vpop.f32.mrb[0].mxu0
        %v6753 = vpop.f32.mrb[0].mxu0
        %v6754 = vadd.f32 %v6577, %v6753
        %v6755 = vpop.f32.mrb[0].mxu0
        %6756 = vmatprep.mubr.bf16.mxu0 %v5824
        %6757 = vmatmul.mubr.bf16.gmra.mrb[0].mxu0 %v5823
        %v6758 = vpop.f32.mrb[0].mxu0
        %v6759 = vadd.f32 %v6582, %v6758
        %v6760 = vpop.f32.mrb[0].mxu0
        %v6761 = vpop.f32.mrb[0].mxu0
        %v6762 = vadd.f32 %v6585, %v6761
        %v6763 = vpop.f32.mrb[0].mxu0
        %6764 = vmatprep.mubr.bf16.mxu0 %v5833
        %6765 = vmatmul.mubr.bf16.gmra.mrb[0].mxu0 %v5832
        %v6766 = vpop.f32.mrb[0].mxu0
        %v6767 = vadd.f32 %v6590, %v6766
        %v6768 = vpop.f32.mrb[0].mxu0
        %v6769 = vpop.f32.mrb[0].mxu0
        %v6770 = vadd.f32 %v6593, %v6769
        %v6771 = vpop.f32.mrb[0].mxu0
        %6772 = vmatprep.mubr.bf16.mxu0 %v5842
        %6773 = vmatmul.mubr.bf16.gmra.mrb[0].mxu0 %v5841
        %v6774 = vpop.f32.mrb[0].mxu0
        %v6775 = vadd.f32 %v6598, %v6774
        %v6776 = vpop.f32.mrb[0].mxu0
        %v6777 = vpop.f32.mrb[0].mxu0
        %v6778 = vadd.f32 %v6601, %v6777
        %v6779 = vpop.f32.mrb[0].mxu0
        %6780 = vmatprep.mubr.bf16.mxu0 %v5851
        %6781 = vmatmul.mubr.bf16.gmra.mrb[0].mxu0 %v5850
        %v6782 = vpop.f32.mrb[0].mxu0
        %v6783 = vadd.f32 %v6606, %v6782
        %v6784 = vpop.f32.mrb[0].mxu0
        %v6785 = vpop.f32.mrb[0].mxu0
        %v6786 = vadd.f32 %v6609, %v6785
        %v6787 = vpop.f32.mrb[0].mxu0
        %6788 = vmatprep.mubr.bf16.mxu0 %v5860
        %6789 = vmatmul.mubr.bf16.gmra.mrb[0].mxu0 %v5859
        %v6790 = vpop.f32.mrb[0].mxu0
        %v6791 = vadd.f32 %v6614, %v6790
        %v6792 = vpop.f32.mrb[0].mxu0
        %v6793 = vpop.f32.mrb[0].mxu0
        %v6794 = vadd.f32 %v6617, %v6793
        %v6795 = vpop.f32.mrb[0].mxu0
        %6796 = vmatprep.mubr.bf16.mxu0 %v5869
        %6797 = vmatmul.mubr.bf16.gmra.mrb[0].mxu0 %v5868
        %v6798 = vpop.f32.mrb[0].mxu0
        %v6799 = vadd.f32 %v6622, %v6798
        %v6800 = vpop.f32.mrb[0].mxu0
        %v6801 = vpop.f32.mrb[0].mxu0
        %v6802 = vadd.f32 %v6625, %v6801
        %v6803 = vpop.f32.mrb[0].mxu0
        %6804 = vdwg.mxu0
        %6805 = vmatprep.subr.bf16.mxu0 0
        %6806 = vmatpush1.bf16.msra.mxu0 %v6339
        %6807 = vmatprep.subr.bf16.mxu0 0
        %6808 = vmatpush1.bf16.msra.mxu0 %v6340
        %6809 = vmatprep.subr.bf16.mxu0 0
        %6810 = vmatpush1.bf16.msra.mxu0 %v6341
        %6811 = vmatprep.subr.bf16.mxu0 0
        %6812 = vmatpush1.bf16.msra.mxu0 %v6342
        %6813 = vmatprep.subr.bf16.mxu0 0
        %6814 = vmatpush1.bf16.msra.mxu0 %v6343
        %6815 = vmatprep.subr.bf16.mxu0 0
        %6816 = vmatpush1.bf16.msra.mxu0 %v6344
        %6817 = vmatprep.subr.bf16.mxu0 0
        %6818 = vmatpush1.bf16.msra.mxu0 %v6345
        %6819 = vmatprep.subr.bf16.mxu0 0
        %6820 = vmatpush1.bf16.msra.mxu0 %v6346
        %6821 = vmatprep.subr.bf16.mxu0 0
        %6822 = vmatpush1.bf16.msra.mxu0 %v6347
        %6823 = vmatprep.subr.bf16.mxu0 0
        %6824 = vmatpush1.bf16.msra.mxu0 %v6348
        %6825 = vmatprep.subr.bf16.mxu0 0
        %6826 = vmatpush1.bf16.msra.mxu0 %v6349
        %6827 = vmatprep.subr.bf16.mxu0 0
        %6828 = vmatpush1.bf16.msra.mxu0 %v6350
        %6829 = vmatprep.subr.bf16.mxu0 0
        %6830 = vmatpush1.bf16.msra.mxu0 %v6351
        %6831 = vmatprep.subr.bf16.mxu0 0
        %6832 = vmatpush1.bf16.msra.mxu0 %v6352
        %6833 = vmatprep.subr.bf16.mxu0 0
        %6834 = vmatpush1.bf16.msra.mxu0 %v6353
        %6835 = vmatprep.subr.bf16.mxu0 0
        %6836 = vmatpush1.bf16.msra.mxu0 %v6354
        %6837 = vmatprep.mubr.bf16.mxu0 %v5718
        %6838 = vmatmul.mubr.bf16.gmra.mrb[0].mxu0 %v5717
        %v6839 = vpop.f32.mrb[0].mxu0
        %v6840 = vadd.f32 %v6663, %v6839
        %v6841 = vpop.f32.mrb[0].mxu0
        %v6842 = vpop.f32.mrb[0].mxu0
        %v6843 = vadd.f32 %v6666, %v6842
        %v6844 = vpop.f32.mrb[0].mxu0
        %6845 = vmatprep.mubr.bf16.mxu0 %v5727
        %6846 = vmatmul.mubr.bf16.gmra.mrb[0].mxu0 %v5726
        %v6847 = vpop.f32.mrb[0].mxu0
        %v6848 = vadd.f32 %v6671, %v6847
        %v6849 = vpop.f32.mrb[0].mxu0
        %v6850 = vpop.f32.mrb[0].mxu0
        %v6851 = vadd.f32 %v6674, %v6850
        %v6852 = vpop.f32.mrb[0].mxu0
        %6853 = vmatprep.mubr.bf16.mxu0 %v5736
        %6854 = vmatmul.mubr.bf16.gmra.mrb[0].mxu0 %v5735
        %v6855 = vpop.f32.mrb[0].mxu0
        %v6856 = vadd.f32 %v6679, %v6855
        %v6857 = vpop.f32.mrb[0].mxu0
        %v6858 = vpop.f32.mrb[0].mxu0
        %v6859 = vadd.f32 %v6682, %v6858
        %v6860 = vpop.f32.mrb[0].mxu0
        %6861 = vmatprep.mubr.bf16.mxu0 %v5745
        %6862 = vmatmul.mubr.bf16.gmra.mrb[0].mxu0 %v5744
        %v6863 = vpop.f32.mrb[0].mxu0
        %v6864 = vadd.f32 %v6687, %v6863
        %v6865 = vpop.f32.mrb[0].mxu0
        %v6866 = vpop.f32.mrb[0].mxu0
        %v6867 = vadd.f32 %v6690, %v6866
        %v6868 = vpop.f32.mrb[0].mxu0
        %6869 = vmatprep.mubr.bf16.mxu0 %v5754
        %6870 = vmatmul.mubr.bf16.gmra.mrb[0].mxu0 %v5753
        %v6871 = vpop.f32.mrb[0].mxu0
        %v6872 = vadd.f32 %v6695, %v6871
        %v6873 = vpop.f32.mrb[0].mxu0
        %v6874 = vpop.f32.mrb[0].mxu0
        %v6875 = vadd.f32 %v6698, %v6874
        %v6876 = vpop.f32.mrb[0].mxu0
        %6877 = vmatprep.mubr.bf16.mxu0 %v5763
        %6878 = vmatmul.mubr.bf16.gmra.mrb[0].mxu0 %v5762
        %v6879 = vpop.f32.mrb[0].mxu0
        %v6880 = vadd.f32 %v6703, %v6879
        %v6881 = vpop.f32.mrb[0].mxu0
        %v6882 = vpop.f32.mrb[0].mxu0
        %v6883 = vadd.f32 %v6706, %v6882
        %v6884 = vpop.f32.mrb[0].mxu0
        %6885 = vmatprep.mubr.bf16.mxu0 %v5772
        %6886 = vmatmul.mubr.bf16.gmra.mrb[0].mxu0 %v5771
        %v6887 = vpop.f32.mrb[0].mxu0
        %v6888 = vadd.f32 %v6711, %v6887
        %v6889 = vpop.f32.mrb[0].mxu0
        %v6890 = vpop.f32.mrb[0].mxu0
        %v6891 = vadd.f32 %v6714, %v6890
        %v6892 = vpop.f32.mrb[0].mxu0
        %6893 = vmatprep.mubr.bf16.mxu0 %v5781
        %6894 = vmatmul.mubr.bf16.gmra.mrb[0].mxu0 %v5780
        %v6895 = vpop.f32.mrb[0].mxu0
        %v6896 = vadd.f32 %v6719, %v6895
        %v6897 = vpop.f32.mrb[0].mxu0
        %v6898 = vpop.f32.mrb[0].mxu0
        %v6899 = vadd.f32 %v6722, %v6898
        %v6900 = vpop.f32.mrb[0].mxu0
        %6901 = vmatprep.mubr.bf16.mxu0 %v5790
        %6902 = vmatmul.mubr.bf16.gmra.mrb[0].mxu0 %v5789
        %v6903 = vpop.f32.mrb[0].mxu0
        %v6904 = vadd.f32 %v6727, %v6903
        %v6905 = vpop.f32.mrb[0].mxu0
        %v6906 = vpop.f32.mrb[0].mxu0
        %v6907 = vadd.f32 %v6730, %v6906
        %v6908 = vpop.f32.mrb[0].mxu0
        %6909 = vmatprep.mubr.bf16.mxu0 %v5799
        %6910 = vmatmul.mubr.bf16.gmra.mrb[0].mxu0 %v5798
        %v6911 = vpop.f32.mrb[0].mxu0
        %v6912 = vadd.f32 %v6735, %v6911
        %v6913 = vpop.f32.mrb[0].mxu0
        %v6914 = vpop.f32.mrb[0].mxu0
        %v6915 = vadd.f32 %v6738, %v6914
        %v6916 = vpop.f32.mrb[0].mxu0
        %6917 = vmatprep.mubr.bf16.mxu0 %v5808
        %6918 = vmatmul.mubr.bf16.gmra.mrb[0].mxu0 %v5807
        %v6919 = vpop.f32.mrb[0].mxu0
        %v6920 = vadd.f32 %v6743, %v6919
        %v6921 = vpop.f32.mrb[0].mxu0
        %v6922 = vpop.f32.mrb[0].mxu0
        %v6923 = vadd.f32 %v6746, %v6922
        %v6924 = vpop.f32.mrb[0].mxu0
        %6925 = vmatprep.mubr.bf16.mxu0 %v5817
        %6926 = vmatmul.mubr.bf16.gmra.mrb[0].mxu0 %v5816
        %v6927 = vpop.f32.mrb[0].mxu0
        %v6928 = vadd.f32 %v6751, %v6927
        %v6929 = vpop.f32.mrb[0].mxu0
        %v6930 = vpop.f32.mrb[0].mxu0
        %v6931 = vadd.f32 %v6754, %v6930
        %v6932 = vpop.f32.mrb[0].mxu0
        %6933 = vmatprep.mubr.bf16.mxu0 %v5826
        %6934 = vmatmul.mubr.bf16.gmra.mrb[0].mxu0 %v5825
        %v6935 = vpop.f32.mrb[0].mxu0
        %v6936 = vadd.f32 %v6759, %v6935
        %v6937 = vpop.f32.mrb[0].mxu0
        %v6938 = vpop.f32.mrb[0].mxu0
        %v6939 = vadd.f32 %v6762, %v6938
        %v6940 = vpop.f32.mrb[0].mxu0
        %6941 = vmatprep.mubr.bf16.mxu0 %v5835
        %6942 = vmatmul.mubr.bf16.gmra.mrb[0].mxu0 %v5834
        %v6943 = vpop.f32.mrb[0].mxu0
        %v6944 = vadd.f32 %v6767, %v6943
        %v6945 = vpop.f32.mrb[0].mxu0
        %v6946 = vpop.f32.mrb[0].mxu0
        %v6947 = vadd.f32 %v6770, %v6946
        %v6948 = vpop.f32.mrb[0].mxu0
        %6949 = vmatprep.mubr.bf16.mxu0 %v5844
        %6950 = vmatmul.mubr.bf16.gmra.mrb[0].mxu0 %v5843
        %v6951 = vpop.f32.mrb[0].mxu0
        %v6952 = vadd.f32 %v6775, %v6951
        %v6953 = vpop.f32.mrb[0].mxu0
        %v6954 = vpop.f32.mrb[0].mxu0
        %v6955 = vadd.f32 %v6778, %v6954
        %v6956 = vpop.f32.mrb[0].mxu0
        %6957 = vmatprep.mubr.bf16.mxu0 %v5853
        %6958 = vmatmul.mubr.bf16.gmra.mrb[0].mxu0 %v5852
        %v6959 = vpop.f32.mrb[0].mxu0
        %v6960 = vadd.f32 %v6783, %v6959
        %v6961 = vpop.f32.mrb[0].mxu0
        %v6962 = vpop.f32.mrb[0].mxu0
        %v6963 = vadd.f32 %v6786, %v6962
        %v6964 = vpop.f32.mrb[0].mxu0
        %6965 = vmatprep.mubr.bf16.mxu0 %v5862
        %6966 = vmatmul.mubr.bf16.gmra.mrb[0].mxu0 %v5861
        %v6967 = vpop.f32.mrb[0].mxu0
        %v6968 = vadd.f32 %v6791, %v6967
        %v6969 = vpop.f32.mrb[0].mxu0
        %v6970 = vpop.f32.mrb[0].mxu0
        %v6971 = vadd.f32 %v6794, %v6970
        %v6972 = vpop.f32.mrb[0].mxu0
        %6973 = vmatprep.mubr.bf16.mxu0 %v5871
        %6974 = vmatmul.mubr.bf16.gmra.mrb[0].mxu0 %v5870
        %v6975 = vpop.f32.mrb[0].mxu0
        %v6976 = vadd.f32 %v6799, %v6975
        %v6977 = vpop.f32.mrb[0].mxu0
        %v6978 = vpop.f32.mrb[0].mxu0
        %v6979 = vadd.f32 %v6802, %v6978
        %v6980 = vpop.f32.mrb[0].mxu0
        %6981 = vdwg.mxu0
        %6982 = vmatprep.subr.bf16.mxu0 0
        %6983 = vmatpush1.bf16.msra.mxu0 %v6355
        %6984 = vmatprep.subr.bf16.mxu0 0
        %6985 = vmatpush1.bf16.msra.mxu0 %v6356
        %6986 = vmatprep.subr.bf16.mxu0 0
        %6987 = vmatpush1.bf16.msra.mxu0 %v6357
        %6988 = vmatprep.subr.bf16.mxu0 0
        %6989 = vmatpush1.bf16.msra.mxu0 %v6358
        %6990 = vmatprep.subr.bf16.mxu0 0
        %6991 = vmatpush1.bf16.msra.mxu0 %v6359
        %6992 = vmatprep.subr.bf16.mxu0 0
        %6993 = vmatpush1.bf16.msra.mxu0 %v6360
        %6994 = vmatprep.subr.bf16.mxu0 0
        %6995 = vmatpush1.bf16.msra.mxu0 %v6361
        %6996 = vmatprep.subr.bf16.mxu0 0
        %6997 = vmatpush1.bf16.msra.mxu0 %v6362
        %6998 = vmatprep.subr.bf16.mxu0 0
        %6999 = vmatpush1.bf16.msra.mxu0 %v6363
        %7000 = vmatprep.subr.bf16.mxu0 0
        %7001 = vmatpush1.bf16.msra.mxu0 %v6364
        %7002 = vmatprep.subr.bf16.mxu0 0
        %7003 = vmatpush1.bf16.msra.mxu0 %v6365
        %7004 = vmatprep.subr.bf16.mxu0 0
        %7005 = vmatpush1.bf16.msra.mxu0 %v6366
        %7006 = vmatprep.subr.bf16.mxu0 0
        %7007 = vmatpush1.bf16.msra.mxu0 %v6367
        %7008 = vmatprep.subr.bf16.mxu0 0
        %7009 = vmatpush1.bf16.msra.mxu0 %v6368
        %7010 = vmatprep.subr.bf16.mxu0 0
        %7011 = vmatpush1.bf16.msra.mxu0 %v6369
        %7012 = vmatprep.subr.bf16.mxu0 0
        %7013 = vmatpush1.bf16.msra.mxu0 %v6370
        %7014 = vmatprep.mubr.bf16.mxu0 %v5720
        %7015 = vmatmul.mubr.bf16.gmra.mrb[0].mxu0 %v5719
        %v7016 = vpop.f32.mrb[0].mxu0
        %v7017 = vadd.f32 %v6840, %v7016
        %v7018 = vpop.f32.mrb[0].mxu0
        %v7019 = vpop.f32.mrb[0].mxu0
        %v7020 = vadd.f32 %v6843, %v7019
        %v7021 = vpop.f32.mrb[0].mxu0
        %7022 = vmatprep.mubr.bf16.mxu0 %v5729
        %7023 = vmatmul.mubr.bf16.gmra.mrb[0].mxu0 %v5728
        %v7024 = vpop.f32.mrb[0].mxu0
        %v7025 = vadd.f32 %v6848, %v7024
        %v7026 = vpop.f32.mrb[0].mxu0
        %v7027 = vpop.f32.mrb[0].mxu0
        %v7028 = vadd.f32 %v6851, %v7027
        %v7029 = vpop.f32.mrb[0].mxu0
        %7030 = vmatprep.mubr.bf16.mxu0 %v5738
        %7031 = vmatmul.mubr.bf16.gmra.mrb[0].mxu0 %v5737
        %v7032 = vpop.f32.mrb[0].mxu0
        %v7033 = vadd.f32 %v6856, %v7032
        %v7034 = vpop.f32.mrb[0].mxu0
        %v7035 = vpop.f32.mrb[0].mxu0
        %v7036 = vadd.f32 %v6859, %v7035
        %v7037 = vpop.f32.mrb[0].mxu0
        %7038 = vmatprep.mubr.bf16.mxu0 %v5747
        %7039 = vmatmul.mubr.bf16.gmra.mrb[0].mxu0 %v5746
        %v7040 = vpop.f32.mrb[0].mxu0
        %v7041 = vadd.f32 %v6864, %v7040
        %v7042 = vpop.f32.mrb[0].mxu0
        %v7043 = vpop.f32.mrb[0].mxu0
        %v7044 = vadd.f32 %v6867, %v7043
        %v7045 = vpop.f32.mrb[0].mxu0
        %7046 = vmatprep.mubr.bf16.mxu0 %v5756
        %7047 = vmatmul.mubr.bf16.gmra.mrb[0].mxu0 %v5755
        %v7048 = vpop.f32.mrb[0].mxu0
        %v7049 = vadd.f32 %v6872, %v7048
        %v7050 = vpop.f32.mrb[0].mxu0
        %v7051 = vpop.f32.mrb[0].mxu0
        %v7052 = vadd.f32 %v6875, %v7051
        %v7053 = vpop.f32.mrb[0].mxu0
        %7054 = vmatprep.mubr.bf16.mxu0 %v5765
        %7055 = vmatmul.mubr.bf16.gmra.mrb[0].mxu0 %v5764
        %v7056 = vpop.f32.mrb[0].mxu0
        %v7057 = vadd.f32 %v6880, %v7056
        %v7058 = vpop.f32.mrb[0].mxu0
        %v7059 = vpop.f32.mrb[0].mxu0
        %v7060 = vadd.f32 %v6883, %v7059
        %v7061 = vpop.f32.mrb[0].mxu0
        %7062 = vmatprep.mubr.bf16.mxu0 %v5774
        %7063 = vmatmul.mubr.bf16.gmra.mrb[0].mxu0 %v5773
        %v7064 = vpop.f32.mrb[0].mxu0
        %v7065 = vadd.f32 %v6888, %v7064
        %v7066 = vpop.f32.mrb[0].mxu0
        %v7067 = vpop.f32.mrb[0].mxu0
        %v7068 = vadd.f32 %v6891, %v7067
        %v7069 = vpop.f32.mrb[0].mxu0
        %7070 = vmatprep.mubr.bf16.mxu0 %v5783
        %7071 = vmatmul.mubr.bf16.gmra.mrb[0].mxu0 %v5782
        %v7072 = vpop.f32.mrb[0].mxu0
        %v7073 = vadd.f32 %v6896, %v7072
        %v7074 = vpop.f32.mrb[0].mxu0
        %v7075 = vpop.f32.mrb[0].mxu0
        %v7076 = vadd.f32 %v6899, %v7075
        %v7077 = vpop.f32.mrb[0].mxu0
        %7078 = vmatprep.mubr.bf16.mxu0 %v5792
        %7079 = vmatmul.mubr.bf16.gmra.mrb[0].mxu0 %v5791
        %v7080 = vpop.f32.mrb[0].mxu0
        %v7081 = vadd.f32 %v6904, %v7080
        %v7082 = vpop.f32.mrb[0].mxu0
        %v7083 = vpop.f32.mrb[0].mxu0
        %v7084 = vadd.f32 %v6907, %v7083
        %v7085 = vpop.f32.mrb[0].mxu0
        %7086 = vmatprep.mubr.bf16.mxu0 %v5801
        %7087 = vmatmul.mubr.bf16.gmra.mrb[0].mxu0 %v5800
        %v7088 = vpop.f32.mrb[0].mxu0
        %v7089 = vadd.f32 %v6912, %v7088
        %v7090 = vpop.f32.mrb[0].mxu0
        %v7091 = vpop.f32.mrb[0].mxu0
        %v7092 = vadd.f32 %v6915, %v7091
        %v7093 = vpop.f32.mrb[0].mxu0
        %7094 = vmatprep.mubr.bf16.mxu0 %v5810
        %7095 = vmatmul.mubr.bf16.gmra.mrb[0].mxu0 %v5809
        %v7096 = vpop.f32.mrb[0].mxu0
        %v7097 = vadd.f32 %v6920, %v7096
        %v7098 = vpop.f32.mrb[0].mxu0
        %v7099 = vpop.f32.mrb[0].mxu0
        %v7100 = vadd.f32 %v6923, %v7099
        %v7101 = vpop.f32.mrb[0].mxu0
        %7102 = vmatprep.mubr.bf16.mxu0 %v5819
        %7103 = vmatmul.mubr.bf16.gmra.mrb[0].mxu0 %v5818
        %v7104 = vpop.f32.mrb[0].mxu0
        %v7105 = vadd.f32 %v6928, %v7104
        %v7106 = vpop.f32.mrb[0].mxu0
        %v7107 = vpop.f32.mrb[0].mxu0
        %v7108 = vadd.f32 %v6931, %v7107
        %v7109 = vpop.f32.mrb[0].mxu0
        %7110 = vmatprep.mubr.bf16.mxu0 %v5828
        %7111 = vmatmul.mubr.bf16.gmra.mrb[0].mxu0 %v5827
        %v7112 = vpop.f32.mrb[0].mxu0
        %v7113 = vadd.f32 %v6936, %v7112
        %v7114 = vpop.f32.mrb[0].mxu0
        %v7115 = vpop.f32.mrb[0].mxu0
        %v7116 = vadd.f32 %v6939, %v7115
        %v7117 = vpop.f32.mrb[0].mxu0
        %7118 = vmatprep.mubr.bf16.mxu0 %v5837
        %7119 = vmatmul.mubr.bf16.gmra.mrb[0].mxu0 %v5836
        %v7120 = vpop.f32.mrb[0].mxu0
        %v7121 = vadd.f32 %v6944, %v7120
        %v7122 = vpop.f32.mrb[0].mxu0
        %v7123 = vpop.f32.mrb[0].mxu0
        %v7124 = vadd.f32 %v6947, %v7123
        %v7125 = vpop.f32.mrb[0].mxu0
        %7126 = vmatprep.mubr.bf16.mxu0 %v5846
        %7127 = vmatmul.mubr.bf16.gmra.mrb[0].mxu0 %v5845
        %v7128 = vpop.f32.mrb[0].mxu0
        %v7129 = vadd.f32 %v6952, %v7128
        %v7130 = vpop.f32.mrb[0].mxu0
        %v7131 = vpop.f32.mrb[0].mxu0
        %v7132 = vadd.f32 %v6955, %v7131
        %v7133 = vpop.f32.mrb[0].mxu0
        %7134 = vmatprep.mubr.bf16.mxu0 %v5855
        %7135 = vmatmul.mubr.bf16.gmra.mrb[0].mxu0 %v5854
        %v7136 = vpop.f32.mrb[0].mxu0
        %v7137 = vadd.f32 %v6960, %v7136
        %v7138 = vpop.f32.mrb[0].mxu0
        %v7139 = vpop.f32.mrb[0].mxu0
        %v7140 = vadd.f32 %v6963, %v7139
        %v7141 = vpop.f32.mrb[0].mxu0
        %7142 = vmatprep.mubr.bf16.mxu0 %v5864
        %7143 = vmatmul.mubr.bf16.gmra.mrb[0].mxu0 %v5863
        %v7144 = vpop.f32.mrb[0].mxu0
        %v7145 = vadd.f32 %v6968, %v7144
        %v7146 = vpop.f32.mrb[0].mxu0
        %v7147 = vpop.f32.mrb[0].mxu0
        %v7148 = vadd.f32 %v6971, %v7147
        %v7149 = vpop.f32.mrb[0].mxu0
        %7150 = vmatprep.mubr.bf16.mxu0 %v5873
        %7151 = vmatmul.mubr.bf16.gmra.mrb[0].mxu0 %v5872
        %v7152 = vpop.f32.mrb[0].mxu0
        %v7153 = vadd.f32 %v6976, %v7152
        %v7154 = vpop.f32.mrb[0].mxu0
        %v7155 = vpop.f32.mrb[0].mxu0
        %v7156 = vadd.f32 %v6979, %v7155
        %v7157 = vpop.f32.mrb[0].mxu0
        %7158 = vdwg.mxu0
        %7159 = vmatprep.subr.bf16.mxu0 0
        %7160 = vmatpush1.bf16.msra.mxu0 %v6371
        %7161 = vmatprep.subr.bf16.mxu0 0
        %7162 = vmatpush1.bf16.msra.mxu0 %v6372
        %7163 = vmatprep.subr.bf16.mxu0 0
        %7164 = vmatpush1.bf16.msra.mxu0 %v6373
        %7165 = vmatprep.subr.bf16.mxu0 0
        %7166 = vmatpush1.bf16.msra.mxu0 %v6374
        %7167 = vmatprep.subr.bf16.mxu0 0
        %7168 = vmatpush1.bf16.msra.mxu0 %v6375
        %7169 = vmatprep.subr.bf16.mxu0 0
        %7170 = vmatpush1.bf16.msra.mxu0 %v6376
        %7171 = vmatprep.subr.bf16.mxu0 0
        %7172 = vmatpush1.bf16.msra.mxu0 %v6377
        %7173 = vmatprep.subr.bf16.mxu0 0
        %7174 = vmatpush1.bf16.msra.mxu0 %v6378
        %7175 = vmatprep.subr.bf16.mxu0 0
        %7176 = vmatpush1.bf16.msra.mxu0 0
        %7177 = vmatprep.subr.bf16.mxu0 0
        %7178 = vmatpush1.bf16.msra.mxu0 0
        %7179 = vmatprep.subr.bf16.mxu0 0
        %7180 = vmatpush1.bf16.msra.mxu0 0
        %7181 = vmatprep.subr.bf16.mxu0 0
        %7182 = vmatpush1.bf16.msra.mxu0 0
        %7183 = vmatprep.subr.bf16.mxu0 0
        %7184 = vmatpush1.bf16.msra.mxu0 0
        %7185 = vmatprep.subr.bf16.mxu0 0
        %7186 = vmatpush1.bf16.msra.mxu0 0
        %7187 = vmatprep.subr.bf16.mxu0 0
        %7188 = vmatpush1.bf16.msra.mxu0 0
        %7189 = vmatprep.subr.bf16.mxu0 0
        %7190 = vmatpush1.bf16.msra.mxu0 0
        %7191 = vmatprep.mubr.bf16.mxu0 0
        %7192 = vmatmul.mubr.bf16.gmra.mrb[0].mxu0 %v5721
        %v7193 = vpop.f32.mrb[0].mxu0
        %v7194 = vadd.f32 %v7017, %v7193
        %v7195 = vpop.f32.mrb[0].mxu0
        %v7196 = vpop.f32.mrb[0].mxu0
        %v7197 = vadd.f32 %v7020, %v7196
        %v7198 = vpop.f32.mrb[0].mxu0
        %7199 = vmatprep.mubr.bf16.mxu0 0
        %7200 = vmatmul.mubr.bf16.gmra.mrb[0].mxu0 %v5730
        %v7201 = vpop.f32.mrb[0].mxu0
        %v7202 = vadd.f32 %v7025, %v7201
        %v7203 = vpop.f32.mrb[0].mxu0
        %v7204 = vpop.f32.mrb[0].mxu0
        %v7205 = vadd.f32 %v7028, %v7204
        %v7206 = vpop.f32.mrb[0].mxu0
        %7207 = vmatprep.mubr.bf16.mxu0 0
        %7208 = vmatmul.mubr.bf16.gmra.mrb[0].mxu0 %v5739
        %v7209 = vpop.f32.mrb[0].mxu0
        %v7210 = vadd.f32 %v7033, %v7209
        %v7211 = vpop.f32.mrb[0].mxu0
        %v7212 = vpop.f32.mrb[0].mxu0
        %v7213 = vadd.f32 %v7036, %v7212
        %v7214 = vpop.f32.mrb[0].mxu0
        %7215 = vmatprep.mubr.bf16.mxu0 0
        %7216 = vmatmul.mubr.bf16.gmra.mrb[0].mxu0 %v5748
        %v7217 = vpop.f32.mrb[0].mxu0
        %v7218 = vadd.f32 %v7041, %v7217
        %v7219 = vpop.f32.mrb[0].mxu0
        %v7220 = vpop.f32.mrb[0].mxu0
        %v7221 = vadd.f32 %v7044, %v7220
        %v7222 = vpop.f32.mrb[0].mxu0
        %7223 = vmatprep.mubr.bf16.mxu0 0
        %7224 = vmatmul.mubr.bf16.gmra.mrb[0].mxu0 %v5757
        %v7225 = vpop.f32.mrb[0].mxu0
        %v7226 = vadd.f32 %v7049, %v7225
        %v7227 = vpop.f32.mrb[0].mxu0
        %v7228 = vpop.f32.mrb[0].mxu0
        %v7229 = vadd.f32 %v7052, %v7228
        %v7230 = vpop.f32.mrb[0].mxu0
        %7231 = vmatprep.mubr.bf16.mxu0 0
        %7232 = vmatmul.mubr.bf16.gmra.mrb[0].mxu0 %v5766
        %v7233 = vpop.f32.mrb[0].mxu0
        %v7234 = vadd.f32 %v7057, %v7233
        %v7235 = vpop.f32.mrb[0].mxu0
        %v7236 = vpop.f32.mrb[0].mxu0
        %v7237 = vadd.f32 %v7060, %v7236
        %v7238 = vpop.f32.mrb[0].mxu0
        %7239 = vmatprep.mubr.bf16.mxu0 0
        %7240 = vmatmul.mubr.bf16.gmra.mrb[0].mxu0 %v5775
        %v7241 = vpop.f32.mrb[0].mxu0
        %v7242 = vadd.f32 %v7065, %v7241
        %v7243 = vpop.f32.mrb[0].mxu0
        %v7244 = vpop.f32.mrb[0].mxu0
        %v7245 = vadd.f32 %v7068, %v7244
        %v7246 = vpop.f32.mrb[0].mxu0
        %7247 = vmatprep.mubr.bf16.mxu0 0
        %7248 = vmatmul.mubr.bf16.gmra.mrb[0].mxu0 %v5784
        %v7249 = vpop.f32.mrb[0].mxu0
        %v7250 = vadd.f32 %v7073, %v7249
        %v7251 = vpop.f32.mrb[0].mxu0
        %v7252 = vpop.f32.mrb[0].mxu0
        %v7253 = vadd.f32 %v7076, %v7252
        %v7254 = vpop.f32.mrb[0].mxu0
        %7255 = vmatprep.mubr.bf16.mxu0 0
        %7256 = vmatmul.mubr.bf16.gmra.mrb[0].mxu0 %v5793
        %v7257 = vpop.f32.mrb[0].mxu0
        %v7258 = vadd.f32 %v7081, %v7257
        %v7259 = vpop.f32.mrb[0].mxu0
        %v7260 = vpop.f32.mrb[0].mxu0
        %v7261 = vadd.f32 %v7084, %v7260
        %v7262 = vpop.f32.mrb[0].mxu0
        %7263 = vmatprep.mubr.bf16.mxu0 0
        %7264 = vmatmul.mubr.bf16.gmra.mrb[0].mxu0 %v5802
        %v7265 = vpop.f32.mrb[0].mxu0
        %v7266 = vadd.f32 %v7089, %v7265
        %v7267 = vpop.f32.mrb[0].mxu0
        %v7268 = vpop.f32.mrb[0].mxu0
        %v7269 = vadd.f32 %v7092, %v7268
        %v7270 = vpop.f32.mrb[0].mxu0
        %7271 = vmatprep.mubr.bf16.mxu0 0
        %7272 = vmatmul.mubr.bf16.gmra.mrb[0].mxu0 %v5811
        %v7273 = vpop.f32.mrb[0].mxu0
        %v7274 = vadd.f32 %v7097, %v7273
        %v7275 = vpop.f32.mrb[0].mxu0
        %v7276 = vpop.f32.mrb[0].mxu0
        %v7277 = vadd.f32 %v7100, %v7276
        %v7278 = vpop.f32.mrb[0].mxu0
        %7279 = vmatprep.mubr.bf16.mxu0 0
        %7280 = vmatmul.mubr.bf16.gmra.mrb[0].mxu0 %v5820
        %v7281 = vpop.f32.mrb[0].mxu0
        %v7282 = vadd.f32 %v7105, %v7281
        %v7283 = vpop.f32.mrb[0].mxu0
        %v7284 = vpop.f32.mrb[0].mxu0
        %v7285 = vadd.f32 %v7108, %v7284
        %v7286 = vpop.f32.mrb[0].mxu0
        %7287 = vmatprep.mubr.bf16.mxu0 0
        %7288 = vmatmul.mubr.bf16.gmra.mrb[0].mxu0 %v5829
        %v7289 = vpop.f32.mrb[0].mxu0
        %v7290 = vadd.f32 %v7113, %v7289
        %v7291 = vpop.f32.mrb[0].mxu0
        %v7292 = vpop.f32.mrb[0].mxu0
        %v7293 = vadd.f32 %v7116, %v7292
        %v7294 = vpop.f32.mrb[0].mxu0
        %7295 = vmatprep.mubr.bf16.mxu0 0
        %7296 = vmatmul.mubr.bf16.gmra.mrb[0].mxu0 %v5838
        %v7297 = vpop.f32.mrb[0].mxu0
        %v7298 = vadd.f32 %v7121, %v7297
        %v7299 = vpop.f32.mrb[0].mxu0
        %v7300 = vpop.f32.mrb[0].mxu0
        %v7301 = vadd.f32 %v7124, %v7300
        %v7302 = vpop.f32.mrb[0].mxu0
        %7303 = vmatprep.mubr.bf16.mxu0 0
        %7304 = vmatmul.mubr.bf16.gmra.mrb[0].mxu0 %v5847
        %v7305 = vpop.f32.mrb[0].mxu0
        %v7306 = vadd.f32 %v7129, %v7305
        %v7307 = vpop.f32.mrb[0].mxu0
        %v7308 = vpop.f32.mrb[0].mxu0
        %v7309 = vadd.f32 %v7132, %v7308
        %v7310 = vpop.f32.mrb[0].mxu0
        %7311 = vmatprep.mubr.bf16.mxu0 0
        %7312 = vmatmul.mubr.bf16.gmra.mrb[0].mxu0 %v5856
        %v7313 = vpop.f32.mrb[0].mxu0
        %v7314 = vadd.f32 %v7137, %v7313
        %v7315 = vpop.f32.mrb[0].mxu0
        %v7316 = vpop.f32.mrb[0].mxu0
        %v7317 = vadd.f32 %v7140, %v7316
        %v7318 = vpop.f32.mrb[0].mxu0
        %7319 = vmatprep.mubr.bf16.mxu0 0
        %7320 = vmatmul.mubr.bf16.gmra.mrb[0].mxu0 %v5865
        %v7321 = vpop.f32.mrb[0].mxu0
        %v7322 = vadd.f32 %v7145, %v7321
        %v7323 = vpop.f32.mrb[0].mxu0
        %v7324 = vpop.f32.mrb[0].mxu0
        %v7325 = vadd.f32 %v7148, %v7324
        %v7326 = vpop.f32.mrb[0].mxu0
        %7327 = vmatprep.mubr.bf16.mxu0 0
        %7328 = vmatmul.mubr.bf16.gmra.mrb[0].mxu0 %v5874
        %v7329 = vpop.f32.mrb[0].mxu0
        %v7330 = vadd.f32 %v7153, %v7329
        %v7331 = vpop.f32.mrb[0].mxu0
        %v7332 = vpop.f32.mrb[0].mxu0
        %v7333 = vadd.f32 %v7156, %v7332
        %v7334 = vpop.f32.mrb[0].mxu0
        %7335 = vdwg.mxu0
        %v7336 = vld [vmem:[%s5] sm:$0x1]
        %v7338 = vlaneseq
        %v7339 = vshrl.u32 %v7338, 7
        %v7340 = vsub.s32 0, %v7339
        %v7341 = vrot.slane %v7336, %v7340
        %v7343 = vmul.f32 %v7194, %v7341
        %v7344 = vmul.f32 %v7197, %v7341
        %v7345 = vmul.f32 %v7202, %v7341
        %v7346 = vmul.f32 %v7205, %v7341
        %v7347 = vmul.f32 %v7210, %v7341
        %v7348 = vmul.f32 %v7213, %v7341
        %v7349 = vmul.f32 %v7218, %v7341
        %v7350 = vmul.f32 %v7221, %v7341
        %v7351 = vmul.f32 %v7226, %v7341
        %v7352 = vmul.f32 %v7229, %v7341
        %v7353 = vmul.f32 %v7234, %v7341
        %v7354 = vmul.f32 %v7237, %v7341
        %v7355 = vmul.f32 %v7242, %v7341
        %v7356 = vmul.f32 %v7245, %v7341
        %v7357 = vmul.f32 %v7250, %v7341
        %v7358 = vmul.f32 %v7253, %v7341
        %v7359 = vmul.f32 %v7258, %v7341
        %v7360 = vmul.f32 %v7261, %v7341
        %v7361 = vmul.f32 %v7266, %v7341
        %v7362 = vmul.f32 %v7269, %v7341
        %v7363 = vmul.f32 %v7274, %v7341
        %v7364 = vmul.f32 %v7277, %v7341
        %v7365 = vmul.f32 %v7282, %v7341
        %v7366 = vmul.f32 %v7285, %v7341
        %v7367 = vmul.f32 %v7290, %v7341
        %v7368 = vmul.f32 %v7293, %v7341
        %v7369 = vmul.f32 %v7298, %v7341
        %v7370 = vmul.f32 %v7301, %v7341
        %v7371 = vmul.f32 %v7306, %v7341
        %v7372 = vmul.f32 %v7309, %v7341
        %v7373 = vmul.f32 %v7314, %v7341
        %v7374 = vmul.f32 %v7317, %v7341
        %v7375 = vmul.f32 %v7322, %v7341
        %v7376 = vmul.f32 %v7325, %v7341
        %v7377 = vmul.f32 %v7330, %v7341
        %v7378 = vmul.f32 %v7333, %v7341
        %v7379 = vld [vmem:[%s6] sm:$0x1]
        %v7381 = vlaneseq
        %v7382 = vshrl.u32 %v7381, 7
        %v7383 = vsub.s32 0, %v7382
        %v7384 = vrot.slane %v7379, %v7383
        %v7386 = vadd.f32 %v7343, %v7384
        %v7387 = vadd.f32 %v7344, %v7384
        %v7388 = vadd.f32 %v7345, %v7384
        %v7389 = vadd.f32 %v7346, %v7384
        %v7390 = vadd.f32 %v7347, %v7384
        %v7391 = vadd.f32 %v7348, %v7384
        %v7392 = vadd.f32 %v7349, %v7384
        %v7393 = vadd.f32 %v7350, %v7384
        %v7394 = vadd.f32 %v7351, %v7384
        %v7395 = vadd.f32 %v7352, %v7384
        %v7396 = vadd.f32 %v7353, %v7384
        %v7397 = vadd.f32 %v7354, %v7384
        %v7398 = vadd.f32 %v7355, %v7384
        %v7399 = vadd.f32 %v7356, %v7384
        %v7400 = vadd.f32 %v7357, %v7384
        %v7401 = vadd.f32 %v7358, %v7384
        %v7402 = vadd.f32 %v7359, %v7384
        %v7403 = vadd.f32 %v7360, %v7384
        %v7404 = vadd.f32 %v7361, %v7384
        %v7405 = vadd.f32 %v7362, %v7384
        %v7406 = vadd.f32 %v7363, %v7384
        %v7407 = vadd.f32 %v7364, %v7384
        %v7408 = vadd.f32 %v7365, %v7384
        %v7409 = vadd.f32 %v7366, %v7384
        %v7410 = vadd.f32 %v7367, %v7384
        %v7411 = vadd.f32 %v7368, %v7384
        %v7412 = vadd.f32 %v7369, %v7384
        %v7413 = vadd.f32 %v7370, %v7384
        %v7414 = vadd.f32 %v7371, %v7384
        %v7415 = vadd.f32 %v7372, %v7384
        %v7416 = vadd.f32 %v7373, %v7384
        %v7417 = vadd.f32 %v7374, %v7384
        %v7418 = vadd.f32 %v7375, %v7384
        %v7419 = vadd.f32 %v7376, %v7384
        %v7420 = vadd.f32 %v7377, %v7384
        %v7421 = vadd.f32 %v7378, %v7384
        %v7422 = vmax.f32 %v7386, 0.0
        %v7423 = vmax.f32 %v7387, 0.0
        %v7424 = vmax.f32 %v7388, 0.0
        %v7425 = vmax.f32 %v7389, 0.0
        %v7426 = vmax.f32 %v7390, 0.0
        %v7427 = vmax.f32 %v7391, 0.0
        %v7428 = vmax.f32 %v7392, 0.0
        %v7429 = vmax.f32 %v7393, 0.0
        %v7430 = vmax.f32 %v7394, 0.0
        %v7431 = vmax.f32 %v7395, 0.0
        %v7432 = vmax.f32 %v7396, 0.0
        %v7433 = vmax.f32 %v7397, 0.0
        %v7434 = vmax.f32 %v7398, 0.0
        %v7435 = vmax.f32 %v7399, 0.0
        %v7436 = vmax.f32 %v7400, 0.0
        %v7437 = vmax.f32 %v7401, 0.0
        %v7438 = vmax.f32 %v7402, 0.0
        %v7439 = vmax.f32 %v7403, 0.0
        %v7440 = vmax.f32 %v7404, 0.0
        %v7441 = vmax.f32 %v7405, 0.0
        %v7442 = vmax.f32 %v7406, 0.0
        %v7443 = vmax.f32 %v7407, 0.0
        %v7444 = vmax.f32 %v7408, 0.0
        %v7445 = vmax.f32 %v7409, 0.0
        %v7446 = vmax.f32 %v7410, 0.0
        %v7447 = vmax.f32 %v7411, 0.0
        %v7448 = vmax.f32 %v7412, 0.0
        %v7449 = vmax.f32 %v7413, 0.0
        %v7450 = vmax.f32 %v7414, 0.0
        %v7451 = vmax.f32 %v7415, 0.0
        %v7452 = vmax.f32 %v7416, 0.0
        %v7453 = vmax.f32 %v7417, 0.0
        %v7454 = vmax.f32 %v7418, 0.0
        %v7455 = vmax.f32 %v7419, 0.0
        %v7456 = vmax.f32 %v7420, 0.0
        %v7457 = vmax.f32 %v7421, 0.0
        %7458 = vst [vmem:[%s286] sm:$0xff] %v7422
        %7459 = vst [vmem:[%s286 + $0x8] sm:$0xff] %v7423
        %7460 = vst [vmem:[%s286 + $0x10] sm:$0xff] %v7424
        %7461 = vst [vmem:[%s286 + $0x18] sm:$0xff] %v7425
        %7462 = vst [vmem:[%s286 + $0x20] sm:$0xff] %v7426
        %7463 = vst [vmem:[%s286 + $0x28] sm:$0xff] %v7427
        %7464 = vst [vmem:[%s286 + $0x30] sm:$0xff] %v7428
        %7465 = vst [vmem:[%s286 + $0x38] sm:$0xff] %v7429
        %7466 = vst [vmem:[%s286 + $0x40] sm:$0xff] %v7430
        %7467 = vst [vmem:[%s286 + $0x48] sm:$0xff] %v7431
        %7468 = vst [vmem:[%s286 + $0x50] sm:$0xff] %v7432
        %7469 = vst [vmem:[%s286 + $0x58] sm:$0xff] %v7433
        %7470 = vst [vmem:[%s286 + $0x60] sm:$0xff] %v7434
        %7471 = vst [vmem:[%s286 + $0x68] sm:$0xff] %v7435
        %7472 = vst [vmem:[%s286 + $0x70] sm:$0xff] %v7436
        %7473 = vst [vmem:[%s286 + $0x78] sm:$0xff] %v7437
        %7474 = vst [vmem:[%s286 + $0x80] sm:$0xff] %v7438
        %7475 = vst [vmem:[%s286 + $0x88] sm:$0xff] %v7439
        %7476 = vst [vmem:[%s286 + $0x90] sm:$0xff] %v7440
        %7477 = vst [vmem:[%s286 + $0x98] sm:$0xff] %v7441
        %7478 = vst [vmem:[%s286 + $0xa0] sm:$0xff] %v7442
        %7479 = vst [vmem:[%s286 + $0xa8] sm:$0xff] %v7443
        %7480 = vst [vmem:[%s286 + $0xb0] sm:$0xff] %v7444
        %7481 = vst [vmem:[%s286 + $0xb8] sm:$0xff] %v7445
        %7482 = vst [vmem:[%s286 + $0xc0] sm:$0xff] %v7446
        %7483 = vst [vmem:[%s286 + $0xc8] sm:$0xff] %v7447
        %7484 = vst [vmem:[%s286 + $0xd0] sm:$0xff] %v7448
        %7485 = vst [vmem:[%s286 + $0xd8] sm:$0xff] %v7449
        %7486 = vst [vmem:[%s286 + $0xe0] sm:$0xff] %v7450
        %7487 = vst [vmem:[%s286 + $0xe8] sm:$0xff] %v7451
        %7488 = vst [vmem:[%s286 + $0xf0] sm:$0xff] %v7452
        %7489 = vst [vmem:[%s286 + $0xf8] sm:$0xff] %v7453
        %7490 = vst [vmem:[%s286 + $0x100] sm:$0xff] %v7454
        %7491 = vst [vmem:[%s286 + $0x108] sm:$0xff] %v7455
        %7492 = vst [vmem:[%s286 + $0x110] sm:$0xff] %v7456
        %7493 = vst [vmem:[%s286 + $0x118] sm:$0xff] %v7457
        %s7494 = sand.u32 %s182, 1
        %s7495 = scalar_lea.sflag [#allocation7], %s7494
        %s7496 = sand.u32 %s182, 1
        %s7497 = smul.addr %s7496, 288
        %s7498 = scalar_lea.vmem [#allocation8], %s7497
        // Predicated region
        $region53: #{tpu_custom_call.1} parent=47 // pred_check
          %p7499 = pneg %p192
        $region54: #{tpu_custom_call.1} parent=47 // pred_check_branch
          %7501 = sbr.rel (%p7499) target = $region56
        $region55: #{tpu_custom_call.1} parent=47 // pred_region
          %s7503 = ssub.s32 4608, 4608
          %7504 = vsyncadd %s7495, %s7503
          %s7505 = smul.addr %s22, 36
          %s7506 = smul.addr %s7505, 128
          %s7507 = scalar_lea.hbm %s7, %s7506
          %s7508 = sshll.u32 %s7498, 4
          %s7509 = int_to_ptr.vmem [resolvable:$true] %s7508
          %7514 = dma.vmem_to_hbm [thread:$0]  %s7509, 4608, %s7507, %s7495, 128, 128, 8
        $region56: #{tpu_custom_call.1} parent=47 // pred_fallthru
          _
      $region48: #{tpu_custom_call.1} parent=5 // pred_fallthru
        _
      %p7515 = scmp.le.s32.totalorder 2, %s17
      // Predicated region
      $region57: #{tpu_custom_call.1} parent=5 // pred_check
        %p7516 = pneg %p7515
      $region58: #{tpu_custom_call.1} parent=5 // pred_check_branch
        %7518 = sbr.rel (%p7516) target = $region60
      $region59: #{tpu_custom_call.1} parent=5 // pred_region
        %s7519 = ssub.s32 %s17, 2
        // Predicated region
        $region61: #{tpu_custom_call.1} parent=59 // pred_check
          %p7520 = pneg %p198
        $region62: #{tpu_custom_call.1} parent=59 // pred_check_branch
          %7522 = sbr.rel (%p7520) target = $region64
        $region63: #{tpu_custom_call.1} parent=59 // pred_region
          %s7523 = sand.u32 %s183, 1
          %s7524 = scalar_lea.sflag [#allocation7], %s7523
          %s7525 = sand.u32 %s183, 1
          %s7526 = smul.addr %s7525, 288
          %s7527 = scalar_lea.vmem [#allocation8], %s7526
          %7528 = dma.done %s7524, 4608
        $region64: #{tpu_custom_call.1} parent=59 // pred_fallthru
          _
      $region60: #{tpu_custom_call.1} parent=5 // pred_fallthru
        _
    $region6: #{tpu_custom_call.1} parent=1 // loop_footer
      %s21 = sadd.s32 1, %s17
    $region7: #{tpu_custom_call.1} parent=1 // loop_footer_branch
      %16 = sbr.rel target = $region3
    $region8: #{tpu_custom_call.1} parent=1 // loop_exit
      _
    %7529 = vsyncpa [#allocation6], 1
    %s7530 = scalar_lea.sflag [#allocation6], 1
    %7531 = vsyncpa %s7530, 1
    %7532 = vsyncpa [#allocation7], 1
    %s7533 = scalar_lea.sflag [#allocation7], 1
    %7534 = vsyncpa %s7533, 1

</llo_original>
